<compile_context>
chip_gen: v7x
topology: tpu7x:2x2x1
jax: 0.10.0
libtpu: 0.0.40
codegen_flags: <defaults>
</compile_context>

<pallas_src>
import functools

import jax
import jax.numpy as jnp
from jax import lax
from jax.experimental import pallas as pl
from jax.experimental.pallas import tpu as pltpu

_COMPUTE_DTYPE = jnp.bfloat16   # MXU-native; f32 accumulation inside the kernel
_LRELU_SLOPE = 0.2


# ---------------------------------------------------------------------------
# Pallas kernel: in-VMEM im2col assembly + fused GEMM + bias + LeakyReLU.
# One grid step = one image.
#   qf_ref   : (s, kk, NI*OW) bf16  W-partial im2col, H-phase split (kk = Cin*k)
#   w_ref    : (Cout, k*kk)   bf16  weights, rows ordered (kh, ci, kw)
#   b_ref    : (Cout, 1)      f32
#   o_ref    : (Cout, m)      bf16  m = OH*OW (lane-dense output)
#   patch_ref: (k*kk, m)      bf16  VMEM scratch: full im2col block
# ---------------------------------------------------------------------------
def _conv_gemm_kernel(qf_ref, w_ref, b_ref, o_ref, patch_ref, *,
                      k, s, kk, m, ow, slope):
    # Assemble the (K, M) patch block in VMEM: each kh tap group is a
    # contiguous static slice of the flattened (phase-row, ow) axis, because
    # row index = s*(oh + qh) + rh  =>  flat offset = qh*OW + (oh*OW + ow).
    for kh in range(k):                       # static unroll (k <= 7)
        qh, rh = kh // s, kh % s
        patch_ref[kh * kk:(kh + 1) * kk, :] = qf_ref[rh, :, qh * ow:qh * ow + m]
    # Single full-K MXU GEMM with f32 accumulation, fused bias + LeakyReLU.
    acc = jnp.dot(w_ref[...], patch_ref[...], preferred_element_type=jnp.float32)
    acc = acc + b_ref[...]                    # (Cout, 1) lane-broadcast
    acc = jnp.where(acc >= 0, acc, slope * acc)
    o_ref[...] = acc.astype(o_ref.dtype)


def conv2d_lrelu_pallas(x, w, b, *, stride, padding, slope=_LRELU_SLOPE):
    """x: (B, Cin, H, W) bf16; w: (Cout, Cin, k, k) f32; b: (Cout,) f32.
    Returns LeakyReLU(conv2d(x, w) + b) as (B, Cout, OH, OW) bf16."""
    bsz, cin, h, wdim = x.shape
    cout, cin_w, k, k2 = w.shape
    assert cin == cin_w and k == k2
    s, p = stride, padding
    oh = (h + 2 * p - k) // s + 1
    ow = (wdim + 2 * p - k) // s + 1
    qh_max = -(-k // s)                 # ceil(k/s): kh groups per phase
    ni = oh - 1 + qh_max                # phase rows needed
    hp = s * ni                         # padded height (multiple of s)
    wp = s * (ow - 1) + k               # padded width actually needed
    pad_bot = hp - h - p
    pad_right = wp - wdim - p
    assert pad_bot >= 0 and pad_right >= 0, (pad_bot, pad_right)

    xpad = jnp.pad(x, ((0, 0), (0, 0), (p, pad_bot), (p, pad_right)))

    # W-direction partial im2col + H-phase split (the only HBM-materialized
    # expansion; ~k/s blowup).  qf[b, rh, ci*k+kw, i*OW+ow] = xpad[b, ci,
    # s*i+rh, s*ow+kw].
    per_phase = []
    for rh in range(s):
        taps = [xpad[:, :, rh:rh + s * (ni - 1) + 1:s,
                     kw:kw + s * (ow - 1) + 1:s]              # (B, Cin, NI, OW)
                for kw in range(k)]
        per_phase.append(jnp.stack(taps, axis=2))             # (B, Cin, k, NI, OW)
    qf = jnp.stack(per_phase, axis=1)                         # (B, s, Cin, k, NI, OW)
    qf = qf.reshape(bsz, s, cin * k, ni * ow)

    # Weight rows must match the patch row order (kh major, then (ci, kw)).
    w2 = w.transpose(0, 2, 1, 3).reshape(cout, k * cin * k).astype(x.dtype)
    b2 = b.reshape(cout, 1).astype(jnp.float32)

    kk = cin * k
    m = oh * ow
    kernel = functools.partial(_conv_gemm_kernel, k=k, s=s, kk=kk, m=m, ow=ow,
                               slope=slope)
    out = pl.pallas_call(
        kernel,
        out_shape=jax.ShapeDtypeStruct((bsz, cout, m), x.dtype),
        grid_spec=pltpu.PrefetchScalarGridSpec(
            num_scalar_prefetch=0,
            grid=(bsz,),                                       # >= 2 steps (v7x)
            in_specs=[
                pl.BlockSpec((None, s, kk, ni * ow), lambda i: (i, 0, 0, 0)),
                pl.BlockSpec((cout, k * kk), lambda i: (0, 0)),
                pl.BlockSpec((cout, 1), lambda i: (0, 0)),
            ],
            out_specs=pl.BlockSpec((None, cout, m), lambda i: (i, 0, 0)),
            scratch_shapes=[pltpu.VMEM((k * kk, m), x.dtype)],
        ),
        compiler_params=pltpu.CompilerParams(
            dimension_semantics=("parallel",)),
    )(qf, w2, b2)
    return out.reshape(bsz, cout, oh, ow)


# ---------------------------------------------------------------------------
# Tiny tail layers (3-5): plain XLA conv (review item 8 — a standalone
# pallas_call would be pure launch overhead at M = 900/256/64).
# ---------------------------------------------------------------------------
def conv2d_lrelu_xla(x, w, b, *, stride, padding, slope=_LRELU_SLOPE):
    cout = w.shape[0]
    y = lax.conv_general_dilated(
        x, w.astype(x.dtype),
        window_strides=(stride, stride),
        padding=[(padding, padding), (padding, padding)],
        dimension_numbers=("NCHW", "OIHW", "NCHW"),
        preferred_element_type=jnp.float32)
    y = y + b.reshape(1, cout, 1, 1)
    y = jnp.where(y >= 0, y, slope * y)
    return y.astype(x.dtype)


# ---------------------------------------------------------------------------
# SSTN parameters (deterministic init) and forward
# ---------------------------------------------------------------------------
_CONV_CFG = [  # (Cout, Cin, K, stride, padding) — matches the nn.Sequential
    (16, 2, 7, 3, 3),
    (16, 16, 3, 2, 1),
    (16, 16, 5, 3, 2),
    (16, 16, 3, 2, 1),
    (16, 16, 3, 2, 1),
]
_N_PALLAS_LAYERS = 2   # layers 1-2 carry essentially all the bytes/compute


def init_params(key):
    params = {"conv_w": [], "conv_b": []}
    keys = jax.random.split(key, 2 * len(_CONV_CFG) + 1)
    for i, (co, ci, k, _, _) in enumerate(_CONV_CFG):
        fan_in = ci * k * k
        bound = 1.0 / jnp.sqrt(fan_in)
        params["conv_w"].append(
            jax.random.uniform(keys[2 * i], (co, ci, k, k), jnp.float32,
                               -bound, bound))
        params["conv_b"].append(
            jax.random.uniform(keys[2 * i + 1], (co,), jnp.float32,
                               -bound, bound))
    fc_bound = 1.0 / jnp.sqrt(16 * 4 * 4 * 2)
    params["fc_w"] = jax.random.uniform(keys[-1], (2, 16 * 4 * 4 * 2),
                                        jnp.float32, -fc_bound, fc_bound)
    return params


def sstn_forward(params, inp):
    """inp: (N, 2, 256, 256) float32 -> affine (N, 2, 3)."""
    n = inp.shape[0]
    # Cast to bf16 FIRST so the crop/upsample/concat preamble moves half the bytes.
    x16 = inp.astype(_COMPUTE_DTYPE)
    # input_d = F.interpolate(input[:, :, 64:192, 64:192], scale_factor=2)
    # (mode='nearest' -> 2x2 pixel replication)
    crop = x16[:, :, 64:192, 64:192]
    inp_d = jnp.repeat(jnp.repeat(crop, 2, axis=2), 2, axis=3)
    # localization0 shares weights across both streams -> run once on the
    # stacked (2N, 2, 256, 256) batch; NCHW kept end-to-end (no HBM transpose).
    x = jnp.concatenate([x16, inp_d], axis=0)

    for i, (_, _, _, s, p) in enumerate(_CONV_CFG):
        wi, bi = params["conv_w"][i], params["conv_b"][i]
        if i < _N_PALLAS_LAYERS:
            x = conv2d_lrelu_pallas(x, wi, bi, stride=s, padding=p)
        else:
            x = conv2d_lrelu_xla(x, wi, bi, stride=s, padding=p)
    # x: (2N, 16, 4, 4)

    feat = x.reshape(2 * n, 16 * 4 * 4).astype(jnp.float32)     # (2N, 256)
    x2 = jnp.concatenate([feat[:n], feat[n:]], axis=1)          # (N, 512)

    # fc_loc0: Linear(512 -> 2, bias=False). Tiny -> plain dot (no launch cost).
    theta = jnp.dot(x2, params["fc_w"].T).reshape(n, 2, 1)
    eye = jnp.broadcast_to(jnp.eye(2, dtype=theta.dtype), (n, 2, 2))
    affine = jnp.concatenate([eye, theta], axis=2)              # (N, 2, 3)
    return affine


if __name__ == "__main__":
    key = jax.random.PRNGKey(0)
    pkey, xkey = jax.random.split(key)
    params = init_params(pkey)
    # The module's forward hard-codes a 64:192 crop and a 16*4*4 flatten,
    # which require 256x256 spatial input with 2 channels; batch kept small.
    x = jax.random.normal(xkey, (2, 2, 256, 256), jnp.float32)

    affine = jax.block_until_ready(jax.jit(sstn_forward)(params, x))
    assert affine.shape == (2, 2, 3), affine.shape
    print("KERNEL_OK")
</pallas_src>

<mosaic_0001>
module attributes {stable_mosaic.version = 11 : i64} {
  func.func @_conv_gemm_kernel(%arg0: i32, %arg1: memref<1x3x14x7568xbf16, #tpu.memory_space<vmem>>, %arg2: memref<16x98xbf16, #tpu.memory_space<vmem>>, %arg3: memref<16x1xf32, #tpu.memory_space<vmem>>, %arg4: memref<1x16x7396xbf16, #tpu.memory_space<vmem>>, %arg5: memref<98x7396xbf16, #tpu.memory_space<vmem>>) attributes {dimension_semantics = [#tpu.dimension_semantics<parallel>], iteration_bounds = array<i64: 4>, scalar_prefetch = 0 : i64, scratch_operands = 1 : i64, tpu.core_type = #tpu.core_type<tc>, window_params = [{transform_indices = @transform_0, window_bounds = array<i64: 1, 3, 14, 7568>}, {pipeline_mode = #tpu.pipeline_mode<synchronous>, transform_indices = @transform_1, window_bounds = array<i64: 16, 98>}, {pipeline_mode = #tpu.pipeline_mode<synchronous>, transform_indices = @transform_2, window_bounds = array<i64: 16, 1>}, {transform_indices = @transform_3, window_bounds = array<i64: 1, 16, 7396>}]} {
    %c0 = arith.constant 0 : index
    %c0_0 = arith.constant 0 : index
    %c0_1 = arith.constant 0 : index
    %c0_2 = arith.constant 0 : index
    %0 = vector.load %arg1[%c0, %c0_0, %c0_1, %c0_2] : memref<1x3x14x7568xbf16, #tpu.memory_space<vmem>>, vector<1x1x14x7396xbf16>
    %1 = vector.shape_cast %0 : vector<1x1x14x7396xbf16> to vector<14x7396xbf16>
    %c0_3 = arith.constant 0 : index
    %c0_4 = arith.constant 0 : index
    %2 = vector.load %arg5[%c0_3, %c0_4] : memref<98x7396xbf16, #tpu.memory_space<vmem>>, vector<14x7396xbf16>
    tpu.vector_store %arg5[%c0_3, %c0_4], %1 {strides = array<i32>} : memref<98x7396xbf16, #tpu.memory_space<vmem>>, vector<14x7396xbf16>,
    %c0_5 = arith.constant 0 : index
    %c1 = arith.constant 1 : index
    %c0_6 = arith.constant 0 : index
    %c0_7 = arith.constant 0 : index
    %3 = vector.load %arg1[%c0_5, %c1, %c0_6, %c0_7] : memref<1x3x14x7568xbf16, #tpu.memory_space<vmem>>, vector<1x1x14x7396xbf16>
    %4 = vector.shape_cast %3 : vector<1x1x14x7396xbf16> to vector<14x7396xbf16>
    %c14 = arith.constant 14 : index
    %c0_8 = arith.constant 0 : index
    %5 = vector.load %arg5[%c14, %c0_8] : memref<98x7396xbf16, #tpu.memory_space<vmem>>, vector<14x7396xbf16>
    tpu.vector_store %arg5[%c14, %c0_8], %4 {strides = array<i32>} : memref<98x7396xbf16, #tpu.memory_space<vmem>>, vector<14x7396xbf16>,
    %c0_9 = arith.constant 0 : index
    %c2 = arith.constant 2 : index
    %c0_10 = arith.constant 0 : index
    %c0_11 = arith.constant 0 : index
    %6 = vector.load %arg1[%c0_9, %c2, %c0_10, %c0_11] : memref<1x3x14x7568xbf16, #tpu.memory_space<vmem>>, vector<1x1x14x7396xbf16>
    %7 = vector.shape_cast %6 : vector<1x1x14x7396xbf16> to vector<14x7396xbf16>
    %c28 = arith.constant 28 : index
    %c0_12 = arith.constant 0 : index
    %8 = vector.load %arg5[%c28, %c0_12] : memref<98x7396xbf16, #tpu.memory_space<vmem>>, vector<14x7396xbf16>
    tpu.vector_store %arg5[%c28, %c0_12], %7 {strides = array<i32>} : memref<98x7396xbf16, #tpu.memory_space<vmem>>, vector<14x7396xbf16>,
    %c0_13 = arith.constant 0 : index
    %c0_14 = arith.constant 0 : index
    %c0_15 = arith.constant 0 : index
    %c86 = arith.constant 86 : index
    %9 = vector.load %arg1[%c0_13, %c0_14, %c0_15, %c86] : memref<1x3x14x7568xbf16, #tpu.memory_space<vmem>>, vector<1x1x14x7396xbf16>
    %10 = vector.shape_cast %9 : vector<1x1x14x7396xbf16> to vector<14x7396xbf16>
    %c42 = arith.constant 42 : index
    %c0_16 = arith.constant 0 : index
    %11 = vector.load %arg5[%c42, %c0_16] : memref<98x7396xbf16, #tpu.memory_space<vmem>>, vector<14x7396xbf16>
    tpu.vector_store %arg5[%c42, %c0_16], %10 {strides = array<i32>} : memref<98x7396xbf16, #tpu.memory_space<vmem>>, vector<14x7396xbf16>,
    %c0_17 = arith.constant 0 : index
    %c1_18 = arith.constant 1 : index
    %c0_19 = arith.constant 0 : index
    %c86_20 = arith.constant 86 : index
    %12 = vector.load %arg1[%c0_17, %c1_18, %c0_19, %c86_20] : memref<1x3x14x7568xbf16, #tpu.memory_space<vmem>>, vector<1x1x14x7396xbf16>
    %13 = vector.shape_cast %12 : vector<1x1x14x7396xbf16> to vector<14x7396xbf16>
    %c56 = arith.constant 56 : index
    %c0_21 = arith.constant 0 : index
    %14 = vector.load %arg5[%c56, %c0_21] : memref<98x7396xbf16, #tpu.memory_space<vmem>>, vector<14x7396xbf16>
    tpu.vector_store %arg5[%c56, %c0_21], %13 {strides = array<i32>} : memref<98x7396xbf16, #tpu.memory_space<vmem>>, vector<14x7396xbf16>,
    %c0_22 = arith.constant 0 : index
    %c2_23 = arith.constant 2 : index
    %c0_24 = arith.constant 0 : index
    %c86_25 = arith.constant 86 : index
    %15 = vector.load %arg1[%c0_22, %c2_23, %c0_24, %c86_25] : memref<1x3x14x7568xbf16, #tpu.memory_space<vmem>>, vector<1x1x14x7396xbf16>
    %16 = vector.shape_cast %15 : vector<1x1x14x7396xbf16> to vector<14x7396xbf16>
    %c70 = arith.constant 70 : index
    %c0_26 = arith.constant 0 : index
    %17 = vector.load %arg5[%c70, %c0_26] : memref<98x7396xbf16, #tpu.memory_space<vmem>>, vector<14x7396xbf16>
    tpu.vector_store %arg5[%c70, %c0_26], %16 {strides = array<i32>} : memref<98x7396xbf16, #tpu.memory_space<vmem>>, vector<14x7396xbf16>,
    %c0_27 = arith.constant 0 : index
    %c0_28 = arith.constant 0 : index
    %c0_29 = arith.constant 0 : index
    %c172 = arith.constant 172 : index
    %18 = vector.load %arg1[%c0_27, %c0_28, %c0_29, %c172] : memref<1x3x14x7568xbf16, #tpu.memory_space<vmem>>, vector<1x1x14x7396xbf16>
    %19 = vector.shape_cast %18 : vector<1x1x14x7396xbf16> to vector<14x7396xbf16>
    %c84 = arith.constant 84 : index
    %c0_30 = arith.constant 0 : index
    %20 = vector.load %arg5[%c84, %c0_30] : memref<98x7396xbf16, #tpu.memory_space<vmem>>, vector<14x7396xbf16>
    tpu.vector_store %arg5[%c84, %c0_30], %19 {strides = array<i32>} : memref<98x7396xbf16, #tpu.memory_space<vmem>>, vector<14x7396xbf16>,
    %c0_31 = arith.constant 0 : index
    %c0_32 = arith.constant 0 : index
    %21 = vector.load %arg2[%c0_31, %c0_32] : memref<16x98xbf16, #tpu.memory_space<vmem>>, vector<16x98xbf16>
    %c0_33 = arith.constant 0 : index
    %c0_34 = arith.constant 0 : index
    %22 = vector.load %arg5[%c0_33, %c0_34] : memref<98x7396xbf16, #tpu.memory_space<vmem>>, vector<98x7396xbf16>
    %cst = arith.constant dense<0.000000e+00> : vector<16x7396xf32>
    %23 = tpu.matmul %21, %22, %cst {dimension_numbers = #tpu.dot_dimension_numbers<[1], [0], [0], [1], [0, 0, 1, 1], [], []>} : vector<16x98xbf16>, vector<98x7396xbf16>, vector<16x7396xf32> -> vector<16x7396xf32>
    %c0_35 = arith.constant 0 : index
    %c0_36 = arith.constant 0 : index
    %24 = vector.load %arg3[%c0_35, %c0_36] : memref<16x1xf32, #tpu.memory_space<vmem>>, vector<16x1xf32>
    %25 = vector.broadcast %24 : vector<16x1xf32> to vector<16x7396xf32>
    %26 = arith.addf %23, %25 : vector<16x7396xf32>
    %cst_37 = arith.constant 0.000000e+00 : f32
    %27 = vector.broadcast %cst_37 : f32 to vector<16x7396xf32>
    %28 = arith.cmpf oge, %26, %27 : vector<16x7396xf32>
    %cst_38 = arith.constant 2.000000e-01 : f32
    %29 = vector.broadcast %cst_38 : f32 to vector<16x7396xf32>
    %30 = arith.mulf %29, %26 : vector<16x7396xf32>
    %31 = arith.select %28, %26, %30 : vector<16x7396xi1>, vector<16x7396xf32>
    %32 = arith.truncf %31 : vector<16x7396xf32> to vector<16x7396xbf16>
    %c0_39 = arith.constant 0 : index
    %c0_40 = arith.constant 0 : index
    %c0_41 = arith.constant 0 : index
    %33 = vector.load %arg4[%c0_39, %c0_40, %c0_41] : memref<1x16x7396xbf16, #tpu.memory_space<vmem>>, vector<1x16x7396xbf16>
    %34 = vector.shape_cast %33 : vector<1x16x7396xbf16> to vector<16x7396xbf16>
    %35 = vector.shape_cast %32 : vector<16x7396xbf16> to vector<1x16x7396xbf16>
    tpu.vector_store %arg4[%c0_39, %c0_40, %c0_41], %35 {strides = array<i32>} : memref<1x16x7396xbf16, #tpu.memory_space<vmem>>, vector<1x16x7396xbf16>,
    return
  }
  func.func @transform_0(%arg0: i32) -> (i32, i32, i32, i32) {
    %c0_i32 = arith.constant 0 : i32
    %c0_i32_0 = arith.constant 0 : i32
    %c0_i32_1 = arith.constant 0 : i32
    %c0_i32_2 = arith.constant 0 : i32
    return %arg0, %c0_i32, %c0_i32_0, %c0_i32_1 : i32, i32, i32, i32
  }
  func.func @transform_1(%arg0: i32) -> (i32, i32) {
    %c0_i32 = arith.constant 0 : i32
    %c0_i32_0 = arith.constant 0 : i32
    %c0_i32_1 = arith.constant 0 : i32
    return %c0_i32, %c0_i32_0 : i32, i32
  }
  func.func @transform_2(%arg0: i32) -> (i32, i32) {
    %c0_i32 = arith.constant 0 : i32
    %c0_i32_0 = arith.constant 0 : i32
    %c0_i32_1 = arith.constant 0 : i32
    return %c0_i32, %c0_i32_0 : i32, i32
  }
  func.func @transform_3(%arg0: i32) -> (i32, i32, i32) {
    %c0_i32 = arith.constant 0 : i32
    %c0_i32_0 = arith.constant 0 : i32
    %c0_i32_1 = arith.constant 0 : i32
    return %arg0, %c0_i32, %c0_i32_0 : i32, i32, i32
  }
}

module attributes {stable_mosaic.version = 11 : i64} {
  func.func @_conv_gemm_kernel(%arg0: i32, %arg1: memref<1x2x48x1892xbf16, #tpu.memory_space<vmem>>, %arg2: memref<16x144xbf16, #tpu.memory_space<vmem>>, %arg3: memref<16x1xf32, #tpu.memory_space<vmem>>, %arg4: memref<1x16x1849xbf16, #tpu.memory_space<vmem>>, %arg5: memref<144x1849xbf16, #tpu.memory_space<vmem>>) attributes {dimension_semantics = [#tpu.dimension_semantics<parallel>], iteration_bounds = array<i64: 4>, scalar_prefetch = 0 : i64, scratch_operands = 1 : i64, tpu.core_type = #tpu.core_type<tc>, window_params = [{transform_indices = @transform_0, window_bounds = array<i64: 1, 2, 48, 1892>}, {pipeline_mode = #tpu.pipeline_mode<synchronous>, transform_indices = @transform_1, window_bounds = array<i64: 16, 144>}, {pipeline_mode = #tpu.pipeline_mode<synchronous>, transform_indices = @transform_2, window_bounds = array<i64: 16, 1>}, {transform_indices = @transform_3, window_bounds = array<i64: 1, 16, 1849>}]} {
    %c0 = arith.constant 0 : index
    %c0_0 = arith.constant 0 : index
    %c0_1 = arith.constant 0 : index
    %c0_2 = arith.constant 0 : index
    %0 = vector.load %arg1[%c0, %c0_0, %c0_1, %c0_2] : memref<1x2x48x1892xbf16, #tpu.memory_space<vmem>>, vector<1x1x48x1849xbf16>
    %1 = vector.shape_cast %0 : vector<1x1x48x1849xbf16> to vector<48x1849xbf16>
    %c0_3 = arith.constant 0 : index
    %c0_4 = arith.constant 0 : index
    %2 = vector.load %arg5[%c0_3, %c0_4] : memref<144x1849xbf16, #tpu.memory_space<vmem>>, vector<48x1849xbf16>
    tpu.vector_store %arg5[%c0_3, %c0_4], %1 {strides = array<i32>} : memref<144x1849xbf16, #tpu.memory_space<vmem>>, vector<48x1849xbf16>,
    %c0_5 = arith.constant 0 : index
    %c1 = arith.constant 1 : index
    %c0_6 = arith.constant 0 : index
    %c0_7 = arith.constant 0 : index
    %3 = vector.load %arg1[%c0_5, %c1, %c0_6, %c0_7] : memref<1x2x48x1892xbf16, #tpu.memory_space<vmem>>, vector<1x1x48x1849xbf16>
    %4 = vector.shape_cast %3 : vector<1x1x48x1849xbf16> to vector<48x1849xbf16>
    %c48 = arith.constant 48 : index
    %c0_8 = arith.constant 0 : index
    %5 = vector.load %arg5[%c48, %c0_8] : memref<144x1849xbf16, #tpu.memory_space<vmem>>, vector<48x1849xbf16>
    tpu.vector_store %arg5[%c48, %c0_8], %4 {strides = array<i32>} : memref<144x1849xbf16, #tpu.memory_space<vmem>>, vector<48x1849xbf16>,
    %c0_9 = arith.constant 0 : index
    %c0_10 = arith.constant 0 : index
    %c0_11 = arith.constant 0 : index
    %c43 = arith.constant 43 : index
    %6 = vector.load %arg1[%c0_9, %c0_10, %c0_11, %c43] : memref<1x2x48x1892xbf16, #tpu.memory_space<vmem>>, vector<1x1x48x1849xbf16>
    %7 = vector.shape_cast %6 : vector<1x1x48x1849xbf16> to vector<48x1849xbf16>
    %c96 = arith.constant 96 : index
    %c0_12 = arith.constant 0 : index
    %8 = vector.load %arg5[%c96, %c0_12] : memref<144x1849xbf16, #tpu.memory_space<vmem>>, vector<48x1849xbf16>
    tpu.vector_store %arg5[%c96, %c0_12], %7 {strides = array<i32>} : memref<144x1849xbf16, #tpu.memory_space<vmem>>, vector<48x1849xbf16>,
    %c0_13 = arith.constant 0 : index
    %c0_14 = arith.constant 0 : index
    %9 = vector.load %arg2[%c0_13, %c0_14] : memref<16x144xbf16, #tpu.memory_space<vmem>>, vector<16x144xbf16>
    %c0_15 = arith.constant 0 : index
    %c0_16 = arith.constant 0 : index
    %10 = vector.load %arg5[%c0_15, %c0_16] : memref<144x1849xbf16, #tpu.memory_space<vmem>>, vector<144x1849xbf16>
    %cst = arith.constant dense<0.000000e+00> : vector<16x1849xf32>
    %11 = tpu.matmul %9, %10, %cst {dimension_numbers = #tpu.dot_dimension_numbers<[1], [0], [0], [1], [0, 0, 1, 1], [], []>} : vector<16x144xbf16>, vector<144x1849xbf16>, vector<16x1849xf32> -> vector<16x1849xf32>
    %c0_17 = arith.constant 0 : index
    %c0_18 = arith.constant 0 : index
    %12 = vector.load %arg3[%c0_17, %c0_18] : memref<16x1xf32, #tpu.memory_space<vmem>>, vector<16x1xf32>
    %13 = vector.broadcast %12 : vector<16x1xf32> to vector<16x1849xf32>
    %14 = arith.addf %11, %13 : vector<16x1849xf32>
    %cst_19 = arith.constant 0.000000e+00 : f32
    %15 = vector.broadcast %cst_19 : f32 to vector<16x1849xf32>
    %16 = arith.cmpf oge, %14, %15 : vector<16x1849xf32>
    %cst_20 = arith.constant 2.000000e-01 : f32
    %17 = vector.broadcast %cst_20 : f32 to vector<16x1849xf32>
    %18 = arith.mulf %17, %14 : vector<16x1849xf32>
    %19 = arith.select %16, %14, %18 : vector<16x1849xi1>, vector<16x1849xf32>
    %20 = arith.truncf %19 : vector<16x1849xf32> to vector<16x1849xbf16>
    %c0_21 = arith.constant 0 : index
    %c0_22 = arith.constant 0 : index
    %c0_23 = arith.constant 0 : index
    %21 = vector.load %arg4[%c0_21, %c0_22, %c0_23] : memref<1x16x1849xbf16, #tpu.memory_space<vmem>>, vector<1x16x1849xbf16>
    %22 = vector.shape_cast %21 : vector<1x16x1849xbf16> to vector<16x1849xbf16>
    %23 = vector.shape_cast %20 : vector<16x1849xbf16> to vector<1x16x1849xbf16>
    tpu.vector_store %arg4[%c0_21, %c0_22, %c0_23], %23 {strides = array<i32>} : memref<1x16x1849xbf16, #tpu.memory_space<vmem>>, vector<1x16x1849xbf16>,
    return
  }
  func.func @transform_0(%arg0: i32) -> (i32, i32, i32, i32) {
    %c0_i32 = arith.constant 0 : i32
    %c0_i32_0 = arith.constant 0 : i32
    %c0_i32_1 = arith.constant 0 : i32
    %c0_i32_2 = arith.constant 0 : i32
    return %arg0, %c0_i32, %c0_i32_0, %c0_i32_1 : i32, i32, i32, i32
  }
  func.func @transform_1(%arg0: i32) -> (i32, i32) {
    %c0_i32 = arith.constant 0 : i32
    %c0_i32_0 = arith.constant 0 : i32
    %c0_i32_1 = arith.constant 0 : i32
    return %c0_i32, %c0_i32_0 : i32, i32
  }
  func.func @transform_2(%arg0: i32) -> (i32, i32) {
    %c0_i32 = arith.constant 0 : i32
    %c0_i32_0 = arith.constant 0 : i32
    %c0_i32_1 = arith.constant 0 : i32
    return %c0_i32, %c0_i32_0 : i32, i32
  }
  func.func @transform_3(%arg0: i32) -> (i32, i32, i32) {
    %c0_i32 = arith.constant 0 : i32
    %c0_i32_0 = arith.constant 0 : i32
    %c0_i32_1 = arith.constant 0 : i32
    return %arg0, %c0_i32, %c0_i32_0 : i32, i32, i32
  }
}

</mosaic_0001>

<llo_original>
// kernel: sstn_forward.2
$region0: #{sstn_forward.2}
  #allocation0 [shape = 'u32[]', space=smem, size = 0x4, offset = 0x4, fixed_abs, tag = 'smem constant byte address 0x4 - core index']
  #allocation1 [shape = 'u32[144,128]{1,0:T(1,128)}', space=vmem, size = 0x12000, scoped, tag = 'internal scratch']
  #allocation2 [shape = 'bf16[98,7396]{1,0:T(8,128)(2,1)}', space=vmem, size = 0x179000, scoped, tag = 'scratch operand']
  %s0 = inlined_call_operand.vmem [shape: bf16[4,3,14,7568], index: 0, kind: input, shape index: {}]
  %s1 = inlined_call_operand.vmem [shape: bf16[16,98], index: 1, kind: input, shape index: {}]
  %s2 = inlined_call_operand.vmem [shape: f32[16,1], index: 2, kind: input, shape index: {}]
  %s3 = inlined_call_operand.vmem [shape: bf16[4,16,7396], index: 3, kind: output, shape index: {}]
  %s4 = sld [smem:[#allocation0]]
  $region45: #{sstn_forward.2} parent=0
    _
  %s6 = ssub.s32 1, %s4
  %s7 = scalar_select 0, %s6, %s4
  loop: start=0, step=1, limit=6
  $region2: #{sstn_forward.2} parent=0 // loop_pre_header
    _
  $region3: #{sstn_forward.2} parent=0 // loop_header
    %s9 = sphi 0, %s13
    %p10 = scmp.ge.s32.totalorder %s9, 6
    %s19 = sphi 0, %s21
    %s22 = sphi 0, %s19
    %s23 = sphi 0, %s22
    %s39 = sphi 0, %s23
    %s43 = sphi 0, %s43
    %s45 = sphi 0, %s43
    %s46 = sphi 0, %s45
    %s60 = sphi 0, %s46
    %s64 = sphi 0, %s64
    %s66 = sphi 0, %s64
    %s67 = sphi 0, %s66
    %s81 = sphi 0, %s67
    %s87 = sphi 0, %s89
    %s90 = sphi 0, %s87
    %s91 = sphi 0, %s90
    %s107 = sphi 0, %s91
  $region4: #{sstn_forward.2} parent=0 // loop_header_branch
    %12 = sbr.rel (%p10) target = $region8
  $region5: #{sstn_forward.2} parent=0 // loop_body
    %s14 = ssub.s32 %s9, 1
    %s15 = ssub.s32 %s9, 2
    %s16 = sadd.s32 %s9, 1
    %s17 = ssub.s32 %s9, %s16
    %p18 = scmp.eq.s32.totalorder %s17, 0
    %s20 = sadd.s32 %s19, 1
    %s21 = scalar_select %p18, %s19, %s20
    %p24 = pneg %p18
    %p25 = scmp.eq.s32.totalorder %s9, 3
    %p26 = por %p24, %p25
    %p27 = scmp.ne.s32.totalorder %s19, %s22
    %p28 = scmp.eq.s32.totalorder %s9, 0
    %p29 = por %p27, %p28
    %p30 = scmp.ne.s32.totalorder %s19, %s22
    %p31 = scmp.eq.s32.totalorder %s14, 3
    %p32 = por %p30, %p31
    %p33 = scmp.ne.s32.totalorder %s22, %s23
    %p34 = scmp.eq.s32.totalorder %s14, 0
    %p35 = por %p33, %p34
    %p36 = scmp.ne.s32.totalorder %s22, %s23
    %p37 = scmp.eq.s32.totalorder %s15, 3
    %p38 = por %p36, %p37
    %p40 = scmp.ne.s32.totalorder %s23, %s39
    %p41 = scmp.eq.s32.totalorder %s15, 0
    %p42 = por %p40, %p41
    %s44 = sadd.s32 %s43, 1
    %p47 = scmp.eq.s32.totalorder %s9, 3
    %p48 = scmp.ne.s32.totalorder %s43, %s45
    %p49 = scmp.eq.s32.totalorder %s9, 0
    %p50 = por %p48, %p49
    %p51 = scmp.ne.s32.totalorder %s43, %s45
    %p52 = scmp.eq.s32.totalorder %s14, 3
    %p53 = por %p51, %p52
    %p54 = scmp.ne.s32.totalorder %s45, %s46
    %p55 = scmp.eq.s32.totalorder %s14, 0
    %p56 = por %p54, %p55
    %p57 = scmp.ne.s32.totalorder %s45, %s46
    %p58 = scmp.eq.s32.totalorder %s15, 3
    %p59 = por %p57, %p58
    %p61 = scmp.ne.s32.totalorder %s46, %s60
    %p62 = scmp.eq.s32.totalorder %s15, 0
    %p63 = por %p61, %p62
    %s65 = sadd.s32 %s64, 1
    %p68 = scmp.eq.s32.totalorder %s9, 3
    %p69 = scmp.ne.s32.totalorder %s64, %s66
    %p70 = scmp.eq.s32.totalorder %s9, 0
    %p71 = por %p69, %p70
    %p72 = scmp.ne.s32.totalorder %s64, %s66
    %p73 = scmp.eq.s32.totalorder %s14, 3
    %p74 = por %p72, %p73
    %p75 = scmp.ne.s32.totalorder %s66, %s67
    %p76 = scmp.eq.s32.totalorder %s14, 0
    %p77 = por %p75, %p76
    %p78 = scmp.ne.s32.totalorder %s66, %s67
    %p79 = scmp.eq.s32.totalorder %s15, 3
    %p80 = por %p78, %p79
    %p82 = scmp.ne.s32.totalorder %s67, %s81
    %p83 = scmp.eq.s32.totalorder %s15, 0
    %p84 = por %p82, %p83
    %s85 = ssub.s32 %s9, %s16
    %p86 = scmp.eq.s32.totalorder %s85, 0
    %s88 = sadd.s32 %s87, 1
    %s89 = scalar_select %p86, %s87, %s88
    %p92 = pneg %p86
    %p93 = scmp.eq.s32.totalorder %s9, 3
    %p94 = por %p92, %p93
    %p95 = scmp.ne.s32.totalorder %s87, %s90
    %p96 = scmp.eq.s32.totalorder %s9, 0
    %p97 = por %p95, %p96
    %p98 = scmp.ne.s32.totalorder %s87, %s90
    %p99 = scmp.eq.s32.totalorder %s14, 3
    %p100 = por %p98, %p99
    %p101 = scmp.ne.s32.totalorder %s90, %s91
    %p102 = scmp.eq.s32.totalorder %s14, 0
    %p103 = por %p101, %p102
    %p104 = scmp.ne.s32.totalorder %s90, %s91
    %p105 = scmp.eq.s32.totalorder %s15, 3
    %p106 = por %p104, %p105
    %p108 = scmp.ne.s32.totalorder %s91, %s107
    %p109 = scmp.eq.s32.totalorder %s15, 0
    %p110 = por %p108, %p109
    %p111 = scmp.le.s32.totalorder 1, %s9
    %p112 = scmp.lt.s32.totalorder %s9, 5
    %p113 = pnand %p111, %p112
    %p114 = pneg %p113
    // Predicated region
    $region9: #{sstn_forward.2} parent=5 // pred_check
      _
    $region10: #{sstn_forward.2} parent=5 // pred_check_branch
      %116 = sbr.rel (%p113) target = $region12
    $region11: #{sstn_forward.2} parent=5 // pred_region
      %s117 = ssub.s32 %s9, 1
      // Predicated region
      $region13: #{sstn_forward.2} parent=11 // pred_check
        %p118 = pneg %p56
      $region14: #{sstn_forward.2} parent=11 // pred_check_branch
        %120 = sbr.rel (%p118) target = $region16
      $region15: #{sstn_forward.2} parent=11 // pred_region
        _
      $region16: #{sstn_forward.2} parent=11 // pred_fallthru
        _
      // Predicated region
      $region17: #{sstn_forward.2} parent=11 // pred_check
        %p121 = pneg %p77
      $region18: #{sstn_forward.2} parent=11 // pred_check_branch
        %123 = sbr.rel (%p121) target = $region20
      $region19: #{sstn_forward.2} parent=11 // pred_region
        _
      $region20: #{sstn_forward.2} parent=11 // pred_fallthru
        _
    $region12: #{sstn_forward.2} parent=5 // pred_fallthru
      _
    %p124 = scmp.lt.s32.totalorder %s9, 4
    // Predicated region
    $region21: #{sstn_forward.2} parent=5 // pred_check
      %p125 = pneg %p124
    $region22: #{sstn_forward.2} parent=5 // pred_check_branch
      %127 = sbr.rel (%p125) target = $region24
    $region23: #{sstn_forward.2} parent=5 // pred_region
      // Predicated region
      $region25: #{sstn_forward.2} parent=23 // pred_check
        %p128 = pneg %p29
      $region26: #{sstn_forward.2} parent=23 // pred_check_branch
        %130 = sbr.rel (%p128) target = $region28
      $region27: #{sstn_forward.2} parent=23 // pred_region
        %p131 = scmp.lt.s32.totalorder %s9, 3
        %s132 = scalar_select %p131, %s9, 3
        %s133 = smul.addr %s132, 360
        %s134 = smul.addr %s133, 4
        %s135 = scalar_lea.vmem %s0, %s134
      $region28: #{sstn_forward.2} parent=23 // pred_fallthru
        _
    $region24: #{sstn_forward.2} parent=5 // pred_fallthru
      _
    %p136 = scmp.le.s32.totalorder 1, %s9
    %p137 = scmp.lt.s32.totalorder %s9, 5
    %p138 = pnand %p136, %p137
    %p139 = pneg %p138
    // Predicated region
    $region29: #{sstn_forward.2} parent=5 // pred_check
      _
    $region30: #{sstn_forward.2} parent=5 // pred_check_branch
      %141 = sbr.rel (%p138) target = $region32
    $region31: #{sstn_forward.2} parent=5 // pred_region
      %s142 = ssub.s32 %s9, 1
      %p143 = scmp.lt.s32.totalorder %s14, 3
      %s144 = scalar_select %p143, %s14, 3
      %s145 = smul.addr %s144, 360
      %s146 = smul.addr %s145, 4
      %s147 = scalar_lea.vmem %s0, %s146
      %p148 = pneg %p35
      %p149 = pneg %p32
      %p150 = pneg %p56
      %p151 = pneg %p53
      %p152 = pneg %p77
      %p153 = pneg %p74
      %p154 = pneg %p103
      %p155 = pneg %p100
      %p156 = scmp.lt.s32.totalorder %s14, 3
      %s157 = scalar_select %p156, %s14, 3
      %s158 = smul.addr %s157, 116
      %s159 = smul.addr %s158, 4
      %s160 = scalar_lea.vmem %s3, %s159
      %p161 = scmp.lt.s32.totalorder %s14, 3
      %s162 = scalar_select %p161, %s14, 3
      %s163 = smul.addr %s162, 360
      %s164 = smul.addr %s163, 4
      %s165 = scalar_lea.vmem %s0, %s164
      %p166 = scmp.lt.s32.totalorder %s14, 3
      %s167 = scalar_select %p166, %s14, 3
      %s168 = smul.addr %s167, 116
      %s169 = smul.addr %s168, 4
      %s170 = scalar_lea.vmem %s3, %s169
      %v172 = vld [vmem:[%s165] sm:$0xff]
      %v173 = vld [vmem:[%s165 + $0x8] sm:$0xff]
      %v174 = vld [vmem:[%s165 + $0x10] sm:$0xff]
      %v175 = vld [vmem:[%s165 + $0x18] sm:$0xff]
      %v176 = vld [vmem:[%s165 + $0x20] sm:$0xff]
      %v177 = vld [vmem:[%s165 + $0x28] sm:$0xff]
      %v178 = vld [vmem:[%s165 + $0x30] sm:$0xff]
      %v179 = vld [vmem:[%s165 + $0x38] sm:$0xff]
      %v180 = vld [vmem:[%s165 + $0x40] sm:$0xff]
      %v181 = vld [vmem:[%s165 + $0x48] sm:$0xff]
      %v182 = vld [vmem:[%s165 + $0x50] sm:$0xff]
      %v183 = vld [vmem:[%s165 + $0x58] sm:$0xff]
      %v184 = vld [vmem:[%s165 + $0x60] sm:$0xff]
      %v185 = vld [vmem:[%s165 + $0x68] sm:$0xff]
      %v186 = vld [vmem:[%s165 + $0x70] sm:$0xff]
      %v187 = vld [vmem:[%s165 + $0x78] sm:$0xff]
      %v188 = vld [vmem:[%s165 + $0x80] sm:$0xff]
      %v189 = vld [vmem:[%s165 + $0x88] sm:$0xff]
      %v190 = vld [vmem:[%s165 + $0x90] sm:$0xff]
      %v191 = vld [vmem:[%s165 + $0x98] sm:$0xff]
      %v192 = vld [vmem:[%s165 + $0xa0] sm:$0xff]
      %v193 = vld [vmem:[%s165 + $0xa8] sm:$0xff]
      %v194 = vld [vmem:[%s165 + $0xb0] sm:$0xff]
      %v195 = vld [vmem:[%s165 + $0xb8] sm:$0xff]
      %v196 = vld [vmem:[%s165 + $0xc0] sm:$0xff]
      %v197 = vld [vmem:[%s165 + $0xc8] sm:$0xff]
      %v198 = vld [vmem:[%s165 + $0xd0] sm:$0xff]
      %v199 = vld [vmem:[%s165 + $0xd8] sm:$0xff]
      %v200 = vld [vmem:[%s165 + $0xe0] sm:$0xff]
      %v201 = vld [vmem:[%s165 + $0xf0] sm:$0x77]
      %v202 = vld [vmem:[%s165 + $0xf8] sm:$0x77]
      %v203 = vld [vmem:[%s165 + $0x100] sm:$0x77]
      %v204 = vld [vmem:[%s165 + $0x108] sm:$0x77]
      %v205 = vld [vmem:[%s165 + $0x110] sm:$0x77]
      %v206 = vld [vmem:[%s165 + $0x118] sm:$0x77]
      %v207 = vld [vmem:[%s165 + $0x120] sm:$0x77]
      %v208 = vld [vmem:[%s165 + $0x128] sm:$0x77]
      %v209 = vld [vmem:[%s165 + $0x130] sm:$0x77]
      %v210 = vld [vmem:[%s165 + $0x138] sm:$0x77]
      %v211 = vld [vmem:[%s165 + $0x140] sm:$0x77]
      %v212 = vld [vmem:[%s165 + $0x148] sm:$0x77]
      %v213 = vld [vmem:[%s165 + $0x150] sm:$0x77]
      %v214 = vld [vmem:[%s165 + $0x158] sm:$0x77]
      %v215 = vld [vmem:[%s165 + $0x160] sm:$0x77]
      %v216 = vld [vmem:[%s165 + $0x168] sm:$0x77]
      %v217 = vld [vmem:[%s165 + $0x170] sm:$0x77]
      %v218 = vld [vmem:[%s165 + $0x178] sm:$0x77]
      %v219 = vld [vmem:[%s165 + $0x180] sm:$0x77]
      %v220 = vld [vmem:[%s165 + $0x188] sm:$0x77]
      %v221 = vld [vmem:[%s165 + $0x190] sm:$0x77]
      %v222 = vld [vmem:[%s165 + $0x198] sm:$0x77]
      %v223 = vld [vmem:[%s165 + $0x1a0] sm:$0x77]
      %v224 = vld [vmem:[%s165 + $0x1a8] sm:$0x77]
      %v225 = vld [vmem:[%s165 + $0x1b0] sm:$0x77]
      %v226 = vld [vmem:[%s165 + $0x1b8] sm:$0x77]
      %v227 = vld [vmem:[%s165 + $0x1c0] sm:$0x77]
      %v228 = vld [vmem:[%s165 + $0x1c8] sm:$0x77]
      %v229 = vld [vmem:[%s165 + $0x1d0] sm:$0x77]
      %230 = vst [vmem:[#allocation2] sm:$0xff] %v172
      %231 = vst [vmem:[#allocation2 + $0x8] sm:$0xff] %v173
      %232 = vst [vmem:[#allocation2 + $0x10] sm:$0xff] %v174
      %233 = vst [vmem:[#allocation2 + $0x18] sm:$0xff] %v175
      %234 = vst [vmem:[#allocation2 + $0x20] sm:$0xff] %v176
      %235 = vst [vmem:[#allocation2 + $0x28] sm:$0xff] %v177
      %236 = vst [vmem:[#allocation2 + $0x30] sm:$0xff] %v178
      %237 = vst [vmem:[#allocation2 + $0x38] sm:$0xff] %v179
      %238 = vst [vmem:[#allocation2 + $0x40] sm:$0xff] %v180
      %239 = vst [vmem:[#allocation2 + $0x48] sm:$0xff] %v181
      %240 = vst [vmem:[#allocation2 + $0x50] sm:$0xff] %v182
      %241 = vst [vmem:[#allocation2 + $0x58] sm:$0xff] %v183
      %242 = vst [vmem:[#allocation2 + $0x60] sm:$0xff] %v184
      %243 = vst [vmem:[#allocation2 + $0x68] sm:$0xff] %v185
      %244 = vst [vmem:[#allocation2 + $0x70] sm:$0xff] %v186
      %245 = vst [vmem:[#allocation2 + $0x78] sm:$0xff] %v187
      %246 = vst [vmem:[#allocation2 + $0x80] sm:$0xff] %v188
      %247 = vst [vmem:[#allocation2 + $0x88] sm:$0xff] %v189
      %248 = vst [vmem:[#allocation2 + $0x90] sm:$0xff] %v190
      %249 = vst [vmem:[#allocation2 + $0x98] sm:$0xff] %v191
      %250 = vst [vmem:[#allocation2 + $0xa0] sm:$0xff] %v192
      %251 = vst [vmem:[#allocation2 + $0xa8] sm:$0xff] %v193
      %252 = vst [vmem:[#allocation2 + $0xb0] sm:$0xff] %v194
      %253 = vst [vmem:[#allocation2 + $0xb8] sm:$0xff] %v195
      %254 = vst [vmem:[#allocation2 + $0xc0] sm:$0xff] %v196
      %255 = vst [vmem:[#allocation2 + $0xc8] sm:$0xff] %v197
      %256 = vst [vmem:[#allocation2 + $0xd0] sm:$0xff] %v198
      %257 = vst [vmem:[#allocation2 + $0xd8] sm:$0xff] %v199
      %vm258 = vcmask 1043456
      %vm259 = vcmask 818180
      %vm260 = vmor %vm259, %vm258
      %261 = vst.msk [vmem:[#allocation2 + $0xe0] sm:$0xff] %vm260, %v200
      %262 = vst [vmem:[#allocation2 + $0xe8] sm:$0x77] %v201
      %263 = vst [vmem:[#allocation2 + $0xf0] sm:$0x77] %v202
      %264 = vst [vmem:[#allocation2 + $0xf8] sm:$0x77] %v203
      %265 = vst [vmem:[#allocation2 + $0x100] sm:$0x77] %v204
      %266 = vst [vmem:[#allocation2 + $0x108] sm:$0x77] %v205
      %267 = vst [vmem:[#allocation2 + $0x110] sm:$0x77] %v206
      %268 = vst [vmem:[#allocation2 + $0x118] sm:$0x77] %v207
      %269 = vst [vmem:[#allocation2 + $0x120] sm:$0x77] %v208
      %270 = vst [vmem:[#allocation2 + $0x128] sm:$0x77] %v209
      %271 = vst [vmem:[#allocation2 + $0x130] sm:$0x77] %v210
      %272 = vst [vmem:[#allocation2 + $0x138] sm:$0x77] %v211
      %273 = vst [vmem:[#allocation2 + $0x140] sm:$0x77] %v212
      %274 = vst [vmem:[#allocation2 + $0x148] sm:$0x77] %v213
      %275 = vst [vmem:[#allocation2 + $0x150] sm:$0x77] %v214
      %276 = vst [vmem:[#allocation2 + $0x158] sm:$0x77] %v215
      %277 = vst [vmem:[#allocation2 + $0x160] sm:$0x77] %v216
      %278 = vst [vmem:[#allocation2 + $0x168] sm:$0x77] %v217
      %279 = vst [vmem:[#allocation2 + $0x170] sm:$0x77] %v218
      %280 = vst [vmem:[#allocation2 + $0x178] sm:$0x77] %v219
      %281 = vst [vmem:[#allocation2 + $0x180] sm:$0x77] %v220
      %282 = vst [vmem:[#allocation2 + $0x188] sm:$0x77] %v221
      %283 = vst [vmem:[#allocation2 + $0x190] sm:$0x77] %v222
      %284 = vst [vmem:[#allocation2 + $0x198] sm:$0x77] %v223
      %285 = vst [vmem:[#allocation2 + $0x1a0] sm:$0x77] %v224
      %286 = vst [vmem:[#allocation2 + $0x1a8] sm:$0x77] %v225
      %287 = vst [vmem:[#allocation2 + $0x1b0] sm:$0x77] %v226
      %288 = vst [vmem:[#allocation2 + $0x1b8] sm:$0x77] %v227
      %289 = vst [vmem:[#allocation2 + $0x1c0] sm:$0x77] %v228
      %vm290 = vcmask 1042432
      %vm291 = vcmask 817156
      %vm292 = vmor %vm291, %vm290
      %293 = vst.msk [vmem:[#allocation2 + $0x1c8] sm:$0x77] %vm292, %v229
      %s294 = scalar_lea.vmem %s165, 480
      %v295 = vld [vmem:[%s294] sm:$0xff]
      %v296 = vld [vmem:[%s294 + $0x8] sm:$0xff]
      %v297 = vld [vmem:[%s294 + $0x10] sm:$0xff]
      %v298 = vld [vmem:[%s294 + $0x18] sm:$0xff]
      %v299 = vld [vmem:[%s294 + $0x20] sm:$0xff]
      %v300 = vld [vmem:[%s294 + $0x28] sm:$0xff]
      %v301 = vld [vmem:[%s294 + $0x30] sm:$0xff]
      %v302 = vld [vmem:[%s294 + $0x38] sm:$0xff]
      %v303 = vld [vmem:[%s294 + $0x40] sm:$0xff]
      %v304 = vld [vmem:[%s294 + $0x48] sm:$0xff]
      %v305 = vld [vmem:[%s294 + $0x50] sm:$0xff]
      %v306 = vld [vmem:[%s294 + $0x58] sm:$0xff]
      %v307 = vld [vmem:[%s294 + $0x60] sm:$0xff]
      %v308 = vld [vmem:[%s294 + $0x68] sm:$0xff]
      %v309 = vld [vmem:[%s294 + $0x70] sm:$0xff]
      %v310 = vld [vmem:[%s294 + $0x78] sm:$0xff]
      %v311 = vld [vmem:[%s294 + $0x80] sm:$0xff]
      %v312 = vld [vmem:[%s294 + $0x88] sm:$0xff]
      %v313 = vld [vmem:[%s294 + $0x90] sm:$0xff]
      %v314 = vld [vmem:[%s294 + $0x98] sm:$0xff]
      %v315 = vld [vmem:[%s294 + $0xa0] sm:$0xff]
      %v316 = vld [vmem:[%s294 + $0xa8] sm:$0xff]
      %v317 = vld [vmem:[%s294 + $0xb0] sm:$0xff]
      %v318 = vld [vmem:[%s294 + $0xb8] sm:$0xff]
      %v319 = vld [vmem:[%s294 + $0xc0] sm:$0xff]
      %v320 = vld [vmem:[%s294 + $0xc8] sm:$0xff]
      %v321 = vld [vmem:[%s294 + $0xd0] sm:$0xff]
      %v322 = vld [vmem:[%s294 + $0xd8] sm:$0xff]
      %v323 = vld [vmem:[%s294 + $0xe0] sm:$0xff]
      %v324 = vld [vmem:[%s294 + $0xf0] sm:$0x77]
      %v325 = vld [vmem:[%s294 + $0xf8] sm:$0x77]
      %v326 = vld [vmem:[%s294 + $0x100] sm:$0x77]
      %v327 = vld [vmem:[%s294 + $0x108] sm:$0x77]
      %v328 = vld [vmem:[%s294 + $0x110] sm:$0x77]
      %v329 = vld [vmem:[%s294 + $0x118] sm:$0x77]
      %v330 = vld [vmem:[%s294 + $0x120] sm:$0x77]
      %v331 = vld [vmem:[%s294 + $0x128] sm:$0x77]
      %v332 = vld [vmem:[%s294 + $0x130] sm:$0x77]
      %v333 = vld [vmem:[%s294 + $0x138] sm:$0x77]
      %v334 = vld [vmem:[%s294 + $0x140] sm:$0x77]
      %v335 = vld [vmem:[%s294 + $0x148] sm:$0x77]
      %v336 = vld [vmem:[%s294 + $0x150] sm:$0x77]
      %v337 = vld [vmem:[%s294 + $0x158] sm:$0x77]
      %v338 = vld [vmem:[%s294 + $0x160] sm:$0x77]
      %v339 = vld [vmem:[%s294 + $0x168] sm:$0x77]
      %v340 = vld [vmem:[%s294 + $0x170] sm:$0x77]
      %v341 = vld [vmem:[%s294 + $0x178] sm:$0x77]
      %v342 = vld [vmem:[%s294 + $0x180] sm:$0x77]
      %v343 = vld [vmem:[%s294 + $0x188] sm:$0x77]
      %v344 = vld [vmem:[%s294 + $0x190] sm:$0x77]
      %v345 = vld [vmem:[%s294 + $0x198] sm:$0x77]
      %v346 = vld [vmem:[%s294 + $0x1a0] sm:$0x77]
      %v347 = vld [vmem:[%s294 + $0x1a8] sm:$0x77]
      %v348 = vld [vmem:[%s294 + $0x1b0] sm:$0x77]
      %v349 = vld [vmem:[%s294 + $0x1b8] sm:$0x77]
      %v350 = vld [vmem:[%s294 + $0x1c0] sm:$0x77]
      %v351 = vld [vmem:[%s294 + $0x1c8] sm:$0x77]
      %v352 = vld [vmem:[%s294 + $0x1d0] sm:$0x77]
      %vm411 = vcmask 1042432
      %vm412 = vcmask 1046532
      %vm413 = vmor %vm411, %vm412
      %v414 = vrot.slane %v295, 5
      %v415 = vrot.slane %v296, 5
      %v416 = vrot.slane %v297, 5
      %v417 = vrot.slane %v298, 5
      %v418 = vrot.slane %v299, 5
      %v419 = vrot.slane %v300, 5
      %v420 = vrot.slane %v301, 5
      %v421 = vrot.slane %v302, 5
      %v422 = vrot.slane %v303, 5
      %v423 = vrot.slane %v304, 5
      %v424 = vrot.slane %v305, 5
      %v425 = vrot.slane %v306, 5
      %v426 = vrot.slane %v307, 5
      %v427 = vrot.slane %v308, 5
      %v428 = vrot.slane %v309, 5
      %v429 = vrot.slane %v310, 5
      %v430 = vrot.slane %v311, 5
      %v431 = vrot.slane %v312, 5
      %v432 = vrot.slane %v313, 5
      %v433 = vrot.slane %v314, 5
      %v434 = vrot.slane %v315, 5
      %v435 = vrot.slane %v316, 5
      %v436 = vrot.slane %v317, 5
      %v437 = vrot.slane %v318, 5
      %v438 = vrot.slane %v319, 5
      %v439 = vrot.slane %v320, 5
      %v440 = vrot.slane %v321, 5
      %v441 = vrot.slane %v322, 5
      %v442 = vrot.slane %v323, 5
      %v443 = vrot.slane %v414, 4
      %v444 = vrot.slane %v324, 5
      %v445 = vsel %vm413, %v443, %v444
      %v446 = vrot.slane %v415, 4
      %v447 = vrot.slane %v325, 5
      %v448 = vsel %vm413, %v446, %v447
      %v449 = vrot.slane %v416, 4
      %v450 = vrot.slane %v326, 5
      %v451 = vsel %vm413, %v449, %v450
      %v452 = vrot.slane %v417, 4
      %v453 = vrot.slane %v327, 5
      %v454 = vsel %vm413, %v452, %v453
      %v455 = vrot.slane %v418, 4
      %v456 = vrot.slane %v328, 5
      %v457 = vsel %vm413, %v455, %v456
      %v458 = vrot.slane %v419, 4
      %v459 = vrot.slane %v329, 5
      %v460 = vsel %vm413, %v458, %v459
      %v461 = vrot.slane %v420, 4
      %v462 = vrot.slane %v330, 5
      %v463 = vsel %vm413, %v461, %v462
      %v464 = vrot.slane %v421, 4
      %v465 = vrot.slane %v331, 5
      %v466 = vsel %vm413, %v464, %v465
      %v467 = vrot.slane %v422, 4
      %v468 = vrot.slane %v332, 5
      %v469 = vsel %vm413, %v467, %v468
      %v470 = vrot.slane %v423, 4
      %v471 = vrot.slane %v333, 5
      %v472 = vsel %vm413, %v470, %v471
      %v473 = vrot.slane %v424, 4
      %v474 = vrot.slane %v334, 5
      %v475 = vsel %vm413, %v473, %v474
      %v476 = vrot.slane %v425, 4
      %v477 = vrot.slane %v335, 5
      %v478 = vsel %vm413, %v476, %v477
      %v479 = vrot.slane %v426, 4
      %v480 = vrot.slane %v336, 5
      %v481 = vsel %vm413, %v479, %v480
      %v482 = vrot.slane %v427, 4
      %v483 = vrot.slane %v337, 5
      %v484 = vsel %vm413, %v482, %v483
      %v485 = vrot.slane %v428, 4
      %v486 = vrot.slane %v338, 5
      %v487 = vsel %vm413, %v485, %v486
      %v488 = vrot.slane %v429, 4
      %v489 = vrot.slane %v339, 5
      %v490 = vsel %vm413, %v488, %v489
      %v491 = vrot.slane %v430, 4
      %v492 = vrot.slane %v340, 5
      %v493 = vsel %vm413, %v491, %v492
      %v494 = vrot.slane %v431, 4
      %v495 = vrot.slane %v341, 5
      %v496 = vsel %vm413, %v494, %v495
      %v497 = vrot.slane %v432, 4
      %v498 = vrot.slane %v342, 5
      %v499 = vsel %vm413, %v497, %v498
      %v500 = vrot.slane %v433, 4
      %v501 = vrot.slane %v343, 5
      %v502 = vsel %vm413, %v500, %v501
      %v503 = vrot.slane %v434, 4
      %v504 = vrot.slane %v344, 5
      %v505 = vsel %vm413, %v503, %v504
      %v506 = vrot.slane %v435, 4
      %v507 = vrot.slane %v345, 5
      %v508 = vsel %vm413, %v506, %v507
      %v509 = vrot.slane %v436, 4
      %v510 = vrot.slane %v346, 5
      %v511 = vsel %vm413, %v509, %v510
      %v512 = vrot.slane %v437, 4
      %v513 = vrot.slane %v347, 5
      %v514 = vsel %vm413, %v512, %v513
      %v515 = vrot.slane %v438, 4
      %v516 = vrot.slane %v348, 5
      %v517 = vsel %vm413, %v515, %v516
      %v518 = vrot.slane %v439, 4
      %v519 = vrot.slane %v349, 5
      %v520 = vsel %vm413, %v518, %v519
      %v521 = vrot.slane %v440, 4
      %v522 = vrot.slane %v350, 5
      %v523 = vsel %vm413, %v521, %v522
      %v524 = vrot.slane %v441, 4
      %v525 = vrot.slane %v351, 5
      %v526 = vsel %vm413, %v524, %v525
      %v527 = vrot.slane %v442, 4
      %v528 = vrot.slane %v352, 5
      %v529 = vsel %vm413, %v527, %v528
      %v530 = vrot.slane %v444, 4
      %v531 = vrot.slane %v447, 4
      %v532 = vrot.slane %v450, 4
      %v533 = vrot.slane %v453, 4
      %v534 = vrot.slane %v456, 4
      %v535 = vrot.slane %v459, 4
      %v536 = vrot.slane %v462, 4
      %v537 = vrot.slane %v465, 4
      %v538 = vrot.slane %v468, 4
      %v539 = vrot.slane %v471, 4
      %v540 = vrot.slane %v474, 4
      %v541 = vrot.slane %v477, 4
      %v542 = vrot.slane %v480, 4
      %v543 = vrot.slane %v483, 4
      %v544 = vrot.slane %v486, 4
      %v545 = vrot.slane %v489, 4
      %v546 = vrot.slane %v492, 4
      %v547 = vrot.slane %v495, 4
      %v548 = vrot.slane %v498, 4
      %v549 = vrot.slane %v501, 4
      %v550 = vrot.slane %v504, 4
      %v551 = vrot.slane %v507, 4
      %v552 = vrot.slane %v510, 4
      %v553 = vrot.slane %v513, 4
      %v554 = vrot.slane %v516, 4
      %v555 = vrot.slane %v519, 4
      %v556 = vrot.slane %v522, 4
      %v557 = vrot.slane %v525, 4
      %v558 = vrot.slane %v528, 4
      %646 = vst [vmem:[#allocation2 + $0xe8] sm:$0x88] %v414
      %647 = vst [vmem:[#allocation2 + $0xf0] sm:$0x88] %v415
      %648 = vst [vmem:[#allocation2 + $0xf8] sm:$0x88] %v416
      %649 = vst [vmem:[#allocation2 + $0x100] sm:$0x88] %v417
      %650 = vst [vmem:[#allocation2 + $0x108] sm:$0x88] %v418
      %651 = vst [vmem:[#allocation2 + $0x110] sm:$0x88] %v419
      %652 = vst [vmem:[#allocation2 + $0x118] sm:$0x88] %v420
      %653 = vst [vmem:[#allocation2 + $0x120] sm:$0x88] %v421
      %654 = vst [vmem:[#allocation2 + $0x128] sm:$0x88] %v422
      %655 = vst [vmem:[#allocation2 + $0x130] sm:$0x88] %v423
      %656 = vst [vmem:[#allocation2 + $0x138] sm:$0x88] %v424
      %657 = vst [vmem:[#allocation2 + $0x140] sm:$0x88] %v425
      %658 = vst [vmem:[#allocation2 + $0x148] sm:$0x88] %v426
      %659 = vst [vmem:[#allocation2 + $0x150] sm:$0x88] %v427
      %660 = vst [vmem:[#allocation2 + $0x158] sm:$0x88] %v428
      %661 = vst [vmem:[#allocation2 + $0x160] sm:$0x88] %v429
      %662 = vst [vmem:[#allocation2 + $0x168] sm:$0x88] %v430
      %663 = vst [vmem:[#allocation2 + $0x170] sm:$0x88] %v431
      %664 = vst [vmem:[#allocation2 + $0x178] sm:$0x88] %v432
      %665 = vst [vmem:[#allocation2 + $0x180] sm:$0x88] %v433
      %666 = vst [vmem:[#allocation2 + $0x188] sm:$0x88] %v434
      %667 = vst [vmem:[#allocation2 + $0x190] sm:$0x88] %v435
      %668 = vst [vmem:[#allocation2 + $0x198] sm:$0x88] %v436
      %669 = vst [vmem:[#allocation2 + $0x1a0] sm:$0x88] %v437
      %670 = vst [vmem:[#allocation2 + $0x1a8] sm:$0x88] %v438
      %671 = vst [vmem:[#allocation2 + $0x1b0] sm:$0x88] %v439
      %672 = vst [vmem:[#allocation2 + $0x1b8] sm:$0x88] %v440
      %673 = vst [vmem:[#allocation2 + $0x1c0] sm:$0x88] %v441
      %vm674 = vcmask 1043459
      %vm675 = vcmask 818183
      %vm676 = vmor %vm675, %vm674
      %677 = vst.msk [vmem:[#allocation2 + $0x1c8] sm:$0x88] %vm676, %v442
      %678 = vst [vmem:[#allocation2 + $0x1d0] sm:$0xff] %v445
      %679 = vst [vmem:[#allocation2 + $0x1d8] sm:$0xff] %v448
      %680 = vst [vmem:[#allocation2 + $0x1e0] sm:$0xff] %v451
      %681 = vst [vmem:[#allocation2 + $0x1e8] sm:$0xff] %v454
      %682 = vst [vmem:[#allocation2 + $0x1f0] sm:$0xff] %v457
      %683 = vst [vmem:[#allocation2 + $0x1f8] sm:$0xff] %v460
      %684 = vst [vmem:[#allocation2 + $0x200] sm:$0xff] %v463
      %685 = vst [vmem:[#allocation2 + $0x208] sm:$0xff] %v466
      %686 = vst [vmem:[#allocation2 + $0x210] sm:$0xff] %v469
      %687 = vst [vmem:[#allocation2 + $0x218] sm:$0xff] %v472
      %688 = vst [vmem:[#allocation2 + $0x220] sm:$0xff] %v475
      %689 = vst [vmem:[#allocation2 + $0x228] sm:$0xff] %v478
      %690 = vst [vmem:[#allocation2 + $0x230] sm:$0xff] %v481
      %691 = vst [vmem:[#allocation2 + $0x238] sm:$0xff] %v484
      %692 = vst [vmem:[#allocation2 + $0x240] sm:$0xff] %v487
      %693 = vst [vmem:[#allocation2 + $0x248] sm:$0xff] %v490
      %694 = vst [vmem:[#allocation2 + $0x250] sm:$0xff] %v493
      %695 = vst [vmem:[#allocation2 + $0x258] sm:$0xff] %v496
      %696 = vst [vmem:[#allocation2 + $0x260] sm:$0xff] %v499
      %697 = vst [vmem:[#allocation2 + $0x268] sm:$0xff] %v502
      %698 = vst [vmem:[#allocation2 + $0x270] sm:$0xff] %v505
      %699 = vst [vmem:[#allocation2 + $0x278] sm:$0xff] %v508
      %700 = vst [vmem:[#allocation2 + $0x280] sm:$0xff] %v511
      %701 = vst [vmem:[#allocation2 + $0x288] sm:$0xff] %v514
      %702 = vst [vmem:[#allocation2 + $0x290] sm:$0xff] %v517
      %703 = vst [vmem:[#allocation2 + $0x298] sm:$0xff] %v520
      %704 = vst [vmem:[#allocation2 + $0x2a0] sm:$0xff] %v523
      %705 = vst [vmem:[#allocation2 + $0x2a8] sm:$0xff] %v526
      %706 = vst.msk [vmem:[#allocation2 + $0x2b0] sm:$0xff] %vm260, %v529
      %707 = vst [vmem:[#allocation2 + $0x2b8] sm:$0x33] %v530
      %708 = vst [vmem:[#allocation2 + $0x2c0] sm:$0x33] %v531
      %709 = vst [vmem:[#allocation2 + $0x2c8] sm:$0x33] %v532
      %710 = vst [vmem:[#allocation2 + $0x2d0] sm:$0x33] %v533
      %711 = vst [vmem:[#allocation2 + $0x2d8] sm:$0x33] %v534
      %712 = vst [vmem:[#allocation2 + $0x2e0] sm:$0x33] %v535
      %713 = vst [vmem:[#allocation2 + $0x2e8] sm:$0x33] %v536
      %714 = vst [vmem:[#allocation2 + $0x2f0] sm:$0x33] %v537
      %715 = vst [vmem:[#allocation2 + $0x2f8] sm:$0x33] %v538
      %716 = vst [vmem:[#allocation2 + $0x300] sm:$0x33] %v539
      %717 = vst [vmem:[#allocation2 + $0x308] sm:$0x33] %v540
      %718 = vst [vmem:[#allocation2 + $0x310] sm:$0x33] %v541
      %719 = vst [vmem:[#allocation2 + $0x318] sm:$0x33] %v542
      %720 = vst [vmem:[#allocation2 + $0x320] sm:$0x33] %v543
      %721 = vst [vmem:[#allocation2 + $0x328] sm:$0x33] %v544
      %722 = vst [vmem:[#allocation2 + $0x330] sm:$0x33] %v545
      %723 = vst [vmem:[#allocation2 + $0x338] sm:$0x33] %v546
      %724 = vst [vmem:[#allocation2 + $0x340] sm:$0x33] %v547
      %725 = vst [vmem:[#allocation2 + $0x348] sm:$0x33] %v548
      %726 = vst [vmem:[#allocation2 + $0x350] sm:$0x33] %v549
      %727 = vst [vmem:[#allocation2 + $0x358] sm:$0x33] %v550
      %728 = vst [vmem:[#allocation2 + $0x360] sm:$0x33] %v551
      %729 = vst [vmem:[#allocation2 + $0x368] sm:$0x33] %v552
      %730 = vst [vmem:[#allocation2 + $0x370] sm:$0x33] %v553
      %731 = vst [vmem:[#allocation2 + $0x378] sm:$0x33] %v554
      %732 = vst [vmem:[#allocation2 + $0x380] sm:$0x33] %v555
      %733 = vst [vmem:[#allocation2 + $0x388] sm:$0x33] %v556
      %734 = vst [vmem:[#allocation2 + $0x390] sm:$0x33] %v557
      %vm735 = vcmask 1041408
      %vm736 = vcmask 816132
      %vm737 = vmor %vm736, %vm735
      %738 = vst.msk [vmem:[#allocation2 + $0x398] sm:$0x33] %vm737, %v558
      %s739 = scalar_lea.vmem %s165, 960
      %v740 = vld [vmem:[%s739] sm:$0xff]
      %v741 = vld [vmem:[%s739 + $0x8] sm:$0xff]
      %v742 = vld [vmem:[%s739 + $0x10] sm:$0xff]
      %v743 = vld [vmem:[%s739 + $0x18] sm:$0xff]
      %v744 = vld [vmem:[%s739 + $0x20] sm:$0xff]
      %v745 = vld [vmem:[%s739 + $0x28] sm:$0xff]
      %v746 = vld [vmem:[%s739 + $0x30] sm:$0xff]
      %v747 = vld [vmem:[%s739 + $0x38] sm:$0xff]
      %v748 = vld [vmem:[%s739 + $0x40] sm:$0xff]
      %v749 = vld [vmem:[%s739 + $0x48] sm:$0xff]
      %v750 = vld [vmem:[%s739 + $0x50] sm:$0xff]
      %v751 = vld [vmem:[%s739 + $0x58] sm:$0xff]
      %v752 = vld [vmem:[%s739 + $0x60] sm:$0xff]
      %v753 = vld [vmem:[%s739 + $0x68] sm:$0xff]
      %v754 = vld [vmem:[%s739 + $0x70] sm:$0xff]
      %v755 = vld [vmem:[%s739 + $0x78] sm:$0xff]
      %v756 = vld [vmem:[%s739 + $0x80] sm:$0xff]
      %v757 = vld [vmem:[%s739 + $0x88] sm:$0xff]
      %v758 = vld [vmem:[%s739 + $0x90] sm:$0xff]
      %v759 = vld [vmem:[%s739 + $0x98] sm:$0xff]
      %v760 = vld [vmem:[%s739 + $0xa0] sm:$0xff]
      %v761 = vld [vmem:[%s739 + $0xa8] sm:$0xff]
      %v762 = vld [vmem:[%s739 + $0xb0] sm:$0xff]
      %v763 = vld [vmem:[%s739 + $0xb8] sm:$0xff]
      %v764 = vld [vmem:[%s739 + $0xc0] sm:$0xff]
      %v765 = vld [vmem:[%s739 + $0xc8] sm:$0xff]
      %v766 = vld [vmem:[%s739 + $0xd0] sm:$0xff]
      %v767 = vld [vmem:[%s739 + $0xd8] sm:$0xff]
      %v768 = vld [vmem:[%s739 + $0xe0] sm:$0xff]
      %v769 = vld [vmem:[%s739 + $0xf0] sm:$0x77]
      %v770 = vld [vmem:[%s739 + $0xf8] sm:$0x77]
      %v771 = vld [vmem:[%s739 + $0x100] sm:$0x77]
      %v772 = vld [vmem:[%s739 + $0x108] sm:$0x77]
      %v773 = vld [vmem:[%s739 + $0x110] sm:$0x77]
      %v774 = vld [vmem:[%s739 + $0x118] sm:$0x77]
      %v775 = vld [vmem:[%s739 + $0x120] sm:$0x77]
      %v776 = vld [vmem:[%s739 + $0x128] sm:$0x77]
      %v777 = vld [vmem:[%s739 + $0x130] sm:$0x77]
      %v778 = vld [vmem:[%s739 + $0x138] sm:$0x77]
      %v779 = vld [vmem:[%s739 + $0x140] sm:$0x77]
      %v780 = vld [vmem:[%s739 + $0x148] sm:$0x77]
      %v781 = vld [vmem:[%s739 + $0x150] sm:$0x77]
      %v782 = vld [vmem:[%s739 + $0x158] sm:$0x77]
      %v783 = vld [vmem:[%s739 + $0x160] sm:$0x77]
      %v784 = vld [vmem:[%s739 + $0x168] sm:$0x77]
      %v785 = vld [vmem:[%s739 + $0x170] sm:$0x77]
      %v786 = vld [vmem:[%s739 + $0x178] sm:$0x77]
      %v787 = vld [vmem:[%s739 + $0x180] sm:$0x77]
      %v788 = vld [vmem:[%s739 + $0x188] sm:$0x77]
      %v789 = vld [vmem:[%s739 + $0x190] sm:$0x77]
      %v790 = vld [vmem:[%s739 + $0x198] sm:$0x77]
      %v791 = vld [vmem:[%s739 + $0x1a0] sm:$0x77]
      %v792 = vld [vmem:[%s739 + $0x1a8] sm:$0x77]
      %v793 = vld [vmem:[%s739 + $0x1b0] sm:$0x77]
      %v794 = vld [vmem:[%s739 + $0x1b8] sm:$0x77]
      %v795 = vld [vmem:[%s739 + $0x1c0] sm:$0x77]
      %v796 = vld [vmem:[%s739 + $0x1c8] sm:$0x77]
      %v797 = vld [vmem:[%s739 + $0x1d0] sm:$0x77]
      %vm856 = vcmask 1041408
      %vm857 = vcmask 1045508
      %vm858 = vmor %vm856, %vm857
      %v859 = vrot.slane %v740, 6
      %v860 = vrot.slane %v741, 6
      %v861 = vrot.slane %v742, 6
      %v862 = vrot.slane %v743, 6
      %v863 = vrot.slane %v744, 6
      %v864 = vrot.slane %v745, 6
      %v865 = vrot.slane %v746, 6
      %v866 = vrot.slane %v747, 6
      %v867 = vrot.slane %v748, 6
      %v868 = vrot.slane %v749, 6
      %v869 = vrot.slane %v750, 6
      %v870 = vrot.slane %v751, 6
      %v871 = vrot.slane %v752, 6
      %v872 = vrot.slane %v753, 6
      %v873 = vrot.slane %v754, 6
      %v874 = vrot.slane %v755, 6
      %v875 = vrot.slane %v756, 6
      %v876 = vrot.slane %v757, 6
      %v877 = vrot.slane %v758, 6
      %v878 = vrot.slane %v759, 6
      %v879 = vrot.slane %v760, 6
      %v880 = vrot.slane %v761, 6
      %v881 = vrot.slane %v762, 6
      %v882 = vrot.slane %v763, 6
      %v883 = vrot.slane %v764, 6
      %v884 = vrot.slane %v765, 6
      %v885 = vrot.slane %v766, 6
      %v886 = vrot.slane %v767, 6
      %v887 = vrot.slane %v768, 6
      %v888 = vrot.slane %v859, 4
      %v889 = vrot.slane %v769, 6
      %v890 = vsel %vm858, %v888, %v889
      %v891 = vrot.slane %v860, 4
      %v892 = vrot.slane %v770, 6
      %v893 = vsel %vm858, %v891, %v892
      %v894 = vrot.slane %v861, 4
      %v895 = vrot.slane %v771, 6
      %v896 = vsel %vm858, %v894, %v895
      %v897 = vrot.slane %v862, 4
      %v898 = vrot.slane %v772, 6
      %v899 = vsel %vm858, %v897, %v898
      %v900 = vrot.slane %v863, 4
      %v901 = vrot.slane %v773, 6
      %v902 = vsel %vm858, %v900, %v901
      %v903 = vrot.slane %v864, 4
      %v904 = vrot.slane %v774, 6
      %v905 = vsel %vm858, %v903, %v904
      %v906 = vrot.slane %v865, 4
      %v907 = vrot.slane %v775, 6
      %v908 = vsel %vm858, %v906, %v907
      %v909 = vrot.slane %v866, 4
      %v910 = vrot.slane %v776, 6
      %v911 = vsel %vm858, %v909, %v910
      %v912 = vrot.slane %v867, 4
      %v913 = vrot.slane %v777, 6
      %v914 = vsel %vm858, %v912, %v913
      %v915 = vrot.slane %v868, 4
      %v916 = vrot.slane %v778, 6
      %v917 = vsel %vm858, %v915, %v916
      %v918 = vrot.slane %v869, 4
      %v919 = vrot.slane %v779, 6
      %v920 = vsel %vm858, %v918, %v919
      %v921 = vrot.slane %v870, 4
      %v922 = vrot.slane %v780, 6
      %v923 = vsel %vm858, %v921, %v922
      %v924 = vrot.slane %v871, 4
      %v925 = vrot.slane %v781, 6
      %v926 = vsel %vm858, %v924, %v925
      %v927 = vrot.slane %v872, 4
      %v928 = vrot.slane %v782, 6
      %v929 = vsel %vm858, %v927, %v928
      %v930 = vrot.slane %v873, 4
      %v931 = vrot.slane %v783, 6
      %v932 = vsel %vm858, %v930, %v931
      %v933 = vrot.slane %v874, 4
      %v934 = vrot.slane %v784, 6
      %v935 = vsel %vm858, %v933, %v934
      %v936 = vrot.slane %v875, 4
      %v937 = vrot.slane %v785, 6
      %v938 = vsel %vm858, %v936, %v937
      %v939 = vrot.slane %v876, 4
      %v940 = vrot.slane %v786, 6
      %v941 = vsel %vm858, %v939, %v940
      %v942 = vrot.slane %v877, 4
      %v943 = vrot.slane %v787, 6
      %v944 = vsel %vm858, %v942, %v943
      %v945 = vrot.slane %v878, 4
      %v946 = vrot.slane %v788, 6
      %v947 = vsel %vm858, %v945, %v946
      %v948 = vrot.slane %v879, 4
      %v949 = vrot.slane %v789, 6
      %v950 = vsel %vm858, %v948, %v949
      %v951 = vrot.slane %v880, 4
      %v952 = vrot.slane %v790, 6
      %v953 = vsel %vm858, %v951, %v952
      %v954 = vrot.slane %v881, 4
      %v955 = vrot.slane %v791, 6
      %v956 = vsel %vm858, %v954, %v955
      %v957 = vrot.slane %v882, 4
      %v958 = vrot.slane %v792, 6
      %v959 = vsel %vm858, %v957, %v958
      %v960 = vrot.slane %v883, 4
      %v961 = vrot.slane %v793, 6
      %v962 = vsel %vm858, %v960, %v961
      %v963 = vrot.slane %v884, 4
      %v964 = vrot.slane %v794, 6
      %v965 = vsel %vm858, %v963, %v964
      %v966 = vrot.slane %v885, 4
      %v967 = vrot.slane %v795, 6
      %v968 = vsel %vm858, %v966, %v967
      %v969 = vrot.slane %v886, 4
      %v970 = vrot.slane %v796, 6
      %v971 = vsel %vm858, %v969, %v970
      %v972 = vrot.slane %v887, 4
      %v973 = vrot.slane %v797, 6
      %v974 = vsel %vm858, %v972, %v973
      %v975 = vrot.slane %v889, 4
      %v976 = vrot.slane %v892, 4
      %v977 = vrot.slane %v895, 4
      %v978 = vrot.slane %v898, 4
      %v979 = vrot.slane %v901, 4
      %v980 = vrot.slane %v904, 4
      %v981 = vrot.slane %v907, 4
      %v982 = vrot.slane %v910, 4
      %v983 = vrot.slane %v913, 4
      %v984 = vrot.slane %v916, 4
      %v985 = vrot.slane %v919, 4
      %v986 = vrot.slane %v922, 4
      %v987 = vrot.slane %v925, 4
      %v988 = vrot.slane %v928, 4
      %v989 = vrot.slane %v931, 4
      %v990 = vrot.slane %v934, 4
      %v991 = vrot.slane %v937, 4
      %v992 = vrot.slane %v940, 4
      %v993 = vrot.slane %v943, 4
      %v994 = vrot.slane %v946, 4
      %v995 = vrot.slane %v949, 4
      %v996 = vrot.slane %v952, 4
      %v997 = vrot.slane %v955, 4
      %v998 = vrot.slane %v958, 4
      %v999 = vrot.slane %v961, 4
      %v1000 = vrot.slane %v964, 4
      %v1001 = vrot.slane %v967, 4
      %v1002 = vrot.slane %v970, 4
      %v1003 = vrot.slane %v973, 4
      %1091 = vst [vmem:[#allocation2 + $0x2b8] sm:$0xcc] %v859
      %1092 = vst [vmem:[#allocation2 + $0x2c0] sm:$0xcc] %v860
      %1093 = vst [vmem:[#allocation2 + $0x2c8] sm:$0xcc] %v861
      %1094 = vst [vmem:[#allocation2 + $0x2d0] sm:$0xcc] %v862
      %1095 = vst [vmem:[#allocation2 + $0x2d8] sm:$0xcc] %v863
      %1096 = vst [vmem:[#allocation2 + $0x2e0] sm:$0xcc] %v864
      %1097 = vst [vmem:[#allocation2 + $0x2e8] sm:$0xcc] %v865
      %1098 = vst [vmem:[#allocation2 + $0x2f0] sm:$0xcc] %v866
      %1099 = vst [vmem:[#allocation2 + $0x2f8] sm:$0xcc] %v867
      %1100 = vst [vmem:[#allocation2 + $0x300] sm:$0xcc] %v868
      %1101 = vst [vmem:[#allocation2 + $0x308] sm:$0xcc] %v869
      %1102 = vst [vmem:[#allocation2 + $0x310] sm:$0xcc] %v870
      %1103 = vst [vmem:[#allocation2 + $0x318] sm:$0xcc] %v871
      %1104 = vst [vmem:[#allocation2 + $0x320] sm:$0xcc] %v872
      %1105 = vst [vmem:[#allocation2 + $0x328] sm:$0xcc] %v873
      %1106 = vst [vmem:[#allocation2 + $0x330] sm:$0xcc] %v874
      %1107 = vst [vmem:[#allocation2 + $0x338] sm:$0xcc] %v875
      %1108 = vst [vmem:[#allocation2 + $0x340] sm:$0xcc] %v876
      %1109 = vst [vmem:[#allocation2 + $0x348] sm:$0xcc] %v877
      %1110 = vst [vmem:[#allocation2 + $0x350] sm:$0xcc] %v878
      %1111 = vst [vmem:[#allocation2 + $0x358] sm:$0xcc] %v879
      %1112 = vst [vmem:[#allocation2 + $0x360] sm:$0xcc] %v880
      %1113 = vst [vmem:[#allocation2 + $0x368] sm:$0xcc] %v881
      %1114 = vst [vmem:[#allocation2 + $0x370] sm:$0xcc] %v882
      %1115 = vst [vmem:[#allocation2 + $0x378] sm:$0xcc] %v883
      %1116 = vst [vmem:[#allocation2 + $0x380] sm:$0xcc] %v884
      %1117 = vst [vmem:[#allocation2 + $0x388] sm:$0xcc] %v885
      %1118 = vst [vmem:[#allocation2 + $0x390] sm:$0xcc] %v886
      %vm1119 = vcmask 1043458
      %vm1120 = vcmask 818182
      %vm1121 = vmor %vm1120, %vm1119
      %1122 = vst.msk [vmem:[#allocation2 + $0x398] sm:$0xcc] %vm1121, %v887
      %1123 = vst [vmem:[#allocation2 + $0x3a0] sm:$0xff] %v890
      %1124 = vst [vmem:[#allocation2 + $0x3a8] sm:$0xff] %v893
      %1125 = vst [vmem:[#allocation2 + $0x3b0] sm:$0xff] %v896
      %1126 = vst [vmem:[#allocation2 + $0x3b8] sm:$0xff] %v899
      %1127 = vst [vmem:[#allocation2 + $0x3c0] sm:$0xff] %v902
      %1128 = vst [vmem:[#allocation2 + $0x3c8] sm:$0xff] %v905
      %1129 = vst [vmem:[#allocation2 + $0x3d0] sm:$0xff] %v908
      %1130 = vst [vmem:[#allocation2 + $0x3d8] sm:$0xff] %v911
      %1131 = vst [vmem:[#allocation2 + $0x3e0] sm:$0xff] %v914
      %1132 = vst [vmem:[#allocation2 + $0x3e8] sm:$0xff] %v917
      %1133 = vst [vmem:[#allocation2 + $0x3f0] sm:$0xff] %v920
      %1134 = vst [vmem:[#allocation2 + $0x3f8] sm:$0xff] %v923
      %1135 = vst [vmem:[#allocation2 + $0x400] sm:$0xff] %v926
      %1136 = vst [vmem:[#allocation2 + $0x408] sm:$0xff] %v929
      %1137 = vst [vmem:[#allocation2 + $0x410] sm:$0xff] %v932
      %1138 = vst [vmem:[#allocation2 + $0x418] sm:$0xff] %v935
      %1139 = vst [vmem:[#allocation2 + $0x420] sm:$0xff] %v938
      %1140 = vst [vmem:[#allocation2 + $0x428] sm:$0xff] %v941
      %1141 = vst [vmem:[#allocation2 + $0x430] sm:$0xff] %v944
      %1142 = vst [vmem:[#allocation2 + $0x438] sm:$0xff] %v947
      %1143 = vst [vmem:[#allocation2 + $0x440] sm:$0xff] %v950
      %1144 = vst [vmem:[#allocation2 + $0x448] sm:$0xff] %v953
      %1145 = vst [vmem:[#allocation2 + $0x450] sm:$0xff] %v956
      %1146 = vst [vmem:[#allocation2 + $0x458] sm:$0xff] %v959
      %1147 = vst [vmem:[#allocation2 + $0x460] sm:$0xff] %v962
      %1148 = vst [vmem:[#allocation2 + $0x468] sm:$0xff] %v965
      %1149 = vst [vmem:[#allocation2 + $0x470] sm:$0xff] %v968
      %1150 = vst [vmem:[#allocation2 + $0x478] sm:$0xff] %v971
      %1151 = vst.msk [vmem:[#allocation2 + $0x480] sm:$0xff] %vm260, %v974
      %1152 = vst [vmem:[#allocation2 + $0x488] sm:$0x11] %v975
      %1153 = vst [vmem:[#allocation2 + $0x490] sm:$0x11] %v976
      %1154 = vst [vmem:[#allocation2 + $0x498] sm:$0x11] %v977
      %1155 = vst [vmem:[#allocation2 + $0x4a0] sm:$0x11] %v978
      %1156 = vst [vmem:[#allocation2 + $0x4a8] sm:$0x11] %v979
      %1157 = vst [vmem:[#allocation2 + $0x4b0] sm:$0x11] %v980
      %1158 = vst [vmem:[#allocation2 + $0x4b8] sm:$0x11] %v981
      %1159 = vst [vmem:[#allocation2 + $0x4c0] sm:$0x11] %v982
      %1160 = vst [vmem:[#allocation2 + $0x4c8] sm:$0x11] %v983
      %1161 = vst [vmem:[#allocation2 + $0x4d0] sm:$0x11] %v984
      %1162 = vst [vmem:[#allocation2 + $0x4d8] sm:$0x11] %v985
      %1163 = vst [vmem:[#allocation2 + $0x4e0] sm:$0x11] %v986
      %1164 = vst [vmem:[#allocation2 + $0x4e8] sm:$0x11] %v987
      %1165 = vst [vmem:[#allocation2 + $0x4f0] sm:$0x11] %v988
      %1166 = vst [vmem:[#allocation2 + $0x4f8] sm:$0x11] %v989
      %1167 = vst [vmem:[#allocation2 + $0x500] sm:$0x11] %v990
      %1168 = vst [vmem:[#allocation2 + $0x508] sm:$0x11] %v991
      %1169 = vst [vmem:[#allocation2 + $0x510] sm:$0x11] %v992
      %1170 = vst [vmem:[#allocation2 + $0x518] sm:$0x11] %v993
      %1171 = vst [vmem:[#allocation2 + $0x520] sm:$0x11] %v994
      %1172 = vst [vmem:[#allocation2 + $0x528] sm:$0x11] %v995
      %1173 = vst [vmem:[#allocation2 + $0x530] sm:$0x11] %v996
      %1174 = vst [vmem:[#allocation2 + $0x538] sm:$0x11] %v997
      %1175 = vst [vmem:[#allocation2 + $0x540] sm:$0x11] %v998
      %1176 = vst [vmem:[#allocation2 + $0x548] sm:$0x11] %v999
      %1177 = vst [vmem:[#allocation2 + $0x550] sm:$0x11] %v1000
      %1178 = vst [vmem:[#allocation2 + $0x558] sm:$0x11] %v1001
      %1179 = vst [vmem:[#allocation2 + $0x560] sm:$0x11] %v1002
      %vm1180 = vcmask 1040384
      %vm1181 = vcmask 815108
      %vm1182 = vmor %vm1181, %vm1180
      %1183 = vst.msk [vmem:[#allocation2 + $0x568] sm:$0x11] %vm1182, %v1003
      %v1184 = vld [vmem:[%s165] sm:$0xff]
      %v1185 = vld [vmem:[%s165 + $0x8] sm:$0xff]
      %v1186 = vld [vmem:[%s165 + $0x10] sm:$0xff]
      %v1187 = vld [vmem:[%s165 + $0x18] sm:$0xff]
      %v1188 = vld [vmem:[%s165 + $0x20] sm:$0xff]
      %v1189 = vld [vmem:[%s165 + $0x28] sm:$0xff]
      %v1190 = vld [vmem:[%s165 + $0x30] sm:$0xff]
      %v1191 = vld [vmem:[%s165 + $0x38] sm:$0xff]
      %v1192 = vld [vmem:[%s165 + $0x40] sm:$0xff]
      %v1193 = vld [vmem:[%s165 + $0x48] sm:$0xff]
      %v1194 = vld [vmem:[%s165 + $0x50] sm:$0xff]
      %v1195 = vld [vmem:[%s165 + $0x58] sm:$0xff]
      %v1196 = vld [vmem:[%s165 + $0x60] sm:$0xff]
      %v1197 = vld [vmem:[%s165 + $0x68] sm:$0xff]
      %v1198 = vld [vmem:[%s165 + $0x70] sm:$0xff]
      %v1199 = vld [vmem:[%s165 + $0x78] sm:$0xff]
      %v1200 = vld [vmem:[%s165 + $0x80] sm:$0xff]
      %v1201 = vld [vmem:[%s165 + $0x88] sm:$0xff]
      %v1202 = vld [vmem:[%s165 + $0x90] sm:$0xff]
      %v1203 = vld [vmem:[%s165 + $0x98] sm:$0xff]
      %v1204 = vld [vmem:[%s165 + $0xa0] sm:$0xff]
      %v1205 = vld [vmem:[%s165 + $0xa8] sm:$0xff]
      %v1206 = vld [vmem:[%s165 + $0xb0] sm:$0xff]
      %v1207 = vld [vmem:[%s165 + $0xb8] sm:$0xff]
      %v1208 = vld [vmem:[%s165 + $0xc0] sm:$0xff]
      %v1209 = vld [vmem:[%s165 + $0xc8] sm:$0xff]
      %v1210 = vld [vmem:[%s165 + $0xd0] sm:$0xff]
      %v1211 = vld [vmem:[%s165 + $0xd8] sm:$0xff]
      %v1212 = vld [vmem:[%s165 + $0xe0] sm:$0xff]
      %v1213 = vld [vmem:[%s165 + $0xe8] sm:$0xf]
      %v1214 = vld [vmem:[%s165 + $0xf0] sm:$0x77]
      %v1215 = vld [vmem:[%s165 + $0xf8] sm:$0x77]
      %v1216 = vld [vmem:[%s165 + $0x100] sm:$0x77]
      %v1217 = vld [vmem:[%s165 + $0x108] sm:$0x77]
      %v1218 = vld [vmem:[%s165 + $0x110] sm:$0x77]
      %v1219 = vld [vmem:[%s165 + $0x118] sm:$0x77]
      %v1220 = vld [vmem:[%s165 + $0x120] sm:$0x77]
      %v1221 = vld [vmem:[%s165 + $0x128] sm:$0x77]
      %v1222 = vld [vmem:[%s165 + $0x130] sm:$0x77]
      %v1223 = vld [vmem:[%s165 + $0x138] sm:$0x77]
      %v1224 = vld [vmem:[%s165 + $0x140] sm:$0x77]
      %v1225 = vld [vmem:[%s165 + $0x148] sm:$0x77]
      %v1226 = vld [vmem:[%s165 + $0x150] sm:$0x77]
      %v1227 = vld [vmem:[%s165 + $0x158] sm:$0x77]
      %v1228 = vld [vmem:[%s165 + $0x160] sm:$0x77]
      %v1229 = vld [vmem:[%s165 + $0x168] sm:$0x77]
      %v1230 = vld [vmem:[%s165 + $0x170] sm:$0x77]
      %v1231 = vld [vmem:[%s165 + $0x178] sm:$0x77]
      %v1232 = vld [vmem:[%s165 + $0x180] sm:$0x77]
      %v1233 = vld [vmem:[%s165 + $0x188] sm:$0x77]
      %v1234 = vld [vmem:[%s165 + $0x190] sm:$0x77]
      %v1235 = vld [vmem:[%s165 + $0x198] sm:$0x77]
      %v1236 = vld [vmem:[%s165 + $0x1a0] sm:$0x77]
      %v1237 = vld [vmem:[%s165 + $0x1a8] sm:$0x77]
      %v1238 = vld [vmem:[%s165 + $0x1b0] sm:$0x77]
      %v1239 = vld [vmem:[%s165 + $0x1b8] sm:$0x77]
      %v1240 = vld [vmem:[%s165 + $0x1c0] sm:$0x77]
      %v1241 = vld [vmem:[%s165 + $0x1c8] sm:$0x77]
      %v1242 = vld [vmem:[%s165 + $0x1d0] sm:$0x77]
      %v1243 = vld [vmem:[%s165 + $0x1d8] sm:$0x7]
      %vm1304 = vcmask 1040384
      %vm1305 = vcmask 1044484
      %vm1306 = vmor %vm1304, %vm1305
      %v1307 = vrot.slane %v1184, 7
      %v1308 = vrot.slane %v1185, 7
      %v1309 = vrot.slane %v1186, 7
      %v1310 = vrot.slane %v1187, 7
      %v1311 = vrot.slane %v1188, 7
      %v1312 = vrot.slane %v1189, 7
      %v1313 = vrot.slane %v1190, 7
      %v1314 = vrot.slane %v1191, 7
      %v1315 = vrot.slane %v1192, 7
      %v1316 = vrot.slane %v1193, 7
      %v1317 = vrot.slane %v1194, 7
      %v1318 = vrot.slane %v1195, 7
      %v1319 = vrot.slane %v1196, 7
      %v1320 = vrot.slane %v1197, 7
      %v1321 = vrot.slane %v1198, 7
      %v1322 = vrot.slane %v1199, 7
      %v1323 = vrot.slane %v1200, 7
      %v1324 = vrot.slane %v1201, 7
      %v1325 = vrot.slane %v1202, 7
      %v1326 = vrot.slane %v1203, 7
      %v1327 = vrot.slane %v1204, 7
      %v1328 = vrot.slane %v1205, 7
      %v1329 = vrot.slane %v1206, 7
      %v1330 = vrot.slane %v1207, 7
      %v1331 = vrot.slane %v1208, 7
      %v1332 = vrot.slane %v1209, 7
      %v1333 = vrot.slane %v1210, 7
      %v1334 = vrot.slane %v1211, 7
      %v1335 = vrot.slane %v1212, 7
      %v1336 = vrot.slane %v1213, 7
      %v1337 = vrot.slane %v1307, 4
      %v1338 = vrot.slane %v1214, 7
      %v1339 = vsel %vm1306, %v1337, %v1338
      %v1340 = vrot.slane %v1308, 4
      %v1341 = vrot.slane %v1215, 7
      %v1342 = vsel %vm1306, %v1340, %v1341
      %v1343 = vrot.slane %v1309, 4
      %v1344 = vrot.slane %v1216, 7
      %v1345 = vsel %vm1306, %v1343, %v1344
      %v1346 = vrot.slane %v1310, 4
      %v1347 = vrot.slane %v1217, 7
      %v1348 = vsel %vm1306, %v1346, %v1347
      %v1349 = vrot.slane %v1311, 4
      %v1350 = vrot.slane %v1218, 7
      %v1351 = vsel %vm1306, %v1349, %v1350
      %v1352 = vrot.slane %v1312, 4
      %v1353 = vrot.slane %v1219, 7
      %v1354 = vsel %vm1306, %v1352, %v1353
      %v1355 = vrot.slane %v1313, 4
      %v1356 = vrot.slane %v1220, 7
      %v1357 = vsel %vm1306, %v1355, %v1356
      %v1358 = vrot.slane %v1314, 4
      %v1359 = vrot.slane %v1221, 7
      %v1360 = vsel %vm1306, %v1358, %v1359
      %v1361 = vrot.slane %v1315, 4
      %v1362 = vrot.slane %v1222, 7
      %v1363 = vsel %vm1306, %v1361, %v1362
      %v1364 = vrot.slane %v1316, 4
      %v1365 = vrot.slane %v1223, 7
      %v1366 = vsel %vm1306, %v1364, %v1365
      %v1367 = vrot.slane %v1317, 4
      %v1368 = vrot.slane %v1224, 7
      %v1369 = vsel %vm1306, %v1367, %v1368
      %v1370 = vrot.slane %v1318, 4
      %v1371 = vrot.slane %v1225, 7
      %v1372 = vsel %vm1306, %v1370, %v1371
      %v1373 = vrot.slane %v1319, 4
      %v1374 = vrot.slane %v1226, 7
      %v1375 = vsel %vm1306, %v1373, %v1374
      %v1376 = vrot.slane %v1320, 4
      %v1377 = vrot.slane %v1227, 7
      %v1378 = vsel %vm1306, %v1376, %v1377
      %v1379 = vrot.slane %v1321, 4
      %v1380 = vrot.slane %v1228, 7
      %v1381 = vsel %vm1306, %v1379, %v1380
      %v1382 = vrot.slane %v1322, 4
      %v1383 = vrot.slane %v1229, 7
      %v1384 = vsel %vm1306, %v1382, %v1383
      %v1385 = vrot.slane %v1323, 4
      %v1386 = vrot.slane %v1230, 7
      %v1387 = vsel %vm1306, %v1385, %v1386
      %v1388 = vrot.slane %v1324, 4
      %v1389 = vrot.slane %v1231, 7
      %v1390 = vsel %vm1306, %v1388, %v1389
      %v1391 = vrot.slane %v1325, 4
      %v1392 = vrot.slane %v1232, 7
      %v1393 = vsel %vm1306, %v1391, %v1392
      %v1394 = vrot.slane %v1326, 4
      %v1395 = vrot.slane %v1233, 7
      %v1396 = vsel %vm1306, %v1394, %v1395
      %v1397 = vrot.slane %v1327, 4
      %v1398 = vrot.slane %v1234, 7
      %v1399 = vsel %vm1306, %v1397, %v1398
      %v1400 = vrot.slane %v1328, 4
      %v1401 = vrot.slane %v1235, 7
      %v1402 = vsel %vm1306, %v1400, %v1401
      %v1403 = vrot.slane %v1329, 4
      %v1404 = vrot.slane %v1236, 7
      %v1405 = vsel %vm1306, %v1403, %v1404
      %v1406 = vrot.slane %v1330, 4
      %v1407 = vrot.slane %v1237, 7
      %v1408 = vsel %vm1306, %v1406, %v1407
      %v1409 = vrot.slane %v1331, 4
      %v1410 = vrot.slane %v1238, 7
      %v1411 = vsel %vm1306, %v1409, %v1410
      %v1412 = vrot.slane %v1332, 4
      %v1413 = vrot.slane %v1239, 7
      %v1414 = vsel %vm1306, %v1412, %v1413
      %v1415 = vrot.slane %v1333, 4
      %v1416 = vrot.slane %v1240, 7
      %v1417 = vsel %vm1306, %v1415, %v1416
      %v1418 = vrot.slane %v1334, 4
      %v1419 = vrot.slane %v1241, 7
      %v1420 = vsel %vm1306, %v1418, %v1419
      %v1421 = vrot.slane %v1335, 4
      %v1422 = vrot.slane %v1242, 7
      %v1423 = vsel %vm1306, %v1421, %v1422
      %v1424 = vrot.slane %v1336, 4
      %v1425 = vrot.slane %v1243, 7
      %v1426 = vsel %vm1306, %v1424, %v1425
      %1427 = vrot.lane.b32.xlu0 %v1307, 42
      %v1428 = vpop.permute.xlu0 %1427
      %1429 = vrot.lane.b32.xlu0 %v1308, 42
      %v1430 = vpop.permute.xlu0 %1429
      %1431 = vrot.lane.b32.xlu0 %v1309, 42
      %v1432 = vpop.permute.xlu0 %1431
      %1433 = vrot.lane.b32.xlu0 %v1310, 42
      %v1434 = vpop.permute.xlu0 %1433
      %1435 = vrot.lane.b32.xlu0 %v1311, 42
      %v1436 = vpop.permute.xlu0 %1435
      %1437 = vrot.lane.b32.xlu0 %v1312, 42
      %v1438 = vpop.permute.xlu0 %1437
      %1439 = vrot.lane.b32.xlu0 %v1313, 42
      %v1440 = vpop.permute.xlu0 %1439
      %1441 = vrot.lane.b32.xlu0 %v1314, 42
      %v1442 = vpop.permute.xlu0 %1441
      %1443 = vrot.lane.b32.xlu0 %v1315, 42
      %v1444 = vpop.permute.xlu0 %1443
      %1445 = vrot.lane.b32.xlu0 %v1316, 42
      %v1446 = vpop.permute.xlu0 %1445
      %1447 = vrot.lane.b32.xlu0 %v1317, 42
      %v1448 = vpop.permute.xlu0 %1447
      %1449 = vrot.lane.b32.xlu0 %v1318, 42
      %v1450 = vpop.permute.xlu0 %1449
      %1451 = vrot.lane.b32.xlu0 %v1319, 42
      %v1452 = vpop.permute.xlu0 %1451
      %1453 = vrot.lane.b32.xlu0 %v1320, 42
      %v1454 = vpop.permute.xlu0 %1453
      %1455 = vrot.lane.b32.xlu0 %v1321, 42
      %v1456 = vpop.permute.xlu0 %1455
      %1457 = vrot.lane.b32.xlu0 %v1322, 42
      %v1458 = vpop.permute.xlu0 %1457
      %1459 = vrot.lane.b32.xlu0 %v1323, 42
      %v1460 = vpop.permute.xlu0 %1459
      %1461 = vrot.lane.b32.xlu0 %v1324, 42
      %v1462 = vpop.permute.xlu0 %1461
      %1463 = vrot.lane.b32.xlu0 %v1325, 42
      %v1464 = vpop.permute.xlu0 %1463
      %1465 = vrot.lane.b32.xlu0 %v1326, 42
      %v1466 = vpop.permute.xlu0 %1465
      %1467 = vrot.lane.b32.xlu0 %v1327, 42
      %v1468 = vpop.permute.xlu0 %1467
      %1469 = vrot.lane.b32.xlu0 %v1328, 42
      %v1470 = vpop.permute.xlu0 %1469
      %1471 = vrot.lane.b32.xlu0 %v1329, 42
      %v1472 = vpop.permute.xlu0 %1471
      %1473 = vrot.lane.b32.xlu0 %v1330, 42
      %v1474 = vpop.permute.xlu0 %1473
      %1475 = vrot.lane.b32.xlu0 %v1331, 42
      %v1476 = vpop.permute.xlu0 %1475
      %1477 = vrot.lane.b32.xlu0 %v1332, 42
      %v1478 = vpop.permute.xlu0 %1477
      %1479 = vrot.lane.b32.xlu0 %v1333, 42
      %v1480 = vpop.permute.xlu0 %1479
      %1481 = vrot.lane.b32.xlu0 %v1334, 42
      %v1482 = vpop.permute.xlu0 %1481
      %1483 = vrot.lane.b32.xlu0 %v1335, 42
      %v1484 = vpop.permute.xlu0 %1483
      %1485 = vrot.lane.b32.xlu0 %v1336, 42
      %v1486 = vpop.permute.xlu0 %1485
      %1487 = vrot.lane.b32.xlu0 %v1339, 42
      %v1488 = vpop.permute.xlu0 %1487
      %1489 = vrot.lane.b32.xlu0 %v1342, 42
      %v1490 = vpop.permute.xlu0 %1489
      %1491 = vrot.lane.b32.xlu0 %v1345, 42
      %v1492 = vpop.permute.xlu0 %1491
      %1493 = vrot.lane.b32.xlu0 %v1348, 42
      %v1494 = vpop.permute.xlu0 %1493
      %1495 = vrot.lane.b32.xlu0 %v1351, 42
      %v1496 = vpop.permute.xlu0 %1495
      %1497 = vrot.lane.b32.xlu0 %v1354, 42
      %v1498 = vpop.permute.xlu0 %1497
      %1499 = vrot.lane.b32.xlu0 %v1357, 42
      %v1500 = vpop.permute.xlu0 %1499
      %1501 = vrot.lane.b32.xlu0 %v1360, 42
      %v1502 = vpop.permute.xlu0 %1501
      %1503 = vrot.lane.b32.xlu0 %v1363, 42
      %v1504 = vpop.permute.xlu0 %1503
      %1505 = vrot.lane.b32.xlu0 %v1366, 42
      %v1506 = vpop.permute.xlu0 %1505
      %1507 = vrot.lane.b32.xlu0 %v1369, 42
      %v1508 = vpop.permute.xlu0 %1507
      %1509 = vrot.lane.b32.xlu0 %v1372, 42
      %v1510 = vpop.permute.xlu0 %1509
      %1511 = vrot.lane.b32.xlu0 %v1375, 42
      %v1512 = vpop.permute.xlu0 %1511
      %1513 = vrot.lane.b32.xlu0 %v1378, 42
      %v1514 = vpop.permute.xlu0 %1513
      %1515 = vrot.lane.b32.xlu0 %v1381, 42
      %v1516 = vpop.permute.xlu0 %1515
      %1517 = vrot.lane.b32.xlu0 %v1384, 42
      %v1518 = vpop.permute.xlu0 %1517
      %1519 = vrot.lane.b32.xlu0 %v1387, 42
      %v1520 = vpop.permute.xlu0 %1519
      %1521 = vrot.lane.b32.xlu0 %v1390, 42
      %v1522 = vpop.permute.xlu0 %1521
      %1523 = vrot.lane.b32.xlu0 %v1393, 42
      %v1524 = vpop.permute.xlu0 %1523
      %1525 = vrot.lane.b32.xlu0 %v1396, 42
      %v1526 = vpop.permute.xlu0 %1525
      %1527 = vrot.lane.b32.xlu0 %v1399, 42
      %v1528 = vpop.permute.xlu0 %1527
      %1529 = vrot.lane.b32.xlu0 %v1402, 42
      %v1530 = vpop.permute.xlu0 %1529
      %1531 = vrot.lane.b32.xlu0 %v1405, 42
      %v1532 = vpop.permute.xlu0 %1531
      %1533 = vrot.lane.b32.xlu0 %v1408, 42
      %v1534 = vpop.permute.xlu0 %1533
      %1535 = vrot.lane.b32.xlu0 %v1411, 42
      %v1536 = vpop.permute.xlu0 %1535
      %1537 = vrot.lane.b32.xlu0 %v1414, 42
      %v1538 = vpop.permute.xlu0 %1537
      %1539 = vrot.lane.b32.xlu0 %v1417, 42
      %v1540 = vpop.permute.xlu0 %1539
      %1541 = vrot.lane.b32.xlu0 %v1420, 42
      %v1542 = vpop.permute.xlu0 %1541
      %1543 = vrot.lane.b32.xlu0 %v1423, 42
      %v1544 = vpop.permute.xlu0 %1543
      %1545 = vrot.lane.b32.xlu0 %v1426, 42
      %v1546 = vpop.permute.xlu0 %1545
      %v1547 = vrot.slane %v1428, 4
      %v1548 = vrot.slane %v1430, 4
      %v1549 = vrot.slane %v1432, 4
      %v1550 = vrot.slane %v1434, 4
      %v1551 = vrot.slane %v1436, 4
      %v1552 = vrot.slane %v1438, 4
      %v1553 = vrot.slane %v1440, 4
      %v1554 = vrot.slane %v1442, 4
      %v1555 = vrot.slane %v1444, 4
      %v1556 = vrot.slane %v1446, 4
      %v1557 = vrot.slane %v1448, 4
      %v1558 = vrot.slane %v1450, 4
      %v1559 = vrot.slane %v1452, 4
      %v1560 = vrot.slane %v1454, 4
      %v1561 = vrot.slane %v1456, 4
      %v1562 = vrot.slane %v1458, 4
      %v1563 = vrot.slane %v1460, 4
      %v1564 = vrot.slane %v1462, 4
      %v1565 = vrot.slane %v1464, 4
      %v1566 = vrot.slane %v1466, 4
      %v1567 = vrot.slane %v1468, 4
      %v1568 = vrot.slane %v1470, 4
      %v1569 = vrot.slane %v1472, 4
      %v1570 = vrot.slane %v1474, 4
      %v1571 = vrot.slane %v1476, 4
      %v1572 = vrot.slane %v1478, 4
      %v1573 = vrot.slane %v1480, 4
      %v1574 = vrot.slane %v1482, 4
      %v1575 = vrot.slane %v1484, 4
      %v1576 = vrot.slane %v1486, 4
      %v1577 = vrot.slane %v1488, 4
      %v1578 = vrot.slane %v1490, 4
      %v1579 = vrot.slane %v1492, 4
      %v1580 = vrot.slane %v1494, 4
      %v1581 = vrot.slane %v1496, 4
      %v1582 = vrot.slane %v1498, 4
      %v1583 = vrot.slane %v1500, 4
      %v1584 = vrot.slane %v1502, 4
      %v1585 = vrot.slane %v1504, 4
      %v1586 = vrot.slane %v1506, 4
      %v1587 = vrot.slane %v1508, 4
      %v1588 = vrot.slane %v1510, 4
      %v1589 = vrot.slane %v1512, 4
      %v1590 = vrot.slane %v1514, 4
      %v1591 = vrot.slane %v1516, 4
      %v1592 = vrot.slane %v1518, 4
      %v1593 = vrot.slane %v1520, 4
      %v1594 = vrot.slane %v1522, 4
      %v1595 = vrot.slane %v1524, 4
      %v1596 = vrot.slane %v1526, 4
      %v1597 = vrot.slane %v1528, 4
      %v1598 = vrot.slane %v1530, 4
      %v1599 = vrot.slane %v1532, 4
      %v1600 = vrot.slane %v1534, 4
      %v1601 = vrot.slane %v1536, 4
      %v1602 = vrot.slane %v1538, 4
      %v1603 = vrot.slane %v1540, 4
      %v1604 = vrot.slane %v1542, 4
      %v1605 = vrot.slane %v1544, 4
      %v1606 = vrot.slane %v1546, 4
      %vm1607 = vcmask 1043456
      %v1608 = vsel %vm1607, %v1547, %v1548
      %vm1609 = vcmask 343040
      %v1610 = vsel %vm1609, %v1428, %v1608
      %v1611 = vsel %vm1607, %v1548, %v1549
      %v1612 = vsel %vm1609, %v1430, %v1611
      %v1613 = vsel %vm1607, %v1549, %v1550
      %v1614 = vsel %vm1609, %v1432, %v1613
      %v1615 = vsel %vm1607, %v1550, %v1551
      %v1616 = vsel %vm1609, %v1434, %v1615
      %v1617 = vsel %vm1607, %v1551, %v1552
      %v1618 = vsel %vm1609, %v1436, %v1617
      %v1619 = vsel %vm1607, %v1552, %v1553
      %v1620 = vsel %vm1609, %v1438, %v1619
      %v1621 = vsel %vm1607, %v1553, %v1554
      %v1622 = vsel %vm1609, %v1440, %v1621
      %v1623 = vsel %vm1607, %v1554, %v1555
      %v1624 = vsel %vm1609, %v1442, %v1623
      %v1625 = vsel %vm1607, %v1555, %v1556
      %v1626 = vsel %vm1609, %v1444, %v1625
      %v1627 = vsel %vm1607, %v1556, %v1557
      %v1628 = vsel %vm1609, %v1446, %v1627
      %v1629 = vsel %vm1607, %v1557, %v1558
      %v1630 = vsel %vm1609, %v1448, %v1629
      %v1631 = vsel %vm1607, %v1558, %v1559
      %v1632 = vsel %vm1609, %v1450, %v1631
      %v1633 = vsel %vm1607, %v1559, %v1560
      %v1634 = vsel %vm1609, %v1452, %v1633
      %v1635 = vsel %vm1607, %v1560, %v1561
      %v1636 = vsel %vm1609, %v1454, %v1635
      %v1637 = vsel %vm1607, %v1561, %v1562
      %v1638 = vsel %vm1609, %v1456, %v1637
      %v1639 = vsel %vm1607, %v1562, %v1563
      %v1640 = vsel %vm1609, %v1458, %v1639
      %v1641 = vsel %vm1607, %v1563, %v1564
      %v1642 = vsel %vm1609, %v1460, %v1641
      %v1643 = vsel %vm1607, %v1564, %v1565
      %v1644 = vsel %vm1609, %v1462, %v1643
      %v1645 = vsel %vm1607, %v1565, %v1566
      %v1646 = vsel %vm1609, %v1464, %v1645
      %v1647 = vsel %vm1607, %v1566, %v1567
      %v1648 = vsel %vm1609, %v1466, %v1647
      %v1649 = vsel %vm1607, %v1567, %v1568
      %v1650 = vsel %vm1609, %v1468, %v1649
      %v1651 = vsel %vm1607, %v1568, %v1569
      %v1652 = vsel %vm1609, %v1470, %v1651
      %v1653 = vsel %vm1607, %v1569, %v1570
      %v1654 = vsel %vm1609, %v1472, %v1653
      %v1655 = vsel %vm1607, %v1570, %v1571
      %v1656 = vsel %vm1609, %v1474, %v1655
      %v1657 = vsel %vm1607, %v1571, %v1572
      %v1658 = vsel %vm1609, %v1476, %v1657
      %v1659 = vsel %vm1607, %v1572, %v1573
      %v1660 = vsel %vm1609, %v1478, %v1659
      %v1661 = vsel %vm1607, %v1573, %v1574
      %v1662 = vsel %vm1609, %v1480, %v1661
      %v1663 = vsel %vm1607, %v1574, %v1575
      %v1664 = vsel %vm1609, %v1482, %v1663
      %v1665 = vsel %vm1607, %v1575, %v1576
      %v1666 = vsel %vm1609, %v1484, %v1665
      %v1667 = vsel %vm1607, %v1577, %v1578
      %v1668 = vsel %vm1609, %v1488, %v1667
      %v1669 = vsel %vm1607, %v1578, %v1579
      %v1670 = vsel %vm1609, %v1490, %v1669
      %v1671 = vsel %vm1607, %v1579, %v1580
      %v1672 = vsel %vm1609, %v1492, %v1671
      %v1673 = vsel %vm1607, %v1580, %v1581
      %v1674 = vsel %vm1609, %v1494, %v1673
      %v1675 = vsel %vm1607, %v1581, %v1582
      %v1676 = vsel %vm1609, %v1496, %v1675
      %v1677 = vsel %vm1607, %v1582, %v1583
      %v1678 = vsel %vm1609, %v1498, %v1677
      %v1679 = vsel %vm1607, %v1583, %v1584
      %v1680 = vsel %vm1609, %v1500, %v1679
      %v1681 = vsel %vm1607, %v1584, %v1585
      %v1682 = vsel %vm1609, %v1502, %v1681
      %v1683 = vsel %vm1607, %v1585, %v1586
      %v1684 = vsel %vm1609, %v1504, %v1683
      %v1685 = vsel %vm1607, %v1586, %v1587
      %v1686 = vsel %vm1609, %v1506, %v1685
      %v1687 = vsel %vm1607, %v1587, %v1588
      %v1688 = vsel %vm1609, %v1508, %v1687
      %v1689 = vsel %vm1607, %v1588, %v1589
      %v1690 = vsel %vm1609, %v1510, %v1689
      %v1691 = vsel %vm1607, %v1589, %v1590
      %v1692 = vsel %vm1609, %v1512, %v1691
      %v1693 = vsel %vm1607, %v1590, %v1591
      %v1694 = vsel %vm1609, %v1514, %v1693
      %v1695 = vsel %vm1607, %v1591, %v1592
      %v1696 = vsel %vm1609, %v1516, %v1695
      %v1697 = vsel %vm1607, %v1592, %v1593
      %v1698 = vsel %vm1609, %v1518, %v1697
      %v1699 = vsel %vm1607, %v1593, %v1594
      %v1700 = vsel %vm1609, %v1520, %v1699
      %v1701 = vsel %vm1607, %v1594, %v1595
      %v1702 = vsel %vm1609, %v1522, %v1701
      %v1703 = vsel %vm1607, %v1595, %v1596
      %v1704 = vsel %vm1609, %v1524, %v1703
      %v1705 = vsel %vm1607, %v1596, %v1597
      %v1706 = vsel %vm1609, %v1526, %v1705
      %v1707 = vsel %vm1607, %v1597, %v1598
      %v1708 = vsel %vm1609, %v1528, %v1707
      %v1709 = vsel %vm1607, %v1598, %v1599
      %v1710 = vsel %vm1609, %v1530, %v1709
      %v1711 = vsel %vm1607, %v1599, %v1600
      %v1712 = vsel %vm1609, %v1532, %v1711
      %v1713 = vsel %vm1607, %v1600, %v1601
      %v1714 = vsel %vm1609, %v1534, %v1713
      %v1715 = vsel %vm1607, %v1601, %v1602
      %v1716 = vsel %vm1609, %v1536, %v1715
      %v1717 = vsel %vm1607, %v1602, %v1603
      %v1718 = vsel %vm1609, %v1538, %v1717
      %v1719 = vsel %vm1607, %v1603, %v1604
      %v1720 = vsel %vm1609, %v1540, %v1719
      %v1721 = vsel %vm1607, %v1604, %v1605
      %v1722 = vsel %vm1609, %v1542, %v1721
      %v1723 = vsel %vm1607, %v1605, %v1606
      %v1724 = vsel %vm1609, %v1544, %v1723
      %1783 = vst [vmem:[#allocation2 + $0x488] sm:$0xee] %v1610
      %1784 = vst [vmem:[#allocation2 + $0x490] sm:$0xee] %v1612
      %1785 = vst [vmem:[#allocation2 + $0x498] sm:$0xee] %v1614
      %1786 = vst [vmem:[#allocation2 + $0x4a0] sm:$0xee] %v1616
      %1787 = vst [vmem:[#allocation2 + $0x4a8] sm:$0xee] %v1618
      %1788 = vst [vmem:[#allocation2 + $0x4b0] sm:$0xee] %v1620
      %1789 = vst [vmem:[#allocation2 + $0x4b8] sm:$0xee] %v1622
      %1790 = vst [vmem:[#allocation2 + $0x4c0] sm:$0xee] %v1624
      %1791 = vst [vmem:[#allocation2 + $0x4c8] sm:$0xee] %v1626
      %1792 = vst [vmem:[#allocation2 + $0x4d0] sm:$0xee] %v1628
      %1793 = vst [vmem:[#allocation2 + $0x4d8] sm:$0xee] %v1630
      %1794 = vst [vmem:[#allocation2 + $0x4e0] sm:$0xee] %v1632
      %1795 = vst [vmem:[#allocation2 + $0x4e8] sm:$0xee] %v1634
      %1796 = vst [vmem:[#allocation2 + $0x4f0] sm:$0xee] %v1636
      %1797 = vst [vmem:[#allocation2 + $0x4f8] sm:$0xee] %v1638
      %1798 = vst [vmem:[#allocation2 + $0x500] sm:$0xee] %v1640
      %1799 = vst [vmem:[#allocation2 + $0x508] sm:$0xee] %v1642
      %1800 = vst [vmem:[#allocation2 + $0x510] sm:$0xee] %v1644
      %1801 = vst [vmem:[#allocation2 + $0x518] sm:$0xee] %v1646
      %1802 = vst [vmem:[#allocation2 + $0x520] sm:$0xee] %v1648
      %1803 = vst [vmem:[#allocation2 + $0x528] sm:$0xee] %v1650
      %1804 = vst [vmem:[#allocation2 + $0x530] sm:$0xee] %v1652
      %1805 = vst [vmem:[#allocation2 + $0x538] sm:$0xee] %v1654
      %1806 = vst [vmem:[#allocation2 + $0x540] sm:$0xee] %v1656
      %1807 = vst [vmem:[#allocation2 + $0x548] sm:$0xee] %v1658
      %1808 = vst [vmem:[#allocation2 + $0x550] sm:$0xee] %v1660
      %1809 = vst [vmem:[#allocation2 + $0x558] sm:$0xee] %v1662
      %1810 = vst [vmem:[#allocation2 + $0x560] sm:$0xee] %v1664
      %vm1811 = vcmask 1043457
      %vm1812 = vcmask 818181
      %vm1813 = vmor %vm1812, %vm1811
      %1814 = vst.msk [vmem:[#allocation2 + $0x568] sm:$0xee] %vm1813, %v1666
      %1815 = vst [vmem:[#allocation2 + $0x570] sm:$0xff] %v1668
      %1816 = vst [vmem:[#allocation2 + $0x578] sm:$0xff] %v1670
      %1817 = vst [vmem:[#allocation2 + $0x580] sm:$0xff] %v1672
      %1818 = vst [vmem:[#allocation2 + $0x588] sm:$0xff] %v1674
      %1819 = vst [vmem:[#allocation2 + $0x590] sm:$0xff] %v1676
      %1820 = vst [vmem:[#allocation2 + $0x598] sm:$0xff] %v1678
      %1821 = vst [vmem:[#allocation2 + $0x5a0] sm:$0xff] %v1680
      %1822 = vst [vmem:[#allocation2 + $0x5a8] sm:$0xff] %v1682
      %1823 = vst [vmem:[#allocation2 + $0x5b0] sm:$0xff] %v1684
      %1824 = vst [vmem:[#allocation2 + $0x5b8] sm:$0xff] %v1686
      %1825 = vst [vmem:[#allocation2 + $0x5c0] sm:$0xff] %v1688
      %1826 = vst [vmem:[#allocation2 + $0x5c8] sm:$0xff] %v1690
      %1827 = vst [vmem:[#allocation2 + $0x5d0] sm:$0xff] %v1692
      %1828 = vst [vmem:[#allocation2 + $0x5d8] sm:$0xff] %v1694
      %1829 = vst [vmem:[#allocation2 + $0x5e0] sm:$0xff] %v1696
      %1830 = vst [vmem:[#allocation2 + $0x5e8] sm:$0xff] %v1698
      %1831 = vst [vmem:[#allocation2 + $0x5f0] sm:$0xff] %v1700
      %1832 = vst [vmem:[#allocation2 + $0x5f8] sm:$0xff] %v1702
      %1833 = vst [vmem:[#allocation2 + $0x600] sm:$0xff] %v1704
      %1834 = vst [vmem:[#allocation2 + $0x608] sm:$0xff] %v1706
      %1835 = vst [vmem:[#allocation2 + $0x610] sm:$0xff] %v1708
      %1836 = vst [vmem:[#allocation2 + $0x618] sm:$0xff] %v1710
      %1837 = vst [vmem:[#allocation2 + $0x620] sm:$0xff] %v1712
      %1838 = vst [vmem:[#allocation2 + $0x628] sm:$0xff] %v1714
      %1839 = vst [vmem:[#allocation2 + $0x630] sm:$0xff] %v1716
      %1840 = vst [vmem:[#allocation2 + $0x638] sm:$0xff] %v1718
      %1841 = vst [vmem:[#allocation2 + $0x640] sm:$0xff] %v1720
      %1842 = vst [vmem:[#allocation2 + $0x648] sm:$0xff] %v1722
      %1843 = vst.msk [vmem:[#allocation2 + $0x650] sm:$0xff] %vm260, %v1724
      %v1844 = vld [vmem:[%s294] sm:$0xff]
      %v1845 = vld [vmem:[%s294 + $0x8] sm:$0xff]
      %v1846 = vld [vmem:[%s294 + $0x10] sm:$0xff]
      %v1847 = vld [vmem:[%s294 + $0x18] sm:$0xff]
      %v1848 = vld [vmem:[%s294 + $0x20] sm:$0xff]
      %v1849 = vld [vmem:[%s294 + $0x28] sm:$0xff]
      %v1850 = vld [vmem:[%s294 + $0x30] sm:$0xff]
      %v1851 = vld [vmem:[%s294 + $0x38] sm:$0xff]
      %v1852 = vld [vmem:[%s294 + $0x40] sm:$0xff]
      %v1853 = vld [vmem:[%s294 + $0x48] sm:$0xff]
      %v1854 = vld [vmem:[%s294 + $0x50] sm:$0xff]
      %v1855 = vld [vmem:[%s294 + $0x58] sm:$0xff]
      %v1856 = vld [vmem:[%s294 + $0x60] sm:$0xff]
      %v1857 = vld [vmem:[%s294 + $0x68] sm:$0xff]
      %v1858 = vld [vmem:[%s294 + $0x70] sm:$0xff]
      %v1859 = vld [vmem:[%s294 + $0x78] sm:$0xff]
      %v1860 = vld [vmem:[%s294 + $0x80] sm:$0xff]
      %v1861 = vld [vmem:[%s294 + $0x88] sm:$0xff]
      %v1862 = vld [vmem:[%s294 + $0x90] sm:$0xff]
      %v1863 = vld [vmem:[%s294 + $0x98] sm:$0xff]
      %v1864 = vld [vmem:[%s294 + $0xa0] sm:$0xff]
      %v1865 = vld [vmem:[%s294 + $0xa8] sm:$0xff]
      %v1866 = vld [vmem:[%s294 + $0xb0] sm:$0xff]
      %v1867 = vld [vmem:[%s294 + $0xb8] sm:$0xff]
      %v1868 = vld [vmem:[%s294 + $0xc0] sm:$0xff]
      %v1869 = vld [vmem:[%s294 + $0xc8] sm:$0xff]
      %v1870 = vld [vmem:[%s294 + $0xd0] sm:$0xff]
      %v1871 = vld [vmem:[%s294 + $0xd8] sm:$0xff]
      %v1872 = vld [vmem:[%s294 + $0xe0] sm:$0xff]
      %v1873 = vld [vmem:[%s294 + $0xe8] sm:$0xf]
      %v1874 = vld [vmem:[%s294 + $0xf0] sm:$0x77]
      %v1875 = vld [vmem:[%s294 + $0xf8] sm:$0x77]
      %v1876 = vld [vmem:[%s294 + $0x100] sm:$0x77]
      %v1877 = vld [vmem:[%s294 + $0x108] sm:$0x77]
      %v1878 = vld [vmem:[%s294 + $0x110] sm:$0x77]
      %v1879 = vld [vmem:[%s294 + $0x118] sm:$0x77]
      %v1880 = vld [vmem:[%s294 + $0x120] sm:$0x77]
      %v1881 = vld [vmem:[%s294 + $0x128] sm:$0x77]
      %v1882 = vld [vmem:[%s294 + $0x130] sm:$0x77]
      %v1883 = vld [vmem:[%s294 + $0x138] sm:$0x77]
      %v1884 = vld [vmem:[%s294 + $0x140] sm:$0x77]
      %v1885 = vld [vmem:[%s294 + $0x148] sm:$0x77]
      %v1886 = vld [vmem:[%s294 + $0x150] sm:$0x77]
      %v1887 = vld [vmem:[%s294 + $0x158] sm:$0x77]
      %v1888 = vld [vmem:[%s294 + $0x160] sm:$0x77]
      %v1889 = vld [vmem:[%s294 + $0x168] sm:$0x77]
      %v1890 = vld [vmem:[%s294 + $0x170] sm:$0x77]
      %v1891 = vld [vmem:[%s294 + $0x178] sm:$0x77]
      %v1892 = vld [vmem:[%s294 + $0x180] sm:$0x77]
      %v1893 = vld [vmem:[%s294 + $0x188] sm:$0x77]
      %v1894 = vld [vmem:[%s294 + $0x190] sm:$0x77]
      %v1895 = vld [vmem:[%s294 + $0x198] sm:$0x77]
      %v1896 = vld [vmem:[%s294 + $0x1a0] sm:$0x77]
      %v1897 = vld [vmem:[%s294 + $0x1a8] sm:$0x77]
      %v1898 = vld [vmem:[%s294 + $0x1b0] sm:$0x77]
      %v1899 = vld [vmem:[%s294 + $0x1b8] sm:$0x77]
      %v1900 = vld [vmem:[%s294 + $0x1c0] sm:$0x77]
      %v1901 = vld [vmem:[%s294 + $0x1c8] sm:$0x77]
      %v1902 = vld [vmem:[%s294 + $0x1d0] sm:$0x77]
      %v1903 = vld [vmem:[%s294 + $0x1d8] sm:$0x7]
      %1964 = vrot.lane.b32.xlu0 %v1844, 42
      %v1965 = vpop.permute.xlu0 %1964
      %1966 = vrot.lane.b32.xlu0 %v1845, 42
      %v1967 = vpop.permute.xlu0 %1966
      %1968 = vrot.lane.b32.xlu0 %v1846, 42
      %v1969 = vpop.permute.xlu0 %1968
      %1970 = vrot.lane.b32.xlu0 %v1847, 42
      %v1971 = vpop.permute.xlu0 %1970
      %1972 = vrot.lane.b32.xlu0 %v1848, 42
      %v1973 = vpop.permute.xlu0 %1972
      %1974 = vrot.lane.b32.xlu0 %v1849, 42
      %v1975 = vpop.permute.xlu0 %1974
      %1976 = vrot.lane.b32.xlu0 %v1850, 42
      %v1977 = vpop.permute.xlu0 %1976
      %1978 = vrot.lane.b32.xlu0 %v1851, 42
      %v1979 = vpop.permute.xlu0 %1978
      %1980 = vrot.lane.b32.xlu0 %v1852, 42
      %v1981 = vpop.permute.xlu0 %1980
      %1982 = vrot.lane.b32.xlu0 %v1853, 42
      %v1983 = vpop.permute.xlu0 %1982
      %1984 = vrot.lane.b32.xlu0 %v1854, 42
      %v1985 = vpop.permute.xlu0 %1984
      %1986 = vrot.lane.b32.xlu0 %v1855, 42
      %v1987 = vpop.permute.xlu0 %1986
      %1988 = vrot.lane.b32.xlu0 %v1856, 42
      %v1989 = vpop.permute.xlu0 %1988
      %1990 = vrot.lane.b32.xlu0 %v1857, 42
      %v1991 = vpop.permute.xlu0 %1990
      %1992 = vrot.lane.b32.xlu0 %v1858, 42
      %v1993 = vpop.permute.xlu0 %1992
      %1994 = vrot.lane.b32.xlu0 %v1859, 42
      %v1995 = vpop.permute.xlu0 %1994
      %1996 = vrot.lane.b32.xlu0 %v1860, 42
      %v1997 = vpop.permute.xlu0 %1996
      %1998 = vrot.lane.b32.xlu0 %v1861, 42
      %v1999 = vpop.permute.xlu0 %1998
      %2000 = vrot.lane.b32.xlu0 %v1862, 42
      %v2001 = vpop.permute.xlu0 %2000
      %2002 = vrot.lane.b32.xlu0 %v1863, 42
      %v2003 = vpop.permute.xlu0 %2002
      %2004 = vrot.lane.b32.xlu0 %v1864, 42
      %v2005 = vpop.permute.xlu0 %2004
      %2006 = vrot.lane.b32.xlu0 %v1865, 42
      %v2007 = vpop.permute.xlu0 %2006
      %2008 = vrot.lane.b32.xlu0 %v1866, 42
      %v2009 = vpop.permute.xlu0 %2008
      %2010 = vrot.lane.b32.xlu0 %v1867, 42
      %v2011 = vpop.permute.xlu0 %2010
      %2012 = vrot.lane.b32.xlu0 %v1868, 42
      %v2013 = vpop.permute.xlu0 %2012
      %2014 = vrot.lane.b32.xlu0 %v1869, 42
      %v2015 = vpop.permute.xlu0 %2014
      %2016 = vrot.lane.b32.xlu0 %v1870, 42
      %v2017 = vpop.permute.xlu0 %2016
      %2018 = vrot.lane.b32.xlu0 %v1871, 42
      %v2019 = vpop.permute.xlu0 %2018
      %2020 = vrot.lane.b32.xlu0 %v1872, 42
      %v2021 = vpop.permute.xlu0 %2020
      %2022 = vrot.lane.b32.xlu0 %v1873, 42
      %v2023 = vpop.permute.xlu0 %2022
      %2024 = vrot.lane.b32.xlu0 %v1874, 42
      %v2025 = vpop.permute.xlu0 %2024
      %2026 = vrot.lane.b32.xlu0 %v1875, 42
      %v2027 = vpop.permute.xlu0 %2026
      %2028 = vrot.lane.b32.xlu0 %v1876, 42
      %v2029 = vpop.permute.xlu0 %2028
      %2030 = vrot.lane.b32.xlu0 %v1877, 42
      %v2031 = vpop.permute.xlu0 %2030
      %2032 = vrot.lane.b32.xlu0 %v1878, 42
      %v2033 = vpop.permute.xlu0 %2032
      %2034 = vrot.lane.b32.xlu0 %v1879, 42
      %v2035 = vpop.permute.xlu0 %2034
      %2036 = vrot.lane.b32.xlu0 %v1880, 42
      %v2037 = vpop.permute.xlu0 %2036
      %2038 = vrot.lane.b32.xlu0 %v1881, 42
      %v2039 = vpop.permute.xlu0 %2038
      %2040 = vrot.lane.b32.xlu0 %v1882, 42
      %v2041 = vpop.permute.xlu0 %2040
      %2042 = vrot.lane.b32.xlu0 %v1883, 42
      %v2043 = vpop.permute.xlu0 %2042
      %2044 = vrot.lane.b32.xlu0 %v1884, 42
      %v2045 = vpop.permute.xlu0 %2044
      %2046 = vrot.lane.b32.xlu0 %v1885, 42
      %v2047 = vpop.permute.xlu0 %2046
      %2048 = vrot.lane.b32.xlu0 %v1886, 42
      %v2049 = vpop.permute.xlu0 %2048
      %2050 = vrot.lane.b32.xlu0 %v1887, 42
      %v2051 = vpop.permute.xlu0 %2050
      %2052 = vrot.lane.b32.xlu0 %v1888, 42
      %v2053 = vpop.permute.xlu0 %2052
      %2054 = vrot.lane.b32.xlu0 %v1889, 42
      %v2055 = vpop.permute.xlu0 %2054
      %2056 = vrot.lane.b32.xlu0 %v1890, 42
      %v2057 = vpop.permute.xlu0 %2056
      %2058 = vrot.lane.b32.xlu0 %v1891, 42
      %v2059 = vpop.permute.xlu0 %2058
      %2060 = vrot.lane.b32.xlu0 %v1892, 42
      %v2061 = vpop.permute.xlu0 %2060
      %2062 = vrot.lane.b32.xlu0 %v1893, 42
      %v2063 = vpop.permute.xlu0 %2062
      %2064 = vrot.lane.b32.xlu0 %v1894, 42
      %v2065 = vpop.permute.xlu0 %2064
      %2066 = vrot.lane.b32.xlu0 %v1895, 42
      %v2067 = vpop.permute.xlu0 %2066
      %2068 = vrot.lane.b32.xlu0 %v1896, 42
      %v2069 = vpop.permute.xlu0 %2068
      %2070 = vrot.lane.b32.xlu0 %v1897, 42
      %v2071 = vpop.permute.xlu0 %2070
      %2072 = vrot.lane.b32.xlu0 %v1898, 42
      %v2073 = vpop.permute.xlu0 %2072
      %2074 = vrot.lane.b32.xlu0 %v1899, 42
      %v2075 = vpop.permute.xlu0 %2074
      %2076 = vrot.lane.b32.xlu0 %v1900, 42
      %v2077 = vpop.permute.xlu0 %2076
      %2078 = vrot.lane.b32.xlu0 %v1901, 42
      %v2079 = vpop.permute.xlu0 %2078
      %2080 = vrot.lane.b32.xlu0 %v1902, 42
      %v2081 = vpop.permute.xlu0 %2080
      %2082 = vrot.lane.b32.xlu0 %v1903, 42
      %v2083 = vpop.permute.xlu0 %2082
      %v2084 = vrot.slane %v1965, 4
      %v2085 = vrot.slane %v1967, 4
      %v2086 = vrot.slane %v1969, 4
      %v2087 = vrot.slane %v1971, 4
      %v2088 = vrot.slane %v1973, 4
      %v2089 = vrot.slane %v1975, 4
      %v2090 = vrot.slane %v1977, 4
      %v2091 = vrot.slane %v1979, 4
      %v2092 = vrot.slane %v1981, 4
      %v2093 = vrot.slane %v1983, 4
      %v2094 = vrot.slane %v1985, 4
      %v2095 = vrot.slane %v1987, 4
      %v2096 = vrot.slane %v1989, 4
      %v2097 = vrot.slane %v1991, 4
      %v2098 = vrot.slane %v1993, 4
      %v2099 = vrot.slane %v1995, 4
      %v2100 = vrot.slane %v1997, 4
      %v2101 = vrot.slane %v1999, 4
      %v2102 = vrot.slane %v2001, 4
      %v2103 = vrot.slane %v2003, 4
      %v2104 = vrot.slane %v2005, 4
      %v2105 = vrot.slane %v2007, 4
      %v2106 = vrot.slane %v2009, 4
      %v2107 = vrot.slane %v2011, 4
      %v2108 = vrot.slane %v2013, 4
      %v2109 = vrot.slane %v2015, 4
      %v2110 = vrot.slane %v2017, 4
      %v2111 = vrot.slane %v2019, 4
      %v2112 = vrot.slane %v2021, 4
      %v2113 = vrot.slane %v2023, 4
      %v2114 = vrot.slane %v2025, 4
      %v2115 = vrot.slane %v2027, 4
      %v2116 = vrot.slane %v2029, 4
      %v2117 = vrot.slane %v2031, 4
      %v2118 = vrot.slane %v2033, 4
      %v2119 = vrot.slane %v2035, 4
      %v2120 = vrot.slane %v2037, 4
      %v2121 = vrot.slane %v2039, 4
      %v2122 = vrot.slane %v2041, 4
      %v2123 = vrot.slane %v2043, 4
      %v2124 = vrot.slane %v2045, 4
      %v2125 = vrot.slane %v2047, 4
      %v2126 = vrot.slane %v2049, 4
      %v2127 = vrot.slane %v2051, 4
      %v2128 = vrot.slane %v2053, 4
      %v2129 = vrot.slane %v2055, 4
      %v2130 = vrot.slane %v2057, 4
      %v2131 = vrot.slane %v2059, 4
      %v2132 = vrot.slane %v2061, 4
      %v2133 = vrot.slane %v2063, 4
      %v2134 = vrot.slane %v2065, 4
      %v2135 = vrot.slane %v2067, 4
      %v2136 = vrot.slane %v2069, 4
      %v2137 = vrot.slane %v2071, 4
      %v2138 = vrot.slane %v2073, 4
      %v2139 = vrot.slane %v2075, 4
      %v2140 = vrot.slane %v2077, 4
      %v2141 = vrot.slane %v2079, 4
      %v2142 = vrot.slane %v2081, 4
      %v2143 = vrot.slane %v2083, 4
      %v2144 = vsel %vm1607, %v2084, %v2085
      %v2145 = vsel %vm1609, %v1965, %v2144
      %v2146 = vsel %vm1607, %v2085, %v2086
      %v2147 = vsel %vm1609, %v1967, %v2146
      %v2148 = vsel %vm1607, %v2086, %v2087
      %v2149 = vsel %vm1609, %v1969, %v2148
      %v2150 = vsel %vm1607, %v2087, %v2088
      %v2151 = vsel %vm1609, %v1971, %v2150
      %v2152 = vsel %vm1607, %v2088, %v2089
      %v2153 = vsel %vm1609, %v1973, %v2152
      %v2154 = vsel %vm1607, %v2089, %v2090
      %v2155 = vsel %vm1609, %v1975, %v2154
      %v2156 = vsel %vm1607, %v2090, %v2091
      %v2157 = vsel %vm1609, %v1977, %v2156
      %v2158 = vsel %vm1607, %v2091, %v2092
      %v2159 = vsel %vm1609, %v1979, %v2158
      %v2160 = vsel %vm1607, %v2092, %v2093
      %v2161 = vsel %vm1609, %v1981, %v2160
      %v2162 = vsel %vm1607, %v2093, %v2094
      %v2163 = vsel %vm1609, %v1983, %v2162
      %v2164 = vsel %vm1607, %v2094, %v2095
      %v2165 = vsel %vm1609, %v1985, %v2164
      %v2166 = vsel %vm1607, %v2095, %v2096
      %v2167 = vsel %vm1609, %v1987, %v2166
      %v2168 = vsel %vm1607, %v2096, %v2097
      %v2169 = vsel %vm1609, %v1989, %v2168
      %v2170 = vsel %vm1607, %v2097, %v2098
      %v2171 = vsel %vm1609, %v1991, %v2170
      %v2172 = vsel %vm1607, %v2098, %v2099
      %v2173 = vsel %vm1609, %v1993, %v2172
      %v2174 = vsel %vm1607, %v2099, %v2100
      %v2175 = vsel %vm1609, %v1995, %v2174
      %v2176 = vsel %vm1607, %v2100, %v2101
      %v2177 = vsel %vm1609, %v1997, %v2176
      %v2178 = vsel %vm1607, %v2101, %v2102
      %v2179 = vsel %vm1609, %v1999, %v2178
      %v2180 = vsel %vm1607, %v2102, %v2103
      %v2181 = vsel %vm1609, %v2001, %v2180
      %v2182 = vsel %vm1607, %v2103, %v2104
      %v2183 = vsel %vm1609, %v2003, %v2182
      %v2184 = vsel %vm1607, %v2104, %v2105
      %v2185 = vsel %vm1609, %v2005, %v2184
      %v2186 = vsel %vm1607, %v2105, %v2106
      %v2187 = vsel %vm1609, %v2007, %v2186
      %v2188 = vsel %vm1607, %v2106, %v2107
      %v2189 = vsel %vm1609, %v2009, %v2188
      %v2190 = vsel %vm1607, %v2107, %v2108
      %v2191 = vsel %vm1609, %v2011, %v2190
      %v2192 = vsel %vm1607, %v2108, %v2109
      %v2193 = vsel %vm1609, %v2013, %v2192
      %v2194 = vsel %vm1607, %v2109, %v2110
      %v2195 = vsel %vm1609, %v2015, %v2194
      %v2196 = vsel %vm1607, %v2110, %v2111
      %v2197 = vsel %vm1609, %v2017, %v2196
      %v2198 = vsel %vm1607, %v2111, %v2112
      %v2199 = vsel %vm1609, %v2019, %v2198
      %v2200 = vsel %vm1607, %v2112, %v2113
      %v2201 = vsel %vm1609, %v2021, %v2200
      %v2202 = vsel %vm1607, %v2114, %v2115
      %v2203 = vsel %vm1609, %v2025, %v2202
      %v2204 = vsel %vm1607, %v2115, %v2116
      %v2205 = vsel %vm1609, %v2027, %v2204
      %v2206 = vsel %vm1607, %v2116, %v2117
      %v2207 = vsel %vm1609, %v2029, %v2206
      %v2208 = vsel %vm1607, %v2117, %v2118
      %v2209 = vsel %vm1609, %v2031, %v2208
      %v2210 = vsel %vm1607, %v2118, %v2119
      %v2211 = vsel %vm1609, %v2033, %v2210
      %v2212 = vsel %vm1607, %v2119, %v2120
      %v2213 = vsel %vm1609, %v2035, %v2212
      %v2214 = vsel %vm1607, %v2120, %v2121
      %v2215 = vsel %vm1609, %v2037, %v2214
      %v2216 = vsel %vm1607, %v2121, %v2122
      %v2217 = vsel %vm1609, %v2039, %v2216
      %v2218 = vsel %vm1607, %v2122, %v2123
      %v2219 = vsel %vm1609, %v2041, %v2218
      %v2220 = vsel %vm1607, %v2123, %v2124
      %v2221 = vsel %vm1609, %v2043, %v2220
      %v2222 = vsel %vm1607, %v2124, %v2125
      %v2223 = vsel %vm1609, %v2045, %v2222
      %v2224 = vsel %vm1607, %v2125, %v2126
      %v2225 = vsel %vm1609, %v2047, %v2224
      %v2226 = vsel %vm1607, %v2126, %v2127
      %v2227 = vsel %vm1609, %v2049, %v2226
      %v2228 = vsel %vm1607, %v2127, %v2128
      %v2229 = vsel %vm1609, %v2051, %v2228
      %v2230 = vsel %vm1607, %v2128, %v2129
      %v2231 = vsel %vm1609, %v2053, %v2230
      %v2232 = vsel %vm1607, %v2129, %v2130
      %v2233 = vsel %vm1609, %v2055, %v2232
      %v2234 = vsel %vm1607, %v2130, %v2131
      %v2235 = vsel %vm1609, %v2057, %v2234
      %v2236 = vsel %vm1607, %v2131, %v2132
      %v2237 = vsel %vm1609, %v2059, %v2236
      %v2238 = vsel %vm1607, %v2132, %v2133
      %v2239 = vsel %vm1609, %v2061, %v2238
      %v2240 = vsel %vm1607, %v2133, %v2134
      %v2241 = vsel %vm1609, %v2063, %v2240
      %v2242 = vsel %vm1607, %v2134, %v2135
      %v2243 = vsel %vm1609, %v2065, %v2242
      %v2244 = vsel %vm1607, %v2135, %v2136
      %v2245 = vsel %vm1609, %v2067, %v2244
      %v2246 = vsel %vm1607, %v2136, %v2137
      %v2247 = vsel %vm1609, %v2069, %v2246
      %v2248 = vsel %vm1607, %v2137, %v2138
      %v2249 = vsel %vm1609, %v2071, %v2248
      %v2250 = vsel %vm1607, %v2138, %v2139
      %v2251 = vsel %vm1609, %v2073, %v2250
      %v2252 = vsel %vm1607, %v2139, %v2140
      %v2253 = vsel %vm1609, %v2075, %v2252
      %v2254 = vsel %vm1607, %v2140, %v2141
      %v2255 = vsel %vm1609, %v2077, %v2254
      %v2256 = vsel %vm1607, %v2141, %v2142
      %v2257 = vsel %vm1609, %v2079, %v2256
      %v2258 = vsel %vm1607, %v2142, %v2143
      %v2259 = vsel %vm1609, %v2081, %v2258
      %2318 = vst [vmem:[#allocation2 + $0x658] sm:$0xff] %v2145
      %2319 = vst [vmem:[#allocation2 + $0x660] sm:$0xff] %v2147
      %2320 = vst [vmem:[#allocation2 + $0x668] sm:$0xff] %v2149
      %2321 = vst [vmem:[#allocation2 + $0x670] sm:$0xff] %v2151
      %2322 = vst [vmem:[#allocation2 + $0x678] sm:$0xff] %v2153
      %2323 = vst [vmem:[#allocation2 + $0x680] sm:$0xff] %v2155
      %2324 = vst [vmem:[#allocation2 + $0x688] sm:$0xff] %v2157
      %2325 = vst [vmem:[#allocation2 + $0x690] sm:$0xff] %v2159
      %2326 = vst [vmem:[#allocation2 + $0x698] sm:$0xff] %v2161
      %2327 = vst [vmem:[#allocation2 + $0x6a0] sm:$0xff] %v2163
      %2328 = vst [vmem:[#allocation2 + $0x6a8] sm:$0xff] %v2165
      %2329 = vst [vmem:[#allocation2 + $0x6b0] sm:$0xff] %v2167
      %2330 = vst [vmem:[#allocation2 + $0x6b8] sm:$0xff] %v2169
      %2331 = vst [vmem:[#allocation2 + $0x6c0] sm:$0xff] %v2171
      %2332 = vst [vmem:[#allocation2 + $0x6c8] sm:$0xff] %v2173
      %2333 = vst [vmem:[#allocation2 + $0x6d0] sm:$0xff] %v2175
      %2334 = vst [vmem:[#allocation2 + $0x6d8] sm:$0xff] %v2177
      %2335 = vst [vmem:[#allocation2 + $0x6e0] sm:$0xff] %v2179
      %2336 = vst [vmem:[#allocation2 + $0x6e8] sm:$0xff] %v2181
      %2337 = vst [vmem:[#allocation2 + $0x6f0] sm:$0xff] %v2183
      %2338 = vst [vmem:[#allocation2 + $0x6f8] sm:$0xff] %v2185
      %2339 = vst [vmem:[#allocation2 + $0x700] sm:$0xff] %v2187
      %2340 = vst [vmem:[#allocation2 + $0x708] sm:$0xff] %v2189
      %2341 = vst [vmem:[#allocation2 + $0x710] sm:$0xff] %v2191
      %2342 = vst [vmem:[#allocation2 + $0x718] sm:$0xff] %v2193
      %2343 = vst [vmem:[#allocation2 + $0x720] sm:$0xff] %v2195
      %2344 = vst [vmem:[#allocation2 + $0x728] sm:$0xff] %v2197
      %2345 = vst [vmem:[#allocation2 + $0x730] sm:$0xff] %v2199
      %2346 = vst.msk [vmem:[#allocation2 + $0x738] sm:$0xff] %vm260, %v2201
      %2347 = vst [vmem:[#allocation2 + $0x740] sm:$0x77] %v2203
      %2348 = vst [vmem:[#allocation2 + $0x748] sm:$0x77] %v2205
      %2349 = vst [vmem:[#allocation2 + $0x750] sm:$0x77] %v2207
      %2350 = vst [vmem:[#allocation2 + $0x758] sm:$0x77] %v2209
      %2351 = vst [vmem:[#allocation2 + $0x760] sm:$0x77] %v2211
      %2352 = vst [vmem:[#allocation2 + $0x768] sm:$0x77] %v2213
      %2353 = vst [vmem:[#allocation2 + $0x770] sm:$0x77] %v2215
      %2354 = vst [vmem:[#allocation2 + $0x778] sm:$0x77] %v2217
      %2355 = vst [vmem:[#allocation2 + $0x780] sm:$0x77] %v2219
      %2356 = vst [vmem:[#allocation2 + $0x788] sm:$0x77] %v2221
      %2357 = vst [vmem:[#allocation2 + $0x790] sm:$0x77] %v2223
      %2358 = vst [vmem:[#allocation2 + $0x798] sm:$0x77] %v2225
      %2359 = vst [vmem:[#allocation2 + $0x7a0] sm:$0x77] %v2227
      %2360 = vst [vmem:[#allocation2 + $0x7a8] sm:$0x77] %v2229
      %2361 = vst [vmem:[#allocation2 + $0x7b0] sm:$0x77] %v2231
      %2362 = vst [vmem:[#allocation2 + $0x7b8] sm:$0x77] %v2233
      %2363 = vst [vmem:[#allocation2 + $0x7c0] sm:$0x77] %v2235
      %2364 = vst [vmem:[#allocation2 + $0x7c8] sm:$0x77] %v2237
      %2365 = vst [vmem:[#allocation2 + $0x7d0] sm:$0x77] %v2239
      %2366 = vst [vmem:[#allocation2 + $0x7d8] sm:$0x77] %v2241
      %2367 = vst [vmem:[#allocation2 + $0x7e0] sm:$0x77] %v2243
      %2368 = vst [vmem:[#allocation2 + $0x7e8] sm:$0x77] %v2245
      %2369 = vst [vmem:[#allocation2 + $0x7f0] sm:$0x77] %v2247
      %2370 = vst [vmem:[#allocation2 + $0x7f8] sm:$0x77] %v2249
      %2371 = vst [vmem:[#allocation2 + $0x800] sm:$0x77] %v2251
      %2372 = vst [vmem:[#allocation2 + $0x808] sm:$0x77] %v2253
      %2373 = vst [vmem:[#allocation2 + $0x810] sm:$0x77] %v2255
      %2374 = vst [vmem:[#allocation2 + $0x818] sm:$0x77] %v2257
      %2375 = vst.msk [vmem:[#allocation2 + $0x820] sm:$0x77] %vm292, %v2259
      %v2376 = vld [vmem:[%s739] sm:$0xff]
      %v2377 = vld [vmem:[%s739 + $0x8] sm:$0xff]
      %v2378 = vld [vmem:[%s739 + $0x10] sm:$0xff]
      %v2379 = vld [vmem:[%s739 + $0x18] sm:$0xff]
      %v2380 = vld [vmem:[%s739 + $0x20] sm:$0xff]
      %v2381 = vld [vmem:[%s739 + $0x28] sm:$0xff]
      %v2382 = vld [vmem:[%s739 + $0x30] sm:$0xff]
      %v2383 = vld [vmem:[%s739 + $0x38] sm:$0xff]
      %v2384 = vld [vmem:[%s739 + $0x40] sm:$0xff]
      %v2385 = vld [vmem:[%s739 + $0x48] sm:$0xff]
      %v2386 = vld [vmem:[%s739 + $0x50] sm:$0xff]
      %v2387 = vld [vmem:[%s739 + $0x58] sm:$0xff]
      %v2388 = vld [vmem:[%s739 + $0x60] sm:$0xff]
      %v2389 = vld [vmem:[%s739 + $0x68] sm:$0xff]
      %v2390 = vld [vmem:[%s739 + $0x70] sm:$0xff]
      %v2391 = vld [vmem:[%s739 + $0x78] sm:$0xff]
      %v2392 = vld [vmem:[%s739 + $0x80] sm:$0xff]
      %v2393 = vld [vmem:[%s739 + $0x88] sm:$0xff]
      %v2394 = vld [vmem:[%s739 + $0x90] sm:$0xff]
      %v2395 = vld [vmem:[%s739 + $0x98] sm:$0xff]
      %v2396 = vld [vmem:[%s739 + $0xa0] sm:$0xff]
      %v2397 = vld [vmem:[%s739 + $0xa8] sm:$0xff]
      %v2398 = vld [vmem:[%s739 + $0xb0] sm:$0xff]
      %v2399 = vld [vmem:[%s739 + $0xb8] sm:$0xff]
      %v2400 = vld [vmem:[%s739 + $0xc0] sm:$0xff]
      %v2401 = vld [vmem:[%s739 + $0xc8] sm:$0xff]
      %v2402 = vld [vmem:[%s739 + $0xd0] sm:$0xff]
      %v2403 = vld [vmem:[%s739 + $0xd8] sm:$0xff]
      %v2404 = vld [vmem:[%s739 + $0xe0] sm:$0xff]
      %v2405 = vld [vmem:[%s739 + $0xe8] sm:$0xf]
      %v2406 = vld [vmem:[%s739 + $0xf0] sm:$0x77]
      %v2407 = vld [vmem:[%s739 + $0xf8] sm:$0x77]
      %v2408 = vld [vmem:[%s739 + $0x100] sm:$0x77]
      %v2409 = vld [vmem:[%s739 + $0x108] sm:$0x77]
      %v2410 = vld [vmem:[%s739 + $0x110] sm:$0x77]
      %v2411 = vld [vmem:[%s739 + $0x118] sm:$0x77]
      %v2412 = vld [vmem:[%s739 + $0x120] sm:$0x77]
      %v2413 = vld [vmem:[%s739 + $0x128] sm:$0x77]
      %v2414 = vld [vmem:[%s739 + $0x130] sm:$0x77]
      %v2415 = vld [vmem:[%s739 + $0x138] sm:$0x77]
      %v2416 = vld [vmem:[%s739 + $0x140] sm:$0x77]
      %v2417 = vld [vmem:[%s739 + $0x148] sm:$0x77]
      %v2418 = vld [vmem:[%s739 + $0x150] sm:$0x77]
      %v2419 = vld [vmem:[%s739 + $0x158] sm:$0x77]
      %v2420 = vld [vmem:[%s739 + $0x160] sm:$0x77]
      %v2421 = vld [vmem:[%s739 + $0x168] sm:$0x77]
      %v2422 = vld [vmem:[%s739 + $0x170] sm:$0x77]
      %v2423 = vld [vmem:[%s739 + $0x178] sm:$0x77]
      %v2424 = vld [vmem:[%s739 + $0x180] sm:$0x77]
      %v2425 = vld [vmem:[%s739 + $0x188] sm:$0x77]
      %v2426 = vld [vmem:[%s739 + $0x190] sm:$0x77]
      %v2427 = vld [vmem:[%s739 + $0x198] sm:$0x77]
      %v2428 = vld [vmem:[%s739 + $0x1a0] sm:$0x77]
      %v2429 = vld [vmem:[%s739 + $0x1a8] sm:$0x77]
      %v2430 = vld [vmem:[%s739 + $0x1b0] sm:$0x77]
      %v2431 = vld [vmem:[%s739 + $0x1b8] sm:$0x77]
      %v2432 = vld [vmem:[%s739 + $0x1c0] sm:$0x77]
      %v2433 = vld [vmem:[%s739 + $0x1c8] sm:$0x77]
      %v2434 = vld [vmem:[%s739 + $0x1d0] sm:$0x77]
      %v2435 = vld [vmem:[%s739 + $0x1d8] sm:$0x7]
      %v2496 = vrot.slane %v2376, 5
      %v2497 = vrot.slane %v2377, 5
      %v2498 = vrot.slane %v2378, 5
      %v2499 = vrot.slane %v2379, 5
      %v2500 = vrot.slane %v2380, 5
      %v2501 = vrot.slane %v2381, 5
      %v2502 = vrot.slane %v2382, 5
      %v2503 = vrot.slane %v2383, 5
      %v2504 = vrot.slane %v2384, 5
      %v2505 = vrot.slane %v2385, 5
      %v2506 = vrot.slane %v2386, 5
      %v2507 = vrot.slane %v2387, 5
      %v2508 = vrot.slane %v2388, 5
      %v2509 = vrot.slane %v2389, 5
      %v2510 = vrot.slane %v2390, 5
      %v2511 = vrot.slane %v2391, 5
      %v2512 = vrot.slane %v2392, 5
      %v2513 = vrot.slane %v2393, 5
      %v2514 = vrot.slane %v2394, 5
      %v2515 = vrot.slane %v2395, 5
      %v2516 = vrot.slane %v2396, 5
      %v2517 = vrot.slane %v2397, 5
      %v2518 = vrot.slane %v2398, 5
      %v2519 = vrot.slane %v2399, 5
      %v2520 = vrot.slane %v2400, 5
      %v2521 = vrot.slane %v2401, 5
      %v2522 = vrot.slane %v2402, 5
      %v2523 = vrot.slane %v2403, 5
      %v2524 = vrot.slane %v2404, 5
      %v2525 = vrot.slane %v2405, 5
      %v2526 = vrot.slane %v2496, 4
      %v2527 = vrot.slane %v2406, 5
      %v2528 = vsel %vm413, %v2526, %v2527
      %v2529 = vrot.slane %v2497, 4
      %v2530 = vrot.slane %v2407, 5
      %v2531 = vsel %vm413, %v2529, %v2530
      %v2532 = vrot.slane %v2498, 4
      %v2533 = vrot.slane %v2408, 5
      %v2534 = vsel %vm413, %v2532, %v2533
      %v2535 = vrot.slane %v2499, 4
      %v2536 = vrot.slane %v2409, 5
      %v2537 = vsel %vm413, %v2535, %v2536
      %v2538 = vrot.slane %v2500, 4
      %v2539 = vrot.slane %v2410, 5
      %v2540 = vsel %vm413, %v2538, %v2539
      %v2541 = vrot.slane %v2501, 4
      %v2542 = vrot.slane %v2411, 5
      %v2543 = vsel %vm413, %v2541, %v2542
      %v2544 = vrot.slane %v2502, 4
      %v2545 = vrot.slane %v2412, 5
      %v2546 = vsel %vm413, %v2544, %v2545
      %v2547 = vrot.slane %v2503, 4
      %v2548 = vrot.slane %v2413, 5
      %v2549 = vsel %vm413, %v2547, %v2548
      %v2550 = vrot.slane %v2504, 4
      %v2551 = vrot.slane %v2414, 5
      %v2552 = vsel %vm413, %v2550, %v2551
      %v2553 = vrot.slane %v2505, 4
      %v2554 = vrot.slane %v2415, 5
      %v2555 = vsel %vm413, %v2553, %v2554
      %v2556 = vrot.slane %v2506, 4
      %v2557 = vrot.slane %v2416, 5
      %v2558 = vsel %vm413, %v2556, %v2557
      %v2559 = vrot.slane %v2507, 4
      %v2560 = vrot.slane %v2417, 5
      %v2561 = vsel %vm413, %v2559, %v2560
      %v2562 = vrot.slane %v2508, 4
      %v2563 = vrot.slane %v2418, 5
      %v2564 = vsel %vm413, %v2562, %v2563
      %v2565 = vrot.slane %v2509, 4
      %v2566 = vrot.slane %v2419, 5
      %v2567 = vsel %vm413, %v2565, %v2566
      %v2568 = vrot.slane %v2510, 4
      %v2569 = vrot.slane %v2420, 5
      %v2570 = vsel %vm413, %v2568, %v2569
      %v2571 = vrot.slane %v2511, 4
      %v2572 = vrot.slane %v2421, 5
      %v2573 = vsel %vm413, %v2571, %v2572
      %v2574 = vrot.slane %v2512, 4
      %v2575 = vrot.slane %v2422, 5
      %v2576 = vsel %vm413, %v2574, %v2575
      %v2577 = vrot.slane %v2513, 4
      %v2578 = vrot.slane %v2423, 5
      %v2579 = vsel %vm413, %v2577, %v2578
      %v2580 = vrot.slane %v2514, 4
      %v2581 = vrot.slane %v2424, 5
      %v2582 = vsel %vm413, %v2580, %v2581
      %v2583 = vrot.slane %v2515, 4
      %v2584 = vrot.slane %v2425, 5
      %v2585 = vsel %vm413, %v2583, %v2584
      %v2586 = vrot.slane %v2516, 4
      %v2587 = vrot.slane %v2426, 5
      %v2588 = vsel %vm413, %v2586, %v2587
      %v2589 = vrot.slane %v2517, 4
      %v2590 = vrot.slane %v2427, 5
      %v2591 = vsel %vm413, %v2589, %v2590
      %v2592 = vrot.slane %v2518, 4
      %v2593 = vrot.slane %v2428, 5
      %v2594 = vsel %vm413, %v2592, %v2593
      %v2595 = vrot.slane %v2519, 4
      %v2596 = vrot.slane %v2429, 5
      %v2597 = vsel %vm413, %v2595, %v2596
      %v2598 = vrot.slane %v2520, 4
      %v2599 = vrot.slane %v2430, 5
      %v2600 = vsel %vm413, %v2598, %v2599
      %v2601 = vrot.slane %v2521, 4
      %v2602 = vrot.slane %v2431, 5
      %v2603 = vsel %vm413, %v2601, %v2602
      %v2604 = vrot.slane %v2522, 4
      %v2605 = vrot.slane %v2432, 5
      %v2606 = vsel %vm413, %v2604, %v2605
      %v2607 = vrot.slane %v2523, 4
      %v2608 = vrot.slane %v2433, 5
      %v2609 = vsel %vm413, %v2607, %v2608
      %v2610 = vrot.slane %v2524, 4
      %v2611 = vrot.slane %v2434, 5
      %v2612 = vsel %vm413, %v2610, %v2611
      %v2613 = vrot.slane %v2525, 4
      %v2614 = vrot.slane %v2435, 5
      %v2615 = vsel %vm413, %v2613, %v2614
      %v2616 = vrot.slane %v2527, 4
      %v2617 = vrot.slane %v2530, 4
      %v2618 = vrot.slane %v2533, 4
      %v2619 = vrot.slane %v2536, 4
      %v2620 = vrot.slane %v2539, 4
      %v2621 = vrot.slane %v2542, 4
      %v2622 = vrot.slane %v2545, 4
      %v2623 = vrot.slane %v2548, 4
      %v2624 = vrot.slane %v2551, 4
      %v2625 = vrot.slane %v2554, 4
      %v2626 = vrot.slane %v2557, 4
      %v2627 = vrot.slane %v2560, 4
      %v2628 = vrot.slane %v2563, 4
      %v2629 = vrot.slane %v2566, 4
      %v2630 = vrot.slane %v2569, 4
      %v2631 = vrot.slane %v2572, 4
      %v2632 = vrot.slane %v2575, 4
      %v2633 = vrot.slane %v2578, 4
      %v2634 = vrot.slane %v2581, 4
      %v2635 = vrot.slane %v2584, 4
      %v2636 = vrot.slane %v2587, 4
      %v2637 = vrot.slane %v2590, 4
      %v2638 = vrot.slane %v2593, 4
      %v2639 = vrot.slane %v2596, 4
      %v2640 = vrot.slane %v2599, 4
      %v2641 = vrot.slane %v2602, 4
      %v2642 = vrot.slane %v2605, 4
      %v2643 = vrot.slane %v2608, 4
      %v2644 = vrot.slane %v2611, 4
      %v2645 = vrot.slane %v2614, 4
      %2646 = vrot.lane.b32.xlu0 %v2496, 42
      %v2647 = vpop.permute.xlu0 %2646
      %2648 = vrot.lane.b32.xlu0 %v2497, 42
      %v2649 = vpop.permute.xlu0 %2648
      %2650 = vrot.lane.b32.xlu0 %v2498, 42
      %v2651 = vpop.permute.xlu0 %2650
      %2652 = vrot.lane.b32.xlu0 %v2499, 42
      %v2653 = vpop.permute.xlu0 %2652
      %2654 = vrot.lane.b32.xlu0 %v2500, 42
      %v2655 = vpop.permute.xlu0 %2654
      %2656 = vrot.lane.b32.xlu0 %v2501, 42
      %v2657 = vpop.permute.xlu0 %2656
      %2658 = vrot.lane.b32.xlu0 %v2502, 42
      %v2659 = vpop.permute.xlu0 %2658
      %2660 = vrot.lane.b32.xlu0 %v2503, 42
      %v2661 = vpop.permute.xlu0 %2660
      %2662 = vrot.lane.b32.xlu0 %v2504, 42
      %v2663 = vpop.permute.xlu0 %2662
      %2664 = vrot.lane.b32.xlu0 %v2505, 42
      %v2665 = vpop.permute.xlu0 %2664
      %2666 = vrot.lane.b32.xlu0 %v2506, 42
      %v2667 = vpop.permute.xlu0 %2666
      %2668 = vrot.lane.b32.xlu0 %v2507, 42
      %v2669 = vpop.permute.xlu0 %2668
      %2670 = vrot.lane.b32.xlu0 %v2508, 42
      %v2671 = vpop.permute.xlu0 %2670
      %2672 = vrot.lane.b32.xlu0 %v2509, 42
      %v2673 = vpop.permute.xlu0 %2672
      %2674 = vrot.lane.b32.xlu0 %v2510, 42
      %v2675 = vpop.permute.xlu0 %2674
      %2676 = vrot.lane.b32.xlu0 %v2511, 42
      %v2677 = vpop.permute.xlu0 %2676
      %2678 = vrot.lane.b32.xlu0 %v2512, 42
      %v2679 = vpop.permute.xlu0 %2678
      %2680 = vrot.lane.b32.xlu0 %v2513, 42
      %v2681 = vpop.permute.xlu0 %2680
      %2682 = vrot.lane.b32.xlu0 %v2514, 42
      %v2683 = vpop.permute.xlu0 %2682
      %2684 = vrot.lane.b32.xlu0 %v2515, 42
      %v2685 = vpop.permute.xlu0 %2684
      %2686 = vrot.lane.b32.xlu0 %v2516, 42
      %v2687 = vpop.permute.xlu0 %2686
      %2688 = vrot.lane.b32.xlu0 %v2517, 42
      %v2689 = vpop.permute.xlu0 %2688
      %2690 = vrot.lane.b32.xlu0 %v2518, 42
      %v2691 = vpop.permute.xlu0 %2690
      %2692 = vrot.lane.b32.xlu0 %v2519, 42
      %v2693 = vpop.permute.xlu0 %2692
      %2694 = vrot.lane.b32.xlu0 %v2520, 42
      %v2695 = vpop.permute.xlu0 %2694
      %2696 = vrot.lane.b32.xlu0 %v2521, 42
      %v2697 = vpop.permute.xlu0 %2696
      %2698 = vrot.lane.b32.xlu0 %v2522, 42
      %v2699 = vpop.permute.xlu0 %2698
      %2700 = vrot.lane.b32.xlu0 %v2523, 42
      %v2701 = vpop.permute.xlu0 %2700
      %2702 = vrot.lane.b32.xlu0 %v2524, 42
      %v2703 = vpop.permute.xlu0 %2702
      %2704 = vrot.lane.b32.xlu0 %v2525, 42
      %v2705 = vpop.permute.xlu0 %2704
      %2706 = vrot.lane.b32.xlu0 %v2528, 42
      %v2707 = vpop.permute.xlu0 %2706
      %2708 = vrot.lane.b32.xlu0 %v2531, 42
      %v2709 = vpop.permute.xlu0 %2708
      %2710 = vrot.lane.b32.xlu0 %v2534, 42
      %v2711 = vpop.permute.xlu0 %2710
      %2712 = vrot.lane.b32.xlu0 %v2537, 42
      %v2713 = vpop.permute.xlu0 %2712
      %2714 = vrot.lane.b32.xlu0 %v2540, 42
      %v2715 = vpop.permute.xlu0 %2714
      %2716 = vrot.lane.b32.xlu0 %v2543, 42
      %v2717 = vpop.permute.xlu0 %2716
      %2718 = vrot.lane.b32.xlu0 %v2546, 42
      %v2719 = vpop.permute.xlu0 %2718
      %2720 = vrot.lane.b32.xlu0 %v2549, 42
      %v2721 = vpop.permute.xlu0 %2720
      %2722 = vrot.lane.b32.xlu0 %v2552, 42
      %v2723 = vpop.permute.xlu0 %2722
      %2724 = vrot.lane.b32.xlu0 %v2555, 42
      %v2725 = vpop.permute.xlu0 %2724
      %2726 = vrot.lane.b32.xlu0 %v2558, 42
      %v2727 = vpop.permute.xlu0 %2726
      %2728 = vrot.lane.b32.xlu0 %v2561, 42
      %v2729 = vpop.permute.xlu0 %2728
      %2730 = vrot.lane.b32.xlu0 %v2564, 42
      %v2731 = vpop.permute.xlu0 %2730
      %2732 = vrot.lane.b32.xlu0 %v2567, 42
      %v2733 = vpop.permute.xlu0 %2732
      %2734 = vrot.lane.b32.xlu0 %v2570, 42
      %v2735 = vpop.permute.xlu0 %2734
      %2736 = vrot.lane.b32.xlu0 %v2573, 42
      %v2737 = vpop.permute.xlu0 %2736
      %2738 = vrot.lane.b32.xlu0 %v2576, 42
      %v2739 = vpop.permute.xlu0 %2738
      %2740 = vrot.lane.b32.xlu0 %v2579, 42
      %v2741 = vpop.permute.xlu0 %2740
      %2742 = vrot.lane.b32.xlu0 %v2582, 42
      %v2743 = vpop.permute.xlu0 %2742
      %2744 = vrot.lane.b32.xlu0 %v2585, 42
      %v2745 = vpop.permute.xlu0 %2744
      %2746 = vrot.lane.b32.xlu0 %v2588, 42
      %v2747 = vpop.permute.xlu0 %2746
      %2748 = vrot.lane.b32.xlu0 %v2591, 42
      %v2749 = vpop.permute.xlu0 %2748
      %2750 = vrot.lane.b32.xlu0 %v2594, 42
      %v2751 = vpop.permute.xlu0 %2750
      %2752 = vrot.lane.b32.xlu0 %v2597, 42
      %v2753 = vpop.permute.xlu0 %2752
      %2754 = vrot.lane.b32.xlu0 %v2600, 42
      %v2755 = vpop.permute.xlu0 %2754
      %2756 = vrot.lane.b32.xlu0 %v2603, 42
      %v2757 = vpop.permute.xlu0 %2756
      %2758 = vrot.lane.b32.xlu0 %v2606, 42
      %v2759 = vpop.permute.xlu0 %2758
      %2760 = vrot.lane.b32.xlu0 %v2609, 42
      %v2761 = vpop.permute.xlu0 %2760
      %2762 = vrot.lane.b32.xlu0 %v2612, 42
      %v2763 = vpop.permute.xlu0 %2762
      %2764 = vrot.lane.b32.xlu0 %v2615, 42
      %v2765 = vpop.permute.xlu0 %2764
      %2766 = vrot.lane.b32.xlu0 %v2616, 42
      %v2767 = vpop.permute.xlu0 %2766
      %2768 = vrot.lane.b32.xlu0 %v2617, 42
      %v2769 = vpop.permute.xlu0 %2768
      %2770 = vrot.lane.b32.xlu0 %v2618, 42
      %v2771 = vpop.permute.xlu0 %2770
      %2772 = vrot.lane.b32.xlu0 %v2619, 42
      %v2773 = vpop.permute.xlu0 %2772
      %2774 = vrot.lane.b32.xlu0 %v2620, 42
      %v2775 = vpop.permute.xlu0 %2774
      %2776 = vrot.lane.b32.xlu0 %v2621, 42
      %v2777 = vpop.permute.xlu0 %2776
      %2778 = vrot.lane.b32.xlu0 %v2622, 42
      %v2779 = vpop.permute.xlu0 %2778
      %2780 = vrot.lane.b32.xlu0 %v2623, 42
      %v2781 = vpop.permute.xlu0 %2780
      %2782 = vrot.lane.b32.xlu0 %v2624, 42
      %v2783 = vpop.permute.xlu0 %2782
      %2784 = vrot.lane.b32.xlu0 %v2625, 42
      %v2785 = vpop.permute.xlu0 %2784
      %2786 = vrot.lane.b32.xlu0 %v2626, 42
      %v2787 = vpop.permute.xlu0 %2786
      %2788 = vrot.lane.b32.xlu0 %v2627, 42
      %v2789 = vpop.permute.xlu0 %2788
      %2790 = vrot.lane.b32.xlu0 %v2628, 42
      %v2791 = vpop.permute.xlu0 %2790
      %2792 = vrot.lane.b32.xlu0 %v2629, 42
      %v2793 = vpop.permute.xlu0 %2792
      %2794 = vrot.lane.b32.xlu0 %v2630, 42
      %v2795 = vpop.permute.xlu0 %2794
      %2796 = vrot.lane.b32.xlu0 %v2631, 42
      %v2797 = vpop.permute.xlu0 %2796
      %2798 = vrot.lane.b32.xlu0 %v2632, 42
      %v2799 = vpop.permute.xlu0 %2798
      %2800 = vrot.lane.b32.xlu0 %v2633, 42
      %v2801 = vpop.permute.xlu0 %2800
      %2802 = vrot.lane.b32.xlu0 %v2634, 42
      %v2803 = vpop.permute.xlu0 %2802
      %2804 = vrot.lane.b32.xlu0 %v2635, 42
      %v2805 = vpop.permute.xlu0 %2804
      %2806 = vrot.lane.b32.xlu0 %v2636, 42
      %v2807 = vpop.permute.xlu0 %2806
      %2808 = vrot.lane.b32.xlu0 %v2637, 42
      %v2809 = vpop.permute.xlu0 %2808
      %2810 = vrot.lane.b32.xlu0 %v2638, 42
      %v2811 = vpop.permute.xlu0 %2810
      %2812 = vrot.lane.b32.xlu0 %v2639, 42
      %v2813 = vpop.permute.xlu0 %2812
      %2814 = vrot.lane.b32.xlu0 %v2640, 42
      %v2815 = vpop.permute.xlu0 %2814
      %2816 = vrot.lane.b32.xlu0 %v2641, 42
      %v2817 = vpop.permute.xlu0 %2816
      %2818 = vrot.lane.b32.xlu0 %v2642, 42
      %v2819 = vpop.permute.xlu0 %2818
      %2820 = vrot.lane.b32.xlu0 %v2643, 42
      %v2821 = vpop.permute.xlu0 %2820
      %2822 = vrot.lane.b32.xlu0 %v2644, 42
      %v2823 = vpop.permute.xlu0 %2822
      %2824 = vrot.lane.b32.xlu0 %v2645, 42
      %v2825 = vpop.permute.xlu0 %2824
      %v2826 = vrot.slane %v2647, 4
      %v2827 = vrot.slane %v2649, 4
      %v2828 = vrot.slane %v2651, 4
      %v2829 = vrot.slane %v2653, 4
      %v2830 = vrot.slane %v2655, 4
      %v2831 = vrot.slane %v2657, 4
      %v2832 = vrot.slane %v2659, 4
      %v2833 = vrot.slane %v2661, 4
      %v2834 = vrot.slane %v2663, 4
      %v2835 = vrot.slane %v2665, 4
      %v2836 = vrot.slane %v2667, 4
      %v2837 = vrot.slane %v2669, 4
      %v2838 = vrot.slane %v2671, 4
      %v2839 = vrot.slane %v2673, 4
      %v2840 = vrot.slane %v2675, 4
      %v2841 = vrot.slane %v2677, 4
      %v2842 = vrot.slane %v2679, 4
      %v2843 = vrot.slane %v2681, 4
      %v2844 = vrot.slane %v2683, 4
      %v2845 = vrot.slane %v2685, 4
      %v2846 = vrot.slane %v2687, 4
      %v2847 = vrot.slane %v2689, 4
      %v2848 = vrot.slane %v2691, 4
      %v2849 = vrot.slane %v2693, 4
      %v2850 = vrot.slane %v2695, 4
      %v2851 = vrot.slane %v2697, 4
      %v2852 = vrot.slane %v2699, 4
      %v2853 = vrot.slane %v2701, 4
      %v2854 = vrot.slane %v2703, 4
      %v2855 = vrot.slane %v2705, 4
      %v2856 = vrot.slane %v2707, 4
      %v2857 = vrot.slane %v2709, 4
      %v2858 = vrot.slane %v2711, 4
      %v2859 = vrot.slane %v2713, 4
      %v2860 = vrot.slane %v2715, 4
      %v2861 = vrot.slane %v2717, 4
      %v2862 = vrot.slane %v2719, 4
      %v2863 = vrot.slane %v2721, 4
      %v2864 = vrot.slane %v2723, 4
      %v2865 = vrot.slane %v2725, 4
      %v2866 = vrot.slane %v2727, 4
      %v2867 = vrot.slane %v2729, 4
      %v2868 = vrot.slane %v2731, 4
      %v2869 = vrot.slane %v2733, 4
      %v2870 = vrot.slane %v2735, 4
      %v2871 = vrot.slane %v2737, 4
      %v2872 = vrot.slane %v2739, 4
      %v2873 = vrot.slane %v2741, 4
      %v2874 = vrot.slane %v2743, 4
      %v2875 = vrot.slane %v2745, 4
      %v2876 = vrot.slane %v2747, 4
      %v2877 = vrot.slane %v2749, 4
      %v2878 = vrot.slane %v2751, 4
      %v2879 = vrot.slane %v2753, 4
      %v2880 = vrot.slane %v2755, 4
      %v2881 = vrot.slane %v2757, 4
      %v2882 = vrot.slane %v2759, 4
      %v2883 = vrot.slane %v2761, 4
      %v2884 = vrot.slane %v2763, 4
      %v2885 = vrot.slane %v2765, 4
      %v2886 = vrot.slane %v2767, 4
      %v2887 = vrot.slane %v2769, 4
      %v2888 = vrot.slane %v2771, 4
      %v2889 = vrot.slane %v2773, 4
      %v2890 = vrot.slane %v2775, 4
      %v2891 = vrot.slane %v2777, 4
      %v2892 = vrot.slane %v2779, 4
      %v2893 = vrot.slane %v2781, 4
      %v2894 = vrot.slane %v2783, 4
      %v2895 = vrot.slane %v2785, 4
      %v2896 = vrot.slane %v2787, 4
      %v2897 = vrot.slane %v2789, 4
      %v2898 = vrot.slane %v2791, 4
      %v2899 = vrot.slane %v2793, 4
      %v2900 = vrot.slane %v2795, 4
      %v2901 = vrot.slane %v2797, 4
      %v2902 = vrot.slane %v2799, 4
      %v2903 = vrot.slane %v2801, 4
      %v2904 = vrot.slane %v2803, 4
      %v2905 = vrot.slane %v2805, 4
      %v2906 = vrot.slane %v2807, 4
      %v2907 = vrot.slane %v2809, 4
      %v2908 = vrot.slane %v2811, 4
      %v2909 = vrot.slane %v2813, 4
      %v2910 = vrot.slane %v2815, 4
      %v2911 = vrot.slane %v2817, 4
      %v2912 = vrot.slane %v2819, 4
      %v2913 = vrot.slane %v2821, 4
      %v2914 = vrot.slane %v2823, 4
      %v2915 = vrot.slane %v2825, 4
      %v2916 = vsel %vm1607, %v2826, %v2827
      %v2917 = vsel %vm1609, %v2647, %v2916
      %v2918 = vsel %vm1607, %v2827, %v2828
      %v2919 = vsel %vm1609, %v2649, %v2918
      %v2920 = vsel %vm1607, %v2828, %v2829
      %v2921 = vsel %vm1609, %v2651, %v2920
      %v2922 = vsel %vm1607, %v2829, %v2830
      %v2923 = vsel %vm1609, %v2653, %v2922
      %v2924 = vsel %vm1607, %v2830, %v2831
      %v2925 = vsel %vm1609, %v2655, %v2924
      %v2926 = vsel %vm1607, %v2831, %v2832
      %v2927 = vsel %vm1609, %v2657, %v2926
      %v2928 = vsel %vm1607, %v2832, %v2833
      %v2929 = vsel %vm1609, %v2659, %v2928
      %v2930 = vsel %vm1607, %v2833, %v2834
      %v2931 = vsel %vm1609, %v2661, %v2930
      %v2932 = vsel %vm1607, %v2834, %v2835
      %v2933 = vsel %vm1609, %v2663, %v2932
      %v2934 = vsel %vm1607, %v2835, %v2836
      %v2935 = vsel %vm1609, %v2665, %v2934
      %v2936 = vsel %vm1607, %v2836, %v2837
      %v2937 = vsel %vm1609, %v2667, %v2936
      %v2938 = vsel %vm1607, %v2837, %v2838
      %v2939 = vsel %vm1609, %v2669, %v2938
      %v2940 = vsel %vm1607, %v2838, %v2839
      %v2941 = vsel %vm1609, %v2671, %v2940
      %v2942 = vsel %vm1607, %v2839, %v2840
      %v2943 = vsel %vm1609, %v2673, %v2942
      %v2944 = vsel %vm1607, %v2840, %v2841
      %v2945 = vsel %vm1609, %v2675, %v2944
      %v2946 = vsel %vm1607, %v2841, %v2842
      %v2947 = vsel %vm1609, %v2677, %v2946
      %v2948 = vsel %vm1607, %v2842, %v2843
      %v2949 = vsel %vm1609, %v2679, %v2948
      %v2950 = vsel %vm1607, %v2843, %v2844
      %v2951 = vsel %vm1609, %v2681, %v2950
      %v2952 = vsel %vm1607, %v2844, %v2845
      %v2953 = vsel %vm1609, %v2683, %v2952
      %v2954 = vsel %vm1607, %v2845, %v2846
      %v2955 = vsel %vm1609, %v2685, %v2954
      %v2956 = vsel %vm1607, %v2846, %v2847
      %v2957 = vsel %vm1609, %v2687, %v2956
      %v2958 = vsel %vm1607, %v2847, %v2848
      %v2959 = vsel %vm1609, %v2689, %v2958
      %v2960 = vsel %vm1607, %v2848, %v2849
      %v2961 = vsel %vm1609, %v2691, %v2960
      %v2962 = vsel %vm1607, %v2849, %v2850
      %v2963 = vsel %vm1609, %v2693, %v2962
      %v2964 = vsel %vm1607, %v2850, %v2851
      %v2965 = vsel %vm1609, %v2695, %v2964
      %v2966 = vsel %vm1607, %v2851, %v2852
      %v2967 = vsel %vm1609, %v2697, %v2966
      %v2968 = vsel %vm1607, %v2852, %v2853
      %v2969 = vsel %vm1609, %v2699, %v2968
      %v2970 = vsel %vm1607, %v2853, %v2854
      %v2971 = vsel %vm1609, %v2701, %v2970
      %v2972 = vsel %vm1607, %v2854, %v2855
      %v2973 = vsel %vm1609, %v2703, %v2972
      %v2974 = vsel %vm1607, %v2856, %v2857
      %v2975 = vsel %vm1609, %v2707, %v2974
      %v2976 = vsel %vm1607, %v2857, %v2858
      %v2977 = vsel %vm1609, %v2709, %v2976
      %v2978 = vsel %vm1607, %v2858, %v2859
      %v2979 = vsel %vm1609, %v2711, %v2978
      %v2980 = vsel %vm1607, %v2859, %v2860
      %v2981 = vsel %vm1609, %v2713, %v2980
      %v2982 = vsel %vm1607, %v2860, %v2861
      %v2983 = vsel %vm1609, %v2715, %v2982
      %v2984 = vsel %vm1607, %v2861, %v2862
      %v2985 = vsel %vm1609, %v2717, %v2984
      %v2986 = vsel %vm1607, %v2862, %v2863
      %v2987 = vsel %vm1609, %v2719, %v2986
      %v2988 = vsel %vm1607, %v2863, %v2864
      %v2989 = vsel %vm1609, %v2721, %v2988
      %v2990 = vsel %vm1607, %v2864, %v2865
      %v2991 = vsel %vm1609, %v2723, %v2990
      %v2992 = vsel %vm1607, %v2865, %v2866
      %v2993 = vsel %vm1609, %v2725, %v2992
      %v2994 = vsel %vm1607, %v2866, %v2867
      %v2995 = vsel %vm1609, %v2727, %v2994
      %v2996 = vsel %vm1607, %v2867, %v2868
      %v2997 = vsel %vm1609, %v2729, %v2996
      %v2998 = vsel %vm1607, %v2868, %v2869
      %v2999 = vsel %vm1609, %v2731, %v2998
      %v3000 = vsel %vm1607, %v2869, %v2870
      %v3001 = vsel %vm1609, %v2733, %v3000
      %v3002 = vsel %vm1607, %v2870, %v2871
      %v3003 = vsel %vm1609, %v2735, %v3002
      %v3004 = vsel %vm1607, %v2871, %v2872
      %v3005 = vsel %vm1609, %v2737, %v3004
      %v3006 = vsel %vm1607, %v2872, %v2873
      %v3007 = vsel %vm1609, %v2739, %v3006
      %v3008 = vsel %vm1607, %v2873, %v2874
      %v3009 = vsel %vm1609, %v2741, %v3008
      %v3010 = vsel %vm1607, %v2874, %v2875
      %v3011 = vsel %vm1609, %v2743, %v3010
      %v3012 = vsel %vm1607, %v2875, %v2876
      %v3013 = vsel %vm1609, %v2745, %v3012
      %v3014 = vsel %vm1607, %v2876, %v2877
      %v3015 = vsel %vm1609, %v2747, %v3014
      %v3016 = vsel %vm1607, %v2877, %v2878
      %v3017 = vsel %vm1609, %v2749, %v3016
      %v3018 = vsel %vm1607, %v2878, %v2879
      %v3019 = vsel %vm1609, %v2751, %v3018
      %v3020 = vsel %vm1607, %v2879, %v2880
      %v3021 = vsel %vm1609, %v2753, %v3020
      %v3022 = vsel %vm1607, %v2880, %v2881
      %v3023 = vsel %vm1609, %v2755, %v3022
      %v3024 = vsel %vm1607, %v2881, %v2882
      %v3025 = vsel %vm1609, %v2757, %v3024
      %v3026 = vsel %vm1607, %v2882, %v2883
      %v3027 = vsel %vm1609, %v2759, %v3026
      %v3028 = vsel %vm1607, %v2883, %v2884
      %v3029 = vsel %vm1609, %v2761, %v3028
      %v3030 = vsel %vm1607, %v2884, %v2885
      %v3031 = vsel %vm1609, %v2763, %v3030
      %v3032 = vsel %vm1607, %v2886, %v2887
      %v3033 = vsel %vm1609, %v2767, %v3032
      %v3034 = vsel %vm1607, %v2887, %v2888
      %v3035 = vsel %vm1609, %v2769, %v3034
      %v3036 = vsel %vm1607, %v2888, %v2889
      %v3037 = vsel %vm1609, %v2771, %v3036
      %v3038 = vsel %vm1607, %v2889, %v2890
      %v3039 = vsel %vm1609, %v2773, %v3038
      %v3040 = vsel %vm1607, %v2890, %v2891
      %v3041 = vsel %vm1609, %v2775, %v3040
      %v3042 = vsel %vm1607, %v2891, %v2892
      %v3043 = vsel %vm1609, %v2777, %v3042
      %v3044 = vsel %vm1607, %v2892, %v2893
      %v3045 = vsel %vm1609, %v2779, %v3044
      %v3046 = vsel %vm1607, %v2893, %v2894
      %v3047 = vsel %vm1609, %v2781, %v3046
      %v3048 = vsel %vm1607, %v2894, %v2895
      %v3049 = vsel %vm1609, %v2783, %v3048
      %v3050 = vsel %vm1607, %v2895, %v2896
      %v3051 = vsel %vm1609, %v2785, %v3050
      %v3052 = vsel %vm1607, %v2896, %v2897
      %v3053 = vsel %vm1609, %v2787, %v3052
      %v3054 = vsel %vm1607, %v2897, %v2898
      %v3055 = vsel %vm1609, %v2789, %v3054
      %v3056 = vsel %vm1607, %v2898, %v2899
      %v3057 = vsel %vm1609, %v2791, %v3056
      %v3058 = vsel %vm1607, %v2899, %v2900
      %v3059 = vsel %vm1609, %v2793, %v3058
      %v3060 = vsel %vm1607, %v2900, %v2901
      %v3061 = vsel %vm1609, %v2795, %v3060
      %v3062 = vsel %vm1607, %v2901, %v2902
      %v3063 = vsel %vm1609, %v2797, %v3062
      %v3064 = vsel %vm1607, %v2902, %v2903
      %v3065 = vsel %vm1609, %v2799, %v3064
      %v3066 = vsel %vm1607, %v2903, %v2904
      %v3067 = vsel %vm1609, %v2801, %v3066
      %v3068 = vsel %vm1607, %v2904, %v2905
      %v3069 = vsel %vm1609, %v2803, %v3068
      %v3070 = vsel %vm1607, %v2905, %v2906
      %v3071 = vsel %vm1609, %v2805, %v3070
      %v3072 = vsel %vm1607, %v2906, %v2907
      %v3073 = vsel %vm1609, %v2807, %v3072
      %v3074 = vsel %vm1607, %v2907, %v2908
      %v3075 = vsel %vm1609, %v2809, %v3074
      %v3076 = vsel %vm1607, %v2908, %v2909
      %v3077 = vsel %vm1609, %v2811, %v3076
      %v3078 = vsel %vm1607, %v2909, %v2910
      %v3079 = vsel %vm1609, %v2813, %v3078
      %v3080 = vsel %vm1607, %v2910, %v2911
      %v3081 = vsel %vm1609, %v2815, %v3080
      %v3082 = vsel %vm1607, %v2911, %v2912
      %v3083 = vsel %vm1609, %v2817, %v3082
      %v3084 = vsel %vm1607, %v2912, %v2913
      %v3085 = vsel %vm1609, %v2819, %v3084
      %v3086 = vsel %vm1607, %v2913, %v2914
      %v3087 = vsel %vm1609, %v2821, %v3086
      %v3088 = vsel %vm1607, %v2914, %v2915
      %v3089 = vsel %vm1609, %v2823, %v3088
      %3177 = vst [vmem:[#allocation2 + $0x740] sm:$0x88] %v2917
      %3178 = vst [vmem:[#allocation2 + $0x748] sm:$0x88] %v2919
      %3179 = vst [vmem:[#allocation2 + $0x750] sm:$0x88] %v2921
      %3180 = vst [vmem:[#allocation2 + $0x758] sm:$0x88] %v2923
      %3181 = vst [vmem:[#allocation2 + $0x760] sm:$0x88] %v2925
      %3182 = vst [vmem:[#allocation2 + $0x768] sm:$0x88] %v2927
      %3183 = vst [vmem:[#allocation2 + $0x770] sm:$0x88] %v2929
      %3184 = vst [vmem:[#allocation2 + $0x778] sm:$0x88] %v2931
      %3185 = vst [vmem:[#allocation2 + $0x780] sm:$0x88] %v2933
      %3186 = vst [vmem:[#allocation2 + $0x788] sm:$0x88] %v2935
      %3187 = vst [vmem:[#allocation2 + $0x790] sm:$0x88] %v2937
      %3188 = vst [vmem:[#allocation2 + $0x798] sm:$0x88] %v2939
      %3189 = vst [vmem:[#allocation2 + $0x7a0] sm:$0x88] %v2941
      %3190 = vst [vmem:[#allocation2 + $0x7a8] sm:$0x88] %v2943
      %3191 = vst [vmem:[#allocation2 + $0x7b0] sm:$0x88] %v2945
      %3192 = vst [vmem:[#allocation2 + $0x7b8] sm:$0x88] %v2947
      %3193 = vst [vmem:[#allocation2 + $0x7c0] sm:$0x88] %v2949
      %3194 = vst [vmem:[#allocation2 + $0x7c8] sm:$0x88] %v2951
      %3195 = vst [vmem:[#allocation2 + $0x7d0] sm:$0x88] %v2953
      %3196 = vst [vmem:[#allocation2 + $0x7d8] sm:$0x88] %v2955
      %3197 = vst [vmem:[#allocation2 + $0x7e0] sm:$0x88] %v2957
      %3198 = vst [vmem:[#allocation2 + $0x7e8] sm:$0x88] %v2959
      %3199 = vst [vmem:[#allocation2 + $0x7f0] sm:$0x88] %v2961
      %3200 = vst [vmem:[#allocation2 + $0x7f8] sm:$0x88] %v2963
      %3201 = vst [vmem:[#allocation2 + $0x800] sm:$0x88] %v2965
      %3202 = vst [vmem:[#allocation2 + $0x808] sm:$0x88] %v2967
      %3203 = vst [vmem:[#allocation2 + $0x810] sm:$0x88] %v2969
      %3204 = vst [vmem:[#allocation2 + $0x818] sm:$0x88] %v2971
      %3205 = vst.msk [vmem:[#allocation2 + $0x820] sm:$0x88] %vm676, %v2973
      %3206 = vst [vmem:[#allocation2 + $0x828] sm:$0xff] %v2975
      %3207 = vst [vmem:[#allocation2 + $0x830] sm:$0xff] %v2977
      %3208 = vst [vmem:[#allocation2 + $0x838] sm:$0xff] %v2979
      %3209 = vst [vmem:[#allocation2 + $0x840] sm:$0xff] %v2981
      %3210 = vst [vmem:[#allocation2 + $0x848] sm:$0xff] %v2983
      %3211 = vst [vmem:[#allocation2 + $0x850] sm:$0xff] %v2985
      %3212 = vst [vmem:[#allocation2 + $0x858] sm:$0xff] %v2987
      %3213 = vst [vmem:[#allocation2 + $0x860] sm:$0xff] %v2989
      %3214 = vst [vmem:[#allocation2 + $0x868] sm:$0xff] %v2991
      %3215 = vst [vmem:[#allocation2 + $0x870] sm:$0xff] %v2993
      %3216 = vst [vmem:[#allocation2 + $0x878] sm:$0xff] %v2995
      %3217 = vst [vmem:[#allocation2 + $0x880] sm:$0xff] %v2997
      %3218 = vst [vmem:[#allocation2 + $0x888] sm:$0xff] %v2999
      %3219 = vst [vmem:[#allocation2 + $0x890] sm:$0xff] %v3001
      %3220 = vst [vmem:[#allocation2 + $0x898] sm:$0xff] %v3003
      %3221 = vst [vmem:[#allocation2 + $0x8a0] sm:$0xff] %v3005
      %3222 = vst [vmem:[#allocation2 + $0x8a8] sm:$0xff] %v3007
      %3223 = vst [vmem:[#allocation2 + $0x8b0] sm:$0xff] %v3009
      %3224 = vst [vmem:[#allocation2 + $0x8b8] sm:$0xff] %v3011
      %3225 = vst [vmem:[#allocation2 + $0x8c0] sm:$0xff] %v3013
      %3226 = vst [vmem:[#allocation2 + $0x8c8] sm:$0xff] %v3015
      %3227 = vst [vmem:[#allocation2 + $0x8d0] sm:$0xff] %v3017
      %3228 = vst [vmem:[#allocation2 + $0x8d8] sm:$0xff] %v3019
      %3229 = vst [vmem:[#allocation2 + $0x8e0] sm:$0xff] %v3021
      %3230 = vst [vmem:[#allocation2 + $0x8e8] sm:$0xff] %v3023
      %3231 = vst [vmem:[#allocation2 + $0x8f0] sm:$0xff] %v3025
      %3232 = vst [vmem:[#allocation2 + $0x8f8] sm:$0xff] %v3027
      %3233 = vst [vmem:[#allocation2 + $0x900] sm:$0xff] %v3029
      %3234 = vst.msk [vmem:[#allocation2 + $0x908] sm:$0xff] %vm260, %v3031
      %3235 = vst [vmem:[#allocation2 + $0x910] sm:$0x33] %v3033
      %3236 = vst [vmem:[#allocation2 + $0x918] sm:$0x33] %v3035
      %3237 = vst [vmem:[#allocation2 + $0x920] sm:$0x33] %v3037
      %3238 = vst [vmem:[#allocation2 + $0x928] sm:$0x33] %v3039
      %3239 = vst [vmem:[#allocation2 + $0x930] sm:$0x33] %v3041
      %3240 = vst [vmem:[#allocation2 + $0x938] sm:$0x33] %v3043
      %3241 = vst [vmem:[#allocation2 + $0x940] sm:$0x33] %v3045
      %3242 = vst [vmem:[#allocation2 + $0x948] sm:$0x33] %v3047
      %3243 = vst [vmem:[#allocation2 + $0x950] sm:$0x33] %v3049
      %3244 = vst [vmem:[#allocation2 + $0x958] sm:$0x33] %v3051
      %3245 = vst [vmem:[#allocation2 + $0x960] sm:$0x33] %v3053
      %3246 = vst [vmem:[#allocation2 + $0x968] sm:$0x33] %v3055
      %3247 = vst [vmem:[#allocation2 + $0x970] sm:$0x33] %v3057
      %3248 = vst [vmem:[#allocation2 + $0x978] sm:$0x33] %v3059
      %3249 = vst [vmem:[#allocation2 + $0x980] sm:$0x33] %v3061
      %3250 = vst [vmem:[#allocation2 + $0x988] sm:$0x33] %v3063
      %3251 = vst [vmem:[#allocation2 + $0x990] sm:$0x33] %v3065
      %3252 = vst [vmem:[#allocation2 + $0x998] sm:$0x33] %v3067
      %3253 = vst [vmem:[#allocation2 + $0x9a0] sm:$0x33] %v3069
      %3254 = vst [vmem:[#allocation2 + $0x9a8] sm:$0x33] %v3071
      %3255 = vst [vmem:[#allocation2 + $0x9b0] sm:$0x33] %v3073
      %3256 = vst [vmem:[#allocation2 + $0x9b8] sm:$0x33] %v3075
      %3257 = vst [vmem:[#allocation2 + $0x9c0] sm:$0x33] %v3077
      %3258 = vst [vmem:[#allocation2 + $0x9c8] sm:$0x33] %v3079
      %3259 = vst [vmem:[#allocation2 + $0x9d0] sm:$0x33] %v3081
      %3260 = vst [vmem:[#allocation2 + $0x9d8] sm:$0x33] %v3083
      %3261 = vst [vmem:[#allocation2 + $0x9e0] sm:$0x33] %v3085
      %3262 = vst [vmem:[#allocation2 + $0x9e8] sm:$0x33] %v3087
      %3263 = vst.msk [vmem:[#allocation2 + $0x9f0] sm:$0x33] %vm737, %v3089
      %v3264 = vld [vmem:[%s165 + $0x4] sm:$0xff]
      %v3265 = vld [vmem:[%s165 + $0xc] sm:$0xff]
      %v3266 = vld [vmem:[%s165 + $0x14] sm:$0xff]
      %v3267 = vld [vmem:[%s165 + $0x1c] sm:$0xff]
      %v3268 = vld [vmem:[%s165 + $0x24] sm:$0xff]
      %v3269 = vld [vmem:[%s165 + $0x2c] sm:$0xff]
      %v3270 = vld [vmem:[%s165 + $0x34] sm:$0xff]
      %v3271 = vld [vmem:[%s165 + $0x3c] sm:$0xff]
      %v3272 = vld [vmem:[%s165 + $0x44] sm:$0xff]
      %v3273 = vld [vmem:[%s165 + $0x4c] sm:$0xff]
      %v3274 = vld [vmem:[%s165 + $0x54] sm:$0xff]
      %v3275 = vld [vmem:[%s165 + $0x5c] sm:$0xff]
      %v3276 = vld [vmem:[%s165 + $0x64] sm:$0xff]
      %v3277 = vld [vmem:[%s165 + $0x6c] sm:$0xff]
      %v3278 = vld [vmem:[%s165 + $0x74] sm:$0xff]
      %v3279 = vld [vmem:[%s165 + $0x7c] sm:$0xff]
      %v3280 = vld [vmem:[%s165 + $0x84] sm:$0xff]
      %v3281 = vld [vmem:[%s165 + $0x8c] sm:$0xff]
      %v3282 = vld [vmem:[%s165 + $0x94] sm:$0xff]
      %v3283 = vld [vmem:[%s165 + $0x9c] sm:$0xff]
      %v3284 = vld [vmem:[%s165 + $0xa4] sm:$0xff]
      %v3285 = vld [vmem:[%s165 + $0xac] sm:$0xff]
      %v3286 = vld [vmem:[%s165 + $0xb4] sm:$0xff]
      %v3287 = vld [vmem:[%s165 + $0xbc] sm:$0xff]
      %v3288 = vld [vmem:[%s165 + $0xc4] sm:$0xff]
      %v3289 = vld [vmem:[%s165 + $0xcc] sm:$0xff]
      %v3290 = vld [vmem:[%s165 + $0xd4] sm:$0xff]
      %v3291 = vld [vmem:[%s165 + $0xdc] sm:$0xff]
      %v3292 = vld [vmem:[%s165 + $0xe4] sm:$0xff]
      %v3293 = vld [vmem:[%s165 + $0xec] sm:$0xf]
      %v3294 = vld [vmem:[%s165 + $0xf4] sm:$0x77]
      %v3295 = vld [vmem:[%s165 + $0xfc] sm:$0x77]
      %v3296 = vld [vmem:[%s165 + $0x104] sm:$0x77]
      %v3297 = vld [vmem:[%s165 + $0x10c] sm:$0x77]
      %v3298 = vld [vmem:[%s165 + $0x114] sm:$0x77]
      %v3299 = vld [vmem:[%s165 + $0x11c] sm:$0x77]
      %v3300 = vld [vmem:[%s165 + $0x124] sm:$0x77]
      %v3301 = vld [vmem:[%s165 + $0x12c] sm:$0x77]
      %v3302 = vld [vmem:[%s165 + $0x134] sm:$0x77]
      %v3303 = vld [vmem:[%s165 + $0x13c] sm:$0x77]
      %v3304 = vld [vmem:[%s165 + $0x144] sm:$0x77]
      %v3305 = vld [vmem:[%s165 + $0x14c] sm:$0x77]
      %v3306 = vld [vmem:[%s165 + $0x154] sm:$0x77]
      %v3307 = vld [vmem:[%s165 + $0x15c] sm:$0x77]
      %v3308 = vld [vmem:[%s165 + $0x164] sm:$0x77]
      %v3309 = vld [vmem:[%s165 + $0x16c] sm:$0x77]
      %v3310 = vld [vmem:[%s165 + $0x174] sm:$0x77]
      %v3311 = vld [vmem:[%s165 + $0x17c] sm:$0x77]
      %v3312 = vld [vmem:[%s165 + $0x184] sm:$0x77]
      %v3313 = vld [vmem:[%s165 + $0x18c] sm:$0x77]
      %v3314 = vld [vmem:[%s165 + $0x194] sm:$0x77]
      %v3315 = vld [vmem:[%s165 + $0x19c] sm:$0x77]
      %v3316 = vld [vmem:[%s165 + $0x1a4] sm:$0x77]
      %v3317 = vld [vmem:[%s165 + $0x1ac] sm:$0x77]
      %v3318 = vld [vmem:[%s165 + $0x1b4] sm:$0x77]
      %v3319 = vld [vmem:[%s165 + $0x1bc] sm:$0x77]
      %v3320 = vld [vmem:[%s165 + $0x1c4] sm:$0x77]
      %v3321 = vld [vmem:[%s165 + $0x1cc] sm:$0x77]
      %v3322 = vld [vmem:[%s165 + $0x1d4] sm:$0x77]
      %v3323 = vld [vmem:[%s165 + $0x1dc] sm:$0x7]
      %v3384 = vrot.slane %v3264, 6
      %v3385 = vrot.slane %v3265, 6
      %v3386 = vrot.slane %v3266, 6
      %v3387 = vrot.slane %v3267, 6
      %v3388 = vrot.slane %v3268, 6
      %v3389 = vrot.slane %v3269, 6
      %v3390 = vrot.slane %v3270, 6
      %v3391 = vrot.slane %v3271, 6
      %v3392 = vrot.slane %v3272, 6
      %v3393 = vrot.slane %v3273, 6
      %v3394 = vrot.slane %v3274, 6
      %v3395 = vrot.slane %v3275, 6
      %v3396 = vrot.slane %v3276, 6
      %v3397 = vrot.slane %v3277, 6
      %v3398 = vrot.slane %v3278, 6
      %v3399 = vrot.slane %v3279, 6
      %v3400 = vrot.slane %v3280, 6
      %v3401 = vrot.slane %v3281, 6
      %v3402 = vrot.slane %v3282, 6
      %v3403 = vrot.slane %v3283, 6
      %v3404 = vrot.slane %v3284, 6
      %v3405 = vrot.slane %v3285, 6
      %v3406 = vrot.slane %v3286, 6
      %v3407 = vrot.slane %v3287, 6
      %v3408 = vrot.slane %v3288, 6
      %v3409 = vrot.slane %v3289, 6
      %v3410 = vrot.slane %v3290, 6
      %v3411 = vrot.slane %v3291, 6
      %v3412 = vrot.slane %v3292, 6
      %v3413 = vrot.slane %v3293, 6
      %v3414 = vrot.slane %v3384, 4
      %v3415 = vrot.slane %v3294, 6
      %v3416 = vsel %vm858, %v3414, %v3415
      %v3417 = vrot.slane %v3385, 4
      %v3418 = vrot.slane %v3295, 6
      %v3419 = vsel %vm858, %v3417, %v3418
      %v3420 = vrot.slane %v3386, 4
      %v3421 = vrot.slane %v3296, 6
      %v3422 = vsel %vm858, %v3420, %v3421
      %v3423 = vrot.slane %v3387, 4
      %v3424 = vrot.slane %v3297, 6
      %v3425 = vsel %vm858, %v3423, %v3424
      %v3426 = vrot.slane %v3388, 4
      %v3427 = vrot.slane %v3298, 6
      %v3428 = vsel %vm858, %v3426, %v3427
      %v3429 = vrot.slane %v3389, 4
      %v3430 = vrot.slane %v3299, 6
      %v3431 = vsel %vm858, %v3429, %v3430
      %v3432 = vrot.slane %v3390, 4
      %v3433 = vrot.slane %v3300, 6
      %v3434 = vsel %vm858, %v3432, %v3433
      %v3435 = vrot.slane %v3391, 4
      %v3436 = vrot.slane %v3301, 6
      %v3437 = vsel %vm858, %v3435, %v3436
      %v3438 = vrot.slane %v3392, 4
      %v3439 = vrot.slane %v3302, 6
      %v3440 = vsel %vm858, %v3438, %v3439
      %v3441 = vrot.slane %v3393, 4
      %v3442 = vrot.slane %v3303, 6
      %v3443 = vsel %vm858, %v3441, %v3442
      %v3444 = vrot.slane %v3394, 4
      %v3445 = vrot.slane %v3304, 6
      %v3446 = vsel %vm858, %v3444, %v3445
      %v3447 = vrot.slane %v3395, 4
      %v3448 = vrot.slane %v3305, 6
      %v3449 = vsel %vm858, %v3447, %v3448
      %v3450 = vrot.slane %v3396, 4
      %v3451 = vrot.slane %v3306, 6
      %v3452 = vsel %vm858, %v3450, %v3451
      %v3453 = vrot.slane %v3397, 4
      %v3454 = vrot.slane %v3307, 6
      %v3455 = vsel %vm858, %v3453, %v3454
      %v3456 = vrot.slane %v3398, 4
      %v3457 = vrot.slane %v3308, 6
      %v3458 = vsel %vm858, %v3456, %v3457
      %v3459 = vrot.slane %v3399, 4
      %v3460 = vrot.slane %v3309, 6
      %v3461 = vsel %vm858, %v3459, %v3460
      %v3462 = vrot.slane %v3400, 4
      %v3463 = vrot.slane %v3310, 6
      %v3464 = vsel %vm858, %v3462, %v3463
      %v3465 = vrot.slane %v3401, 4
      %v3466 = vrot.slane %v3311, 6
      %v3467 = vsel %vm858, %v3465, %v3466
      %v3468 = vrot.slane %v3402, 4
      %v3469 = vrot.slane %v3312, 6
      %v3470 = vsel %vm858, %v3468, %v3469
      %v3471 = vrot.slane %v3403, 4
      %v3472 = vrot.slane %v3313, 6
      %v3473 = vsel %vm858, %v3471, %v3472
      %v3474 = vrot.slane %v3404, 4
      %v3475 = vrot.slane %v3314, 6
      %v3476 = vsel %vm858, %v3474, %v3475
      %v3477 = vrot.slane %v3405, 4
      %v3478 = vrot.slane %v3315, 6
      %v3479 = vsel %vm858, %v3477, %v3478
      %v3480 = vrot.slane %v3406, 4
      %v3481 = vrot.slane %v3316, 6
      %v3482 = vsel %vm858, %v3480, %v3481
      %v3483 = vrot.slane %v3407, 4
      %v3484 = vrot.slane %v3317, 6
      %v3485 = vsel %vm858, %v3483, %v3484
      %v3486 = vrot.slane %v3408, 4
      %v3487 = vrot.slane %v3318, 6
      %v3488 = vsel %vm858, %v3486, %v3487
      %v3489 = vrot.slane %v3409, 4
      %v3490 = vrot.slane %v3319, 6
      %v3491 = vsel %vm858, %v3489, %v3490
      %v3492 = vrot.slane %v3410, 4
      %v3493 = vrot.slane %v3320, 6
      %v3494 = vsel %vm858, %v3492, %v3493
      %v3495 = vrot.slane %v3411, 4
      %v3496 = vrot.slane %v3321, 6
      %v3497 = vsel %vm858, %v3495, %v3496
      %v3498 = vrot.slane %v3412, 4
      %v3499 = vrot.slane %v3322, 6
      %v3500 = vsel %vm858, %v3498, %v3499
      %v3501 = vrot.slane %v3413, 4
      %v3502 = vrot.slane %v3323, 6
      %v3503 = vsel %vm858, %v3501, %v3502
      %v3504 = vrot.slane %v3415, 4
      %v3505 = vrot.slane %v3418, 4
      %v3506 = vrot.slane %v3421, 4
      %v3507 = vrot.slane %v3424, 4
      %v3508 = vrot.slane %v3427, 4
      %v3509 = vrot.slane %v3430, 4
      %v3510 = vrot.slane %v3433, 4
      %v3511 = vrot.slane %v3436, 4
      %v3512 = vrot.slane %v3439, 4
      %v3513 = vrot.slane %v3442, 4
      %v3514 = vrot.slane %v3445, 4
      %v3515 = vrot.slane %v3448, 4
      %v3516 = vrot.slane %v3451, 4
      %v3517 = vrot.slane %v3454, 4
      %v3518 = vrot.slane %v3457, 4
      %v3519 = vrot.slane %v3460, 4
      %v3520 = vrot.slane %v3463, 4
      %v3521 = vrot.slane %v3466, 4
      %v3522 = vrot.slane %v3469, 4
      %v3523 = vrot.slane %v3472, 4
      %v3524 = vrot.slane %v3475, 4
      %v3525 = vrot.slane %v3478, 4
      %v3526 = vrot.slane %v3481, 4
      %v3527 = vrot.slane %v3484, 4
      %v3528 = vrot.slane %v3487, 4
      %v3529 = vrot.slane %v3490, 4
      %v3530 = vrot.slane %v3493, 4
      %v3531 = vrot.slane %v3496, 4
      %v3532 = vrot.slane %v3499, 4
      %v3533 = vrot.slane %v3502, 4
      %3534 = vrot.lane.b32.xlu0 %v3384, 84
      %v3535 = vpop.permute.xlu0 %3534
      %3536 = vrot.lane.b32.xlu0 %v3385, 84
      %v3537 = vpop.permute.xlu0 %3536
      %3538 = vrot.lane.b32.xlu0 %v3386, 84
      %v3539 = vpop.permute.xlu0 %3538
      %3540 = vrot.lane.b32.xlu0 %v3387, 84
      %v3541 = vpop.permute.xlu0 %3540
      %3542 = vrot.lane.b32.xlu0 %v3388, 84
      %v3543 = vpop.permute.xlu0 %3542
      %3544 = vrot.lane.b32.xlu0 %v3389, 84
      %v3545 = vpop.permute.xlu0 %3544
      %3546 = vrot.lane.b32.xlu0 %v3390, 84
      %v3547 = vpop.permute.xlu0 %3546
      %3548 = vrot.lane.b32.xlu0 %v3391, 84
      %v3549 = vpop.permute.xlu0 %3548
      %3550 = vrot.lane.b32.xlu0 %v3392, 84
      %v3551 = vpop.permute.xlu0 %3550
      %3552 = vrot.lane.b32.xlu0 %v3393, 84
      %v3553 = vpop.permute.xlu0 %3552
      %3554 = vrot.lane.b32.xlu0 %v3394, 84
      %v3555 = vpop.permute.xlu0 %3554
      %3556 = vrot.lane.b32.xlu0 %v3395, 84
      %v3557 = vpop.permute.xlu0 %3556
      %3558 = vrot.lane.b32.xlu0 %v3396, 84
      %v3559 = vpop.permute.xlu0 %3558
      %3560 = vrot.lane.b32.xlu0 %v3397, 84
      %v3561 = vpop.permute.xlu0 %3560
      %3562 = vrot.lane.b32.xlu0 %v3398, 84
      %v3563 = vpop.permute.xlu0 %3562
      %3564 = vrot.lane.b32.xlu0 %v3399, 84
      %v3565 = vpop.permute.xlu0 %3564
      %3566 = vrot.lane.b32.xlu0 %v3400, 84
      %v3567 = vpop.permute.xlu0 %3566
      %3568 = vrot.lane.b32.xlu0 %v3401, 84
      %v3569 = vpop.permute.xlu0 %3568
      %3570 = vrot.lane.b32.xlu0 %v3402, 84
      %v3571 = vpop.permute.xlu0 %3570
      %3572 = vrot.lane.b32.xlu0 %v3403, 84
      %v3573 = vpop.permute.xlu0 %3572
      %3574 = vrot.lane.b32.xlu0 %v3404, 84
      %v3575 = vpop.permute.xlu0 %3574
      %3576 = vrot.lane.b32.xlu0 %v3405, 84
      %v3577 = vpop.permute.xlu0 %3576
      %3578 = vrot.lane.b32.xlu0 %v3406, 84
      %v3579 = vpop.permute.xlu0 %3578
      %3580 = vrot.lane.b32.xlu0 %v3407, 84
      %v3581 = vpop.permute.xlu0 %3580
      %3582 = vrot.lane.b32.xlu0 %v3408, 84
      %v3583 = vpop.permute.xlu0 %3582
      %3584 = vrot.lane.b32.xlu0 %v3409, 84
      %v3585 = vpop.permute.xlu0 %3584
      %3586 = vrot.lane.b32.xlu0 %v3410, 84
      %v3587 = vpop.permute.xlu0 %3586
      %3588 = vrot.lane.b32.xlu0 %v3411, 84
      %v3589 = vpop.permute.xlu0 %3588
      %3590 = vrot.lane.b32.xlu0 %v3412, 84
      %v3591 = vpop.permute.xlu0 %3590
      %3592 = vrot.lane.b32.xlu0 %v3413, 84
      %v3593 = vpop.permute.xlu0 %3592
      %3594 = vrot.lane.b32.xlu0 %v3416, 84
      %v3595 = vpop.permute.xlu0 %3594
      %3596 = vrot.lane.b32.xlu0 %v3419, 84
      %v3597 = vpop.permute.xlu0 %3596
      %3598 = vrot.lane.b32.xlu0 %v3422, 84
      %v3599 = vpop.permute.xlu0 %3598
      %3600 = vrot.lane.b32.xlu0 %v3425, 84
      %v3601 = vpop.permute.xlu0 %3600
      %3602 = vrot.lane.b32.xlu0 %v3428, 84
      %v3603 = vpop.permute.xlu0 %3602
      %3604 = vrot.lane.b32.xlu0 %v3431, 84
      %v3605 = vpop.permute.xlu0 %3604
      %3606 = vrot.lane.b32.xlu0 %v3434, 84
      %v3607 = vpop.permute.xlu0 %3606
      %3608 = vrot.lane.b32.xlu0 %v3437, 84
      %v3609 = vpop.permute.xlu0 %3608
      %3610 = vrot.lane.b32.xlu0 %v3440, 84
      %v3611 = vpop.permute.xlu0 %3610
      %3612 = vrot.lane.b32.xlu0 %v3443, 84
      %v3613 = vpop.permute.xlu0 %3612
      %3614 = vrot.lane.b32.xlu0 %v3446, 84
      %v3615 = vpop.permute.xlu0 %3614
      %3616 = vrot.lane.b32.xlu0 %v3449, 84
      %v3617 = vpop.permute.xlu0 %3616
      %3618 = vrot.lane.b32.xlu0 %v3452, 84
      %v3619 = vpop.permute.xlu0 %3618
      %3620 = vrot.lane.b32.xlu0 %v3455, 84
      %v3621 = vpop.permute.xlu0 %3620
      %3622 = vrot.lane.b32.xlu0 %v3458, 84
      %v3623 = vpop.permute.xlu0 %3622
      %3624 = vrot.lane.b32.xlu0 %v3461, 84
      %v3625 = vpop.permute.xlu0 %3624
      %3626 = vrot.lane.b32.xlu0 %v3464, 84
      %v3627 = vpop.permute.xlu0 %3626
      %3628 = vrot.lane.b32.xlu0 %v3467, 84
      %v3629 = vpop.permute.xlu0 %3628
      %3630 = vrot.lane.b32.xlu0 %v3470, 84
      %v3631 = vpop.permute.xlu0 %3630
      %3632 = vrot.lane.b32.xlu0 %v3473, 84
      %v3633 = vpop.permute.xlu0 %3632
      %3634 = vrot.lane.b32.xlu0 %v3476, 84
      %v3635 = vpop.permute.xlu0 %3634
      %3636 = vrot.lane.b32.xlu0 %v3479, 84
      %v3637 = vpop.permute.xlu0 %3636
      %3638 = vrot.lane.b32.xlu0 %v3482, 84
      %v3639 = vpop.permute.xlu0 %3638
      %3640 = vrot.lane.b32.xlu0 %v3485, 84
      %v3641 = vpop.permute.xlu0 %3640
      %3642 = vrot.lane.b32.xlu0 %v3488, 84
      %v3643 = vpop.permute.xlu0 %3642
      %3644 = vrot.lane.b32.xlu0 %v3491, 84
      %v3645 = vpop.permute.xlu0 %3644
      %3646 = vrot.lane.b32.xlu0 %v3494, 84
      %v3647 = vpop.permute.xlu0 %3646
      %3648 = vrot.lane.b32.xlu0 %v3497, 84
      %v3649 = vpop.permute.xlu0 %3648
      %3650 = vrot.lane.b32.xlu0 %v3500, 84
      %v3651 = vpop.permute.xlu0 %3650
      %3652 = vrot.lane.b32.xlu0 %v3503, 84
      %v3653 = vpop.permute.xlu0 %3652
      %3654 = vrot.lane.b32.xlu0 %v3504, 84
      %v3655 = vpop.permute.xlu0 %3654
      %3656 = vrot.lane.b32.xlu0 %v3505, 84
      %v3657 = vpop.permute.xlu0 %3656
      %3658 = vrot.lane.b32.xlu0 %v3506, 84
      %v3659 = vpop.permute.xlu0 %3658
      %3660 = vrot.lane.b32.xlu0 %v3507, 84
      %v3661 = vpop.permute.xlu0 %3660
      %3662 = vrot.lane.b32.xlu0 %v3508, 84
      %v3663 = vpop.permute.xlu0 %3662
      %3664 = vrot.lane.b32.xlu0 %v3509, 84
      %v3665 = vpop.permute.xlu0 %3664
      %3666 = vrot.lane.b32.xlu0 %v3510, 84
      %v3667 = vpop.permute.xlu0 %3666
      %3668 = vrot.lane.b32.xlu0 %v3511, 84
      %v3669 = vpop.permute.xlu0 %3668
      %3670 = vrot.lane.b32.xlu0 %v3512, 84
      %v3671 = vpop.permute.xlu0 %3670
      %3672 = vrot.lane.b32.xlu0 %v3513, 84
      %v3673 = vpop.permute.xlu0 %3672
      %3674 = vrot.lane.b32.xlu0 %v3514, 84
      %v3675 = vpop.permute.xlu0 %3674
      %3676 = vrot.lane.b32.xlu0 %v3515, 84
      %v3677 = vpop.permute.xlu0 %3676
      %3678 = vrot.lane.b32.xlu0 %v3516, 84
      %v3679 = vpop.permute.xlu0 %3678
      %3680 = vrot.lane.b32.xlu0 %v3517, 84
      %v3681 = vpop.permute.xlu0 %3680
      %3682 = vrot.lane.b32.xlu0 %v3518, 84
      %v3683 = vpop.permute.xlu0 %3682
      %3684 = vrot.lane.b32.xlu0 %v3519, 84
      %v3685 = vpop.permute.xlu0 %3684
      %3686 = vrot.lane.b32.xlu0 %v3520, 84
      %v3687 = vpop.permute.xlu0 %3686
      %3688 = vrot.lane.b32.xlu0 %v3521, 84
      %v3689 = vpop.permute.xlu0 %3688
      %3690 = vrot.lane.b32.xlu0 %v3522, 84
      %v3691 = vpop.permute.xlu0 %3690
      %3692 = vrot.lane.b32.xlu0 %v3523, 84
      %v3693 = vpop.permute.xlu0 %3692
      %3694 = vrot.lane.b32.xlu0 %v3524, 84
      %v3695 = vpop.permute.xlu0 %3694
      %3696 = vrot.lane.b32.xlu0 %v3525, 84
      %v3697 = vpop.permute.xlu0 %3696
      %3698 = vrot.lane.b32.xlu0 %v3526, 84
      %v3699 = vpop.permute.xlu0 %3698
      %3700 = vrot.lane.b32.xlu0 %v3527, 84
      %v3701 = vpop.permute.xlu0 %3700
      %3702 = vrot.lane.b32.xlu0 %v3528, 84
      %v3703 = vpop.permute.xlu0 %3702
      %3704 = vrot.lane.b32.xlu0 %v3529, 84
      %v3705 = vpop.permute.xlu0 %3704
      %3706 = vrot.lane.b32.xlu0 %v3530, 84
      %v3707 = vpop.permute.xlu0 %3706
      %3708 = vrot.lane.b32.xlu0 %v3531, 84
      %v3709 = vpop.permute.xlu0 %3708
      %3710 = vrot.lane.b32.xlu0 %v3532, 84
      %v3711 = vpop.permute.xlu0 %3710
      %3712 = vrot.lane.b32.xlu0 %v3533, 84
      %v3713 = vpop.permute.xlu0 %3712
      %v3714 = vrot.slane %v3535, 4
      %v3715 = vrot.slane %v3537, 4
      %v3716 = vrot.slane %v3539, 4
      %v3717 = vrot.slane %v3541, 4
      %v3718 = vrot.slane %v3543, 4
      %v3719 = vrot.slane %v3545, 4
      %v3720 = vrot.slane %v3547, 4
      %v3721 = vrot.slane %v3549, 4
      %v3722 = vrot.slane %v3551, 4
      %v3723 = vrot.slane %v3553, 4
      %v3724 = vrot.slane %v3555, 4
      %v3725 = vrot.slane %v3557, 4
      %v3726 = vrot.slane %v3559, 4
      %v3727 = vrot.slane %v3561, 4
      %v3728 = vrot.slane %v3563, 4
      %v3729 = vrot.slane %v3565, 4
      %v3730 = vrot.slane %v3567, 4
      %v3731 = vrot.slane %v3569, 4
      %v3732 = vrot.slane %v3571, 4
      %v3733 = vrot.slane %v3573, 4
      %v3734 = vrot.slane %v3575, 4
      %v3735 = vrot.slane %v3577, 4
      %v3736 = vrot.slane %v3579, 4
      %v3737 = vrot.slane %v3581, 4
      %v3738 = vrot.slane %v3583, 4
      %v3739 = vrot.slane %v3585, 4
      %v3740 = vrot.slane %v3587, 4
      %v3741 = vrot.slane %v3589, 4
      %v3742 = vrot.slane %v3591, 4
      %v3743 = vrot.slane %v3593, 4
      %v3744 = vrot.slane %v3595, 4
      %v3745 = vrot.slane %v3597, 4
      %v3746 = vrot.slane %v3599, 4
      %v3747 = vrot.slane %v3601, 4
      %v3748 = vrot.slane %v3603, 4
      %v3749 = vrot.slane %v3605, 4
      %v3750 = vrot.slane %v3607, 4
      %v3751 = vrot.slane %v3609, 4
      %v3752 = vrot.slane %v3611, 4
      %v3753 = vrot.slane %v3613, 4
      %v3754 = vrot.slane %v3615, 4
      %v3755 = vrot.slane %v3617, 4
      %v3756 = vrot.slane %v3619, 4
      %v3757 = vrot.slane %v3621, 4
      %v3758 = vrot.slane %v3623, 4
      %v3759 = vrot.slane %v3625, 4
      %v3760 = vrot.slane %v3627, 4
      %v3761 = vrot.slane %v3629, 4
      %v3762 = vrot.slane %v3631, 4
      %v3763 = vrot.slane %v3633, 4
      %v3764 = vrot.slane %v3635, 4
      %v3765 = vrot.slane %v3637, 4
      %v3766 = vrot.slane %v3639, 4
      %v3767 = vrot.slane %v3641, 4
      %v3768 = vrot.slane %v3643, 4
      %v3769 = vrot.slane %v3645, 4
      %v3770 = vrot.slane %v3647, 4
      %v3771 = vrot.slane %v3649, 4
      %v3772 = vrot.slane %v3651, 4
      %v3773 = vrot.slane %v3653, 4
      %v3774 = vrot.slane %v3655, 4
      %v3775 = vrot.slane %v3657, 4
      %v3776 = vrot.slane %v3659, 4
      %v3777 = vrot.slane %v3661, 4
      %v3778 = vrot.slane %v3663, 4
      %v3779 = vrot.slane %v3665, 4
      %v3780 = vrot.slane %v3667, 4
      %v3781 = vrot.slane %v3669, 4
      %v3782 = vrot.slane %v3671, 4
      %v3783 = vrot.slane %v3673, 4
      %v3784 = vrot.slane %v3675, 4
      %v3785 = vrot.slane %v3677, 4
      %v3786 = vrot.slane %v3679, 4
      %v3787 = vrot.slane %v3681, 4
      %v3788 = vrot.slane %v3683, 4
      %v3789 = vrot.slane %v3685, 4
      %v3790 = vrot.slane %v3687, 4
      %v3791 = vrot.slane %v3689, 4
      %v3792 = vrot.slane %v3691, 4
      %v3793 = vrot.slane %v3693, 4
      %v3794 = vrot.slane %v3695, 4
      %v3795 = vrot.slane %v3697, 4
      %v3796 = vrot.slane %v3699, 4
      %v3797 = vrot.slane %v3701, 4
      %v3798 = vrot.slane %v3703, 4
      %v3799 = vrot.slane %v3705, 4
      %v3800 = vrot.slane %v3707, 4
      %v3801 = vrot.slane %v3709, 4
      %v3802 = vrot.slane %v3711, 4
      %v3803 = vrot.slane %v3713, 4
      %v3804 = vsel %vm1607, %v3714, %v3715
      %vm3805 = vcmask 687104
      %v3806 = vsel %vm3805, %v3535, %v3804
      %v3807 = vsel %vm1607, %v3715, %v3716
      %v3808 = vsel %vm3805, %v3537, %v3807
      %v3809 = vsel %vm1607, %v3716, %v3717
      %v3810 = vsel %vm3805, %v3539, %v3809
      %v3811 = vsel %vm1607, %v3717, %v3718
      %v3812 = vsel %vm3805, %v3541, %v3811
      %v3813 = vsel %vm1607, %v3718, %v3719
      %v3814 = vsel %vm3805, %v3543, %v3813
      %v3815 = vsel %vm1607, %v3719, %v3720
      %v3816 = vsel %vm3805, %v3545, %v3815
      %v3817 = vsel %vm1607, %v3720, %v3721
      %v3818 = vsel %vm3805, %v3547, %v3817
      %v3819 = vsel %vm1607, %v3721, %v3722
      %v3820 = vsel %vm3805, %v3549, %v3819
      %v3821 = vsel %vm1607, %v3722, %v3723
      %v3822 = vsel %vm3805, %v3551, %v3821
      %v3823 = vsel %vm1607, %v3723, %v3724
      %v3824 = vsel %vm3805, %v3553, %v3823
      %v3825 = vsel %vm1607, %v3724, %v3725
      %v3826 = vsel %vm3805, %v3555, %v3825
      %v3827 = vsel %vm1607, %v3725, %v3726
      %v3828 = vsel %vm3805, %v3557, %v3827
      %v3829 = vsel %vm1607, %v3726, %v3727
      %v3830 = vsel %vm3805, %v3559, %v3829
      %v3831 = vsel %vm1607, %v3727, %v3728
      %v3832 = vsel %vm3805, %v3561, %v3831
      %v3833 = vsel %vm1607, %v3728, %v3729
      %v3834 = vsel %vm3805, %v3563, %v3833
      %v3835 = vsel %vm1607, %v3729, %v3730
      %v3836 = vsel %vm3805, %v3565, %v3835
      %v3837 = vsel %vm1607, %v3730, %v3731
      %v3838 = vsel %vm3805, %v3567, %v3837
      %v3839 = vsel %vm1607, %v3731, %v3732
      %v3840 = vsel %vm3805, %v3569, %v3839
      %v3841 = vsel %vm1607, %v3732, %v3733
      %v3842 = vsel %vm3805, %v3571, %v3841
      %v3843 = vsel %vm1607, %v3733, %v3734
      %v3844 = vsel %vm3805, %v3573, %v3843
      %v3845 = vsel %vm1607, %v3734, %v3735
      %v3846 = vsel %vm3805, %v3575, %v3845
      %v3847 = vsel %vm1607, %v3735, %v3736
      %v3848 = vsel %vm3805, %v3577, %v3847
      %v3849 = vsel %vm1607, %v3736, %v3737
      %v3850 = vsel %vm3805, %v3579, %v3849
      %v3851 = vsel %vm1607, %v3737, %v3738
      %v3852 = vsel %vm3805, %v3581, %v3851
      %v3853 = vsel %vm1607, %v3738, %v3739
      %v3854 = vsel %vm3805, %v3583, %v3853
      %v3855 = vsel %vm1607, %v3739, %v3740
      %v3856 = vsel %vm3805, %v3585, %v3855
      %v3857 = vsel %vm1607, %v3740, %v3741
      %v3858 = vsel %vm3805, %v3587, %v3857
      %v3859 = vsel %vm1607, %v3741, %v3742
      %v3860 = vsel %vm3805, %v3589, %v3859
      %v3861 = vsel %vm1607, %v3742, %v3743
      %v3862 = vsel %vm3805, %v3591, %v3861
      %v3863 = vsel %vm1607, %v3744, %v3745
      %v3864 = vsel %vm3805, %v3595, %v3863
      %v3865 = vsel %vm1607, %v3745, %v3746
      %v3866 = vsel %vm3805, %v3597, %v3865
      %v3867 = vsel %vm1607, %v3746, %v3747
      %v3868 = vsel %vm3805, %v3599, %v3867
      %v3869 = vsel %vm1607, %v3747, %v3748
      %v3870 = vsel %vm3805, %v3601, %v3869
      %v3871 = vsel %vm1607, %v3748, %v3749
      %v3872 = vsel %vm3805, %v3603, %v3871
      %v3873 = vsel %vm1607, %v3749, %v3750
      %v3874 = vsel %vm3805, %v3605, %v3873
      %v3875 = vsel %vm1607, %v3750, %v3751
      %v3876 = vsel %vm3805, %v3607, %v3875
      %v3877 = vsel %vm1607, %v3751, %v3752
      %v3878 = vsel %vm3805, %v3609, %v3877
      %v3879 = vsel %vm1607, %v3752, %v3753
      %v3880 = vsel %vm3805, %v3611, %v3879
      %v3881 = vsel %vm1607, %v3753, %v3754
      %v3882 = vsel %vm3805, %v3613, %v3881
      %v3883 = vsel %vm1607, %v3754, %v3755
      %v3884 = vsel %vm3805, %v3615, %v3883
      %v3885 = vsel %vm1607, %v3755, %v3756
      %v3886 = vsel %vm3805, %v3617, %v3885
      %v3887 = vsel %vm1607, %v3756, %v3757
      %v3888 = vsel %vm3805, %v3619, %v3887
      %v3889 = vsel %vm1607, %v3757, %v3758
      %v3890 = vsel %vm3805, %v3621, %v3889
      %v3891 = vsel %vm1607, %v3758, %v3759
      %v3892 = vsel %vm3805, %v3623, %v3891
      %v3893 = vsel %vm1607, %v3759, %v3760
      %v3894 = vsel %vm3805, %v3625, %v3893
      %v3895 = vsel %vm1607, %v3760, %v3761
      %v3896 = vsel %vm3805, %v3627, %v3895
      %v3897 = vsel %vm1607, %v3761, %v3762
      %v3898 = vsel %vm3805, %v3629, %v3897
      %v3899 = vsel %vm1607, %v3762, %v3763
      %v3900 = vsel %vm3805, %v3631, %v3899
      %v3901 = vsel %vm1607, %v3763, %v3764
      %v3902 = vsel %vm3805, %v3633, %v3901
      %v3903 = vsel %vm1607, %v3764, %v3765
      %v3904 = vsel %vm3805, %v3635, %v3903
      %v3905 = vsel %vm1607, %v3765, %v3766
      %v3906 = vsel %vm3805, %v3637, %v3905
      %v3907 = vsel %vm1607, %v3766, %v3767
      %v3908 = vsel %vm3805, %v3639, %v3907
      %v3909 = vsel %vm1607, %v3767, %v3768
      %v3910 = vsel %vm3805, %v3641, %v3909
      %v3911 = vsel %vm1607, %v3768, %v3769
      %v3912 = vsel %vm3805, %v3643, %v3911
      %v3913 = vsel %vm1607, %v3769, %v3770
      %v3914 = vsel %vm3805, %v3645, %v3913
      %v3915 = vsel %vm1607, %v3770, %v3771
      %v3916 = vsel %vm3805, %v3647, %v3915
      %v3917 = vsel %vm1607, %v3771, %v3772
      %v3918 = vsel %vm3805, %v3649, %v3917
      %v3919 = vsel %vm1607, %v3772, %v3773
      %v3920 = vsel %vm3805, %v3651, %v3919
      %v3921 = vsel %vm1607, %v3774, %v3775
      %v3922 = vsel %vm3805, %v3655, %v3921
      %v3923 = vsel %vm1607, %v3775, %v3776
      %v3924 = vsel %vm3805, %v3657, %v3923
      %v3925 = vsel %vm1607, %v3776, %v3777
      %v3926 = vsel %vm3805, %v3659, %v3925
      %v3927 = vsel %vm1607, %v3777, %v3778
      %v3928 = vsel %vm3805, %v3661, %v3927
      %v3929 = vsel %vm1607, %v3778, %v3779
      %v3930 = vsel %vm3805, %v3663, %v3929
      %v3931 = vsel %vm1607, %v3779, %v3780
      %v3932 = vsel %vm3805, %v3665, %v3931
      %v3933 = vsel %vm1607, %v3780, %v3781
      %v3934 = vsel %vm3805, %v3667, %v3933
      %v3935 = vsel %vm1607, %v3781, %v3782
      %v3936 = vsel %vm3805, %v3669, %v3935
      %v3937 = vsel %vm1607, %v3782, %v3783
      %v3938 = vsel %vm3805, %v3671, %v3937
      %v3939 = vsel %vm1607, %v3783, %v3784
      %v3940 = vsel %vm3805, %v3673, %v3939
      %v3941 = vsel %vm1607, %v3784, %v3785
      %v3942 = vsel %vm3805, %v3675, %v3941
      %v3943 = vsel %vm1607, %v3785, %v3786
      %v3944 = vsel %vm3805, %v3677, %v3943
      %v3945 = vsel %vm1607, %v3786, %v3787
      %v3946 = vsel %vm3805, %v3679, %v3945
      %v3947 = vsel %vm1607, %v3787, %v3788
      %v3948 = vsel %vm3805, %v3681, %v3947
      %v3949 = vsel %vm1607, %v3788, %v3789
      %v3950 = vsel %vm3805, %v3683, %v3949
      %v3951 = vsel %vm1607, %v3789, %v3790
      %v3952 = vsel %vm3805, %v3685, %v3951
      %v3953 = vsel %vm1607, %v3790, %v3791
      %v3954 = vsel %vm3805, %v3687, %v3953
      %v3955 = vsel %vm1607, %v3791, %v3792
      %v3956 = vsel %vm3805, %v3689, %v3955
      %v3957 = vsel %vm1607, %v3792, %v3793
      %v3958 = vsel %vm3805, %v3691, %v3957
      %v3959 = vsel %vm1607, %v3793, %v3794
      %v3960 = vsel %vm3805, %v3693, %v3959
      %v3961 = vsel %vm1607, %v3794, %v3795
      %v3962 = vsel %vm3805, %v3695, %v3961
      %v3963 = vsel %vm1607, %v3795, %v3796
      %v3964 = vsel %vm3805, %v3697, %v3963
      %v3965 = vsel %vm1607, %v3796, %v3797
      %v3966 = vsel %vm3805, %v3699, %v3965
      %v3967 = vsel %vm1607, %v3797, %v3798
      %v3968 = vsel %vm3805, %v3701, %v3967
      %v3969 = vsel %vm1607, %v3798, %v3799
      %v3970 = vsel %vm3805, %v3703, %v3969
      %v3971 = vsel %vm1607, %v3799, %v3800
      %v3972 = vsel %vm3805, %v3705, %v3971
      %v3973 = vsel %vm1607, %v3800, %v3801
      %v3974 = vsel %vm3805, %v3707, %v3973
      %v3975 = vsel %vm1607, %v3801, %v3802
      %v3976 = vsel %vm3805, %v3709, %v3975
      %v3977 = vsel %vm1607, %v3802, %v3803
      %v3978 = vsel %vm3805, %v3711, %v3977
      %4066 = vst [vmem:[#allocation2 + $0x910] sm:$0xcc] %v3806
      %4067 = vst [vmem:[#allocation2 + $0x918] sm:$0xcc] %v3808
      %4068 = vst [vmem:[#allocation2 + $0x920] sm:$0xcc] %v3810
      %4069 = vst [vmem:[#allocation2 + $0x928] sm:$0xcc] %v3812
      %4070 = vst [vmem:[#allocation2 + $0x930] sm:$0xcc] %v3814
      %4071 = vst [vmem:[#allocation2 + $0x938] sm:$0xcc] %v3816
      %4072 = vst [vmem:[#allocation2 + $0x940] sm:$0xcc] %v3818
      %4073 = vst [vmem:[#allocation2 + $0x948] sm:$0xcc] %v3820
      %4074 = vst [vmem:[#allocation2 + $0x950] sm:$0xcc] %v3822
      %4075 = vst [vmem:[#allocation2 + $0x958] sm:$0xcc] %v3824
      %4076 = vst [vmem:[#allocation2 + $0x960] sm:$0xcc] %v3826
      %4077 = vst [vmem:[#allocation2 + $0x968] sm:$0xcc] %v3828
      %4078 = vst [vmem:[#allocation2 + $0x970] sm:$0xcc] %v3830
      %4079 = vst [vmem:[#allocation2 + $0x978] sm:$0xcc] %v3832
      %4080 = vst [vmem:[#allocation2 + $0x980] sm:$0xcc] %v3834
      %4081 = vst [vmem:[#allocation2 + $0x988] sm:$0xcc] %v3836
      %4082 = vst [vmem:[#allocation2 + $0x990] sm:$0xcc] %v3838
      %4083 = vst [vmem:[#allocation2 + $0x998] sm:$0xcc] %v3840
      %4084 = vst [vmem:[#allocation2 + $0x9a0] sm:$0xcc] %v3842
      %4085 = vst [vmem:[#allocation2 + $0x9a8] sm:$0xcc] %v3844
      %4086 = vst [vmem:[#allocation2 + $0x9b0] sm:$0xcc] %v3846
      %4087 = vst [vmem:[#allocation2 + $0x9b8] sm:$0xcc] %v3848
      %4088 = vst [vmem:[#allocation2 + $0x9c0] sm:$0xcc] %v3850
      %4089 = vst [vmem:[#allocation2 + $0x9c8] sm:$0xcc] %v3852
      %4090 = vst [vmem:[#allocation2 + $0x9d0] sm:$0xcc] %v3854
      %4091 = vst [vmem:[#allocation2 + $0x9d8] sm:$0xcc] %v3856
      %4092 = vst [vmem:[#allocation2 + $0x9e0] sm:$0xcc] %v3858
      %4093 = vst [vmem:[#allocation2 + $0x9e8] sm:$0xcc] %v3860
      %4094 = vst.msk [vmem:[#allocation2 + $0x9f0] sm:$0xcc] %vm1121, %v3862
      %4095 = vst [vmem:[#allocation2 + $0x9f8] sm:$0xff] %v3864
      %4096 = vst [vmem:[#allocation2 + $0xa00] sm:$0xff] %v3866
      %4097 = vst [vmem:[#allocation2 + $0xa08] sm:$0xff] %v3868
      %4098 = vst [vmem:[#allocation2 + $0xa10] sm:$0xff] %v3870
      %4099 = vst [vmem:[#allocation2 + $0xa18] sm:$0xff] %v3872
      %4100 = vst [vmem:[#allocation2 + $0xa20] sm:$0xff] %v3874
      %4101 = vst [vmem:[#allocation2 + $0xa28] sm:$0xff] %v3876
      %4102 = vst [vmem:[#allocation2 + $0xa30] sm:$0xff] %v3878
      %4103 = vst [vmem:[#allocation2 + $0xa38] sm:$0xff] %v3880
      %4104 = vst [vmem:[#allocation2 + $0xa40] sm:$0xff] %v3882
      %4105 = vst [vmem:[#allocation2 + $0xa48] sm:$0xff] %v3884
      %4106 = vst [vmem:[#allocation2 + $0xa50] sm:$0xff] %v3886
      %4107 = vst [vmem:[#allocation2 + $0xa58] sm:$0xff] %v3888
      %4108 = vst [vmem:[#allocation2 + $0xa60] sm:$0xff] %v3890
      %4109 = vst [vmem:[#allocation2 + $0xa68] sm:$0xff] %v3892
      %4110 = vst [vmem:[#allocation2 + $0xa70] sm:$0xff] %v3894
      %4111 = vst [vmem:[#allocation2 + $0xa78] sm:$0xff] %v3896
      %4112 = vst [vmem:[#allocation2 + $0xa80] sm:$0xff] %v3898
      %4113 = vst [vmem:[#allocation2 + $0xa88] sm:$0xff] %v3900
      %4114 = vst [vmem:[#allocation2 + $0xa90] sm:$0xff] %v3902
      %4115 = vst [vmem:[#allocation2 + $0xa98] sm:$0xff] %v3904
      %4116 = vst [vmem:[#allocation2 + $0xaa0] sm:$0xff] %v3906
      %4117 = vst [vmem:[#allocation2 + $0xaa8] sm:$0xff] %v3908
      %4118 = vst [vmem:[#allocation2 + $0xab0] sm:$0xff] %v3910
      %4119 = vst [vmem:[#allocation2 + $0xab8] sm:$0xff] %v3912
      %4120 = vst [vmem:[#allocation2 + $0xac0] sm:$0xff] %v3914
      %4121 = vst [vmem:[#allocation2 + $0xac8] sm:$0xff] %v3916
      %4122 = vst [vmem:[#allocation2 + $0xad0] sm:$0xff] %v3918
      %4123 = vst.msk [vmem:[#allocation2 + $0xad8] sm:$0xff] %vm260, %v3920
      %4124 = vst [vmem:[#allocation2 + $0xae0] sm:$0x11] %v3922
      %4125 = vst [vmem:[#allocation2 + $0xae8] sm:$0x11] %v3924
      %4126 = vst [vmem:[#allocation2 + $0xaf0] sm:$0x11] %v3926
      %4127 = vst [vmem:[#allocation2 + $0xaf8] sm:$0x11] %v3928
      %4128 = vst [vmem:[#allocation2 + $0xb00] sm:$0x11] %v3930
      %4129 = vst [vmem:[#allocation2 + $0xb08] sm:$0x11] %v3932
      %4130 = vst [vmem:[#allocation2 + $0xb10] sm:$0x11] %v3934
      %4131 = vst [vmem:[#allocation2 + $0xb18] sm:$0x11] %v3936
      %4132 = vst [vmem:[#allocation2 + $0xb20] sm:$0x11] %v3938
      %4133 = vst [vmem:[#allocation2 + $0xb28] sm:$0x11] %v3940
      %4134 = vst [vmem:[#allocation2 + $0xb30] sm:$0x11] %v3942
      %4135 = vst [vmem:[#allocation2 + $0xb38] sm:$0x11] %v3944
      %4136 = vst [vmem:[#allocation2 + $0xb40] sm:$0x11] %v3946
      %4137 = vst [vmem:[#allocation2 + $0xb48] sm:$0x11] %v3948
      %4138 = vst [vmem:[#allocation2 + $0xb50] sm:$0x11] %v3950
      %4139 = vst [vmem:[#allocation2 + $0xb58] sm:$0x11] %v3952
      %4140 = vst [vmem:[#allocation2 + $0xb60] sm:$0x11] %v3954
      %4141 = vst [vmem:[#allocation2 + $0xb68] sm:$0x11] %v3956
      %4142 = vst [vmem:[#allocation2 + $0xb70] sm:$0x11] %v3958
      %4143 = vst [vmem:[#allocation2 + $0xb78] sm:$0x11] %v3960
      %4144 = vst [vmem:[#allocation2 + $0xb80] sm:$0x11] %v3962
      %4145 = vst [vmem:[#allocation2 + $0xb88] sm:$0x11] %v3964
      %4146 = vst [vmem:[#allocation2 + $0xb90] sm:$0x11] %v3966
      %4147 = vst [vmem:[#allocation2 + $0xb98] sm:$0x11] %v3968
      %4148 = vst [vmem:[#allocation2 + $0xba0] sm:$0x11] %v3970
      %4149 = vst [vmem:[#allocation2 + $0xba8] sm:$0x11] %v3972
      %4150 = vst [vmem:[#allocation2 + $0xbb0] sm:$0x11] %v3974
      %4151 = vst [vmem:[#allocation2 + $0xbb8] sm:$0x11] %v3976
      %4152 = vst.msk [vmem:[#allocation2 + $0xbc0] sm:$0x11] %vm1182, %v3978
      %v4153 = vld [vmem:[%s1] sm:$0xf]
      %v4154 = vld [vmem:[%s1 + $0x4] sm:$0xf]
      %v4155 = vld [vmem:[#allocation2] sm:$0xff]
      %v4156 = vld [vmem:[#allocation2 + $0x8] sm:$0xff]
      %v4157 = vld [vmem:[#allocation2 + $0x10] sm:$0xff]
      %v4158 = vld [vmem:[#allocation2 + $0x18] sm:$0xff]
      %v4159 = vld [vmem:[#allocation2 + $0x20] sm:$0xff]
      %v4160 = vld [vmem:[#allocation2 + $0x28] sm:$0xff]
      %v4161 = vld [vmem:[#allocation2 + $0x30] sm:$0xff]
      %v4162 = vld [vmem:[#allocation2 + $0x38] sm:$0xff]
      %v4163 = vld [vmem:[#allocation2 + $0x40] sm:$0xff]
      %v4164 = vld [vmem:[#allocation2 + $0x48] sm:$0xff]
      %v4165 = vld [vmem:[#allocation2 + $0x50] sm:$0xff]
      %v4166 = vld [vmem:[#allocation2 + $0x58] sm:$0xff]
      %v4167 = vld [vmem:[#allocation2 + $0x60] sm:$0xff]
      %v4168 = vld [vmem:[#allocation2 + $0x68] sm:$0xff]
      %v4169 = vld [vmem:[#allocation2 + $0x70] sm:$0xff]
      %v4170 = vld [vmem:[#allocation2 + $0x78] sm:$0xff]
      %v4171 = vld [vmem:[#allocation2 + $0x80] sm:$0xff]
      %v4172 = vld [vmem:[#allocation2 + $0x88] sm:$0xff]
      %v4173 = vld [vmem:[#allocation2 + $0x90] sm:$0xff]
      %v4174 = vld [vmem:[#allocation2 + $0x98] sm:$0xff]
      %v4175 = vld [vmem:[#allocation2 + $0xa0] sm:$0xff]
      %v4176 = vld [vmem:[#allocation2 + $0xa8] sm:$0xff]
      %v4177 = vld [vmem:[#allocation2 + $0xb0] sm:$0xff]
      %v4178 = vld [vmem:[#allocation2 + $0xb8] sm:$0xff]
      %v4179 = vld [vmem:[#allocation2 + $0xc0] sm:$0xff]
      %v4180 = vld [vmem:[#allocation2 + $0xc8] sm:$0xff]
      %v4181 = vld [vmem:[#allocation2 + $0xd0] sm:$0xff]
      %v4182 = vld [vmem:[#allocation2 + $0xd8] sm:$0xff]
      %v4183 = vld [vmem:[#allocation2 + $0xe0] sm:$0xff]
      %v4184 = vld [vmem:[#allocation2 + $0xe8] sm:$0xff]
      %v4185 = vld [vmem:[#allocation2 + $0xf0] sm:$0xff]
      %v4186 = vld [vmem:[#allocation2 + $0xf8] sm:$0xff]
      %v4187 = vld [vmem:[#allocation2 + $0x100] sm:$0xff]
      %v4188 = vld [vmem:[#allocation2 + $0x108] sm:$0xff]
      %v4189 = vld [vmem:[#allocation2 + $0x110] sm:$0xff]
      %v4190 = vld [vmem:[#allocation2 + $0x118] sm:$0xff]
      %v4191 = vld [vmem:[#allocation2 + $0x120] sm:$0xff]
      %v4192 = vld [vmem:[#allocation2 + $0x128] sm:$0xff]
      %v4193 = vld [vmem:[#allocation2 + $0x130] sm:$0xff]
      %v4194 = vld [vmem:[#allocation2 + $0x138] sm:$0xff]
      %v4195 = vld [vmem:[#allocation2 + $0x140] sm:$0xff]
      %v4196 = vld [vmem:[#allocation2 + $0x148] sm:$0xff]
      %v4197 = vld [vmem:[#allocation2 + $0x150] sm:$0xff]
      %v4198 = vld [vmem:[#allocation2 + $0x158] sm:$0xff]
      %v4199 = vld [vmem:[#allocation2 + $0x160] sm:$0xff]
      %v4200 = vld [vmem:[#allocation2 + $0x168] sm:$0xff]
      %v4201 = vld [vmem:[#allocation2 + $0x170] sm:$0xff]
      %v4202 = vld [vmem:[#allocation2 + $0x178] sm:$0xff]
      %v4203 = vld [vmem:[#allocation2 + $0x180] sm:$0xff]
      %v4204 = vld [vmem:[#allocation2 + $0x188] sm:$0xff]
      %v4205 = vld [vmem:[#allocation2 + $0x190] sm:$0xff]
      %v4206 = vld [vmem:[#allocation2 + $0x198] sm:$0xff]
      %v4207 = vld [vmem:[#allocation2 + $0x1a0] sm:$0xff]
      %v4208 = vld [vmem:[#allocation2 + $0x1a8] sm:$0xff]
      %v4209 = vld [vmem:[#allocation2 + $0x1b0] sm:$0xff]
      %v4210 = vld [vmem:[#allocation2 + $0x1b8] sm:$0xff]
      %v4211 = vld [vmem:[#allocation2 + $0x1c0] sm:$0xff]
      %v4212 = vld [vmem:[#allocation2 + $0x1c8] sm:$0xff]
      %v4213 = vld [vmem:[#allocation2 + $0x1d0] sm:$0xff]
      %v4214 = vld [vmem:[#allocation2 + $0x1d8] sm:$0xff]
      %v4215 = vld [vmem:[#allocation2 + $0x1e0] sm:$0xff]
      %v4216 = vld [vmem:[#allocation2 + $0x1e8] sm:$0xff]
      %v4217 = vld [vmem:[#allocation2 + $0x1f0] sm:$0xff]
      %v4218 = vld [vmem:[#allocation2 + $0x1f8] sm:$0xff]
      %v4219 = vld [vmem:[#allocation2 + $0x200] sm:$0xff]
      %v4220 = vld [vmem:[#allocation2 + $0x208] sm:$0xff]
      %v4221 = vld [vmem:[#allocation2 + $0x210] sm:$0xff]
      %v4222 = vld [vmem:[#allocation2 + $0x218] sm:$0xff]
      %v4223 = vld [vmem:[#allocation2 + $0x220] sm:$0xff]
      %v4224 = vld [vmem:[#allocation2 + $0x228] sm:$0xff]
      %v4225 = vld [vmem:[#allocation2 + $0x230] sm:$0xff]
      %v4226 = vld [vmem:[#allocation2 + $0x238] sm:$0xff]
      %v4227 = vld [vmem:[#allocation2 + $0x240] sm:$0xff]
      %v4228 = vld [vmem:[#allocation2 + $0x248] sm:$0xff]
      %v4229 = vld [vmem:[#allocation2 + $0x250] sm:$0xff]
      %v4230 = vld [vmem:[#allocation2 + $0x258] sm:$0xff]
      %v4231 = vld [vmem:[#allocation2 + $0x260] sm:$0xff]
      %v4232 = vld [vmem:[#allocation2 + $0x268] sm:$0xff]
      %v4233 = vld [vmem:[#allocation2 + $0x270] sm:$0xff]
      %v4234 = vld [vmem:[#allocation2 + $0x278] sm:$0xff]
      %v4235 = vld [vmem:[#allocation2 + $0x280] sm:$0xff]
      %v4236 = vld [vmem:[#allocation2 + $0x288] sm:$0xff]
      %v4237 = vld [vmem:[#allocation2 + $0x290] sm:$0xff]
      %v4238 = vld [vmem:[#allocation2 + $0x298] sm:$0xff]
      %v4239 = vld [vmem:[#allocation2 + $0x2a0] sm:$0xff]
      %v4240 = vld [vmem:[#allocation2 + $0x2a8] sm:$0xff]
      %v4241 = vld [vmem:[#allocation2 + $0x2b0] sm:$0xff]
      %v4242 = vld [vmem:[#allocation2 + $0x2b8] sm:$0xff]
      %v4243 = vld [vmem:[#allocation2 + $0x2c0] sm:$0xff]
      %v4244 = vld [vmem:[#allocation2 + $0x2c8] sm:$0xff]
      %v4245 = vld [vmem:[#allocation2 + $0x2d0] sm:$0xff]
      %v4246 = vld [vmem:[#allocation2 + $0x2d8] sm:$0xff]
      %v4247 = vld [vmem:[#allocation2 + $0x2e0] sm:$0xff]
      %v4248 = vld [vmem:[#allocation2 + $0x2e8] sm:$0xff]
      %v4249 = vld [vmem:[#allocation2 + $0x2f0] sm:$0xff]
      %v4250 = vld [vmem:[#allocation2 + $0x2f8] sm:$0xff]
      %v4251 = vld [vmem:[#allocation2 + $0x300] sm:$0xff]
      %v4252 = vld [vmem:[#allocation2 + $0x308] sm:$0xff]
      %v4253 = vld [vmem:[#allocation2 + $0x310] sm:$0xff]
      %v4254 = vld [vmem:[#allocation2 + $0x318] sm:$0xff]
      %v4255 = vld [vmem:[#allocation2 + $0x320] sm:$0xff]
      %v4256 = vld [vmem:[#allocation2 + $0x328] sm:$0xff]
      %v4257 = vld [vmem:[#allocation2 + $0x330] sm:$0xff]
      %v4258 = vld [vmem:[#allocation2 + $0x338] sm:$0xff]
      %v4259 = vld [vmem:[#allocation2 + $0x340] sm:$0xff]
      %v4260 = vld [vmem:[#allocation2 + $0x348] sm:$0xff]
      %v4261 = vld [vmem:[#allocation2 + $0x350] sm:$0xff]
      %v4262 = vld [vmem:[#allocation2 + $0x358] sm:$0xff]
      %v4263 = vld [vmem:[#allocation2 + $0x360] sm:$0xff]
      %v4264 = vld [vmem:[#allocation2 + $0x368] sm:$0xff]
      %v4265 = vld [vmem:[#allocation2 + $0x370] sm:$0xff]
      %v4266 = vld [vmem:[#allocation2 + $0x378] sm:$0xff]
      %v4267 = vld [vmem:[#allocation2 + $0x380] sm:$0xff]
      %v4268 = vld [vmem:[#allocation2 + $0x388] sm:$0xff]
      %v4269 = vld [vmem:[#allocation2 + $0x390] sm:$0xff]
      %v4270 = vld [vmem:[#allocation2 + $0x398] sm:$0xff]
      %v4271 = vld [vmem:[#allocation2 + $0x3a0] sm:$0xff]
      %v4272 = vld [vmem:[#allocation2 + $0x3a8] sm:$0xff]
      %v4273 = vld [vmem:[#allocation2 + $0x3b0] sm:$0xff]
      %v4274 = vld [vmem:[#allocation2 + $0x3b8] sm:$0xff]
      %v4275 = vld [vmem:[#allocation2 + $0x3c0] sm:$0xff]
      %v4276 = vld [vmem:[#allocation2 + $0x3c8] sm:$0xff]
      %v4277 = vld [vmem:[#allocation2 + $0x3d0] sm:$0xff]
      %v4278 = vld [vmem:[#allocation2 + $0x3d8] sm:$0xff]
      %v4279 = vld [vmem:[#allocation2 + $0x3e0] sm:$0xff]
      %v4280 = vld [vmem:[#allocation2 + $0x3e8] sm:$0xff]
      %v4281 = vld [vmem:[#allocation2 + $0x3f0] sm:$0xff]
      %v4282 = vld [vmem:[#allocation2 + $0x3f8] sm:$0xff]
      %v4283 = vld [vmem:[#allocation2 + $0x400] sm:$0xff]
      %v4284 = vld [vmem:[#allocation2 + $0x408] sm:$0xff]
      %v4285 = vld [vmem:[#allocation2 + $0x410] sm:$0xff]
      %v4286 = vld [vmem:[#allocation2 + $0x418] sm:$0xff]
      %v4287 = vld [vmem:[#allocation2 + $0x420] sm:$0xff]
      %v4288 = vld [vmem:[#allocation2 + $0x428] sm:$0xff]
      %v4289 = vld [vmem:[#allocation2 + $0x430] sm:$0xff]
      %v4290 = vld [vmem:[#allocation2 + $0x438] sm:$0xff]
      %v4291 = vld [vmem:[#allocation2 + $0x440] sm:$0xff]
      %v4292 = vld [vmem:[#allocation2 + $0x448] sm:$0xff]
      %v4293 = vld [vmem:[#allocation2 + $0x450] sm:$0xff]
      %v4294 = vld [vmem:[#allocation2 + $0x458] sm:$0xff]
      %v4295 = vld [vmem:[#allocation2 + $0x460] sm:$0xff]
      %v4296 = vld [vmem:[#allocation2 + $0x468] sm:$0xff]
      %v4297 = vld [vmem:[#allocation2 + $0x470] sm:$0xff]
      %v4298 = vld [vmem:[#allocation2 + $0x478] sm:$0xff]
      %v4299 = vld [vmem:[#allocation2 + $0x480] sm:$0xff]
      %v4300 = vld [vmem:[#allocation2 + $0x488] sm:$0xff]
      %v4301 = vld [vmem:[#allocation2 + $0x490] sm:$0xff]
      %v4302 = vld [vmem:[#allocation2 + $0x498] sm:$0xff]
      %v4303 = vld [vmem:[#allocation2 + $0x4a0] sm:$0xff]
      %v4304 = vld [vmem:[#allocation2 + $0x4a8] sm:$0xff]
      %v4305 = vld [vmem:[#allocation2 + $0x4b0] sm:$0xff]
      %v4306 = vld [vmem:[#allocation2 + $0x4b8] sm:$0xff]
      %v4307 = vld [vmem:[#allocation2 + $0x4c0] sm:$0xff]
      %v4308 = vld [vmem:[#allocation2 + $0x4c8] sm:$0xff]
      %v4309 = vld [vmem:[#allocation2 + $0x4d0] sm:$0xff]
      %v4310 = vld [vmem:[#allocation2 + $0x4d8] sm:$0xff]
      %v4311 = vld [vmem:[#allocation2 + $0x4e0] sm:$0xff]
      %v4312 = vld [vmem:[#allocation2 + $0x4e8] sm:$0xff]
      %v4313 = vld [vmem:[#allocation2 + $0x4f0] sm:$0xff]
      %v4314 = vld [vmem:[#allocation2 + $0x4f8] sm:$0xff]
      %v4315 = vld [vmem:[#allocation2 + $0x500] sm:$0xff]
      %v4316 = vld [vmem:[#allocation2 + $0x508] sm:$0xff]
      %v4317 = vld [vmem:[#allocation2 + $0x510] sm:$0xff]
      %v4318 = vld [vmem:[#allocation2 + $0x518] sm:$0xff]
      %v4319 = vld [vmem:[#allocation2 + $0x520] sm:$0xff]
      %v4320 = vld [vmem:[#allocation2 + $0x528] sm:$0xff]
      %v4321 = vld [vmem:[#allocation2 + $0x530] sm:$0xff]
      %v4322 = vld [vmem:[#allocation2 + $0x538] sm:$0xff]
      %v4323 = vld [vmem:[#allocation2 + $0x540] sm:$0xff]
      %v4324 = vld [vmem:[#allocation2 + $0x548] sm:$0xff]
      %v4325 = vld [vmem:[#allocation2 + $0x550] sm:$0xff]
      %v4326 = vld [vmem:[#allocation2 + $0x558] sm:$0xff]
      %v4327 = vld [vmem:[#allocation2 + $0x560] sm:$0xff]
      %v4328 = vld [vmem:[#allocation2 + $0x568] sm:$0xff]
      %v4329 = vld [vmem:[#allocation2 + $0x570] sm:$0xff]
      %v4330 = vld [vmem:[#allocation2 + $0x578] sm:$0xff]
      %v4331 = vld [vmem:[#allocation2 + $0x580] sm:$0xff]
      %v4332 = vld [vmem:[#allocation2 + $0x588] sm:$0xff]
      %v4333 = vld [vmem:[#allocation2 + $0x590] sm:$0xff]
      %v4334 = vld [vmem:[#allocation2 + $0x598] sm:$0xff]
      %v4335 = vld [vmem:[#allocation2 + $0x5a0] sm:$0xff]
      %v4336 = vld [vmem:[#allocation2 + $0x5a8] sm:$0xff]
      %v4337 = vld [vmem:[#allocation2 + $0x5b0] sm:$0xff]
      %v4338 = vld [vmem:[#allocation2 + $0x5b8] sm:$0xff]
      %v4339 = vld [vmem:[#allocation2 + $0x5c0] sm:$0xff]
      %v4340 = vld [vmem:[#allocation2 + $0x5c8] sm:$0xff]
      %v4341 = vld [vmem:[#allocation2 + $0x5d0] sm:$0xff]
      %v4342 = vld [vmem:[#allocation2 + $0x5d8] sm:$0xff]
      %v4343 = vld [vmem:[#allocation2 + $0x5e0] sm:$0xff]
      %v4344 = vld [vmem:[#allocation2 + $0x5e8] sm:$0xff]
      %v4345 = vld [vmem:[#allocation2 + $0x5f0] sm:$0xff]
      %v4346 = vld [vmem:[#allocation2 + $0x5f8] sm:$0xff]
      %v4347 = vld [vmem:[#allocation2 + $0x600] sm:$0xff]
      %v4348 = vld [vmem:[#allocation2 + $0x608] sm:$0xff]
      %v4349 = vld [vmem:[#allocation2 + $0x610] sm:$0xff]
      %v4350 = vld [vmem:[#allocation2 + $0x618] sm:$0xff]
      %v4351 = vld [vmem:[#allocation2 + $0x620] sm:$0xff]
      %v4352 = vld [vmem:[#allocation2 + $0x628] sm:$0xff]
      %v4353 = vld [vmem:[#allocation2 + $0x630] sm:$0xff]
      %v4354 = vld [vmem:[#allocation2 + $0x638] sm:$0xff]
      %v4355 = vld [vmem:[#allocation2 + $0x640] sm:$0xff]
      %v4356 = vld [vmem:[#allocation2 + $0x648] sm:$0xff]
      %v4357 = vld [vmem:[#allocation2 + $0x650] sm:$0xff]
      %v4358 = vld [vmem:[#allocation2 + $0x658] sm:$0xff]
      %v4359 = vld [vmem:[#allocation2 + $0x660] sm:$0xff]
      %v4360 = vld [vmem:[#allocation2 + $0x668] sm:$0xff]
      %v4361 = vld [vmem:[#allocation2 + $0x670] sm:$0xff]
      %v4362 = vld [vmem:[#allocation2 + $0x678] sm:$0xff]
      %v4363 = vld [vmem:[#allocation2 + $0x680] sm:$0xff]
      %v4364 = vld [vmem:[#allocation2 + $0x688] sm:$0xff]
      %v4365 = vld [vmem:[#allocation2 + $0x690] sm:$0xff]
      %v4366 = vld [vmem:[#allocation2 + $0x698] sm:$0xff]
      %v4367 = vld [vmem:[#allocation2 + $0x6a0] sm:$0xff]
      %v4368 = vld [vmem:[#allocation2 + $0x6a8] sm:$0xff]
      %v4369 = vld [vmem:[#allocation2 + $0x6b0] sm:$0xff]
      %v4370 = vld [vmem:[#allocation2 + $0x6b8] sm:$0xff]
      %v4371 = vld [vmem:[#allocation2 + $0x6c0] sm:$0xff]
      %v4372 = vld [vmem:[#allocation2 + $0x6c8] sm:$0xff]
      %v4373 = vld [vmem:[#allocation2 + $0x6d0] sm:$0xff]
      %v4374 = vld [vmem:[#allocation2 + $0x6d8] sm:$0xff]
      %v4375 = vld [vmem:[#allocation2 + $0x6e0] sm:$0xff]
      %v4376 = vld [vmem:[#allocation2 + $0x6e8] sm:$0xff]
      %v4377 = vld [vmem:[#allocation2 + $0x6f0] sm:$0xff]
      %v4378 = vld [vmem:[#allocation2 + $0x6f8] sm:$0xff]
      %v4379 = vld [vmem:[#allocation2 + $0x700] sm:$0xff]
      %v4380 = vld [vmem:[#allocation2 + $0x708] sm:$0xff]
      %v4381 = vld [vmem:[#allocation2 + $0x710] sm:$0xff]
      %v4382 = vld [vmem:[#allocation2 + $0x718] sm:$0xff]
      %v4383 = vld [vmem:[#allocation2 + $0x720] sm:$0xff]
      %v4384 = vld [vmem:[#allocation2 + $0x728] sm:$0xff]
      %v4385 = vld [vmem:[#allocation2 + $0x730] sm:$0xff]
      %v4386 = vld [vmem:[#allocation2 + $0x738] sm:$0xff]
      %v4387 = vld [vmem:[#allocation2 + $0x740] sm:$0xff]
      %v4388 = vld [vmem:[#allocation2 + $0x748] sm:$0xff]
      %v4389 = vld [vmem:[#allocation2 + $0x750] sm:$0xff]
      %v4390 = vld [vmem:[#allocation2 + $0x758] sm:$0xff]
      %v4391 = vld [vmem:[#allocation2 + $0x760] sm:$0xff]
      %v4392 = vld [vmem:[#allocation2 + $0x768] sm:$0xff]
      %v4393 = vld [vmem:[#allocation2 + $0x770] sm:$0xff]
      %v4394 = vld [vmem:[#allocation2 + $0x778] sm:$0xff]
      %v4395 = vld [vmem:[#allocation2 + $0x780] sm:$0xff]
      %v4396 = vld [vmem:[#allocation2 + $0x788] sm:$0xff]
      %v4397 = vld [vmem:[#allocation2 + $0x790] sm:$0xff]
      %v4398 = vld [vmem:[#allocation2 + $0x798] sm:$0xff]
      %v4399 = vld [vmem:[#allocation2 + $0x7a0] sm:$0xff]
      %v4400 = vld [vmem:[#allocation2 + $0x7a8] sm:$0xff]
      %v4401 = vld [vmem:[#allocation2 + $0x7b0] sm:$0xff]
      %v4402 = vld [vmem:[#allocation2 + $0x7b8] sm:$0xff]
      %v4403 = vld [vmem:[#allocation2 + $0x7c0] sm:$0xff]
      %v4404 = vld [vmem:[#allocation2 + $0x7c8] sm:$0xff]
      %v4405 = vld [vmem:[#allocation2 + $0x7d0] sm:$0xff]
      %v4406 = vld [vmem:[#allocation2 + $0x7d8] sm:$0xff]
      %v4407 = vld [vmem:[#allocation2 + $0x7e0] sm:$0xff]
      %v4408 = vld [vmem:[#allocation2 + $0x7e8] sm:$0xff]
      %v4409 = vld [vmem:[#allocation2 + $0x7f0] sm:$0xff]
      %v4410 = vld [vmem:[#allocation2 + $0x7f8] sm:$0xff]
      %v4411 = vld [vmem:[#allocation2 + $0x800] sm:$0xff]
      %v4412 = vld [vmem:[#allocation2 + $0x808] sm:$0xff]
      %v4413 = vld [vmem:[#allocation2 + $0x810] sm:$0xff]
      %v4414 = vld [vmem:[#allocation2 + $0x818] sm:$0xff]
      %v4415 = vld [vmem:[#allocation2 + $0x820] sm:$0xff]
      %v4416 = vld [vmem:[#allocation2 + $0x828] sm:$0xff]
      %v4417 = vld [vmem:[#allocation2 + $0x830] sm:$0xff]
      %v4418 = vld [vmem:[#allocation2 + $0x838] sm:$0xff]
      %v4419 = vld [vmem:[#allocation2 + $0x840] sm:$0xff]
      %v4420 = vld [vmem:[#allocation2 + $0x848] sm:$0xff]
      %v4421 = vld [vmem:[#allocation2 + $0x850] sm:$0xff]
      %v4422 = vld [vmem:[#allocation2 + $0x858] sm:$0xff]
      %v4423 = vld [vmem:[#allocation2 + $0x860] sm:$0xff]
      %v4424 = vld [vmem:[#allocation2 + $0x868] sm:$0xff]
      %v4425 = vld [vmem:[#allocation2 + $0x870] sm:$0xff]
      %v4426 = vld [vmem:[#allocation2 + $0x878] sm:$0xff]
      %v4427 = vld [vmem:[#allocation2 + $0x880] sm:$0xff]
      %v4428 = vld [vmem:[#allocation2 + $0x888] sm:$0xff]
      %v4429 = vld [vmem:[#allocation2 + $0x890] sm:$0xff]
      %v4430 = vld [vmem:[#allocation2 + $0x898] sm:$0xff]
      %v4431 = vld [vmem:[#allocation2 + $0x8a0] sm:$0xff]
      %v4432 = vld [vmem:[#allocation2 + $0x8a8] sm:$0xff]
      %v4433 = vld [vmem:[#allocation2 + $0x8b0] sm:$0xff]
      %v4434 = vld [vmem:[#allocation2 + $0x8b8] sm:$0xff]
      %v4435 = vld [vmem:[#allocation2 + $0x8c0] sm:$0xff]
      %v4436 = vld [vmem:[#allocation2 + $0x8c8] sm:$0xff]
      %v4437 = vld [vmem:[#allocation2 + $0x8d0] sm:$0xff]
      %v4438 = vld [vmem:[#allocation2 + $0x8d8] sm:$0xff]
      %v4439 = vld [vmem:[#allocation2 + $0x8e0] sm:$0xff]
      %v4440 = vld [vmem:[#allocation2 + $0x8e8] sm:$0xff]
      %v4441 = vld [vmem:[#allocation2 + $0x8f0] sm:$0xff]
      %v4442 = vld [vmem:[#allocation2 + $0x8f8] sm:$0xff]
      %v4443 = vld [vmem:[#allocation2 + $0x900] sm:$0xff]
      %v4444 = vld [vmem:[#allocation2 + $0x908] sm:$0xff]
      %v4445 = vld [vmem:[#allocation2 + $0x910] sm:$0xff]
      %v4446 = vld [vmem:[#allocation2 + $0x918] sm:$0xff]
      %v4447 = vld [vmem:[#allocation2 + $0x920] sm:$0xff]
      %v4448 = vld [vmem:[#allocation2 + $0x928] sm:$0xff]
      %v4449 = vld [vmem:[#allocation2 + $0x930] sm:$0xff]
      %v4450 = vld [vmem:[#allocation2 + $0x938] sm:$0xff]
      %v4451 = vld [vmem:[#allocation2 + $0x940] sm:$0xff]
      %v4452 = vld [vmem:[#allocation2 + $0x948] sm:$0xff]
      %v4453 = vld [vmem:[#allocation2 + $0x950] sm:$0xff]
      %v4454 = vld [vmem:[#allocation2 + $0x958] sm:$0xff]
      %v4455 = vld [vmem:[#allocation2 + $0x960] sm:$0xff]
      %v4456 = vld [vmem:[#allocation2 + $0x968] sm:$0xff]
      %v4457 = vld [vmem:[#allocation2 + $0x970] sm:$0xff]
      %v4458 = vld [vmem:[#allocation2 + $0x978] sm:$0xff]
      %v4459 = vld [vmem:[#allocation2 + $0x980] sm:$0xff]
      %v4460 = vld [vmem:[#allocation2 + $0x988] sm:$0xff]
      %v4461 = vld [vmem:[#allocation2 + $0x990] sm:$0xff]
      %v4462 = vld [vmem:[#allocation2 + $0x998] sm:$0xff]
      %v4463 = vld [vmem:[#allocation2 + $0x9a0] sm:$0xff]
      %v4464 = vld [vmem:[#allocation2 + $0x9a8] sm:$0xff]
      %v4465 = vld [vmem:[#allocation2 + $0x9b0] sm:$0xff]
      %v4466 = vld [vmem:[#allocation2 + $0x9b8] sm:$0xff]
      %v4467 = vld [vmem:[#allocation2 + $0x9c0] sm:$0xff]
      %v4468 = vld [vmem:[#allocation2 + $0x9c8] sm:$0xff]
      %v4469 = vld [vmem:[#allocation2 + $0x9d0] sm:$0xff]
      %v4470 = vld [vmem:[#allocation2 + $0x9d8] sm:$0xff]
      %v4471 = vld [vmem:[#allocation2 + $0x9e0] sm:$0xff]
      %v4472 = vld [vmem:[#allocation2 + $0x9e8] sm:$0xff]
      %v4473 = vld [vmem:[#allocation2 + $0x9f0] sm:$0xff]
      %v4474 = vld [vmem:[#allocation2 + $0x9f8] sm:$0xff]
      %v4475 = vld [vmem:[#allocation2 + $0xa00] sm:$0xff]
      %v4476 = vld [vmem:[#allocation2 + $0xa08] sm:$0xff]
      %v4477 = vld [vmem:[#allocation2 + $0xa10] sm:$0xff]
      %v4478 = vld [vmem:[#allocation2 + $0xa18] sm:$0xff]
      %v4479 = vld [vmem:[#allocation2 + $0xa20] sm:$0xff]
      %v4480 = vld [vmem:[#allocation2 + $0xa28] sm:$0xff]
      %v4481 = vld [vmem:[#allocation2 + $0xa30] sm:$0xff]
      %v4482 = vld [vmem:[#allocation2 + $0xa38] sm:$0xff]
      %v4483 = vld [vmem:[#allocation2 + $0xa40] sm:$0xff]
      %v4484 = vld [vmem:[#allocation2 + $0xa48] sm:$0xff]
      %v4485 = vld [vmem:[#allocation2 + $0xa50] sm:$0xff]
      %v4486 = vld [vmem:[#allocation2 + $0xa58] sm:$0xff]
      %v4487 = vld [vmem:[#allocation2 + $0xa60] sm:$0xff]
      %v4488 = vld [vmem:[#allocation2 + $0xa68] sm:$0xff]
      %v4489 = vld [vmem:[#allocation2 + $0xa70] sm:$0xff]
      %v4490 = vld [vmem:[#allocation2 + $0xa78] sm:$0xff]
      %v4491 = vld [vmem:[#allocation2 + $0xa80] sm:$0xff]
      %v4492 = vld [vmem:[#allocation2 + $0xa88] sm:$0xff]
      %v4493 = vld [vmem:[#allocation2 + $0xa90] sm:$0xff]
      %v4494 = vld [vmem:[#allocation2 + $0xa98] sm:$0xff]
      %v4495 = vld [vmem:[#allocation2 + $0xaa0] sm:$0xff]
      %v4496 = vld [vmem:[#allocation2 + $0xaa8] sm:$0xff]
      %v4497 = vld [vmem:[#allocation2 + $0xab0] sm:$0xff]
      %v4498 = vld [vmem:[#allocation2 + $0xab8] sm:$0xff]
      %v4499 = vld [vmem:[#allocation2 + $0xac0] sm:$0xff]
      %v4500 = vld [vmem:[#allocation2 + $0xac8] sm:$0xff]
      %v4501 = vld [vmem:[#allocation2 + $0xad0] sm:$0xff]
      %v4502 = vld [vmem:[#allocation2 + $0xad8] sm:$0xff]
      %v4503 = vld [vmem:[#allocation2 + $0xae0] sm:$0x11]
      %v4504 = vld [vmem:[#allocation2 + $0xae8] sm:$0x11]
      %v4505 = vld [vmem:[#allocation2 + $0xaf0] sm:$0x11]
      %v4506 = vld [vmem:[#allocation2 + $0xaf8] sm:$0x11]
      %v4507 = vld [vmem:[#allocation2 + $0xb00] sm:$0x11]
      %v4508 = vld [vmem:[#allocation2 + $0xb08] sm:$0x11]
      %v4509 = vld [vmem:[#allocation2 + $0xb10] sm:$0x11]
      %v4510 = vld [vmem:[#allocation2 + $0xb18] sm:$0x11]
      %v4511 = vld [vmem:[#allocation2 + $0xb20] sm:$0x11]
      %v4512 = vld [vmem:[#allocation2 + $0xb28] sm:$0x11]
      %v4513 = vld [vmem:[#allocation2 + $0xb30] sm:$0x11]
      %v4514 = vld [vmem:[#allocation2 + $0xb38] sm:$0x11]
      %v4515 = vld [vmem:[#allocation2 + $0xb40] sm:$0x11]
      %v4516 = vld [vmem:[#allocation2 + $0xb48] sm:$0x11]
      %v4517 = vld [vmem:[#allocation2 + $0xb50] sm:$0x11]
      %v4518 = vld [vmem:[#allocation2 + $0xb58] sm:$0x11]
      %v4519 = vld [vmem:[#allocation2 + $0xb60] sm:$0x11]
      %v4520 = vld [vmem:[#allocation2 + $0xb68] sm:$0x11]
      %v4521 = vld [vmem:[#allocation2 + $0xb70] sm:$0x11]
      %v4522 = vld [vmem:[#allocation2 + $0xb78] sm:$0x11]
      %v4523 = vld [vmem:[#allocation2 + $0xb80] sm:$0x11]
      %v4524 = vld [vmem:[#allocation2 + $0xb88] sm:$0x11]
      %v4525 = vld [vmem:[#allocation2 + $0xb90] sm:$0x11]
      %v4526 = vld [vmem:[#allocation2 + $0xb98] sm:$0x11]
      %v4527 = vld [vmem:[#allocation2 + $0xba0] sm:$0x11]
      %v4528 = vld [vmem:[#allocation2 + $0xba8] sm:$0x11]
      %v4529 = vld [vmem:[#allocation2 + $0xbb0] sm:$0x11]
      %v4530 = vld [vmem:[#allocation2 + $0xbb8] sm:$0x11]
      %v4531 = vld [vmem:[#allocation2 + $0xbc0] sm:$0x11]
      %v4532 = vld [vmem:[%s2] sm:$0xff]
      %v4533 = vld [vmem:[%s2 + $0x8] sm:$0xff]
      %4535 = vset.pattern.permute.xlu0 0
      %4536 = vperm.xlu0 %4535, %v4532
      %v4537 = vpop.permute.xlu0 %4536
      %4540 = vset.pattern.permute.xlu0 0
      %4541 = vperm.xlu0 %4540, %v4533
      %v4542 = vpop.permute.xlu0 %4541
      %v4546 = vunpack.c.l.b16 %v4153
      %v4547 = vunpack.c.l.b16 %v4154
      %v4548 = vpack.c.b16 %v4547, %v4546
      %v4926 = vunpack.c.l.b16 %v4155
      %v4927 = vunpack.c.h.b16 %v4155
      %v4928 = vunpack.c.l.b16 %v4156
      %v4929 = vunpack.c.h.b16 %v4156
      %v4930 = vunpack.c.l.b16 %v4157
      %v4931 = vunpack.c.h.b16 %v4157
      %v4932 = vunpack.c.l.b16 %v4158
      %v4933 = vunpack.c.h.b16 %v4158
      %v4934 = vunpack.c.l.b16 %v4159
      %v4935 = vunpack.c.h.b16 %v4159
      %v4936 = vunpack.c.l.b16 %v4160
      %v4937 = vunpack.c.h.b16 %v4160
      %v4938 = vunpack.c.l.b16 %v4161
      %v4939 = vunpack.c.h.b16 %v4161
      %v4940 = vunpack.c.l.b16 %v4162
      %v4941 = vunpack.c.h.b16 %v4162
      %v4942 = vunpack.c.l.b16 %v4163
      %v4943 = vunpack.c.h.b16 %v4163
      %v4944 = vunpack.c.l.b16 %v4164
      %v4945 = vunpack.c.h.b16 %v4164
      %v4946 = vunpack.c.l.b16 %v4165
      %v4947 = vunpack.c.h.b16 %v4165
      %v4948 = vunpack.c.l.b16 %v4166
      %v4949 = vunpack.c.h.b16 %v4166
      %v4950 = vunpack.c.l.b16 %v4167
      %v4951 = vunpack.c.h.b16 %v4167
      %v4952 = vunpack.c.l.b16 %v4168
      %v4953 = vunpack.c.h.b16 %v4168
      %v4954 = vunpack.c.l.b16 %v4169
      %v4955 = vunpack.c.h.b16 %v4169
      %v4956 = vunpack.c.l.b16 %v4170
      %v4957 = vunpack.c.h.b16 %v4170
      %v4958 = vunpack.c.l.b16 %v4171
      %v4959 = vunpack.c.h.b16 %v4171
      %v4960 = vunpack.c.l.b16 %v4172
      %v4961 = vunpack.c.h.b16 %v4172
      %v4962 = vunpack.c.l.b16 %v4173
      %v4963 = vunpack.c.h.b16 %v4173
      %v4964 = vunpack.c.l.b16 %v4174
      %v4965 = vunpack.c.h.b16 %v4174
      %v4966 = vunpack.c.l.b16 %v4175
      %v4967 = vunpack.c.h.b16 %v4175
      %v4968 = vunpack.c.l.b16 %v4176
      %v4969 = vunpack.c.h.b16 %v4176
      %v4970 = vunpack.c.l.b16 %v4177
      %v4971 = vunpack.c.h.b16 %v4177
      %v4972 = vunpack.c.l.b16 %v4178
      %v4973 = vunpack.c.h.b16 %v4178
      %v4974 = vunpack.c.l.b16 %v4179
      %v4975 = vunpack.c.h.b16 %v4179
      %v4976 = vunpack.c.l.b16 %v4180
      %v4977 = vunpack.c.h.b16 %v4180
      %v4978 = vunpack.c.l.b16 %v4181
      %v4979 = vunpack.c.h.b16 %v4181
      %v4980 = vunpack.c.l.b16 %v4182
      %v4981 = vunpack.c.h.b16 %v4182
      %v4982 = vunpack.c.l.b16 %v4183
      %v4983 = vunpack.c.h.b16 %v4183
      %v4984 = vunpack.c.l.b16 %v4184
      %v4985 = vunpack.c.h.b16 %v4184
      %v4986 = vunpack.c.l.b16 %v4185
      %v4987 = vunpack.c.h.b16 %v4185
      %v4988 = vunpack.c.l.b16 %v4186
      %v4989 = vunpack.c.h.b16 %v4186
      %v4990 = vunpack.c.l.b16 %v4187
      %v4991 = vunpack.c.h.b16 %v4187
      %v4992 = vunpack.c.l.b16 %v4188
      %v4993 = vunpack.c.h.b16 %v4188
      %v4994 = vunpack.c.l.b16 %v4189
      %v4995 = vunpack.c.h.b16 %v4189
      %v4996 = vunpack.c.l.b16 %v4190
      %v4997 = vunpack.c.h.b16 %v4190
      %v4998 = vunpack.c.l.b16 %v4191
      %v4999 = vunpack.c.h.b16 %v4191
      %v5000 = vunpack.c.l.b16 %v4192
      %v5001 = vunpack.c.h.b16 %v4192
      %v5002 = vunpack.c.l.b16 %v4193
      %v5003 = vunpack.c.h.b16 %v4193
      %v5004 = vunpack.c.l.b16 %v4194
      %v5005 = vunpack.c.h.b16 %v4194
      %v5006 = vunpack.c.l.b16 %v4195
      %v5007 = vunpack.c.h.b16 %v4195
      %v5008 = vunpack.c.l.b16 %v4196
      %v5009 = vunpack.c.h.b16 %v4196
      %v5010 = vunpack.c.l.b16 %v4197
      %v5011 = vunpack.c.h.b16 %v4197
      %v5012 = vunpack.c.l.b16 %v4198
      %v5013 = vunpack.c.h.b16 %v4198
      %v5014 = vunpack.c.l.b16 %v4199
      %v5015 = vunpack.c.h.b16 %v4199
      %v5016 = vunpack.c.l.b16 %v4200
      %v5017 = vunpack.c.h.b16 %v4200
      %v5018 = vunpack.c.l.b16 %v4201
      %v5019 = vunpack.c.h.b16 %v4201
      %v5020 = vunpack.c.l.b16 %v4202
      %v5021 = vunpack.c.h.b16 %v4202
      %v5022 = vunpack.c.l.b16 %v4203
      %v5023 = vunpack.c.h.b16 %v4203
      %v5024 = vunpack.c.l.b16 %v4204
      %v5025 = vunpack.c.h.b16 %v4204
      %v5026 = vunpack.c.l.b16 %v4205
      %v5027 = vunpack.c.h.b16 %v4205
      %v5028 = vunpack.c.l.b16 %v4206
      %v5029 = vunpack.c.h.b16 %v4206
      %v5030 = vunpack.c.l.b16 %v4207
      %v5031 = vunpack.c.h.b16 %v4207
      %v5032 = vunpack.c.l.b16 %v4208
      %v5033 = vunpack.c.h.b16 %v4208
      %v5034 = vunpack.c.l.b16 %v4209
      %v5035 = vunpack.c.h.b16 %v4209
      %v5036 = vunpack.c.l.b16 %v4210
      %v5037 = vunpack.c.h.b16 %v4210
      %v5038 = vunpack.c.l.b16 %v4211
      %v5039 = vunpack.c.h.b16 %v4211
      %v5040 = vunpack.c.l.b16 %v4212
      %v5041 = vunpack.c.h.b16 %v4212
      %v5042 = vunpack.c.l.b16 %v4213
      %v5043 = vunpack.c.h.b16 %v4213
      %v5044 = vunpack.c.l.b16 %v4214
      %v5045 = vunpack.c.h.b16 %v4214
      %v5046 = vunpack.c.l.b16 %v4215
      %v5047 = vunpack.c.h.b16 %v4215
      %v5048 = vunpack.c.l.b16 %v4216
      %v5049 = vunpack.c.h.b16 %v4216
      %v5050 = vunpack.c.l.b16 %v4217
      %v5051 = vunpack.c.h.b16 %v4217
      %v5052 = vunpack.c.l.b16 %v4218
      %v5053 = vunpack.c.h.b16 %v4218
      %v5054 = vunpack.c.l.b16 %v4219
      %v5055 = vunpack.c.h.b16 %v4219
      %v5056 = vunpack.c.l.b16 %v4220
      %v5057 = vunpack.c.h.b16 %v4220
      %v5058 = vunpack.c.l.b16 %v4221
      %v5059 = vunpack.c.h.b16 %v4221
      %v5060 = vunpack.c.l.b16 %v4222
      %v5061 = vunpack.c.h.b16 %v4222
      %v5062 = vunpack.c.l.b16 %v4223
      %v5063 = vunpack.c.h.b16 %v4223
      %v5064 = vunpack.c.l.b16 %v4224
      %v5065 = vunpack.c.h.b16 %v4224
      %v5066 = vunpack.c.l.b16 %v4225
      %v5067 = vunpack.c.h.b16 %v4225
      %v5068 = vunpack.c.l.b16 %v4226
      %v5069 = vunpack.c.h.b16 %v4226
      %v5070 = vunpack.c.l.b16 %v4227
      %v5071 = vunpack.c.h.b16 %v4227
      %v5072 = vunpack.c.l.b16 %v4228
      %v5073 = vunpack.c.h.b16 %v4228
      %v5074 = vunpack.c.l.b16 %v4229
      %v5075 = vunpack.c.h.b16 %v4229
      %v5076 = vunpack.c.l.b16 %v4230
      %v5077 = vunpack.c.h.b16 %v4230
      %v5078 = vunpack.c.l.b16 %v4231
      %v5079 = vunpack.c.h.b16 %v4231
      %v5080 = vunpack.c.l.b16 %v4232
      %v5081 = vunpack.c.h.b16 %v4232
      %v5082 = vunpack.c.l.b16 %v4233
      %v5083 = vunpack.c.h.b16 %v4233
      %v5084 = vunpack.c.l.b16 %v4234
      %v5085 = vunpack.c.h.b16 %v4234
      %v5086 = vunpack.c.l.b16 %v4235
      %v5087 = vunpack.c.h.b16 %v4235
      %v5088 = vunpack.c.l.b16 %v4236
      %v5089 = vunpack.c.h.b16 %v4236
      %v5090 = vunpack.c.l.b16 %v4237
      %v5091 = vunpack.c.h.b16 %v4237
      %v5092 = vunpack.c.l.b16 %v4238
      %v5093 = vunpack.c.h.b16 %v4238
      %v5094 = vunpack.c.l.b16 %v4239
      %v5095 = vunpack.c.h.b16 %v4239
      %v5096 = vunpack.c.l.b16 %v4240
      %v5097 = vunpack.c.h.b16 %v4240
      %v5098 = vunpack.c.l.b16 %v4241
      %v5099 = vunpack.c.h.b16 %v4241
      %v5100 = vunpack.c.l.b16 %v4242
      %v5101 = vunpack.c.h.b16 %v4242
      %v5102 = vunpack.c.l.b16 %v4243
      %v5103 = vunpack.c.h.b16 %v4243
      %v5104 = vunpack.c.l.b16 %v4244
      %v5105 = vunpack.c.h.b16 %v4244
      %v5106 = vunpack.c.l.b16 %v4245
      %v5107 = vunpack.c.h.b16 %v4245
      %v5108 = vunpack.c.l.b16 %v4246
      %v5109 = vunpack.c.h.b16 %v4246
      %v5110 = vunpack.c.l.b16 %v4247
      %v5111 = vunpack.c.h.b16 %v4247
      %v5112 = vunpack.c.l.b16 %v4248
      %v5113 = vunpack.c.h.b16 %v4248
      %v5114 = vunpack.c.l.b16 %v4249
      %v5115 = vunpack.c.h.b16 %v4249
      %v5116 = vunpack.c.l.b16 %v4250
      %v5117 = vunpack.c.h.b16 %v4250
      %v5118 = vunpack.c.l.b16 %v4251
      %v5119 = vunpack.c.h.b16 %v4251
      %v5120 = vunpack.c.l.b16 %v4252
      %v5121 = vunpack.c.h.b16 %v4252
      %v5122 = vunpack.c.l.b16 %v4253
      %v5123 = vunpack.c.h.b16 %v4253
      %v5124 = vunpack.c.l.b16 %v4254
      %v5125 = vunpack.c.h.b16 %v4254
      %v5126 = vunpack.c.l.b16 %v4255
      %v5127 = vunpack.c.h.b16 %v4255
      %v5128 = vunpack.c.l.b16 %v4256
      %v5129 = vunpack.c.h.b16 %v4256
      %v5130 = vunpack.c.l.b16 %v4257
      %v5131 = vunpack.c.h.b16 %v4257
      %v5132 = vunpack.c.l.b16 %v4258
      %v5133 = vunpack.c.h.b16 %v4258
      %v5134 = vunpack.c.l.b16 %v4259
      %v5135 = vunpack.c.h.b16 %v4259
      %v5136 = vunpack.c.l.b16 %v4260
      %v5137 = vunpack.c.h.b16 %v4260
      %v5138 = vunpack.c.l.b16 %v4261
      %v5139 = vunpack.c.h.b16 %v4261
      %v5140 = vunpack.c.l.b16 %v4262
      %v5141 = vunpack.c.h.b16 %v4262
      %v5142 = vunpack.c.l.b16 %v4263
      %v5143 = vunpack.c.h.b16 %v4263
      %v5144 = vunpack.c.l.b16 %v4264
      %v5145 = vunpack.c.h.b16 %v4264
      %v5146 = vunpack.c.l.b16 %v4265
      %v5147 = vunpack.c.h.b16 %v4265
      %v5148 = vunpack.c.l.b16 %v4266
      %v5149 = vunpack.c.h.b16 %v4266
      %v5150 = vunpack.c.l.b16 %v4267
      %v5151 = vunpack.c.h.b16 %v4267
      %v5152 = vunpack.c.l.b16 %v4268
      %v5153 = vunpack.c.h.b16 %v4268
      %v5154 = vunpack.c.l.b16 %v4269
      %v5155 = vunpack.c.h.b16 %v4269
      %v5156 = vunpack.c.l.b16 %v4270
      %v5157 = vunpack.c.h.b16 %v4270
      %v5158 = vunpack.c.l.b16 %v4271
      %v5159 = vunpack.c.h.b16 %v4271
      %v5160 = vunpack.c.l.b16 %v4272
      %v5161 = vunpack.c.h.b16 %v4272
      %v5162 = vunpack.c.l.b16 %v4273
      %v5163 = vunpack.c.h.b16 %v4273
      %v5164 = vunpack.c.l.b16 %v4274
      %v5165 = vunpack.c.h.b16 %v4274
      %v5166 = vunpack.c.l.b16 %v4275
      %v5167 = vunpack.c.h.b16 %v4275
      %v5168 = vunpack.c.l.b16 %v4276
      %v5169 = vunpack.c.h.b16 %v4276
      %v5170 = vunpack.c.l.b16 %v4277
      %v5171 = vunpack.c.h.b16 %v4277
      %v5172 = vunpack.c.l.b16 %v4278
      %v5173 = vunpack.c.h.b16 %v4278
      %v5174 = vunpack.c.l.b16 %v4279
      %v5175 = vunpack.c.h.b16 %v4279
      %v5176 = vunpack.c.l.b16 %v4280
      %v5177 = vunpack.c.h.b16 %v4280
      %v5178 = vunpack.c.l.b16 %v4281
      %v5179 = vunpack.c.h.b16 %v4281
      %v5180 = vunpack.c.l.b16 %v4282
      %v5181 = vunpack.c.h.b16 %v4282
      %v5182 = vunpack.c.l.b16 %v4283
      %v5183 = vunpack.c.h.b16 %v4283
      %v5184 = vunpack.c.l.b16 %v4284
      %v5185 = vunpack.c.h.b16 %v4284
      %v5186 = vunpack.c.l.b16 %v4285
      %v5187 = vunpack.c.h.b16 %v4285
      %v5188 = vunpack.c.l.b16 %v4286
      %v5189 = vunpack.c.h.b16 %v4286
      %v5190 = vunpack.c.l.b16 %v4287
      %v5191 = vunpack.c.h.b16 %v4287
      %v5192 = vunpack.c.l.b16 %v4288
      %v5193 = vunpack.c.h.b16 %v4288
      %v5194 = vunpack.c.l.b16 %v4289
      %v5195 = vunpack.c.h.b16 %v4289
      %v5196 = vunpack.c.l.b16 %v4290
      %v5197 = vunpack.c.h.b16 %v4290
      %v5198 = vunpack.c.l.b16 %v4291
      %v5199 = vunpack.c.h.b16 %v4291
      %v5200 = vunpack.c.l.b16 %v4292
      %v5201 = vunpack.c.h.b16 %v4292
      %v5202 = vunpack.c.l.b16 %v4293
      %v5203 = vunpack.c.h.b16 %v4293
      %v5204 = vunpack.c.l.b16 %v4294
      %v5205 = vunpack.c.h.b16 %v4294
      %v5206 = vunpack.c.l.b16 %v4295
      %v5207 = vunpack.c.h.b16 %v4295
      %v5208 = vunpack.c.l.b16 %v4296
      %v5209 = vunpack.c.h.b16 %v4296
      %v5210 = vunpack.c.l.b16 %v4297
      %v5211 = vunpack.c.h.b16 %v4297
      %v5212 = vunpack.c.l.b16 %v4298
      %v5213 = vunpack.c.h.b16 %v4298
      %v5214 = vunpack.c.l.b16 %v4299
      %v5215 = vunpack.c.h.b16 %v4299
      %v5216 = vunpack.c.l.b16 %v4300
      %v5217 = vunpack.c.h.b16 %v4300
      %v5218 = vunpack.c.l.b16 %v4301
      %v5219 = vunpack.c.h.b16 %v4301
      %v5220 = vunpack.c.l.b16 %v4302
      %v5221 = vunpack.c.h.b16 %v4302
      %v5222 = vunpack.c.l.b16 %v4303
      %v5223 = vunpack.c.h.b16 %v4303
      %v5224 = vunpack.c.l.b16 %v4304
      %v5225 = vunpack.c.h.b16 %v4304
      %v5226 = vunpack.c.l.b16 %v4305
      %v5227 = vunpack.c.h.b16 %v4305
      %v5228 = vunpack.c.l.b16 %v4306
      %v5229 = vunpack.c.h.b16 %v4306
      %v5230 = vunpack.c.l.b16 %v4307
      %v5231 = vunpack.c.h.b16 %v4307
      %v5232 = vunpack.c.l.b16 %v4308
      %v5233 = vunpack.c.h.b16 %v4308
      %v5234 = vunpack.c.l.b16 %v4309
      %v5235 = vunpack.c.h.b16 %v4309
      %v5236 = vunpack.c.l.b16 %v4310
      %v5237 = vunpack.c.h.b16 %v4310
      %v5238 = vunpack.c.l.b16 %v4311
      %v5239 = vunpack.c.h.b16 %v4311
      %v5240 = vunpack.c.l.b16 %v4312
      %v5241 = vunpack.c.h.b16 %v4312
      %v5242 = vunpack.c.l.b16 %v4313
      %v5243 = vunpack.c.h.b16 %v4313
      %v5244 = vunpack.c.l.b16 %v4314
      %v5245 = vunpack.c.h.b16 %v4314
      %v5246 = vunpack.c.l.b16 %v4315
      %v5247 = vunpack.c.h.b16 %v4315
      %v5248 = vunpack.c.l.b16 %v4316
      %v5249 = vunpack.c.h.b16 %v4316
      %v5250 = vunpack.c.l.b16 %v4317
      %v5251 = vunpack.c.h.b16 %v4317
      %v5252 = vunpack.c.l.b16 %v4318
      %v5253 = vunpack.c.h.b16 %v4318
      %v5254 = vunpack.c.l.b16 %v4319
      %v5255 = vunpack.c.h.b16 %v4319
      %v5256 = vunpack.c.l.b16 %v4320
      %v5257 = vunpack.c.h.b16 %v4320
      %v5258 = vunpack.c.l.b16 %v4321
      %v5259 = vunpack.c.h.b16 %v4321
      %v5260 = vunpack.c.l.b16 %v4322
      %v5261 = vunpack.c.h.b16 %v4322
      %v5262 = vunpack.c.l.b16 %v4323
      %v5263 = vunpack.c.h.b16 %v4323
      %v5264 = vunpack.c.l.b16 %v4324
      %v5265 = vunpack.c.h.b16 %v4324
      %v5266 = vunpack.c.l.b16 %v4325
      %v5267 = vunpack.c.h.b16 %v4325
      %v5268 = vunpack.c.l.b16 %v4326
      %v5269 = vunpack.c.h.b16 %v4326
      %v5270 = vunpack.c.l.b16 %v4327
      %v5271 = vunpack.c.h.b16 %v4327
      %v5272 = vunpack.c.l.b16 %v4328
      %v5273 = vunpack.c.h.b16 %v4328
      %v5274 = vunpack.c.l.b16 %v4329
      %v5275 = vunpack.c.h.b16 %v4329
      %v5276 = vunpack.c.l.b16 %v4330
      %v5277 = vunpack.c.h.b16 %v4330
      %v5278 = vunpack.c.l.b16 %v4331
      %v5279 = vunpack.c.h.b16 %v4331
      %v5280 = vunpack.c.l.b16 %v4332
      %v5281 = vunpack.c.h.b16 %v4332
      %v5282 = vunpack.c.l.b16 %v4333
      %v5283 = vunpack.c.h.b16 %v4333
      %v5284 = vunpack.c.l.b16 %v4334
      %v5285 = vunpack.c.h.b16 %v4334
      %v5286 = vunpack.c.l.b16 %v4335
      %v5287 = vunpack.c.h.b16 %v4335
      %v5288 = vunpack.c.l.b16 %v4336
      %v5289 = vunpack.c.h.b16 %v4336
      %v5290 = vunpack.c.l.b16 %v4337
      %v5291 = vunpack.c.h.b16 %v4337
      %v5292 = vunpack.c.l.b16 %v4338
      %v5293 = vunpack.c.h.b16 %v4338
      %v5294 = vunpack.c.l.b16 %v4339
      %v5295 = vunpack.c.h.b16 %v4339
      %v5296 = vunpack.c.l.b16 %v4340
      %v5297 = vunpack.c.h.b16 %v4340
      %v5298 = vunpack.c.l.b16 %v4341
      %v5299 = vunpack.c.h.b16 %v4341
      %v5300 = vunpack.c.l.b16 %v4342
      %v5301 = vunpack.c.h.b16 %v4342
      %v5302 = vunpack.c.l.b16 %v4343
      %v5303 = vunpack.c.h.b16 %v4343
      %v5304 = vunpack.c.l.b16 %v4344
      %v5305 = vunpack.c.h.b16 %v4344
      %v5306 = vunpack.c.l.b16 %v4345
      %v5307 = vunpack.c.h.b16 %v4345
      %v5308 = vunpack.c.l.b16 %v4346
      %v5309 = vunpack.c.h.b16 %v4346
      %v5310 = vunpack.c.l.b16 %v4347
      %v5311 = vunpack.c.h.b16 %v4347
      %v5312 = vunpack.c.l.b16 %v4348
      %v5313 = vunpack.c.h.b16 %v4348
      %v5314 = vunpack.c.l.b16 %v4349
      %v5315 = vunpack.c.h.b16 %v4349
      %v5316 = vunpack.c.l.b16 %v4350
      %v5317 = vunpack.c.h.b16 %v4350
      %v5318 = vunpack.c.l.b16 %v4351
      %v5319 = vunpack.c.h.b16 %v4351
      %v5320 = vunpack.c.l.b16 %v4352
      %v5321 = vunpack.c.h.b16 %v4352
      %v5322 = vunpack.c.l.b16 %v4353
      %v5323 = vunpack.c.h.b16 %v4353
      %v5324 = vunpack.c.l.b16 %v4354
      %v5325 = vunpack.c.h.b16 %v4354
      %v5326 = vunpack.c.l.b16 %v4355
      %v5327 = vunpack.c.h.b16 %v4355
      %v5328 = vunpack.c.l.b16 %v4356
      %v5329 = vunpack.c.h.b16 %v4356
      %v5330 = vunpack.c.l.b16 %v4357
      %v5331 = vunpack.c.h.b16 %v4357
      %v5332 = vunpack.c.l.b16 %v4358
      %v5333 = vunpack.c.h.b16 %v4358
      %v5334 = vunpack.c.l.b16 %v4359
      %v5335 = vunpack.c.h.b16 %v4359
      %v5336 = vunpack.c.l.b16 %v4360
      %v5337 = vunpack.c.h.b16 %v4360
      %v5338 = vunpack.c.l.b16 %v4361
      %v5339 = vunpack.c.h.b16 %v4361
      %v5340 = vunpack.c.l.b16 %v4362
      %v5341 = vunpack.c.h.b16 %v4362
      %v5342 = vunpack.c.l.b16 %v4363
      %v5343 = vunpack.c.h.b16 %v4363
      %v5344 = vunpack.c.l.b16 %v4364
      %v5345 = vunpack.c.h.b16 %v4364
      %v5346 = vunpack.c.l.b16 %v4365
      %v5347 = vunpack.c.h.b16 %v4365
      %v5348 = vunpack.c.l.b16 %v4366
      %v5349 = vunpack.c.h.b16 %v4366
      %v5350 = vunpack.c.l.b16 %v4367
      %v5351 = vunpack.c.h.b16 %v4367
      %v5352 = vunpack.c.l.b16 %v4368
      %v5353 = vunpack.c.h.b16 %v4368
      %v5354 = vunpack.c.l.b16 %v4369
      %v5355 = vunpack.c.h.b16 %v4369
      %v5356 = vunpack.c.l.b16 %v4370
      %v5357 = vunpack.c.h.b16 %v4370
      %v5358 = vunpack.c.l.b16 %v4371
      %v5359 = vunpack.c.h.b16 %v4371
      %v5360 = vunpack.c.l.b16 %v4372
      %v5361 = vunpack.c.h.b16 %v4372
      %v5362 = vunpack.c.l.b16 %v4373
      %v5363 = vunpack.c.h.b16 %v4373
      %v5364 = vunpack.c.l.b16 %v4374
      %v5365 = vunpack.c.h.b16 %v4374
      %v5366 = vunpack.c.l.b16 %v4375
      %v5367 = vunpack.c.h.b16 %v4375
      %v5368 = vunpack.c.l.b16 %v4376
      %v5369 = vunpack.c.h.b16 %v4376
      %v5370 = vunpack.c.l.b16 %v4377
      %v5371 = vunpack.c.h.b16 %v4377
      %v5372 = vunpack.c.l.b16 %v4378
      %v5373 = vunpack.c.h.b16 %v4378
      %v5374 = vunpack.c.l.b16 %v4379
      %v5375 = vunpack.c.h.b16 %v4379
      %v5376 = vunpack.c.l.b16 %v4380
      %v5377 = vunpack.c.h.b16 %v4380
      %v5378 = vunpack.c.l.b16 %v4381
      %v5379 = vunpack.c.h.b16 %v4381
      %v5380 = vunpack.c.l.b16 %v4382
      %v5381 = vunpack.c.h.b16 %v4382
      %v5382 = vunpack.c.l.b16 %v4383
      %v5383 = vunpack.c.h.b16 %v4383
      %v5384 = vunpack.c.l.b16 %v4384
      %v5385 = vunpack.c.h.b16 %v4384
      %v5386 = vunpack.c.l.b16 %v4385
      %v5387 = vunpack.c.h.b16 %v4385
      %v5388 = vunpack.c.l.b16 %v4386
      %v5389 = vunpack.c.h.b16 %v4386
      %v5390 = vunpack.c.l.b16 %v4387
      %v5391 = vunpack.c.h.b16 %v4387
      %v5392 = vunpack.c.l.b16 %v4388
      %v5393 = vunpack.c.h.b16 %v4388
      %v5394 = vunpack.c.l.b16 %v4389
      %v5395 = vunpack.c.h.b16 %v4389
      %v5396 = vunpack.c.l.b16 %v4390
      %v5397 = vunpack.c.h.b16 %v4390
      %v5398 = vunpack.c.l.b16 %v4391
      %v5399 = vunpack.c.h.b16 %v4391
      %v5400 = vunpack.c.l.b16 %v4392
      %v5401 = vunpack.c.h.b16 %v4392
      %v5402 = vunpack.c.l.b16 %v4393
      %v5403 = vunpack.c.h.b16 %v4393
      %v5404 = vunpack.c.l.b16 %v4394
      %v5405 = vunpack.c.h.b16 %v4394
      %v5406 = vunpack.c.l.b16 %v4395
      %v5407 = vunpack.c.h.b16 %v4395
      %v5408 = vunpack.c.l.b16 %v4396
      %v5409 = vunpack.c.h.b16 %v4396
      %v5410 = vunpack.c.l.b16 %v4397
      %v5411 = vunpack.c.h.b16 %v4397
      %v5412 = vunpack.c.l.b16 %v4398
      %v5413 = vunpack.c.h.b16 %v4398
      %v5414 = vunpack.c.l.b16 %v4399
      %v5415 = vunpack.c.h.b16 %v4399
      %v5416 = vunpack.c.l.b16 %v4400
      %v5417 = vunpack.c.h.b16 %v4400
      %v5418 = vunpack.c.l.b16 %v4401
      %v5419 = vunpack.c.h.b16 %v4401
      %v5420 = vunpack.c.l.b16 %v4402
      %v5421 = vunpack.c.h.b16 %v4402
      %v5422 = vunpack.c.l.b16 %v4403
      %v5423 = vunpack.c.h.b16 %v4403
      %v5424 = vunpack.c.l.b16 %v4404
      %v5425 = vunpack.c.h.b16 %v4404
      %v5426 = vunpack.c.l.b16 %v4405
      %v5427 = vunpack.c.h.b16 %v4405
      %v5428 = vunpack.c.l.b16 %v4406
      %v5429 = vunpack.c.h.b16 %v4406
      %v5430 = vunpack.c.l.b16 %v4407
      %v5431 = vunpack.c.h.b16 %v4407
      %v5432 = vunpack.c.l.b16 %v4408
      %v5433 = vunpack.c.h.b16 %v4408
      %v5434 = vunpack.c.l.b16 %v4409
      %v5435 = vunpack.c.h.b16 %v4409
      %v5436 = vunpack.c.l.b16 %v4410
      %v5437 = vunpack.c.h.b16 %v4410
      %v5438 = vunpack.c.l.b16 %v4411
      %v5439 = vunpack.c.h.b16 %v4411
      %v5440 = vunpack.c.l.b16 %v4412
      %v5441 = vunpack.c.h.b16 %v4412
      %v5442 = vunpack.c.l.b16 %v4413
      %v5443 = vunpack.c.h.b16 %v4413
      %v5444 = vunpack.c.l.b16 %v4414
      %v5445 = vunpack.c.h.b16 %v4414
      %v5446 = vunpack.c.l.b16 %v4415
      %v5447 = vunpack.c.h.b16 %v4415
      %v5448 = vunpack.c.l.b16 %v4416
      %v5449 = vunpack.c.h.b16 %v4416
      %v5450 = vunpack.c.l.b16 %v4417
      %v5451 = vunpack.c.h.b16 %v4417
      %v5452 = vunpack.c.l.b16 %v4418
      %v5453 = vunpack.c.h.b16 %v4418
      %v5454 = vunpack.c.l.b16 %v4419
      %v5455 = vunpack.c.h.b16 %v4419
      %v5456 = vunpack.c.l.b16 %v4420
      %v5457 = vunpack.c.h.b16 %v4420
      %v5458 = vunpack.c.l.b16 %v4421
      %v5459 = vunpack.c.h.b16 %v4421
      %v5460 = vunpack.c.l.b16 %v4422
      %v5461 = vunpack.c.h.b16 %v4422
      %v5462 = vunpack.c.l.b16 %v4423
      %v5463 = vunpack.c.h.b16 %v4423
      %v5464 = vunpack.c.l.b16 %v4424
      %v5465 = vunpack.c.h.b16 %v4424
      %v5466 = vunpack.c.l.b16 %v4425
      %v5467 = vunpack.c.h.b16 %v4425
      %v5468 = vunpack.c.l.b16 %v4426
      %v5469 = vunpack.c.h.b16 %v4426
      %v5470 = vunpack.c.l.b16 %v4427
      %v5471 = vunpack.c.h.b16 %v4427
      %v5472 = vunpack.c.l.b16 %v4428
      %v5473 = vunpack.c.h.b16 %v4428
      %v5474 = vunpack.c.l.b16 %v4429
      %v5475 = vunpack.c.h.b16 %v4429
      %v5476 = vunpack.c.l.b16 %v4430
      %v5477 = vunpack.c.h.b16 %v4430
      %v5478 = vunpack.c.l.b16 %v4431
      %v5479 = vunpack.c.h.b16 %v4431
      %v5480 = vunpack.c.l.b16 %v4432
      %v5481 = vunpack.c.h.b16 %v4432
      %v5482 = vunpack.c.l.b16 %v4433
      %v5483 = vunpack.c.h.b16 %v4433
      %v5484 = vunpack.c.l.b16 %v4434
      %v5485 = vunpack.c.h.b16 %v4434
      %v5486 = vunpack.c.l.b16 %v4435
      %v5487 = vunpack.c.h.b16 %v4435
      %v5488 = vunpack.c.l.b16 %v4436
      %v5489 = vunpack.c.h.b16 %v4436
      %v5490 = vunpack.c.l.b16 %v4437
      %v5491 = vunpack.c.h.b16 %v4437
      %v5492 = vunpack.c.l.b16 %v4438
      %v5493 = vunpack.c.h.b16 %v4438
      %v5494 = vunpack.c.l.b16 %v4439
      %v5495 = vunpack.c.h.b16 %v4439
      %v5496 = vunpack.c.l.b16 %v4440
      %v5497 = vunpack.c.h.b16 %v4440
      %v5498 = vunpack.c.l.b16 %v4441
      %v5499 = vunpack.c.h.b16 %v4441
      %v5500 = vunpack.c.l.b16 %v4442
      %v5501 = vunpack.c.h.b16 %v4442
      %v5502 = vunpack.c.l.b16 %v4443
      %v5503 = vunpack.c.h.b16 %v4443
      %v5504 = vunpack.c.l.b16 %v4444
      %v5505 = vunpack.c.h.b16 %v4444
      %v5506 = vunpack.c.l.b16 %v4445
      %v5507 = vunpack.c.h.b16 %v4445
      %v5508 = vunpack.c.l.b16 %v4446
      %v5509 = vunpack.c.h.b16 %v4446
      %v5510 = vunpack.c.l.b16 %v4447
      %v5511 = vunpack.c.h.b16 %v4447
      %v5512 = vunpack.c.l.b16 %v4448
      %v5513 = vunpack.c.h.b16 %v4448
      %v5514 = vunpack.c.l.b16 %v4449
      %v5515 = vunpack.c.h.b16 %v4449
      %v5516 = vunpack.c.l.b16 %v4450
      %v5517 = vunpack.c.h.b16 %v4450
      %v5518 = vunpack.c.l.b16 %v4451
      %v5519 = vunpack.c.h.b16 %v4451
      %v5520 = vunpack.c.l.b16 %v4452
      %v5521 = vunpack.c.h.b16 %v4452
      %v5522 = vunpack.c.l.b16 %v4453
      %v5523 = vunpack.c.h.b16 %v4453
      %v5524 = vunpack.c.l.b16 %v4454
      %v5525 = vunpack.c.h.b16 %v4454
      %v5526 = vunpack.c.l.b16 %v4455
      %v5527 = vunpack.c.h.b16 %v4455
      %v5528 = vunpack.c.l.b16 %v4456
      %v5529 = vunpack.c.h.b16 %v4456
      %v5530 = vunpack.c.l.b16 %v4457
      %v5531 = vunpack.c.h.b16 %v4457
      %v5532 = vunpack.c.l.b16 %v4458
      %v5533 = vunpack.c.h.b16 %v4458
      %v5534 = vunpack.c.l.b16 %v4459
      %v5535 = vunpack.c.h.b16 %v4459
      %v5536 = vunpack.c.l.b16 %v4460
      %v5537 = vunpack.c.h.b16 %v4460
      %v5538 = vunpack.c.l.b16 %v4461
      %v5539 = vunpack.c.h.b16 %v4461
      %v5540 = vunpack.c.l.b16 %v4462
      %v5541 = vunpack.c.h.b16 %v4462
      %v5542 = vunpack.c.l.b16 %v4463
      %v5543 = vunpack.c.h.b16 %v4463
      %v5544 = vunpack.c.l.b16 %v4464
      %v5545 = vunpack.c.h.b16 %v4464
      %v5546 = vunpack.c.l.b16 %v4465
      %v5547 = vunpack.c.h.b16 %v4465
      %v5548 = vunpack.c.l.b16 %v4466
      %v5549 = vunpack.c.h.b16 %v4466
      %v5550 = vunpack.c.l.b16 %v4467
      %v5551 = vunpack.c.h.b16 %v4467
      %v5552 = vunpack.c.l.b16 %v4468
      %v5553 = vunpack.c.h.b16 %v4468
      %v5554 = vunpack.c.l.b16 %v4469
      %v5555 = vunpack.c.h.b16 %v4469
      %v5556 = vunpack.c.l.b16 %v4470
      %v5557 = vunpack.c.h.b16 %v4470
      %v5558 = vunpack.c.l.b16 %v4471
      %v5559 = vunpack.c.h.b16 %v4471
      %v5560 = vunpack.c.l.b16 %v4472
      %v5561 = vunpack.c.h.b16 %v4472
      %v5562 = vunpack.c.l.b16 %v4473
      %v5563 = vunpack.c.h.b16 %v4473
      %v5564 = vunpack.c.l.b16 %v4474
      %v5565 = vunpack.c.h.b16 %v4474
      %v5566 = vunpack.c.l.b16 %v4475
      %v5567 = vunpack.c.h.b16 %v4475
      %v5568 = vunpack.c.l.b16 %v4476
      %v5569 = vunpack.c.h.b16 %v4476
      %v5570 = vunpack.c.l.b16 %v4477
      %v5571 = vunpack.c.h.b16 %v4477
      %v5572 = vunpack.c.l.b16 %v4478
      %v5573 = vunpack.c.h.b16 %v4478
      %v5574 = vunpack.c.l.b16 %v4479
      %v5575 = vunpack.c.h.b16 %v4479
      %v5576 = vunpack.c.l.b16 %v4480
      %v5577 = vunpack.c.h.b16 %v4480
      %v5578 = vunpack.c.l.b16 %v4481
      %v5579 = vunpack.c.h.b16 %v4481
      %v5580 = vunpack.c.l.b16 %v4482
      %v5581 = vunpack.c.h.b16 %v4482
      %v5582 = vunpack.c.l.b16 %v4483
      %v5583 = vunpack.c.h.b16 %v4483
      %v5584 = vunpack.c.l.b16 %v4484
      %v5585 = vunpack.c.h.b16 %v4484
      %v5586 = vunpack.c.l.b16 %v4485
      %v5587 = vunpack.c.h.b16 %v4485
      %v5588 = vunpack.c.l.b16 %v4486
      %v5589 = vunpack.c.h.b16 %v4486
      %v5590 = vunpack.c.l.b16 %v4487
      %v5591 = vunpack.c.h.b16 %v4487
      %v5592 = vunpack.c.l.b16 %v4488
      %v5593 = vunpack.c.h.b16 %v4488
      %v5594 = vunpack.c.l.b16 %v4489
      %v5595 = vunpack.c.h.b16 %v4489
      %v5596 = vunpack.c.l.b16 %v4490
      %v5597 = vunpack.c.h.b16 %v4490
      %v5598 = vunpack.c.l.b16 %v4491
      %v5599 = vunpack.c.h.b16 %v4491
      %v5600 = vunpack.c.l.b16 %v4492
      %v5601 = vunpack.c.h.b16 %v4492
      %v5602 = vunpack.c.l.b16 %v4493
      %v5603 = vunpack.c.h.b16 %v4493
      %v5604 = vunpack.c.l.b16 %v4494
      %v5605 = vunpack.c.h.b16 %v4494
      %v5606 = vunpack.c.l.b16 %v4495
      %v5607 = vunpack.c.h.b16 %v4495
      %v5608 = vunpack.c.l.b16 %v4496
      %v5609 = vunpack.c.h.b16 %v4496
      %v5610 = vunpack.c.l.b16 %v4497
      %v5611 = vunpack.c.h.b16 %v4497
      %v5612 = vunpack.c.l.b16 %v4498
      %v5613 = vunpack.c.h.b16 %v4498
      %v5614 = vunpack.c.l.b16 %v4499
      %v5615 = vunpack.c.h.b16 %v4499
      %v5616 = vunpack.c.l.b16 %v4500
      %v5617 = vunpack.c.h.b16 %v4500
      %v5618 = vunpack.c.l.b16 %v4501
      %v5619 = vunpack.c.h.b16 %v4501
      %v5620 = vunpack.c.l.b16 %v4502
      %v5621 = vunpack.c.h.b16 %v4502
      %v5622 = vunpack.c.l.b16 %v4503
      %v5623 = vunpack.c.h.b16 %v4503
      %v5624 = vunpack.c.l.b16 %v4504
      %v5625 = vunpack.c.h.b16 %v4504
      %v5626 = vunpack.c.l.b16 %v4505
      %v5627 = vunpack.c.h.b16 %v4505
      %v5628 = vunpack.c.l.b16 %v4506
      %v5629 = vunpack.c.h.b16 %v4506
      %v5630 = vunpack.c.l.b16 %v4507
      %v5631 = vunpack.c.h.b16 %v4507
      %v5632 = vunpack.c.l.b16 %v4508
      %v5633 = vunpack.c.h.b16 %v4508
      %v5634 = vunpack.c.l.b16 %v4509
      %v5635 = vunpack.c.h.b16 %v4509
      %v5636 = vunpack.c.l.b16 %v4510
      %v5637 = vunpack.c.h.b16 %v4510
      %v5638 = vunpack.c.l.b16 %v4511
      %v5639 = vunpack.c.h.b16 %v4511
      %v5640 = vunpack.c.l.b16 %v4512
      %v5641 = vunpack.c.h.b16 %v4512
      %v5642 = vunpack.c.l.b16 %v4513
      %v5643 = vunpack.c.h.b16 %v4513
      %v5644 = vunpack.c.l.b16 %v4514
      %v5645 = vunpack.c.h.b16 %v4514
      %v5646 = vunpack.c.l.b16 %v4515
      %v5647 = vunpack.c.h.b16 %v4515
      %v5648 = vunpack.c.l.b16 %v4516
      %v5649 = vunpack.c.h.b16 %v4516
      %v5650 = vunpack.c.l.b16 %v4517
      %v5651 = vunpack.c.h.b16 %v4517
      %v5652 = vunpack.c.l.b16 %v4518
      %v5653 = vunpack.c.h.b16 %v4518
      %v5654 = vunpack.c.l.b16 %v4519
      %v5655 = vunpack.c.h.b16 %v4519
      %v5656 = vunpack.c.l.b16 %v4520
      %v5657 = vunpack.c.h.b16 %v4520
      %v5658 = vunpack.c.l.b16 %v4521
      %v5659 = vunpack.c.h.b16 %v4521
      %v5660 = vunpack.c.l.b16 %v4522
      %v5661 = vunpack.c.h.b16 %v4522
      %v5662 = vunpack.c.l.b16 %v4523
      %v5663 = vunpack.c.h.b16 %v4523
      %v5664 = vunpack.c.l.b16 %v4524
      %v5665 = vunpack.c.h.b16 %v4524
      %v5666 = vunpack.c.l.b16 %v4525
      %v5667 = vunpack.c.h.b16 %v4525
      %v5668 = vunpack.c.l.b16 %v4526
      %v5669 = vunpack.c.h.b16 %v4526
      %v5670 = vunpack.c.l.b16 %v4527
      %v5671 = vunpack.c.h.b16 %v4527
      %v5672 = vunpack.c.l.b16 %v4528
      %v5673 = vunpack.c.h.b16 %v4528
      %v5674 = vunpack.c.l.b16 %v4529
      %v5675 = vunpack.c.h.b16 %v4529
      %v5676 = vunpack.c.l.b16 %v4530
      %v5677 = vunpack.c.h.b16 %v4530
      %v5678 = vunpack.c.l.b16 %v4531
      %v5679 = vunpack.c.h.b16 %v4531
      %v5680 = vpack.c.b16 %v4984, %v4926
      %v5681 = vpack.c.b16 %v4985, %v4927
      %v5682 = vpack.c.b16 %v4986, %v4928
      %v5683 = vpack.c.b16 %v4987, %v4929
      %v5684 = vpack.c.b16 %v4988, %v4930
      %v5685 = vpack.c.b16 %v4989, %v4931
      %v5686 = vpack.c.b16 %v4990, %v4932
      %v5687 = vpack.c.b16 %v4991, %v4933
      %v5688 = vpack.c.b16 %v4992, %v4934
      %v5689 = vpack.c.b16 %v4993, %v4935
      %v5690 = vpack.c.b16 %v4994, %v4936
      %v5691 = vpack.c.b16 %v4995, %v4937
      %v5692 = vpack.c.b16 %v4996, %v4938
      %v5693 = vpack.c.b16 %v4997, %v4939
      %v5694 = vpack.c.b16 %v4998, %v4940
      %v5695 = vpack.c.b16 %v4999, %v4941
      %v5696 = vpack.c.b16 %v5000, %v4942
      %v5697 = vpack.c.b16 %v5001, %v4943
      %v5698 = vpack.c.b16 %v5002, %v4944
      %v5699 = vpack.c.b16 %v5003, %v4945
      %v5700 = vpack.c.b16 %v5004, %v4946
      %v5701 = vpack.c.b16 %v5005, %v4947
      %v5702 = vpack.c.b16 %v5006, %v4948
      %v5703 = vpack.c.b16 %v5007, %v4949
      %v5704 = vpack.c.b16 %v5008, %v4950
      %v5705 = vpack.c.b16 %v5009, %v4951
      %v5706 = vpack.c.b16 %v5010, %v4952
      %v5707 = vpack.c.b16 %v5011, %v4953
      %v5708 = vpack.c.b16 %v5012, %v4954
      %v5709 = vpack.c.b16 %v5013, %v4955
      %v5710 = vpack.c.b16 %v5014, %v4956
      %v5711 = vpack.c.b16 %v5015, %v4957
      %v5712 = vpack.c.b16 %v5016, %v4958
      %v5713 = vpack.c.b16 %v5017, %v4959
      %v5714 = vpack.c.b16 %v5018, %v4960
      %v5715 = vpack.c.b16 %v5019, %v4961
      %v5716 = vpack.c.b16 %v5020, %v4962
      %v5717 = vpack.c.b16 %v5021, %v4963
      %v5718 = vpack.c.b16 %v5022, %v4964
      %v5719 = vpack.c.b16 %v5023, %v4965
      %v5720 = vpack.c.b16 %v5024, %v4966
      %v5721 = vpack.c.b16 %v5025, %v4967
      %v5722 = vpack.c.b16 %v5026, %v4968
      %v5723 = vpack.c.b16 %v5027, %v4969
      %v5724 = vpack.c.b16 %v5028, %v4970
      %v5725 = vpack.c.b16 %v5029, %v4971
      %v5726 = vpack.c.b16 %v5030, %v4972
      %v5727 = vpack.c.b16 %v5031, %v4973
      %v5728 = vpack.c.b16 %v5032, %v4974
      %v5729 = vpack.c.b16 %v5033, %v4975
      %v5730 = vpack.c.b16 %v5034, %v4976
      %v5731 = vpack.c.b16 %v5035, %v4977
      %v5732 = vpack.c.b16 %v5036, %v4978
      %v5733 = vpack.c.b16 %v5037, %v4979
      %v5734 = vpack.c.b16 %v5038, %v4980
      %v5735 = vpack.c.b16 %v5039, %v4981
      %v5736 = vpack.c.b16 %v5040, %v4982
      %v5737 = vpack.c.b16 %v5041, %v4983
      %v5738 = vpack.c.b16 %v5100, %v5042
      %v5739 = vpack.c.b16 %v5101, %v5043
      %v5740 = vpack.c.b16 %v5102, %v5044
      %v5741 = vpack.c.b16 %v5103, %v5045
      %v5742 = vpack.c.b16 %v5104, %v5046
      %v5743 = vpack.c.b16 %v5105, %v5047
      %v5744 = vpack.c.b16 %v5106, %v5048
      %v5745 = vpack.c.b16 %v5107, %v5049
      %v5746 = vpack.c.b16 %v5108, %v5050
      %v5747 = vpack.c.b16 %v5109, %v5051
      %v5748 = vpack.c.b16 %v5110, %v5052
      %v5749 = vpack.c.b16 %v5111, %v5053
      %v5750 = vpack.c.b16 %v5112, %v5054
      %v5751 = vpack.c.b16 %v5113, %v5055
      %v5752 = vpack.c.b16 %v5114, %v5056
      %v5753 = vpack.c.b16 %v5115, %v5057
      %v5754 = vpack.c.b16 %v5116, %v5058
      %v5755 = vpack.c.b16 %v5117, %v5059
      %v5756 = vpack.c.b16 %v5118, %v5060
      %v5757 = vpack.c.b16 %v5119, %v5061
      %v5758 = vpack.c.b16 %v5120, %v5062
      %v5759 = vpack.c.b16 %v5121, %v5063
      %v5760 = vpack.c.b16 %v5122, %v5064
      %v5761 = vpack.c.b16 %v5123, %v5065
      %v5762 = vpack.c.b16 %v5124, %v5066
      %v5763 = vpack.c.b16 %v5125, %v5067
      %v5764 = vpack.c.b16 %v5126, %v5068
      %v5765 = vpack.c.b16 %v5127, %v5069
      %v5766 = vpack.c.b16 %v5128, %v5070
      %v5767 = vpack.c.b16 %v5129, %v5071
      %v5768 = vpack.c.b16 %v5130, %v5072
      %v5769 = vpack.c.b16 %v5131, %v5073
      %v5770 = vpack.c.b16 %v5132, %v5074
      %v5771 = vpack.c.b16 %v5133, %v5075
      %v5772 = vpack.c.b16 %v5134, %v5076
      %v5773 = vpack.c.b16 %v5135, %v5077
      %v5774 = vpack.c.b16 %v5136, %v5078
      %v5775 = vpack.c.b16 %v5137, %v5079
      %v5776 = vpack.c.b16 %v5138, %v5080
      %v5777 = vpack.c.b16 %v5139, %v5081
      %v5778 = vpack.c.b16 %v5140, %v5082
      %v5779 = vpack.c.b16 %v5141, %v5083
      %v5780 = vpack.c.b16 %v5142, %v5084
      %v5781 = vpack.c.b16 %v5143, %v5085
      %v5782 = vpack.c.b16 %v5144, %v5086
      %v5783 = vpack.c.b16 %v5145, %v5087
      %v5784 = vpack.c.b16 %v5146, %v5088
      %v5785 = vpack.c.b16 %v5147, %v5089
      %v5786 = vpack.c.b16 %v5148, %v5090
      %v5787 = vpack.c.b16 %v5149, %v5091
      %v5788 = vpack.c.b16 %v5150, %v5092
      %v5789 = vpack.c.b16 %v5151, %v5093
      %v5790 = vpack.c.b16 %v5152, %v5094
      %v5791 = vpack.c.b16 %v5153, %v5095
      %v5792 = vpack.c.b16 %v5154, %v5096
      %v5793 = vpack.c.b16 %v5155, %v5097
      %v5794 = vpack.c.b16 %v5156, %v5098
      %v5795 = vpack.c.b16 %v5157, %v5099
      %v5796 = vpack.c.b16 %v5216, %v5158
      %v5797 = vpack.c.b16 %v5217, %v5159
      %v5798 = vpack.c.b16 %v5218, %v5160
      %v5799 = vpack.c.b16 %v5219, %v5161
      %v5800 = vpack.c.b16 %v5220, %v5162
      %v5801 = vpack.c.b16 %v5221, %v5163
      %v5802 = vpack.c.b16 %v5222, %v5164
      %v5803 = vpack.c.b16 %v5223, %v5165
      %v5804 = vpack.c.b16 %v5224, %v5166
      %v5805 = vpack.c.b16 %v5225, %v5167
      %v5806 = vpack.c.b16 %v5226, %v5168
      %v5807 = vpack.c.b16 %v5227, %v5169
      %v5808 = vpack.c.b16 %v5228, %v5170
      %v5809 = vpack.c.b16 %v5229, %v5171
      %v5810 = vpack.c.b16 %v5230, %v5172
      %v5811 = vpack.c.b16 %v5231, %v5173
      %v5812 = vpack.c.b16 %v5232, %v5174
      %v5813 = vpack.c.b16 %v5233, %v5175
      %v5814 = vpack.c.b16 %v5234, %v5176
      %v5815 = vpack.c.b16 %v5235, %v5177
      %v5816 = vpack.c.b16 %v5236, %v5178
      %v5817 = vpack.c.b16 %v5237, %v5179
      %v5818 = vpack.c.b16 %v5238, %v5180
      %v5819 = vpack.c.b16 %v5239, %v5181
      %v5820 = vpack.c.b16 %v5240, %v5182
      %v5821 = vpack.c.b16 %v5241, %v5183
      %v5822 = vpack.c.b16 %v5242, %v5184
      %v5823 = vpack.c.b16 %v5243, %v5185
      %v5824 = vpack.c.b16 %v5244, %v5186
      %v5825 = vpack.c.b16 %v5245, %v5187
      %v5826 = vpack.c.b16 %v5246, %v5188
      %v5827 = vpack.c.b16 %v5247, %v5189
      %v5828 = vpack.c.b16 %v5248, %v5190
      %v5829 = vpack.c.b16 %v5249, %v5191
      %v5830 = vpack.c.b16 %v5250, %v5192
      %v5831 = vpack.c.b16 %v5251, %v5193
      %v5832 = vpack.c.b16 %v5252, %v5194
      %v5833 = vpack.c.b16 %v5253, %v5195
      %v5834 = vpack.c.b16 %v5254, %v5196
      %v5835 = vpack.c.b16 %v5255, %v5197
      %v5836 = vpack.c.b16 %v5256, %v5198
      %v5837 = vpack.c.b16 %v5257, %v5199
      %v5838 = vpack.c.b16 %v5258, %v5200
      %v5839 = vpack.c.b16 %v5259, %v5201
      %v5840 = vpack.c.b16 %v5260, %v5202
      %v5841 = vpack.c.b16 %v5261, %v5203
      %v5842 = vpack.c.b16 %v5262, %v5204
      %v5843 = vpack.c.b16 %v5263, %v5205
      %v5844 = vpack.c.b16 %v5264, %v5206
      %v5845 = vpack.c.b16 %v5265, %v5207
      %v5846 = vpack.c.b16 %v5266, %v5208
      %v5847 = vpack.c.b16 %v5267, %v5209
      %v5848 = vpack.c.b16 %v5268, %v5210
      %v5849 = vpack.c.b16 %v5269, %v5211
      %v5850 = vpack.c.b16 %v5270, %v5212
      %v5851 = vpack.c.b16 %v5271, %v5213
      %v5852 = vpack.c.b16 %v5272, %v5214
      %v5853 = vpack.c.b16 %v5273, %v5215
      %v5854 = vpack.c.b16 %v5332, %v5274
      %v5855 = vpack.c.b16 %v5333, %v5275
      %v5856 = vpack.c.b16 %v5334, %v5276
      %v5857 = vpack.c.b16 %v5335, %v5277
      %v5858 = vpack.c.b16 %v5336, %v5278
      %v5859 = vpack.c.b16 %v5337, %v5279
      %v5860 = vpack.c.b16 %v5338, %v5280
      %v5861 = vpack.c.b16 %v5339, %v5281
      %v5862 = vpack.c.b16 %v5340, %v5282
      %v5863 = vpack.c.b16 %v5341, %v5283
      %v5864 = vpack.c.b16 %v5342, %v5284
      %v5865 = vpack.c.b16 %v5343, %v5285
      %v5866 = vpack.c.b16 %v5344, %v5286
      %v5867 = vpack.c.b16 %v5345, %v5287
      %v5868 = vpack.c.b16 %v5346, %v5288
      %v5869 = vpack.c.b16 %v5347, %v5289
      %v5870 = vpack.c.b16 %v5348, %v5290
      %v5871 = vpack.c.b16 %v5349, %v5291
      %v5872 = vpack.c.b16 %v5350, %v5292
      %v5873 = vpack.c.b16 %v5351, %v5293
      %v5874 = vpack.c.b16 %v5352, %v5294
      %v5875 = vpack.c.b16 %v5353, %v5295
      %v5876 = vpack.c.b16 %v5354, %v5296
      %v5877 = vpack.c.b16 %v5355, %v5297
      %v5878 = vpack.c.b16 %v5356, %v5298
      %v5879 = vpack.c.b16 %v5357, %v5299
      %v5880 = vpack.c.b16 %v5358, %v5300
      %v5881 = vpack.c.b16 %v5359, %v5301
      %v5882 = vpack.c.b16 %v5360, %v5302
      %v5883 = vpack.c.b16 %v5361, %v5303
      %v5884 = vpack.c.b16 %v5362, %v5304
      %v5885 = vpack.c.b16 %v5363, %v5305
      %v5886 = vpack.c.b16 %v5364, %v5306
      %v5887 = vpack.c.b16 %v5365, %v5307
      %v5888 = vpack.c.b16 %v5366, %v5308
      %v5889 = vpack.c.b16 %v5367, %v5309
      %v5890 = vpack.c.b16 %v5368, %v5310
      %v5891 = vpack.c.b16 %v5369, %v5311
      %v5892 = vpack.c.b16 %v5370, %v5312
      %v5893 = vpack.c.b16 %v5371, %v5313
      %v5894 = vpack.c.b16 %v5372, %v5314
      %v5895 = vpack.c.b16 %v5373, %v5315
      %v5896 = vpack.c.b16 %v5374, %v5316
      %v5897 = vpack.c.b16 %v5375, %v5317
      %v5898 = vpack.c.b16 %v5376, %v5318
      %v5899 = vpack.c.b16 %v5377, %v5319
      %v5900 = vpack.c.b16 %v5378, %v5320
      %v5901 = vpack.c.b16 %v5379, %v5321
      %v5902 = vpack.c.b16 %v5380, %v5322
      %v5903 = vpack.c.b16 %v5381, %v5323
      %v5904 = vpack.c.b16 %v5382, %v5324
      %v5905 = vpack.c.b16 %v5383, %v5325
      %v5906 = vpack.c.b16 %v5384, %v5326
      %v5907 = vpack.c.b16 %v5385, %v5327
      %v5908 = vpack.c.b16 %v5386, %v5328
      %v5909 = vpack.c.b16 %v5387, %v5329
      %v5910 = vpack.c.b16 %v5388, %v5330
      %v5911 = vpack.c.b16 %v5389, %v5331
      %v5912 = vpack.c.b16 %v5448, %v5390
      %v5913 = vpack.c.b16 %v5449, %v5391
      %v5914 = vpack.c.b16 %v5450, %v5392
      %v5915 = vpack.c.b16 %v5451, %v5393
      %v5916 = vpack.c.b16 %v5452, %v5394
      %v5917 = vpack.c.b16 %v5453, %v5395
      %v5918 = vpack.c.b16 %v5454, %v5396
      %v5919 = vpack.c.b16 %v5455, %v5397
      %v5920 = vpack.c.b16 %v5456, %v5398
      %v5921 = vpack.c.b16 %v5457, %v5399
      %v5922 = vpack.c.b16 %v5458, %v5400
      %v5923 = vpack.c.b16 %v5459, %v5401
      %v5924 = vpack.c.b16 %v5460, %v5402
      %v5925 = vpack.c.b16 %v5461, %v5403
      %v5926 = vpack.c.b16 %v5462, %v5404
      %v5927 = vpack.c.b16 %v5463, %v5405
      %v5928 = vpack.c.b16 %v5464, %v5406
      %v5929 = vpack.c.b16 %v5465, %v5407
      %v5930 = vpack.c.b16 %v5466, %v5408
      %v5931 = vpack.c.b16 %v5467, %v5409
      %v5932 = vpack.c.b16 %v5468, %v5410
      %v5933 = vpack.c.b16 %v5469, %v5411
      %v5934 = vpack.c.b16 %v5470, %v5412
      %v5935 = vpack.c.b16 %v5471, %v5413
      %v5936 = vpack.c.b16 %v5472, %v5414
      %v5937 = vpack.c.b16 %v5473, %v5415
      %v5938 = vpack.c.b16 %v5474, %v5416
      %v5939 = vpack.c.b16 %v5475, %v5417
      %v5940 = vpack.c.b16 %v5476, %v5418
      %v5941 = vpack.c.b16 %v5477, %v5419
      %v5942 = vpack.c.b16 %v5478, %v5420
      %v5943 = vpack.c.b16 %v5479, %v5421
      %v5944 = vpack.c.b16 %v5480, %v5422
      %v5945 = vpack.c.b16 %v5481, %v5423
      %v5946 = vpack.c.b16 %v5482, %v5424
      %v5947 = vpack.c.b16 %v5483, %v5425
      %v5948 = vpack.c.b16 %v5484, %v5426
      %v5949 = vpack.c.b16 %v5485, %v5427
      %v5950 = vpack.c.b16 %v5486, %v5428
      %v5951 = vpack.c.b16 %v5487, %v5429
      %v5952 = vpack.c.b16 %v5488, %v5430
      %v5953 = vpack.c.b16 %v5489, %v5431
      %v5954 = vpack.c.b16 %v5490, %v5432
      %v5955 = vpack.c.b16 %v5491, %v5433
      %v5956 = vpack.c.b16 %v5492, %v5434
      %v5957 = vpack.c.b16 %v5493, %v5435
      %v5958 = vpack.c.b16 %v5494, %v5436
      %v5959 = vpack.c.b16 %v5495, %v5437
      %v5960 = vpack.c.b16 %v5496, %v5438
      %v5961 = vpack.c.b16 %v5497, %v5439
      %v5962 = vpack.c.b16 %v5498, %v5440
      %v5963 = vpack.c.b16 %v5499, %v5441
      %v5964 = vpack.c.b16 %v5500, %v5442
      %v5965 = vpack.c.b16 %v5501, %v5443
      %v5966 = vpack.c.b16 %v5502, %v5444
      %v5967 = vpack.c.b16 %v5503, %v5445
      %v5968 = vpack.c.b16 %v5504, %v5446
      %v5969 = vpack.c.b16 %v5505, %v5447
      %v5970 = vpack.c.b16 %v5564, %v5506
      %v5971 = vpack.c.b16 %v5565, %v5507
      %v5972 = vpack.c.b16 %v5566, %v5508
      %v5973 = vpack.c.b16 %v5567, %v5509
      %v5974 = vpack.c.b16 %v5568, %v5510
      %v5975 = vpack.c.b16 %v5569, %v5511
      %v5976 = vpack.c.b16 %v5570, %v5512
      %v5977 = vpack.c.b16 %v5571, %v5513
      %v5978 = vpack.c.b16 %v5572, %v5514
      %v5979 = vpack.c.b16 %v5573, %v5515
      %v5980 = vpack.c.b16 %v5574, %v5516
      %v5981 = vpack.c.b16 %v5575, %v5517
      %v5982 = vpack.c.b16 %v5576, %v5518
      %v5983 = vpack.c.b16 %v5577, %v5519
      %v5984 = vpack.c.b16 %v5578, %v5520
      %v5985 = vpack.c.b16 %v5579, %v5521
      %v5986 = vpack.c.b16 %v5580, %v5522
      %v5987 = vpack.c.b16 %v5581, %v5523
      %v5988 = vpack.c.b16 %v5582, %v5524
      %v5989 = vpack.c.b16 %v5583, %v5525
      %v5990 = vpack.c.b16 %v5584, %v5526
      %v5991 = vpack.c.b16 %v5585, %v5527
      %v5992 = vpack.c.b16 %v5586, %v5528
      %v5993 = vpack.c.b16 %v5587, %v5529
      %v5994 = vpack.c.b16 %v5588, %v5530
      %v5995 = vpack.c.b16 %v5589, %v5531
      %v5996 = vpack.c.b16 %v5590, %v5532
      %v5997 = vpack.c.b16 %v5591, %v5533
      %v5998 = vpack.c.b16 %v5592, %v5534
      %v5999 = vpack.c.b16 %v5593, %v5535
      %v6000 = vpack.c.b16 %v5594, %v5536
      %v6001 = vpack.c.b16 %v5595, %v5537
      %v6002 = vpack.c.b16 %v5596, %v5538
      %v6003 = vpack.c.b16 %v5597, %v5539
      %v6004 = vpack.c.b16 %v5598, %v5540
      %v6005 = vpack.c.b16 %v5599, %v5541
      %v6006 = vpack.c.b16 %v5600, %v5542
      %v6007 = vpack.c.b16 %v5601, %v5543
      %v6008 = vpack.c.b16 %v5602, %v5544
      %v6009 = vpack.c.b16 %v5603, %v5545
      %v6010 = vpack.c.b16 %v5604, %v5546
      %v6011 = vpack.c.b16 %v5605, %v5547
      %v6012 = vpack.c.b16 %v5606, %v5548
      %v6013 = vpack.c.b16 %v5607, %v5549
      %v6014 = vpack.c.b16 %v5608, %v5550
      %v6015 = vpack.c.b16 %v5609, %v5551
      %v6016 = vpack.c.b16 %v5610, %v5552
      %v6017 = vpack.c.b16 %v5611, %v5553
      %v6018 = vpack.c.b16 %v5612, %v5554
      %v6019 = vpack.c.b16 %v5613, %v5555
      %v6020 = vpack.c.b16 %v5614, %v5556
      %v6021 = vpack.c.b16 %v5615, %v5557
      %v6022 = vpack.c.b16 %v5616, %v5558
      %v6023 = vpack.c.b16 %v5617, %v5559
      %v6024 = vpack.c.b16 %v5618, %v5560
      %v6025 = vpack.c.b16 %v5619, %v5561
      %v6026 = vpack.c.b16 %v5620, %v5562
      %v6027 = vpack.c.b16 %v5621, %v5563
      %v6028 = vpack.c.b16 %v5622, %v5622
      %v6029 = vpack.c.b16 %v5623, %v5623
      %v6030 = vpack.c.b16 %v5624, %v5624
      %v6031 = vpack.c.b16 %v5625, %v5625
      %v6032 = vpack.c.b16 %v5626, %v5626
      %v6033 = vpack.c.b16 %v5627, %v5627
      %v6034 = vpack.c.b16 %v5628, %v5628
      %v6035 = vpack.c.b16 %v5629, %v5629
      %v6036 = vpack.c.b16 %v5630, %v5630
      %v6037 = vpack.c.b16 %v5631, %v5631
      %v6038 = vpack.c.b16 %v5632, %v5632
      %v6039 = vpack.c.b16 %v5633, %v5633
      %v6040 = vpack.c.b16 %v5634, %v5634
      %v6041 = vpack.c.b16 %v5635, %v5635
      %v6042 = vpack.c.b16 %v5636, %v5636
      %v6043 = vpack.c.b16 %v5637, %v5637
      %v6044 = vpack.c.b16 %v5638, %v5638
      %v6045 = vpack.c.b16 %v5639, %v5639
      %v6046 = vpack.c.b16 %v5640, %v5640
      %v6047 = vpack.c.b16 %v5641, %v5641
      %v6048 = vpack.c.b16 %v5642, %v5642
      %v6049 = vpack.c.b16 %v5643, %v5643
      %v6050 = vpack.c.b16 %v5644, %v5644
      %v6051 = vpack.c.b16 %v5645, %v5645
      %v6052 = vpack.c.b16 %v5646, %v5646
      %v6053 = vpack.c.b16 %v5647, %v5647
      %v6054 = vpack.c.b16 %v5648, %v5648
      %v6055 = vpack.c.b16 %v5649, %v5649
      %v6056 = vpack.c.b16 %v5650, %v5650
      %v6057 = vpack.c.b16 %v5651, %v5651
      %v6058 = vpack.c.b16 %v5652, %v5652
      %v6059 = vpack.c.b16 %v5653, %v5653
      %v6060 = vpack.c.b16 %v5654, %v5654
      %v6061 = vpack.c.b16 %v5655, %v5655
      %v6062 = vpack.c.b16 %v5656, %v5656
      %v6063 = vpack.c.b16 %v5657, %v5657
      %v6064 = vpack.c.b16 %v5658, %v5658
      %v6065 = vpack.c.b16 %v5659, %v5659
      %v6066 = vpack.c.b16 %v5660, %v5660
      %v6067 = vpack.c.b16 %v5661, %v5661
      %v6068 = vpack.c.b16 %v5662, %v5662
      %v6069 = vpack.c.b16 %v5663, %v5663
      %v6070 = vpack.c.b16 %v5664, %v5664
      %v6071 = vpack.c.b16 %v5665, %v5665
      %v6072 = vpack.c.b16 %v5666, %v5666
      %v6073 = vpack.c.b16 %v5667, %v5667
      %v6074 = vpack.c.b16 %v5668, %v5668
      %v6075 = vpack.c.b16 %v5669, %v5669
      %v6076 = vpack.c.b16 %v5670, %v5670
      %v6077 = vpack.c.b16 %v5671, %v5671
      %v6078 = vpack.c.b16 %v5672, %v5672
      %v6079 = vpack.c.b16 %v5673, %v5673
      %v6080 = vpack.c.b16 %v5674, %v5674
      %v6081 = vpack.c.b16 %v5675, %v5675
      %v6082 = vpack.c.b16 %v5676, %v5676
      %v6083 = vpack.c.b16 %v5677, %v5677
      %v6084 = vpack.c.b16 %v5678, %v5678
      %v6085 = vpack.c.b16 %v5679, %v5679
      %vm6434 = vcmask 801792
      %v6436 = vsel %vm6434, %v4548, 0
      %v6439 = vsel %vm1180, %v6028, 0
      %v6442 = vsel %vm1180, %v6029, 0
      %v6445 = vsel %vm1180, %v6030, 0
      %v6448 = vsel %vm1180, %v6031, 0
      %v6451 = vsel %vm1180, %v6032, 0
      %v6454 = vsel %vm1180, %v6033, 0
      %v6457 = vsel %vm1180, %v6034, 0
      %v6460 = vsel %vm1180, %v6035, 0
      %v6463 = vsel %vm1180, %v6036, 0
      %v6466 = vsel %vm1180, %v6037, 0
      %v6469 = vsel %vm1180, %v6038, 0
      %v6472 = vsel %vm1180, %v6039, 0
      %v6475 = vsel %vm1180, %v6040, 0
      %v6478 = vsel %vm1180, %v6041, 0
      %v6481 = vsel %vm1180, %v6042, 0
      %v6484 = vsel %vm1180, %v6043, 0
      %v6487 = vsel %vm1180, %v6044, 0
      %v6490 = vsel %vm1180, %v6045, 0
      %v6493 = vsel %vm1180, %v6046, 0
      %v6496 = vsel %vm1180, %v6047, 0
      %v6499 = vsel %vm1180, %v6048, 0
      %v6502 = vsel %vm1180, %v6049, 0
      %v6505 = vsel %vm1180, %v6050, 0
      %v6508 = vsel %vm1180, %v6051, 0
      %v6511 = vsel %vm1180, %v6052, 0
      %v6514 = vsel %vm1180, %v6053, 0
      %v6517 = vsel %vm1180, %v6054, 0
      %v6520 = vsel %vm1180, %v6055, 0
      %v6523 = vsel %vm1180, %v6056, 0
      %v6526 = vsel %vm1180, %v6057, 0
      %v6529 = vsel %vm1180, %v6058, 0
      %v6532 = vsel %vm1180, %v6059, 0
      %v6535 = vsel %vm1180, %v6060, 0
      %v6538 = vsel %vm1180, %v6061, 0
      %v6541 = vsel %vm1180, %v6062, 0
      %v6544 = vsel %vm1180, %v6063, 0
      %v6547 = vsel %vm1180, %v6064, 0
      %v6550 = vsel %vm1180, %v6065, 0
      %v6553 = vsel %vm1180, %v6066, 0
      %v6556 = vsel %vm1180, %v6067, 0
      %v6559 = vsel %vm1180, %v6068, 0
      %v6562 = vsel %vm1180, %v6069, 0
      %v6565 = vsel %vm1180, %v6070, 0
      %v6568 = vsel %vm1180, %v6071, 0
      %v6571 = vsel %vm1180, %v6072, 0
      %v6574 = vsel %vm1180, %v6073, 0
      %v6577 = vsel %vm1180, %v6074, 0
      %v6580 = vsel %vm1180, %v6075, 0
      %v6583 = vsel %vm1180, %v6076, 0
      %v6586 = vsel %vm1180, %v6077, 0
      %v6589 = vsel %vm1180, %v6078, 0
      %v6592 = vsel %vm1180, %v6079, 0
      %v6595 = vsel %vm1180, %v6080, 0
      %v6598 = vsel %vm1180, %v6081, 0
      %v6601 = vsel %vm1180, %v6082, 0
      %v6604 = vsel %vm1180, %v6083, 0
      %v6607 = vsel %vm1180, %v6084, 0
      %v6610 = vsel %vm1180, %v6085, 0
      %6612 = vmatprep.subr.bf16.mxu0 %v5681
      %6613 = vmatpush1.bf16.msra.mxu0 %v5680
      %6614 = vmatprep.subr.bf16.mxu0 %v5739
      %6615 = vmatpush1.bf16.msra.mxu0 %v5738
      %6616 = vmatprep.subr.bf16.mxu0 %v5797
      %6617 = vmatpush1.bf16.msra.mxu0 %v5796
      %6618 = vmatprep.subr.bf16.mxu0 %v5855
      %6619 = vmatpush1.bf16.msra.mxu0 %v5854
      %6620 = vmatprep.subr.bf16.mxu0 %v5913
      %6621 = vmatpush1.bf16.msra.mxu0 %v5912
      %6622 = vmatprep.subr.bf16.mxu0 %v5971
      %6623 = vmatpush1.bf16.msra.mxu0 %v5970
      %6624 = vmatprep.subr.bf16.mxu0 %v6442
      %6625 = vmatpush1.bf16.msra.mxu0 %v6439
      %6626 = vmatprep.subr.bf16.mxu0 0
      %6627 = vmatpush1.bf16.msra.mxu0 0
      %6628 = vmatprep.subr.bf16.mxu0 0
      %6629 = vmatpush1.bf16.msra.mxu0 0
      %6630 = vmatprep.subr.bf16.mxu0 0
      %6631 = vmatpush1.bf16.msra.mxu0 0
      %6632 = vmatprep.subr.bf16.mxu0 0
      %6633 = vmatpush1.bf16.msra.mxu0 0
      %6634 = vmatprep.subr.bf16.mxu0 0
      %6635 = vmatpush1.bf16.msra.mxu0 0
      %6636 = vmatprep.subr.bf16.mxu0 0
      %6637 = vmatpush1.bf16.msra.mxu0 0
      %6638 = vmatprep.subr.bf16.mxu0 0
      %6639 = vmatpush1.bf16.msra.mxu0 0
      %6640 = vmatprep.subr.bf16.mxu0 0
      %6641 = vmatpush1.bf16.msra.mxu0 0
      %6642 = vmatprep.subr.bf16.mxu0 0
      %6643 = vmatpush1.bf16.msra.mxu0 0
      %6644 = vmatprep.mubr.bf16.mxu0 0
      %6645 = vmatmul.mubr.bf16.gmra.mrb[0].mxu0 %v6436
      %v6646 = vpop.f32.mrb[0].mxu0
      %v6647 = vadd.f32 %v4537, %v6646
      %v6648 = vpop.f32.mrb[0].mxu0
      %v6649 = vadd.f32 %v4537, %v6648
      %v6650 = vpop.f32.mrb[0].mxu0
      %v6651 = vadd.f32 %v4542, %v6650
      %v6652 = vpop.f32.mrb[0].mxu0
      %v6653 = vadd.f32 %v4542, %v6652
      %6654 = vdwg.mxu0
      %6655 = vmatprep.subr.bf16.mxu0 %v5683
      %6656 = vmatpush1.bf16.msra.mxu0 %v5682
      %6657 = vmatprep.subr.bf16.mxu0 %v5741
      %6658 = vmatpush1.bf16.msra.mxu0 %v5740
      %6659 = vmatprep.subr.bf16.mxu0 %v5799
      %6660 = vmatpush1.bf16.msra.mxu0 %v5798
      %6661 = vmatprep.subr.bf16.mxu0 %v5857
      %6662 = vmatpush1.bf16.msra.mxu0 %v5856
      %6663 = vmatprep.subr.bf16.mxu0 %v5915
      %6664 = vmatpush1.bf16.msra.mxu0 %v5914
      %6665 = vmatprep.subr.bf16.mxu0 %v5973
      %6666 = vmatpush1.bf16.msra.mxu0 %v5972
      %6667 = vmatprep.subr.bf16.mxu0 %v6448
      %6668 = vmatpush1.bf16.msra.mxu0 %v6445
      %6669 = vmatprep.subr.bf16.mxu0 0
      %6670 = vmatpush1.bf16.msra.mxu0 0
      %6671 = vmatprep.subr.bf16.mxu0 0
      %6672 = vmatpush1.bf16.msra.mxu0 0
      %6673 = vmatprep.subr.bf16.mxu0 0
      %6674 = vmatpush1.bf16.msra.mxu0 0
      %6675 = vmatprep.subr.bf16.mxu0 0
      %6676 = vmatpush1.bf16.msra.mxu0 0
      %6677 = vmatprep.subr.bf16.mxu0 0
      %6678 = vmatpush1.bf16.msra.mxu0 0
      %6679 = vmatprep.subr.bf16.mxu0 0
      %6680 = vmatpush1.bf16.msra.mxu0 0
      %6681 = vmatprep.subr.bf16.mxu0 0
      %6682 = vmatpush1.bf16.msra.mxu0 0
      %6683 = vmatprep.subr.bf16.mxu0 0
      %6684 = vmatpush1.bf16.msra.mxu0 0
      %6685 = vmatprep.subr.bf16.mxu0 0
      %6686 = vmatpush1.bf16.msra.mxu0 0
      %6687 = vmatprep.mubr.bf16.mxu0 0
      %6688 = vmatmul.mubr.bf16.gmra.mrb[0].mxu0 %v6436
      %v6689 = vpop.f32.mrb[0].mxu0
      %v6690 = vadd.f32 %v4537, %v6689
      %v6691 = vpop.f32.mrb[0].mxu0
      %v6692 = vadd.f32 %v4537, %v6691
      %v6693 = vpop.f32.mrb[0].mxu0
      %v6694 = vadd.f32 %v4542, %v6693
      %v6695 = vpop.f32.mrb[0].mxu0
      %v6696 = vadd.f32 %v4542, %v6695
      %6697 = vdwg.mxu0
      %6698 = vmatprep.subr.bf16.mxu0 %v5685
      %6699 = vmatpush1.bf16.msra.mxu0 %v5684
      %6700 = vmatprep.subr.bf16.mxu0 %v5743
      %6701 = vmatpush1.bf16.msra.mxu0 %v5742
      %6702 = vmatprep.subr.bf16.mxu0 %v5801
      %6703 = vmatpush1.bf16.msra.mxu0 %v5800
      %6704 = vmatprep.subr.bf16.mxu0 %v5859
      %6705 = vmatpush1.bf16.msra.mxu0 %v5858
      %6706 = vmatprep.subr.bf16.mxu0 %v5917
      %6707 = vmatpush1.bf16.msra.mxu0 %v5916
      %6708 = vmatprep.subr.bf16.mxu0 %v5975
      %6709 = vmatpush1.bf16.msra.mxu0 %v5974
      %6710 = vmatprep.subr.bf16.mxu0 %v6454
      %6711 = vmatpush1.bf16.msra.mxu0 %v6451
      %6712 = vmatprep.subr.bf16.mxu0 0
      %6713 = vmatpush1.bf16.msra.mxu0 0
      %6714 = vmatprep.subr.bf16.mxu0 0
      %6715 = vmatpush1.bf16.msra.mxu0 0
      %6716 = vmatprep.subr.bf16.mxu0 0
      %6717 = vmatpush1.bf16.msra.mxu0 0
      %6718 = vmatprep.subr.bf16.mxu0 0
      %6719 = vmatpush1.bf16.msra.mxu0 0
      %6720 = vmatprep.subr.bf16.mxu0 0
      %6721 = vmatpush1.bf16.msra.mxu0 0
      %6722 = vmatprep.subr.bf16.mxu0 0
      %6723 = vmatpush1.bf16.msra.mxu0 0
      %6724 = vmatprep.subr.bf16.mxu0 0
      %6725 = vmatpush1.bf16.msra.mxu0 0
      %6726 = vmatprep.subr.bf16.mxu0 0
      %6727 = vmatpush1.bf16.msra.mxu0 0
      %6728 = vmatprep.subr.bf16.mxu0 0
      %6729 = vmatpush1.bf16.msra.mxu0 0
      %6730 = vmatprep.mubr.bf16.mxu0 0
      %6731 = vmatmul.mubr.bf16.gmra.mrb[0].mxu0 %v6436
      %v6732 = vpop.f32.mrb[0].mxu0
      %v6733 = vadd.f32 %v4537, %v6732
      %v6734 = vpop.f32.mrb[0].mxu0
      %v6735 = vadd.f32 %v4537, %v6734
      %v6736 = vpop.f32.mrb[0].mxu0
      %v6737 = vadd.f32 %v4542, %v6736
      %v6738 = vpop.f32.mrb[0].mxu0
      %v6739 = vadd.f32 %v4542, %v6738
      %6740 = vdwg.mxu0
      %6741 = vmatprep.subr.bf16.mxu0 %v5687
      %6742 = vmatpush1.bf16.msra.mxu0 %v5686
      %6743 = vmatprep.subr.bf16.mxu0 %v5745
      %6744 = vmatpush1.bf16.msra.mxu0 %v5744
      %6745 = vmatprep.subr.bf16.mxu0 %v5803
      %6746 = vmatpush1.bf16.msra.mxu0 %v5802
      %6747 = vmatprep.subr.bf16.mxu0 %v5861
      %6748 = vmatpush1.bf16.msra.mxu0 %v5860
      %6749 = vmatprep.subr.bf16.mxu0 %v5919
      %6750 = vmatpush1.bf16.msra.mxu0 %v5918
      %6751 = vmatprep.subr.bf16.mxu0 %v5977
      %6752 = vmatpush1.bf16.msra.mxu0 %v5976
      %6753 = vmatprep.subr.bf16.mxu0 %v6460
      %6754 = vmatpush1.bf16.msra.mxu0 %v6457
      %6755 = vmatprep.subr.bf16.mxu0 0
      %6756 = vmatpush1.bf16.msra.mxu0 0
      %6757 = vmatprep.subr.bf16.mxu0 0
      %6758 = vmatpush1.bf16.msra.mxu0 0
      %6759 = vmatprep.subr.bf16.mxu0 0
      %6760 = vmatpush1.bf16.msra.mxu0 0
      %6761 = vmatprep.subr.bf16.mxu0 0
      %6762 = vmatpush1.bf16.msra.mxu0 0
      %6763 = vmatprep.subr.bf16.mxu0 0
      %6764 = vmatpush1.bf16.msra.mxu0 0
      %6765 = vmatprep.subr.bf16.mxu0 0
      %6766 = vmatpush1.bf16.msra.mxu0 0
      %6767 = vmatprep.subr.bf16.mxu0 0
      %6768 = vmatpush1.bf16.msra.mxu0 0
      %6769 = vmatprep.subr.bf16.mxu0 0
      %6770 = vmatpush1.bf16.msra.mxu0 0
      %6771 = vmatprep.subr.bf16.mxu0 0
      %6772 = vmatpush1.bf16.msra.mxu0 0
      %6773 = vmatprep.mubr.bf16.mxu0 0
      %6774 = vmatmul.mubr.bf16.gmra.mrb[0].mxu0 %v6436
      %v6775 = vpop.f32.mrb[0].mxu0
      %v6776 = vadd.f32 %v4537, %v6775
      %v6777 = vpop.f32.mrb[0].mxu0
      %v6778 = vadd.f32 %v4537, %v6777
      %v6779 = vpop.f32.mrb[0].mxu0
      %v6780 = vadd.f32 %v4542, %v6779
      %v6781 = vpop.f32.mrb[0].mxu0
      %v6782 = vadd.f32 %v4542, %v6781
      %6783 = vdwg.mxu0
      %6784 = vmatprep.subr.bf16.mxu0 %v5689
      %6785 = vmatpush1.bf16.msra.mxu0 %v5688
      %6786 = vmatprep.subr.bf16.mxu0 %v5747
      %6787 = vmatpush1.bf16.msra.mxu0 %v5746
      %6788 = vmatprep.subr.bf16.mxu0 %v5805
      %6789 = vmatpush1.bf16.msra.mxu0 %v5804
      %6790 = vmatprep.subr.bf16.mxu0 %v5863
      %6791 = vmatpush1.bf16.msra.mxu0 %v5862
      %6792 = vmatprep.subr.bf16.mxu0 %v5921
      %6793 = vmatpush1.bf16.msra.mxu0 %v5920
      %6794 = vmatprep.subr.bf16.mxu0 %v5979
      %6795 = vmatpush1.bf16.msra.mxu0 %v5978
      %6796 = vmatprep.subr.bf16.mxu0 %v6466
      %6797 = vmatpush1.bf16.msra.mxu0 %v6463
      %6798 = vmatprep.subr.bf16.mxu0 0
      %6799 = vmatpush1.bf16.msra.mxu0 0
      %6800 = vmatprep.subr.bf16.mxu0 0
      %6801 = vmatpush1.bf16.msra.mxu0 0
      %6802 = vmatprep.subr.bf16.mxu0 0
      %6803 = vmatpush1.bf16.msra.mxu0 0
      %6804 = vmatprep.subr.bf16.mxu0 0
      %6805 = vmatpush1.bf16.msra.mxu0 0
      %6806 = vmatprep.subr.bf16.mxu0 0
      %6807 = vmatpush1.bf16.msra.mxu0 0
      %6808 = vmatprep.subr.bf16.mxu0 0
      %6809 = vmatpush1.bf16.msra.mxu0 0
      %6810 = vmatprep.subr.bf16.mxu0 0
      %6811 = vmatpush1.bf16.msra.mxu0 0
      %6812 = vmatprep.subr.bf16.mxu0 0
      %6813 = vmatpush1.bf16.msra.mxu0 0
      %6814 = vmatprep.subr.bf16.mxu0 0
      %6815 = vmatpush1.bf16.msra.mxu0 0
      %6816 = vmatprep.mubr.bf16.mxu0 0
      %6817 = vmatmul.mubr.bf16.gmra.mrb[0].mxu0 %v6436
      %v6818 = vpop.f32.mrb[0].mxu0
      %v6819 = vadd.f32 %v4537, %v6818
      %v6820 = vpop.f32.mrb[0].mxu0
      %v6821 = vadd.f32 %v4537, %v6820
      %v6822 = vpop.f32.mrb[0].mxu0
      %v6823 = vadd.f32 %v4542, %v6822
      %v6824 = vpop.f32.mrb[0].mxu0
      %v6825 = vadd.f32 %v4542, %v6824
      %6826 = vdwg.mxu0
      %6827 = vmatprep.subr.bf16.mxu0 %v5691
      %6828 = vmatpush1.bf16.msra.mxu0 %v5690
      %6829 = vmatprep.subr.bf16.mxu0 %v5749
      %6830 = vmatpush1.bf16.msra.mxu0 %v5748
      %6831 = vmatprep.subr.bf16.mxu0 %v5807
      %6832 = vmatpush1.bf16.msra.mxu0 %v5806
      %6833 = vmatprep.subr.bf16.mxu0 %v5865
      %6834 = vmatpush1.bf16.msra.mxu0 %v5864
      %6835 = vmatprep.subr.bf16.mxu0 %v5923
      %6836 = vmatpush1.bf16.msra.mxu0 %v5922
      %6837 = vmatprep.subr.bf16.mxu0 %v5981
      %6838 = vmatpush1.bf16.msra.mxu0 %v5980
      %6839 = vmatprep.subr.bf16.mxu0 %v6472
      %6840 = vmatpush1.bf16.msra.mxu0 %v6469
      %6841 = vmatprep.subr.bf16.mxu0 0
      %6842 = vmatpush1.bf16.msra.mxu0 0
      %6843 = vmatprep.subr.bf16.mxu0 0
      %6844 = vmatpush1.bf16.msra.mxu0 0
      %6845 = vmatprep.subr.bf16.mxu0 0
      %6846 = vmatpush1.bf16.msra.mxu0 0
      %6847 = vmatprep.subr.bf16.mxu0 0
      %6848 = vmatpush1.bf16.msra.mxu0 0
      %6849 = vmatprep.subr.bf16.mxu0 0
      %6850 = vmatpush1.bf16.msra.mxu0 0
      %6851 = vmatprep.subr.bf16.mxu0 0
      %6852 = vmatpush1.bf16.msra.mxu0 0
      %6853 = vmatprep.subr.bf16.mxu0 0
      %6854 = vmatpush1.bf16.msra.mxu0 0
      %6855 = vmatprep.subr.bf16.mxu0 0
      %6856 = vmatpush1.bf16.msra.mxu0 0
      %6857 = vmatprep.subr.bf16.mxu0 0
      %6858 = vmatpush1.bf16.msra.mxu0 0
      %6859 = vmatprep.mubr.bf16.mxu0 0
      %6860 = vmatmul.mubr.bf16.gmra.mrb[0].mxu0 %v6436
      %v6861 = vpop.f32.mrb[0].mxu0
      %v6862 = vadd.f32 %v4537, %v6861
      %v6863 = vpop.f32.mrb[0].mxu0
      %v6864 = vadd.f32 %v4537, %v6863
      %v6865 = vpop.f32.mrb[0].mxu0
      %v6866 = vadd.f32 %v4542, %v6865
      %v6867 = vpop.f32.mrb[0].mxu0
      %v6868 = vadd.f32 %v4542, %v6867
      %6869 = vdwg.mxu0
      %6870 = vmatprep.subr.bf16.mxu0 %v5693
      %6871 = vmatpush1.bf16.msra.mxu0 %v5692
      %6872 = vmatprep.subr.bf16.mxu0 %v5751
      %6873 = vmatpush1.bf16.msra.mxu0 %v5750
      %6874 = vmatprep.subr.bf16.mxu0 %v5809
      %6875 = vmatpush1.bf16.msra.mxu0 %v5808
      %6876 = vmatprep.subr.bf16.mxu0 %v5867
      %6877 = vmatpush1.bf16.msra.mxu0 %v5866
      %6878 = vmatprep.subr.bf16.mxu0 %v5925
      %6879 = vmatpush1.bf16.msra.mxu0 %v5924
      %6880 = vmatprep.subr.bf16.mxu0 %v5983
      %6881 = vmatpush1.bf16.msra.mxu0 %v5982
      %6882 = vmatprep.subr.bf16.mxu0 %v6478
      %6883 = vmatpush1.bf16.msra.mxu0 %v6475
      %6884 = vmatprep.subr.bf16.mxu0 0
      %6885 = vmatpush1.bf16.msra.mxu0 0
      %6886 = vmatprep.subr.bf16.mxu0 0
      %6887 = vmatpush1.bf16.msra.mxu0 0
      %6888 = vmatprep.subr.bf16.mxu0 0
      %6889 = vmatpush1.bf16.msra.mxu0 0
      %6890 = vmatprep.subr.bf16.mxu0 0
      %6891 = vmatpush1.bf16.msra.mxu0 0
      %6892 = vmatprep.subr.bf16.mxu0 0
      %6893 = vmatpush1.bf16.msra.mxu0 0
      %6894 = vmatprep.subr.bf16.mxu0 0
      %6895 = vmatpush1.bf16.msra.mxu0 0
      %6896 = vmatprep.subr.bf16.mxu0 0
      %6897 = vmatpush1.bf16.msra.mxu0 0
      %6898 = vmatprep.subr.bf16.mxu0 0
      %6899 = vmatpush1.bf16.msra.mxu0 0
      %6900 = vmatprep.subr.bf16.mxu0 0
      %6901 = vmatpush1.bf16.msra.mxu0 0
      %6902 = vmatprep.mubr.bf16.mxu0 0
      %6903 = vmatmul.mubr.bf16.gmra.mrb[0].mxu0 %v6436
      %v6904 = vpop.f32.mrb[0].mxu0
      %v6905 = vadd.f32 %v4537, %v6904
      %v6906 = vpop.f32.mrb[0].mxu0
      %v6907 = vadd.f32 %v4537, %v6906
      %v6908 = vpop.f32.mrb[0].mxu0
      %v6909 = vadd.f32 %v4542, %v6908
      %v6910 = vpop.f32.mrb[0].mxu0
      %v6911 = vadd.f32 %v4542, %v6910
      %6912 = vdwg.mxu0
      %6913 = vmatprep.subr.bf16.mxu0 %v5695
      %6914 = vmatpush1.bf16.msra.mxu0 %v5694
      %6915 = vmatprep.subr.bf16.mxu0 %v5753
      %6916 = vmatpush1.bf16.msra.mxu0 %v5752
      %6917 = vmatprep.subr.bf16.mxu0 %v5811
      %6918 = vmatpush1.bf16.msra.mxu0 %v5810
      %6919 = vmatprep.subr.bf16.mxu0 %v5869
      %6920 = vmatpush1.bf16.msra.mxu0 %v5868
      %6921 = vmatprep.subr.bf16.mxu0 %v5927
      %6922 = vmatpush1.bf16.msra.mxu0 %v5926
      %6923 = vmatprep.subr.bf16.mxu0 %v5985
      %6924 = vmatpush1.bf16.msra.mxu0 %v5984
      %6925 = vmatprep.subr.bf16.mxu0 %v6484
      %6926 = vmatpush1.bf16.msra.mxu0 %v6481
      %6927 = vmatprep.subr.bf16.mxu0 0
      %6928 = vmatpush1.bf16.msra.mxu0 0
      %6929 = vmatprep.subr.bf16.mxu0 0
      %6930 = vmatpush1.bf16.msra.mxu0 0
      %6931 = vmatprep.subr.bf16.mxu0 0
      %6932 = vmatpush1.bf16.msra.mxu0 0
      %6933 = vmatprep.subr.bf16.mxu0 0
      %6934 = vmatpush1.bf16.msra.mxu0 0
      %6935 = vmatprep.subr.bf16.mxu0 0
      %6936 = vmatpush1.bf16.msra.mxu0 0
      %6937 = vmatprep.subr.bf16.mxu0 0
      %6938 = vmatpush1.bf16.msra.mxu0 0
      %6939 = vmatprep.subr.bf16.mxu0 0
      %6940 = vmatpush1.bf16.msra.mxu0 0
      %6941 = vmatprep.subr.bf16.mxu0 0
      %6942 = vmatpush1.bf16.msra.mxu0 0
      %6943 = vmatprep.subr.bf16.mxu0 0
      %6944 = vmatpush1.bf16.msra.mxu0 0
      %6945 = vmatprep.mubr.bf16.mxu0 0
      %6946 = vmatmul.mubr.bf16.gmra.mrb[0].mxu0 %v6436
      %v6947 = vpop.f32.mrb[0].mxu0
      %v6948 = vadd.f32 %v4537, %v6947
      %v6949 = vpop.f32.mrb[0].mxu0
      %v6950 = vadd.f32 %v4537, %v6949
      %v6951 = vpop.f32.mrb[0].mxu0
      %v6952 = vadd.f32 %v4542, %v6951
      %v6953 = vpop.f32.mrb[0].mxu0
      %v6954 = vadd.f32 %v4542, %v6953
      %6955 = vdwg.mxu0
      %6956 = vmatprep.subr.bf16.mxu0 %v5697
      %6957 = vmatpush1.bf16.msra.mxu0 %v5696
      %6958 = vmatprep.subr.bf16.mxu0 %v5755
      %6959 = vmatpush1.bf16.msra.mxu0 %v5754
      %6960 = vmatprep.subr.bf16.mxu0 %v5813
      %6961 = vmatpush1.bf16.msra.mxu0 %v5812
      %6962 = vmatprep.subr.bf16.mxu0 %v5871
      %6963 = vmatpush1.bf16.msra.mxu0 %v5870
      %6964 = vmatprep.subr.bf16.mxu0 %v5929
      %6965 = vmatpush1.bf16.msra.mxu0 %v5928
      %6966 = vmatprep.subr.bf16.mxu0 %v5987
      %6967 = vmatpush1.bf16.msra.mxu0 %v5986
      %6968 = vmatprep.subr.bf16.mxu0 %v6490
      %6969 = vmatpush1.bf16.msra.mxu0 %v6487
      %6970 = vmatprep.subr.bf16.mxu0 0
      %6971 = vmatpush1.bf16.msra.mxu0 0
      %6972 = vmatprep.subr.bf16.mxu0 0
      %6973 = vmatpush1.bf16.msra.mxu0 0
      %6974 = vmatprep.subr.bf16.mxu0 0
      %6975 = vmatpush1.bf16.msra.mxu0 0
      %6976 = vmatprep.subr.bf16.mxu0 0
      %6977 = vmatpush1.bf16.msra.mxu0 0
      %6978 = vmatprep.subr.bf16.mxu0 0
      %6979 = vmatpush1.bf16.msra.mxu0 0
      %6980 = vmatprep.subr.bf16.mxu0 0
      %6981 = vmatpush1.bf16.msra.mxu0 0
      %6982 = vmatprep.subr.bf16.mxu0 0
      %6983 = vmatpush1.bf16.msra.mxu0 0
      %6984 = vmatprep.subr.bf16.mxu0 0
      %6985 = vmatpush1.bf16.msra.mxu0 0
      %6986 = vmatprep.subr.bf16.mxu0 0
      %6987 = vmatpush1.bf16.msra.mxu0 0
      %6988 = vmatprep.mubr.bf16.mxu0 0
      %6989 = vmatmul.mubr.bf16.gmra.mrb[0].mxu0 %v6436
      %v6990 = vpop.f32.mrb[0].mxu0
      %v6991 = vadd.f32 %v4537, %v6990
      %v6992 = vpop.f32.mrb[0].mxu0
      %v6993 = vadd.f32 %v4537, %v6992
      %v6994 = vpop.f32.mrb[0].mxu0
      %v6995 = vadd.f32 %v4542, %v6994
      %v6996 = vpop.f32.mrb[0].mxu0
      %v6997 = vadd.f32 %v4542, %v6996
      %6998 = vdwg.mxu0
      %6999 = vmatprep.subr.bf16.mxu0 %v5699
      %7000 = vmatpush1.bf16.msra.mxu0 %v5698
      %7001 = vmatprep.subr.bf16.mxu0 %v5757
      %7002 = vmatpush1.bf16.msra.mxu0 %v5756
      %7003 = vmatprep.subr.bf16.mxu0 %v5815
      %7004 = vmatpush1.bf16.msra.mxu0 %v5814
      %7005 = vmatprep.subr.bf16.mxu0 %v5873
      %7006 = vmatpush1.bf16.msra.mxu0 %v5872
      %7007 = vmatprep.subr.bf16.mxu0 %v5931
      %7008 = vmatpush1.bf16.msra.mxu0 %v5930
      %7009 = vmatprep.subr.bf16.mxu0 %v5989
      %7010 = vmatpush1.bf16.msra.mxu0 %v5988
      %7011 = vmatprep.subr.bf16.mxu0 %v6496
      %7012 = vmatpush1.bf16.msra.mxu0 %v6493
      %7013 = vmatprep.subr.bf16.mxu0 0
      %7014 = vmatpush1.bf16.msra.mxu0 0
      %7015 = vmatprep.subr.bf16.mxu0 0
      %7016 = vmatpush1.bf16.msra.mxu0 0
      %7017 = vmatprep.subr.bf16.mxu0 0
      %7018 = vmatpush1.bf16.msra.mxu0 0
      %7019 = vmatprep.subr.bf16.mxu0 0
      %7020 = vmatpush1.bf16.msra.mxu0 0
      %7021 = vmatprep.subr.bf16.mxu0 0
      %7022 = vmatpush1.bf16.msra.mxu0 0
      %7023 = vmatprep.subr.bf16.mxu0 0
      %7024 = vmatpush1.bf16.msra.mxu0 0
      %7025 = vmatprep.subr.bf16.mxu0 0
      %7026 = vmatpush1.bf16.msra.mxu0 0
      %7027 = vmatprep.subr.bf16.mxu0 0
      %7028 = vmatpush1.bf16.msra.mxu0 0
      %7029 = vmatprep.subr.bf16.mxu0 0
      %7030 = vmatpush1.bf16.msra.mxu0 0
      %7031 = vmatprep.mubr.bf16.mxu0 0
      %7032 = vmatmul.mubr.bf16.gmra.mrb[0].mxu0 %v6436
      %v7033 = vpop.f32.mrb[0].mxu0
      %v7034 = vadd.f32 %v4537, %v7033
      %v7035 = vpop.f32.mrb[0].mxu0
      %v7036 = vadd.f32 %v4537, %v7035
      %v7037 = vpop.f32.mrb[0].mxu0
      %v7038 = vadd.f32 %v4542, %v7037
      %v7039 = vpop.f32.mrb[0].mxu0
      %v7040 = vadd.f32 %v4542, %v7039
      %7041 = vdwg.mxu0
      %7042 = vmatprep.subr.bf16.mxu0 %v5701
      %7043 = vmatpush1.bf16.msra.mxu0 %v5700
      %7044 = vmatprep.subr.bf16.mxu0 %v5759
      %7045 = vmatpush1.bf16.msra.mxu0 %v5758
      %7046 = vmatprep.subr.bf16.mxu0 %v5817
      %7047 = vmatpush1.bf16.msra.mxu0 %v5816
      %7048 = vmatprep.subr.bf16.mxu0 %v5875
      %7049 = vmatpush1.bf16.msra.mxu0 %v5874
      %7050 = vmatprep.subr.bf16.mxu0 %v5933
      %7051 = vmatpush1.bf16.msra.mxu0 %v5932
      %7052 = vmatprep.subr.bf16.mxu0 %v5991
      %7053 = vmatpush1.bf16.msra.mxu0 %v5990
      %7054 = vmatprep.subr.bf16.mxu0 %v6502
      %7055 = vmatpush1.bf16.msra.mxu0 %v6499
      %7056 = vmatprep.subr.bf16.mxu0 0
      %7057 = vmatpush1.bf16.msra.mxu0 0
      %7058 = vmatprep.subr.bf16.mxu0 0
      %7059 = vmatpush1.bf16.msra.mxu0 0
      %7060 = vmatprep.subr.bf16.mxu0 0
      %7061 = vmatpush1.bf16.msra.mxu0 0
      %7062 = vmatprep.subr.bf16.mxu0 0
      %7063 = vmatpush1.bf16.msra.mxu0 0
      %7064 = vmatprep.subr.bf16.mxu0 0
      %7065 = vmatpush1.bf16.msra.mxu0 0
      %7066 = vmatprep.subr.bf16.mxu0 0
      %7067 = vmatpush1.bf16.msra.mxu0 0
      %7068 = vmatprep.subr.bf16.mxu0 0
      %7069 = vmatpush1.bf16.msra.mxu0 0
      %7070 = vmatprep.subr.bf16.mxu0 0
      %7071 = vmatpush1.bf16.msra.mxu0 0
      %7072 = vmatprep.subr.bf16.mxu0 0
      %7073 = vmatpush1.bf16.msra.mxu0 0
      %7074 = vmatprep.mubr.bf16.mxu0 0
      %7075 = vmatmul.mubr.bf16.gmra.mrb[0].mxu0 %v6436
      %v7076 = vpop.f32.mrb[0].mxu0
      %v7077 = vadd.f32 %v4537, %v7076
      %v7078 = vpop.f32.mrb[0].mxu0
      %v7079 = vadd.f32 %v4537, %v7078
      %v7080 = vpop.f32.mrb[0].mxu0
      %v7081 = vadd.f32 %v4542, %v7080
      %v7082 = vpop.f32.mrb[0].mxu0
      %v7083 = vadd.f32 %v4542, %v7082
      %7084 = vdwg.mxu0
      %7085 = vmatprep.subr.bf16.mxu0 %v5703
      %7086 = vmatpush1.bf16.msra.mxu0 %v5702
      %7087 = vmatprep.subr.bf16.mxu0 %v5761
      %7088 = vmatpush1.bf16.msra.mxu0 %v5760
      %7089 = vmatprep.subr.bf16.mxu0 %v5819
      %7090 = vmatpush1.bf16.msra.mxu0 %v5818
      %7091 = vmatprep.subr.bf16.mxu0 %v5877
      %7092 = vmatpush1.bf16.msra.mxu0 %v5876
      %7093 = vmatprep.subr.bf16.mxu0 %v5935
      %7094 = vmatpush1.bf16.msra.mxu0 %v5934
      %7095 = vmatprep.subr.bf16.mxu0 %v5993
      %7096 = vmatpush1.bf16.msra.mxu0 %v5992
      %7097 = vmatprep.subr.bf16.mxu0 %v6508
      %7098 = vmatpush1.bf16.msra.mxu0 %v6505
      %7099 = vmatprep.subr.bf16.mxu0 0
      %7100 = vmatpush1.bf16.msra.mxu0 0
      %7101 = vmatprep.subr.bf16.mxu0 0
      %7102 = vmatpush1.bf16.msra.mxu0 0
      %7103 = vmatprep.subr.bf16.mxu0 0
      %7104 = vmatpush1.bf16.msra.mxu0 0
      %7105 = vmatprep.subr.bf16.mxu0 0
      %7106 = vmatpush1.bf16.msra.mxu0 0
      %7107 = vmatprep.subr.bf16.mxu0 0
      %7108 = vmatpush1.bf16.msra.mxu0 0
      %7109 = vmatprep.subr.bf16.mxu0 0
      %7110 = vmatpush1.bf16.msra.mxu0 0
      %7111 = vmatprep.subr.bf16.mxu0 0
      %7112 = vmatpush1.bf16.msra.mxu0 0
      %7113 = vmatprep.subr.bf16.mxu0 0
      %7114 = vmatpush1.bf16.msra.mxu0 0
      %7115 = vmatprep.subr.bf16.mxu0 0
      %7116 = vmatpush1.bf16.msra.mxu0 0
      %7117 = vmatprep.mubr.bf16.mxu0 0
      %7118 = vmatmul.mubr.bf16.gmra.mrb[0].mxu0 %v6436
      %v7119 = vpop.f32.mrb[0].mxu0
      %v7120 = vadd.f32 %v4537, %v7119
      %v7121 = vpop.f32.mrb[0].mxu0
      %v7122 = vadd.f32 %v4537, %v7121
      %v7123 = vpop.f32.mrb[0].mxu0
      %v7124 = vadd.f32 %v4542, %v7123
      %v7125 = vpop.f32.mrb[0].mxu0
      %v7126 = vadd.f32 %v4542, %v7125
      %7127 = vdwg.mxu0
      %7128 = vmatprep.subr.bf16.mxu0 %v5705
      %7129 = vmatpush1.bf16.msra.mxu0 %v5704
      %7130 = vmatprep.subr.bf16.mxu0 %v5763
      %7131 = vmatpush1.bf16.msra.mxu0 %v5762
      %7132 = vmatprep.subr.bf16.mxu0 %v5821
      %7133 = vmatpush1.bf16.msra.mxu0 %v5820
      %7134 = vmatprep.subr.bf16.mxu0 %v5879
      %7135 = vmatpush1.bf16.msra.mxu0 %v5878
      %7136 = vmatprep.subr.bf16.mxu0 %v5937
      %7137 = vmatpush1.bf16.msra.mxu0 %v5936
      %7138 = vmatprep.subr.bf16.mxu0 %v5995
      %7139 = vmatpush1.bf16.msra.mxu0 %v5994
      %7140 = vmatprep.subr.bf16.mxu0 %v6514
      %7141 = vmatpush1.bf16.msra.mxu0 %v6511
      %7142 = vmatprep.subr.bf16.mxu0 0
      %7143 = vmatpush1.bf16.msra.mxu0 0
      %7144 = vmatprep.subr.bf16.mxu0 0
      %7145 = vmatpush1.bf16.msra.mxu0 0
      %7146 = vmatprep.subr.bf16.mxu0 0
      %7147 = vmatpush1.bf16.msra.mxu0 0
      %7148 = vmatprep.subr.bf16.mxu0 0
      %7149 = vmatpush1.bf16.msra.mxu0 0
      %7150 = vmatprep.subr.bf16.mxu0 0
      %7151 = vmatpush1.bf16.msra.mxu0 0
      %7152 = vmatprep.subr.bf16.mxu0 0
      %7153 = vmatpush1.bf16.msra.mxu0 0
      %7154 = vmatprep.subr.bf16.mxu0 0
      %7155 = vmatpush1.bf16.msra.mxu0 0
      %7156 = vmatprep.subr.bf16.mxu0 0
      %7157 = vmatpush1.bf16.msra.mxu0 0
      %7158 = vmatprep.subr.bf16.mxu0 0
      %7159 = vmatpush1.bf16.msra.mxu0 0
      %7160 = vmatprep.mubr.bf16.mxu0 0
      %7161 = vmatmul.mubr.bf16.gmra.mrb[0].mxu0 %v6436
      %v7162 = vpop.f32.mrb[0].mxu0
      %v7163 = vadd.f32 %v4537, %v7162
      %v7164 = vpop.f32.mrb[0].mxu0
      %v7165 = vadd.f32 %v4537, %v7164
      %v7166 = vpop.f32.mrb[0].mxu0
      %v7167 = vadd.f32 %v4542, %v7166
      %v7168 = vpop.f32.mrb[0].mxu0
      %v7169 = vadd.f32 %v4542, %v7168
      %7170 = vdwg.mxu0
      %7171 = vmatprep.subr.bf16.mxu0 %v5707
      %7172 = vmatpush1.bf16.msra.mxu0 %v5706
      %7173 = vmatprep.subr.bf16.mxu0 %v5765
      %7174 = vmatpush1.bf16.msra.mxu0 %v5764
      %7175 = vmatprep.subr.bf16.mxu0 %v5823
      %7176 = vmatpush1.bf16.msra.mxu0 %v5822
      %7177 = vmatprep.subr.bf16.mxu0 %v5881
      %7178 = vmatpush1.bf16.msra.mxu0 %v5880
      %7179 = vmatprep.subr.bf16.mxu0 %v5939
      %7180 = vmatpush1.bf16.msra.mxu0 %v5938
      %7181 = vmatprep.subr.bf16.mxu0 %v5997
      %7182 = vmatpush1.bf16.msra.mxu0 %v5996
      %7183 = vmatprep.subr.bf16.mxu0 %v6520
      %7184 = vmatpush1.bf16.msra.mxu0 %v6517
      %7185 = vmatprep.subr.bf16.mxu0 0
      %7186 = vmatpush1.bf16.msra.mxu0 0
      %7187 = vmatprep.subr.bf16.mxu0 0
      %7188 = vmatpush1.bf16.msra.mxu0 0
      %7189 = vmatprep.subr.bf16.mxu0 0
      %7190 = vmatpush1.bf16.msra.mxu0 0
      %7191 = vmatprep.subr.bf16.mxu0 0
      %7192 = vmatpush1.bf16.msra.mxu0 0
      %7193 = vmatprep.subr.bf16.mxu0 0
      %7194 = vmatpush1.bf16.msra.mxu0 0
      %7195 = vmatprep.subr.bf16.mxu0 0
      %7196 = vmatpush1.bf16.msra.mxu0 0
      %7197 = vmatprep.subr.bf16.mxu0 0
      %7198 = vmatpush1.bf16.msra.mxu0 0
      %7199 = vmatprep.subr.bf16.mxu0 0
      %7200 = vmatpush1.bf16.msra.mxu0 0
      %7201 = vmatprep.subr.bf16.mxu0 0
      %7202 = vmatpush1.bf16.msra.mxu0 0
      %7203 = vmatprep.mubr.bf16.mxu0 0
      %7204 = vmatmul.mubr.bf16.gmra.mrb[0].mxu0 %v6436
      %v7205 = vpop.f32.mrb[0].mxu0
      %v7206 = vadd.f32 %v4537, %v7205
      %v7207 = vpop.f32.mrb[0].mxu0
      %v7208 = vadd.f32 %v4537, %v7207
      %v7209 = vpop.f32.mrb[0].mxu0
      %v7210 = vadd.f32 %v4542, %v7209
      %v7211 = vpop.f32.mrb[0].mxu0
      %v7212 = vadd.f32 %v4542, %v7211
      %7213 = vdwg.mxu0
      %7214 = vmatprep.subr.bf16.mxu0 %v5709
      %7215 = vmatpush1.bf16.msra.mxu0 %v5708
      %7216 = vmatprep.subr.bf16.mxu0 %v5767
      %7217 = vmatpush1.bf16.msra.mxu0 %v5766
      %7218 = vmatprep.subr.bf16.mxu0 %v5825
      %7219 = vmatpush1.bf16.msra.mxu0 %v5824
      %7220 = vmatprep.subr.bf16.mxu0 %v5883
      %7221 = vmatpush1.bf16.msra.mxu0 %v5882
      %7222 = vmatprep.subr.bf16.mxu0 %v5941
      %7223 = vmatpush1.bf16.msra.mxu0 %v5940
      %7224 = vmatprep.subr.bf16.mxu0 %v5999
      %7225 = vmatpush1.bf16.msra.mxu0 %v5998
      %7226 = vmatprep.subr.bf16.mxu0 %v6526
      %7227 = vmatpush1.bf16.msra.mxu0 %v6523
      %7228 = vmatprep.subr.bf16.mxu0 0
      %7229 = vmatpush1.bf16.msra.mxu0 0
      %7230 = vmatprep.subr.bf16.mxu0 0
      %7231 = vmatpush1.bf16.msra.mxu0 0
      %7232 = vmatprep.subr.bf16.mxu0 0
      %7233 = vmatpush1.bf16.msra.mxu0 0
      %7234 = vmatprep.subr.bf16.mxu0 0
      %7235 = vmatpush1.bf16.msra.mxu0 0
      %7236 = vmatprep.subr.bf16.mxu0 0
      %7237 = vmatpush1.bf16.msra.mxu0 0
      %7238 = vmatprep.subr.bf16.mxu0 0
      %7239 = vmatpush1.bf16.msra.mxu0 0
      %7240 = vmatprep.subr.bf16.mxu0 0
      %7241 = vmatpush1.bf16.msra.mxu0 0
      %7242 = vmatprep.subr.bf16.mxu0 0
      %7243 = vmatpush1.bf16.msra.mxu0 0
      %7244 = vmatprep.subr.bf16.mxu0 0
      %7245 = vmatpush1.bf16.msra.mxu0 0
      %7246 = vmatprep.mubr.bf16.mxu0 0
      %7247 = vmatmul.mubr.bf16.gmra.mrb[0].mxu0 %v6436
      %v7248 = vpop.f32.mrb[0].mxu0
      %v7249 = vadd.f32 %v4537, %v7248
      %v7250 = vpop.f32.mrb[0].mxu0
      %v7251 = vadd.f32 %v4537, %v7250
      %v7252 = vpop.f32.mrb[0].mxu0
      %v7253 = vadd.f32 %v4542, %v7252
      %v7254 = vpop.f32.mrb[0].mxu0
      %v7255 = vadd.f32 %v4542, %v7254
      %7256 = vdwg.mxu0
      %7257 = vmatprep.subr.bf16.mxu0 %v5711
      %7258 = vmatpush1.bf16.msra.mxu0 %v5710
      %7259 = vmatprep.subr.bf16.mxu0 %v5769
      %7260 = vmatpush1.bf16.msra.mxu0 %v5768
      %7261 = vmatprep.subr.bf16.mxu0 %v5827
      %7262 = vmatpush1.bf16.msra.mxu0 %v5826
      %7263 = vmatprep.subr.bf16.mxu0 %v5885
      %7264 = vmatpush1.bf16.msra.mxu0 %v5884
      %7265 = vmatprep.subr.bf16.mxu0 %v5943
      %7266 = vmatpush1.bf16.msra.mxu0 %v5942
      %7267 = vmatprep.subr.bf16.mxu0 %v6001
      %7268 = vmatpush1.bf16.msra.mxu0 %v6000
      %7269 = vmatprep.subr.bf16.mxu0 %v6532
      %7270 = vmatpush1.bf16.msra.mxu0 %v6529
      %7271 = vmatprep.subr.bf16.mxu0 0
      %7272 = vmatpush1.bf16.msra.mxu0 0
      %7273 = vmatprep.subr.bf16.mxu0 0
      %7274 = vmatpush1.bf16.msra.mxu0 0
      %7275 = vmatprep.subr.bf16.mxu0 0
      %7276 = vmatpush1.bf16.msra.mxu0 0
      %7277 = vmatprep.subr.bf16.mxu0 0
      %7278 = vmatpush1.bf16.msra.mxu0 0
      %7279 = vmatprep.subr.bf16.mxu0 0
      %7280 = vmatpush1.bf16.msra.mxu0 0
      %7281 = vmatprep.subr.bf16.mxu0 0
      %7282 = vmatpush1.bf16.msra.mxu0 0
      %7283 = vmatprep.subr.bf16.mxu0 0
      %7284 = vmatpush1.bf16.msra.mxu0 0
      %7285 = vmatprep.subr.bf16.mxu0 0
      %7286 = vmatpush1.bf16.msra.mxu0 0
      %7287 = vmatprep.subr.bf16.mxu0 0
      %7288 = vmatpush1.bf16.msra.mxu0 0
      %7289 = vmatprep.mubr.bf16.mxu0 0
      %7290 = vmatmul.mubr.bf16.gmra.mrb[0].mxu0 %v6436
      %v7291 = vpop.f32.mrb[0].mxu0
      %v7292 = vadd.f32 %v4537, %v7291
      %v7293 = vpop.f32.mrb[0].mxu0
      %v7294 = vadd.f32 %v4537, %v7293
      %v7295 = vpop.f32.mrb[0].mxu0
      %v7296 = vadd.f32 %v4542, %v7295
      %v7297 = vpop.f32.mrb[0].mxu0
      %v7298 = vadd.f32 %v4542, %v7297
      %7299 = vdwg.mxu0
      %7300 = vmatprep.subr.bf16.mxu0 %v5713
      %7301 = vmatpush1.bf16.msra.mxu0 %v5712
      %7302 = vmatprep.subr.bf16.mxu0 %v5771
      %7303 = vmatpush1.bf16.msra.mxu0 %v5770
      %7304 = vmatprep.subr.bf16.mxu0 %v5829
      %7305 = vmatpush1.bf16.msra.mxu0 %v5828
      %7306 = vmatprep.subr.bf16.mxu0 %v5887
      %7307 = vmatpush1.bf16.msra.mxu0 %v5886
      %7308 = vmatprep.subr.bf16.mxu0 %v5945
      %7309 = vmatpush1.bf16.msra.mxu0 %v5944
      %7310 = vmatprep.subr.bf16.mxu0 %v6003
      %7311 = vmatpush1.bf16.msra.mxu0 %v6002
      %7312 = vmatprep.subr.bf16.mxu0 %v6538
      %7313 = vmatpush1.bf16.msra.mxu0 %v6535
      %7314 = vmatprep.subr.bf16.mxu0 0
      %7315 = vmatpush1.bf16.msra.mxu0 0
      %7316 = vmatprep.subr.bf16.mxu0 0
      %7317 = vmatpush1.bf16.msra.mxu0 0
      %7318 = vmatprep.subr.bf16.mxu0 0
      %7319 = vmatpush1.bf16.msra.mxu0 0
      %7320 = vmatprep.subr.bf16.mxu0 0
      %7321 = vmatpush1.bf16.msra.mxu0 0
      %7322 = vmatprep.subr.bf16.mxu0 0
      %7323 = vmatpush1.bf16.msra.mxu0 0
      %7324 = vmatprep.subr.bf16.mxu0 0
      %7325 = vmatpush1.bf16.msra.mxu0 0
      %7326 = vmatprep.subr.bf16.mxu0 0
      %7327 = vmatpush1.bf16.msra.mxu0 0
      %7328 = vmatprep.subr.bf16.mxu0 0
      %7329 = vmatpush1.bf16.msra.mxu0 0
      %7330 = vmatprep.subr.bf16.mxu0 0
      %7331 = vmatpush1.bf16.msra.mxu0 0
      %7332 = vmatprep.mubr.bf16.mxu0 0
      %7333 = vmatmul.mubr.bf16.gmra.mrb[0].mxu0 %v6436
      %v7334 = vpop.f32.mrb[0].mxu0
      %v7335 = vadd.f32 %v4537, %v7334
      %v7336 = vpop.f32.mrb[0].mxu0
      %v7337 = vadd.f32 %v4537, %v7336
      %v7338 = vpop.f32.mrb[0].mxu0
      %v7339 = vadd.f32 %v4542, %v7338
      %v7340 = vpop.f32.mrb[0].mxu0
      %v7341 = vadd.f32 %v4542, %v7340
      %7342 = vdwg.mxu0
      %7343 = vmatprep.subr.bf16.mxu0 %v5715
      %7344 = vmatpush1.bf16.msra.mxu0 %v5714
      %7345 = vmatprep.subr.bf16.mxu0 %v5773
      %7346 = vmatpush1.bf16.msra.mxu0 %v5772
      %7347 = vmatprep.subr.bf16.mxu0 %v5831
      %7348 = vmatpush1.bf16.msra.mxu0 %v5830
      %7349 = vmatprep.subr.bf16.mxu0 %v5889
      %7350 = vmatpush1.bf16.msra.mxu0 %v5888
      %7351 = vmatprep.subr.bf16.mxu0 %v5947
      %7352 = vmatpush1.bf16.msra.mxu0 %v5946
      %7353 = vmatprep.subr.bf16.mxu0 %v6005
      %7354 = vmatpush1.bf16.msra.mxu0 %v6004
      %7355 = vmatprep.subr.bf16.mxu0 %v6544
      %7356 = vmatpush1.bf16.msra.mxu0 %v6541
      %7357 = vmatprep.subr.bf16.mxu0 0
      %7358 = vmatpush1.bf16.msra.mxu0 0
      %7359 = vmatprep.subr.bf16.mxu0 0
      %7360 = vmatpush1.bf16.msra.mxu0 0
      %7361 = vmatprep.subr.bf16.mxu0 0
      %7362 = vmatpush1.bf16.msra.mxu0 0
      %7363 = vmatprep.subr.bf16.mxu0 0
      %7364 = vmatpush1.bf16.msra.mxu0 0
      %7365 = vmatprep.subr.bf16.mxu0 0
      %7366 = vmatpush1.bf16.msra.mxu0 0
      %7367 = vmatprep.subr.bf16.mxu0 0
      %7368 = vmatpush1.bf16.msra.mxu0 0
      %7369 = vmatprep.subr.bf16.mxu0 0
      %7370 = vmatpush1.bf16.msra.mxu0 0
      %7371 = vmatprep.subr.bf16.mxu0 0
      %7372 = vmatpush1.bf16.msra.mxu0 0
      %7373 = vmatprep.subr.bf16.mxu0 0
      %7374 = vmatpush1.bf16.msra.mxu0 0
      %7375 = vmatprep.mubr.bf16.mxu0 0
      %7376 = vmatmul.mubr.bf16.gmra.mrb[0].mxu0 %v6436
      %v7377 = vpop.f32.mrb[0].mxu0
      %v7378 = vadd.f32 %v4537, %v7377
      %v7379 = vpop.f32.mrb[0].mxu0
      %v7380 = vadd.f32 %v4537, %v7379
      %v7381 = vpop.f32.mrb[0].mxu0
      %v7382 = vadd.f32 %v4542, %v7381
      %v7383 = vpop.f32.mrb[0].mxu0
      %v7384 = vadd.f32 %v4542, %v7383
      %7385 = vdwg.mxu0
      %7386 = vmatprep.subr.bf16.mxu0 %v5717
      %7387 = vmatpush1.bf16.msra.mxu0 %v5716
      %7388 = vmatprep.subr.bf16.mxu0 %v5775
      %7389 = vmatpush1.bf16.msra.mxu0 %v5774
      %7390 = vmatprep.subr.bf16.mxu0 %v5833
      %7391 = vmatpush1.bf16.msra.mxu0 %v5832
      %7392 = vmatprep.subr.bf16.mxu0 %v5891
      %7393 = vmatpush1.bf16.msra.mxu0 %v5890
      %7394 = vmatprep.subr.bf16.mxu0 %v5949
      %7395 = vmatpush1.bf16.msra.mxu0 %v5948
      %7396 = vmatprep.subr.bf16.mxu0 %v6007
      %7397 = vmatpush1.bf16.msra.mxu0 %v6006
      %7398 = vmatprep.subr.bf16.mxu0 %v6550
      %7399 = vmatpush1.bf16.msra.mxu0 %v6547
      %7400 = vmatprep.subr.bf16.mxu0 0
      %7401 = vmatpush1.bf16.msra.mxu0 0
      %7402 = vmatprep.subr.bf16.mxu0 0
      %7403 = vmatpush1.bf16.msra.mxu0 0
      %7404 = vmatprep.subr.bf16.mxu0 0
      %7405 = vmatpush1.bf16.msra.mxu0 0
      %7406 = vmatprep.subr.bf16.mxu0 0
      %7407 = vmatpush1.bf16.msra.mxu0 0
      %7408 = vmatprep.subr.bf16.mxu0 0
      %7409 = vmatpush1.bf16.msra.mxu0 0
      %7410 = vmatprep.subr.bf16.mxu0 0
      %7411 = vmatpush1.bf16.msra.mxu0 0
      %7412 = vmatprep.subr.bf16.mxu0 0
      %7413 = vmatpush1.bf16.msra.mxu0 0
      %7414 = vmatprep.subr.bf16.mxu0 0
      %7415 = vmatpush1.bf16.msra.mxu0 0
      %7416 = vmatprep.subr.bf16.mxu0 0
      %7417 = vmatpush1.bf16.msra.mxu0 0
      %7418 = vmatprep.mubr.bf16.mxu0 0
      %7419 = vmatmul.mubr.bf16.gmra.mrb[0].mxu0 %v6436
      %v7420 = vpop.f32.mrb[0].mxu0
      %v7421 = vadd.f32 %v4537, %v7420
      %v7422 = vpop.f32.mrb[0].mxu0
      %v7423 = vadd.f32 %v4537, %v7422
      %v7424 = vpop.f32.mrb[0].mxu0
      %v7425 = vadd.f32 %v4542, %v7424
      %v7426 = vpop.f32.mrb[0].mxu0
      %v7427 = vadd.f32 %v4542, %v7426
      %7428 = vdwg.mxu0
      %7429 = vmatprep.subr.bf16.mxu0 %v5719
      %7430 = vmatpush1.bf16.msra.mxu0 %v5718
      %7431 = vmatprep.subr.bf16.mxu0 %v5777
      %7432 = vmatpush1.bf16.msra.mxu0 %v5776
      %7433 = vmatprep.subr.bf16.mxu0 %v5835
      %7434 = vmatpush1.bf16.msra.mxu0 %v5834
      %7435 = vmatprep.subr.bf16.mxu0 %v5893
      %7436 = vmatpush1.bf16.msra.mxu0 %v5892
      %7437 = vmatprep.subr.bf16.mxu0 %v5951
      %7438 = vmatpush1.bf16.msra.mxu0 %v5950
      %7439 = vmatprep.subr.bf16.mxu0 %v6009
      %7440 = vmatpush1.bf16.msra.mxu0 %v6008
      %7441 = vmatprep.subr.bf16.mxu0 %v6556
      %7442 = vmatpush1.bf16.msra.mxu0 %v6553
      %7443 = vmatprep.subr.bf16.mxu0 0
      %7444 = vmatpush1.bf16.msra.mxu0 0
      %7445 = vmatprep.subr.bf16.mxu0 0
      %7446 = vmatpush1.bf16.msra.mxu0 0
      %7447 = vmatprep.subr.bf16.mxu0 0
      %7448 = vmatpush1.bf16.msra.mxu0 0
      %7449 = vmatprep.subr.bf16.mxu0 0
      %7450 = vmatpush1.bf16.msra.mxu0 0
      %7451 = vmatprep.subr.bf16.mxu0 0
      %7452 = vmatpush1.bf16.msra.mxu0 0
      %7453 = vmatprep.subr.bf16.mxu0 0
      %7454 = vmatpush1.bf16.msra.mxu0 0
      %7455 = vmatprep.subr.bf16.mxu0 0
      %7456 = vmatpush1.bf16.msra.mxu0 0
      %7457 = vmatprep.subr.bf16.mxu0 0
      %7458 = vmatpush1.bf16.msra.mxu0 0
      %7459 = vmatprep.subr.bf16.mxu0 0
      %7460 = vmatpush1.bf16.msra.mxu0 0
      %7461 = vmatprep.mubr.bf16.mxu0 0
      %7462 = vmatmul.mubr.bf16.gmra.mrb[0].mxu0 %v6436
      %v7463 = vpop.f32.mrb[0].mxu0
      %v7464 = vadd.f32 %v4537, %v7463
      %v7465 = vpop.f32.mrb[0].mxu0
      %v7466 = vadd.f32 %v4537, %v7465
      %v7467 = vpop.f32.mrb[0].mxu0
      %v7468 = vadd.f32 %v4542, %v7467
      %v7469 = vpop.f32.mrb[0].mxu0
      %v7470 = vadd.f32 %v4542, %v7469
      %7471 = vdwg.mxu0
      %7472 = vmatprep.subr.bf16.mxu0 %v5721
      %7473 = vmatpush1.bf16.msra.mxu0 %v5720
      %7474 = vmatprep.subr.bf16.mxu0 %v5779
      %7475 = vmatpush1.bf16.msra.mxu0 %v5778
      %7476 = vmatprep.subr.bf16.mxu0 %v5837
      %7477 = vmatpush1.bf16.msra.mxu0 %v5836
      %7478 = vmatprep.subr.bf16.mxu0 %v5895
      %7479 = vmatpush1.bf16.msra.mxu0 %v5894
      %7480 = vmatprep.subr.bf16.mxu0 %v5953
      %7481 = vmatpush1.bf16.msra.mxu0 %v5952
      %7482 = vmatprep.subr.bf16.mxu0 %v6011
      %7483 = vmatpush1.bf16.msra.mxu0 %v6010
      %7484 = vmatprep.subr.bf16.mxu0 %v6562
      %7485 = vmatpush1.bf16.msra.mxu0 %v6559
      %7486 = vmatprep.subr.bf16.mxu0 0
      %7487 = vmatpush1.bf16.msra.mxu0 0
      %7488 = vmatprep.subr.bf16.mxu0 0
      %7489 = vmatpush1.bf16.msra.mxu0 0
      %7490 = vmatprep.subr.bf16.mxu0 0
      %7491 = vmatpush1.bf16.msra.mxu0 0
      %7492 = vmatprep.subr.bf16.mxu0 0
      %7493 = vmatpush1.bf16.msra.mxu0 0
      %7494 = vmatprep.subr.bf16.mxu0 0
      %7495 = vmatpush1.bf16.msra.mxu0 0
      %7496 = vmatprep.subr.bf16.mxu0 0
      %7497 = vmatpush1.bf16.msra.mxu0 0
      %7498 = vmatprep.subr.bf16.mxu0 0
      %7499 = vmatpush1.bf16.msra.mxu0 0
      %7500 = vmatprep.subr.bf16.mxu0 0
      %7501 = vmatpush1.bf16.msra.mxu0 0
      %7502 = vmatprep.subr.bf16.mxu0 0
      %7503 = vmatpush1.bf16.msra.mxu0 0
      %7504 = vmatprep.mubr.bf16.mxu0 0
      %7505 = vmatmul.mubr.bf16.gmra.mrb[0].mxu0 %v6436
      %v7506 = vpop.f32.mrb[0].mxu0
      %v7507 = vadd.f32 %v4537, %v7506
      %v7508 = vpop.f32.mrb[0].mxu0
      %v7509 = vadd.f32 %v4537, %v7508
      %v7510 = vpop.f32.mrb[0].mxu0
      %v7511 = vadd.f32 %v4542, %v7510
      %v7512 = vpop.f32.mrb[0].mxu0
      %v7513 = vadd.f32 %v4542, %v7512
      %7514 = vdwg.mxu0
      %7515 = vmatprep.subr.bf16.mxu0 %v5723
      %7516 = vmatpush1.bf16.msra.mxu0 %v5722
      %7517 = vmatprep.subr.bf16.mxu0 %v5781
      %7518 = vmatpush1.bf16.msra.mxu0 %v5780
      %7519 = vmatprep.subr.bf16.mxu0 %v5839
      %7520 = vmatpush1.bf16.msra.mxu0 %v5838
      %7521 = vmatprep.subr.bf16.mxu0 %v5897
      %7522 = vmatpush1.bf16.msra.mxu0 %v5896
      %7523 = vmatprep.subr.bf16.mxu0 %v5955
      %7524 = vmatpush1.bf16.msra.mxu0 %v5954
      %7525 = vmatprep.subr.bf16.mxu0 %v6013
      %7526 = vmatpush1.bf16.msra.mxu0 %v6012
      %7527 = vmatprep.subr.bf16.mxu0 %v6568
      %7528 = vmatpush1.bf16.msra.mxu0 %v6565
      %7529 = vmatprep.subr.bf16.mxu0 0
      %7530 = vmatpush1.bf16.msra.mxu0 0
      %7531 = vmatprep.subr.bf16.mxu0 0
      %7532 = vmatpush1.bf16.msra.mxu0 0
      %7533 = vmatprep.subr.bf16.mxu0 0
      %7534 = vmatpush1.bf16.msra.mxu0 0
      %7535 = vmatprep.subr.bf16.mxu0 0
      %7536 = vmatpush1.bf16.msra.mxu0 0
      %7537 = vmatprep.subr.bf16.mxu0 0
      %7538 = vmatpush1.bf16.msra.mxu0 0
      %7539 = vmatprep.subr.bf16.mxu0 0
      %7540 = vmatpush1.bf16.msra.mxu0 0
      %7541 = vmatprep.subr.bf16.mxu0 0
      %7542 = vmatpush1.bf16.msra.mxu0 0
      %7543 = vmatprep.subr.bf16.mxu0 0
      %7544 = vmatpush1.bf16.msra.mxu0 0
      %7545 = vmatprep.subr.bf16.mxu0 0
      %7546 = vmatpush1.bf16.msra.mxu0 0
      %7547 = vmatprep.mubr.bf16.mxu0 0
      %7548 = vmatmul.mubr.bf16.gmra.mrb[0].mxu0 %v6436
      %v7549 = vpop.f32.mrb[0].mxu0
      %v7550 = vadd.f32 %v4537, %v7549
      %v7551 = vpop.f32.mrb[0].mxu0
      %v7552 = vadd.f32 %v4537, %v7551
      %v7553 = vpop.f32.mrb[0].mxu0
      %v7554 = vadd.f32 %v4542, %v7553
      %v7555 = vpop.f32.mrb[0].mxu0
      %v7556 = vadd.f32 %v4542, %v7555
      %7557 = vdwg.mxu0
      %7558 = vmatprep.subr.bf16.mxu0 %v5725
      %7559 = vmatpush1.bf16.msra.mxu0 %v5724
      %7560 = vmatprep.subr.bf16.mxu0 %v5783
      %7561 = vmatpush1.bf16.msra.mxu0 %v5782
      %7562 = vmatprep.subr.bf16.mxu0 %v5841
      %7563 = vmatpush1.bf16.msra.mxu0 %v5840
      %7564 = vmatprep.subr.bf16.mxu0 %v5899
      %7565 = vmatpush1.bf16.msra.mxu0 %v5898
      %7566 = vmatprep.subr.bf16.mxu0 %v5957
      %7567 = vmatpush1.bf16.msra.mxu0 %v5956
      %7568 = vmatprep.subr.bf16.mxu0 %v6015
      %7569 = vmatpush1.bf16.msra.mxu0 %v6014
      %7570 = vmatprep.subr.bf16.mxu0 %v6574
      %7571 = vmatpush1.bf16.msra.mxu0 %v6571
      %7572 = vmatprep.subr.bf16.mxu0 0
      %7573 = vmatpush1.bf16.msra.mxu0 0
      %7574 = vmatprep.subr.bf16.mxu0 0
      %7575 = vmatpush1.bf16.msra.mxu0 0
      %7576 = vmatprep.subr.bf16.mxu0 0
      %7577 = vmatpush1.bf16.msra.mxu0 0
      %7578 = vmatprep.subr.bf16.mxu0 0
      %7579 = vmatpush1.bf16.msra.mxu0 0
      %7580 = vmatprep.subr.bf16.mxu0 0
      %7581 = vmatpush1.bf16.msra.mxu0 0
      %7582 = vmatprep.subr.bf16.mxu0 0
      %7583 = vmatpush1.bf16.msra.mxu0 0
      %7584 = vmatprep.subr.bf16.mxu0 0
      %7585 = vmatpush1.bf16.msra.mxu0 0
      %7586 = vmatprep.subr.bf16.mxu0 0
      %7587 = vmatpush1.bf16.msra.mxu0 0
      %7588 = vmatprep.subr.bf16.mxu0 0
      %7589 = vmatpush1.bf16.msra.mxu0 0
      %7590 = vmatprep.mubr.bf16.mxu0 0
      %7591 = vmatmul.mubr.bf16.gmra.mrb[0].mxu0 %v6436
      %v7592 = vpop.f32.mrb[0].mxu0
      %v7593 = vadd.f32 %v4537, %v7592
      %v7594 = vpop.f32.mrb[0].mxu0
      %v7595 = vadd.f32 %v4537, %v7594
      %v7596 = vpop.f32.mrb[0].mxu0
      %v7597 = vadd.f32 %v4542, %v7596
      %v7598 = vpop.f32.mrb[0].mxu0
      %v7599 = vadd.f32 %v4542, %v7598
      %7600 = vdwg.mxu0
      %7601 = vmatprep.subr.bf16.mxu0 %v5727
      %7602 = vmatpush1.bf16.msra.mxu0 %v5726
      %7603 = vmatprep.subr.bf16.mxu0 %v5785
      %7604 = vmatpush1.bf16.msra.mxu0 %v5784
      %7605 = vmatprep.subr.bf16.mxu0 %v5843
      %7606 = vmatpush1.bf16.msra.mxu0 %v5842
      %7607 = vmatprep.subr.bf16.mxu0 %v5901
      %7608 = vmatpush1.bf16.msra.mxu0 %v5900
      %7609 = vmatprep.subr.bf16.mxu0 %v5959
      %7610 = vmatpush1.bf16.msra.mxu0 %v5958
      %7611 = vmatprep.subr.bf16.mxu0 %v6017
      %7612 = vmatpush1.bf16.msra.mxu0 %v6016
      %7613 = vmatprep.subr.bf16.mxu0 %v6580
      %7614 = vmatpush1.bf16.msra.mxu0 %v6577
      %7615 = vmatprep.subr.bf16.mxu0 0
      %7616 = vmatpush1.bf16.msra.mxu0 0
      %7617 = vmatprep.subr.bf16.mxu0 0
      %7618 = vmatpush1.bf16.msra.mxu0 0
      %7619 = vmatprep.subr.bf16.mxu0 0
      %7620 = vmatpush1.bf16.msra.mxu0 0
      %7621 = vmatprep.subr.bf16.mxu0 0
      %7622 = vmatpush1.bf16.msra.mxu0 0
      %7623 = vmatprep.subr.bf16.mxu0 0
      %7624 = vmatpush1.bf16.msra.mxu0 0
      %7625 = vmatprep.subr.bf16.mxu0 0
      %7626 = vmatpush1.bf16.msra.mxu0 0
      %7627 = vmatprep.subr.bf16.mxu0 0
      %7628 = vmatpush1.bf16.msra.mxu0 0
      %7629 = vmatprep.subr.bf16.mxu0 0
      %7630 = vmatpush1.bf16.msra.mxu0 0
      %7631 = vmatprep.subr.bf16.mxu0 0
      %7632 = vmatpush1.bf16.msra.mxu0 0
      %7633 = vmatprep.mubr.bf16.mxu0 0
      %7634 = vmatmul.mubr.bf16.gmra.mrb[0].mxu0 %v6436
      %v7635 = vpop.f32.mrb[0].mxu0
      %v7636 = vadd.f32 %v4537, %v7635
      %v7637 = vpop.f32.mrb[0].mxu0
      %v7638 = vadd.f32 %v4537, %v7637
      %v7639 = vpop.f32.mrb[0].mxu0
      %v7640 = vadd.f32 %v4542, %v7639
      %v7641 = vpop.f32.mrb[0].mxu0
      %v7642 = vadd.f32 %v4542, %v7641
      %7643 = vdwg.mxu0
      %7644 = vmatprep.subr.bf16.mxu0 %v5729
      %7645 = vmatpush1.bf16.msra.mxu0 %v5728
      %7646 = vmatprep.subr.bf16.mxu0 %v5787
      %7647 = vmatpush1.bf16.msra.mxu0 %v5786
      %7648 = vmatprep.subr.bf16.mxu0 %v5845
      %7649 = vmatpush1.bf16.msra.mxu0 %v5844
      %7650 = vmatprep.subr.bf16.mxu0 %v5903
      %7651 = vmatpush1.bf16.msra.mxu0 %v5902
      %7652 = vmatprep.subr.bf16.mxu0 %v5961
      %7653 = vmatpush1.bf16.msra.mxu0 %v5960
      %7654 = vmatprep.subr.bf16.mxu0 %v6019
      %7655 = vmatpush1.bf16.msra.mxu0 %v6018
      %7656 = vmatprep.subr.bf16.mxu0 %v6586
      %7657 = vmatpush1.bf16.msra.mxu0 %v6583
      %7658 = vmatprep.subr.bf16.mxu0 0
      %7659 = vmatpush1.bf16.msra.mxu0 0
      %7660 = vmatprep.subr.bf16.mxu0 0
      %7661 = vmatpush1.bf16.msra.mxu0 0
      %7662 = vmatprep.subr.bf16.mxu0 0
      %7663 = vmatpush1.bf16.msra.mxu0 0
      %7664 = vmatprep.subr.bf16.mxu0 0
      %7665 = vmatpush1.bf16.msra.mxu0 0
      %7666 = vmatprep.subr.bf16.mxu0 0
      %7667 = vmatpush1.bf16.msra.mxu0 0
      %7668 = vmatprep.subr.bf16.mxu0 0
      %7669 = vmatpush1.bf16.msra.mxu0 0
      %7670 = vmatprep.subr.bf16.mxu0 0
      %7671 = vmatpush1.bf16.msra.mxu0 0
      %7672 = vmatprep.subr.bf16.mxu0 0
      %7673 = vmatpush1.bf16.msra.mxu0 0
      %7674 = vmatprep.subr.bf16.mxu0 0
      %7675 = vmatpush1.bf16.msra.mxu0 0
      %7676 = vmatprep.mubr.bf16.mxu0 0
      %7677 = vmatmul.mubr.bf16.gmra.mrb[0].mxu0 %v6436
      %v7678 = vpop.f32.mrb[0].mxu0
      %v7679 = vadd.f32 %v4537, %v7678
      %v7680 = vpop.f32.mrb[0].mxu0
      %v7681 = vadd.f32 %v4537, %v7680
      %v7682 = vpop.f32.mrb[0].mxu0
      %v7683 = vadd.f32 %v4542, %v7682
      %v7684 = vpop.f32.mrb[0].mxu0
      %v7685 = vadd.f32 %v4542, %v7684
      %7686 = vdwg.mxu0
      %7687 = vmatprep.subr.bf16.mxu0 %v5731
      %7688 = vmatpush1.bf16.msra.mxu0 %v5730
      %7689 = vmatprep.subr.bf16.mxu0 %v5789
      %7690 = vmatpush1.bf16.msra.mxu0 %v5788
      %7691 = vmatprep.subr.bf16.mxu0 %v5847
      %7692 = vmatpush1.bf16.msra.mxu0 %v5846
      %7693 = vmatprep.subr.bf16.mxu0 %v5905
      %7694 = vmatpush1.bf16.msra.mxu0 %v5904
      %7695 = vmatprep.subr.bf16.mxu0 %v5963
      %7696 = vmatpush1.bf16.msra.mxu0 %v5962
      %7697 = vmatprep.subr.bf16.mxu0 %v6021
      %7698 = vmatpush1.bf16.msra.mxu0 %v6020
      %7699 = vmatprep.subr.bf16.mxu0 %v6592
      %7700 = vmatpush1.bf16.msra.mxu0 %v6589
      %7701 = vmatprep.subr.bf16.mxu0 0
      %7702 = vmatpush1.bf16.msra.mxu0 0
      %7703 = vmatprep.subr.bf16.mxu0 0
      %7704 = vmatpush1.bf16.msra.mxu0 0
      %7705 = vmatprep.subr.bf16.mxu0 0
      %7706 = vmatpush1.bf16.msra.mxu0 0
      %7707 = vmatprep.subr.bf16.mxu0 0
      %7708 = vmatpush1.bf16.msra.mxu0 0
      %7709 = vmatprep.subr.bf16.mxu0 0
      %7710 = vmatpush1.bf16.msra.mxu0 0
      %7711 = vmatprep.subr.bf16.mxu0 0
      %7712 = vmatpush1.bf16.msra.mxu0 0
      %7713 = vmatprep.subr.bf16.mxu0 0
      %7714 = vmatpush1.bf16.msra.mxu0 0
      %7715 = vmatprep.subr.bf16.mxu0 0
      %7716 = vmatpush1.bf16.msra.mxu0 0
      %7717 = vmatprep.subr.bf16.mxu0 0
      %7718 = vmatpush1.bf16.msra.mxu0 0
      %7719 = vmatprep.mubr.bf16.mxu0 0
      %7720 = vmatmul.mubr.bf16.gmra.mrb[0].mxu0 %v6436
      %v7721 = vpop.f32.mrb[0].mxu0
      %v7722 = vadd.f32 %v4537, %v7721
      %v7723 = vpop.f32.mrb[0].mxu0
      %v7724 = vadd.f32 %v4537, %v7723
      %v7725 = vpop.f32.mrb[0].mxu0
      %v7726 = vadd.f32 %v4542, %v7725
      %v7727 = vpop.f32.mrb[0].mxu0
      %v7728 = vadd.f32 %v4542, %v7727
      %7729 = vdwg.mxu0
      %7730 = vmatprep.subr.bf16.mxu0 %v5733
      %7731 = vmatpush1.bf16.msra.mxu0 %v5732
      %7732 = vmatprep.subr.bf16.mxu0 %v5791
      %7733 = vmatpush1.bf16.msra.mxu0 %v5790
      %7734 = vmatprep.subr.bf16.mxu0 %v5849
      %7735 = vmatpush1.bf16.msra.mxu0 %v5848
      %7736 = vmatprep.subr.bf16.mxu0 %v5907
      %7737 = vmatpush1.bf16.msra.mxu0 %v5906
      %7738 = vmatprep.subr.bf16.mxu0 %v5965
      %7739 = vmatpush1.bf16.msra.mxu0 %v5964
      %7740 = vmatprep.subr.bf16.mxu0 %v6023
      %7741 = vmatpush1.bf16.msra.mxu0 %v6022
      %7742 = vmatprep.subr.bf16.mxu0 %v6598
      %7743 = vmatpush1.bf16.msra.mxu0 %v6595
      %7744 = vmatprep.subr.bf16.mxu0 0
      %7745 = vmatpush1.bf16.msra.mxu0 0
      %7746 = vmatprep.subr.bf16.mxu0 0
      %7747 = vmatpush1.bf16.msra.mxu0 0
      %7748 = vmatprep.subr.bf16.mxu0 0
      %7749 = vmatpush1.bf16.msra.mxu0 0
      %7750 = vmatprep.subr.bf16.mxu0 0
      %7751 = vmatpush1.bf16.msra.mxu0 0
      %7752 = vmatprep.subr.bf16.mxu0 0
      %7753 = vmatpush1.bf16.msra.mxu0 0
      %7754 = vmatprep.subr.bf16.mxu0 0
      %7755 = vmatpush1.bf16.msra.mxu0 0
      %7756 = vmatprep.subr.bf16.mxu0 0
      %7757 = vmatpush1.bf16.msra.mxu0 0
      %7758 = vmatprep.subr.bf16.mxu0 0
      %7759 = vmatpush1.bf16.msra.mxu0 0
      %7760 = vmatprep.subr.bf16.mxu0 0
      %7761 = vmatpush1.bf16.msra.mxu0 0
      %7762 = vmatprep.mubr.bf16.mxu0 0
      %7763 = vmatmul.mubr.bf16.gmra.mrb[0].mxu0 %v6436
      %v7764 = vpop.f32.mrb[0].mxu0
      %v7765 = vadd.f32 %v4537, %v7764
      %v7766 = vpop.f32.mrb[0].mxu0
      %v7767 = vadd.f32 %v4537, %v7766
      %v7768 = vpop.f32.mrb[0].mxu0
      %v7769 = vadd.f32 %v4542, %v7768
      %v7770 = vpop.f32.mrb[0].mxu0
      %v7771 = vadd.f32 %v4542, %v7770
      %7772 = vdwg.mxu0
      %7773 = vmatprep.subr.bf16.mxu0 %v5735
      %7774 = vmatpush1.bf16.msra.mxu0 %v5734
      %7775 = vmatprep.subr.bf16.mxu0 %v5793
      %7776 = vmatpush1.bf16.msra.mxu0 %v5792
      %7777 = vmatprep.subr.bf16.mxu0 %v5851
      %7778 = vmatpush1.bf16.msra.mxu0 %v5850
      %7779 = vmatprep.subr.bf16.mxu0 %v5909
      %7780 = vmatpush1.bf16.msra.mxu0 %v5908
      %7781 = vmatprep.subr.bf16.mxu0 %v5967
      %7782 = vmatpush1.bf16.msra.mxu0 %v5966
      %7783 = vmatprep.subr.bf16.mxu0 %v6025
      %7784 = vmatpush1.bf16.msra.mxu0 %v6024
      %7785 = vmatprep.subr.bf16.mxu0 %v6604
      %7786 = vmatpush1.bf16.msra.mxu0 %v6601
      %7787 = vmatprep.subr.bf16.mxu0 0
      %7788 = vmatpush1.bf16.msra.mxu0 0
      %7789 = vmatprep.subr.bf16.mxu0 0
      %7790 = vmatpush1.bf16.msra.mxu0 0
      %7791 = vmatprep.subr.bf16.mxu0 0
      %7792 = vmatpush1.bf16.msra.mxu0 0
      %7793 = vmatprep.subr.bf16.mxu0 0
      %7794 = vmatpush1.bf16.msra.mxu0 0
      %7795 = vmatprep.subr.bf16.mxu0 0
      %7796 = vmatpush1.bf16.msra.mxu0 0
      %7797 = vmatprep.subr.bf16.mxu0 0
      %7798 = vmatpush1.bf16.msra.mxu0 0
      %7799 = vmatprep.subr.bf16.mxu0 0
      %7800 = vmatpush1.bf16.msra.mxu0 0
      %7801 = vmatprep.subr.bf16.mxu0 0
      %7802 = vmatpush1.bf16.msra.mxu0 0
      %7803 = vmatprep.subr.bf16.mxu0 0
      %7804 = vmatpush1.bf16.msra.mxu0 0
      %7805 = vmatprep.mubr.bf16.mxu0 0
      %7806 = vmatmul.mubr.bf16.gmra.mrb[0].mxu0 %v6436
      %v7807 = vpop.f32.mrb[0].mxu0
      %v7808 = vadd.f32 %v4537, %v7807
      %v7809 = vpop.f32.mrb[0].mxu0
      %v7810 = vadd.f32 %v4537, %v7809
      %v7811 = vpop.f32.mrb[0].mxu0
      %v7812 = vadd.f32 %v4542, %v7811
      %v7813 = vpop.f32.mrb[0].mxu0
      %v7814 = vadd.f32 %v4542, %v7813
      %7815 = vdwg.mxu0
      %7816 = vmatprep.subr.bf16.mxu0 %v5737
      %7817 = vmatpush1.bf16.msra.mxu0 %v5736
      %7818 = vmatprep.subr.bf16.mxu0 %v5795
      %7819 = vmatpush1.bf16.msra.mxu0 %v5794
      %7820 = vmatprep.subr.bf16.mxu0 %v5853
      %7821 = vmatpush1.bf16.msra.mxu0 %v5852
      %7822 = vmatprep.subr.bf16.mxu0 %v5911
      %7823 = vmatpush1.bf16.msra.mxu0 %v5910
      %7824 = vmatprep.subr.bf16.mxu0 %v5969
      %7825 = vmatpush1.bf16.msra.mxu0 %v5968
      %7826 = vmatprep.subr.bf16.mxu0 %v6027
      %7827 = vmatpush1.bf16.msra.mxu0 %v6026
      %7828 = vmatprep.subr.bf16.mxu0 %v6610
      %7829 = vmatpush1.bf16.msra.mxu0 %v6607
      %7830 = vmatprep.subr.bf16.mxu0 0
      %7831 = vmatpush1.bf16.msra.mxu0 0
      %7832 = vmatprep.subr.bf16.mxu0 0
      %7833 = vmatpush1.bf16.msra.mxu0 0
      %7834 = vmatprep.subr.bf16.mxu0 0
      %7835 = vmatpush1.bf16.msra.mxu0 0
      %7836 = vmatprep.subr.bf16.mxu0 0
      %7837 = vmatpush1.bf16.msra.mxu0 0
      %7838 = vmatprep.subr.bf16.mxu0 0
      %7839 = vmatpush1.bf16.msra.mxu0 0
      %7840 = vmatprep.subr.bf16.mxu0 0
      %7841 = vmatpush1.bf16.msra.mxu0 0
      %7842 = vmatprep.subr.bf16.mxu0 0
      %7843 = vmatpush1.bf16.msra.mxu0 0
      %7844 = vmatprep.subr.bf16.mxu0 0
      %7845 = vmatpush1.bf16.msra.mxu0 0
      %7846 = vmatprep.subr.bf16.mxu0 0
      %7847 = vmatpush1.bf16.msra.mxu0 0
      %7848 = vmatprep.mubr.bf16.mxu0 0
      %7849 = vmatmul.mubr.bf16.gmra.mrb[0].mxu0 %v6436
      %v7850 = vpop.f32.mrb[0].mxu0
      %v7851 = vadd.f32 %v4537, %v7850
      %v7852 = vpop.f32.mrb[0].mxu0
      %v7853 = vadd.f32 %v4537, %v7852
      %v7854 = vpop.f32.mrb[0].mxu0
      %v7855 = vadd.f32 %v4542, %v7854
      %v7856 = vpop.f32.mrb[0].mxu0
      %v7857 = vadd.f32 %v4542, %v7856
      %7858 = vdwg.mxu0
      %vm7859 = vcmp.ge.f32.partialorder %v6647, 0.0
      %vm7860 = vcmp.ge.f32.partialorder %v6649, 0.0
      %vm7861 = vcmp.ge.f32.partialorder %v6690, 0.0
      %vm7862 = vcmp.ge.f32.partialorder %v6692, 0.0
      %vm7863 = vcmp.ge.f32.partialorder %v6733, 0.0
      %vm7864 = vcmp.ge.f32.partialorder %v6735, 0.0
      %vm7865 = vcmp.ge.f32.partialorder %v6776, 0.0
      %vm7866 = vcmp.ge.f32.partialorder %v6778, 0.0
      %vm7867 = vcmp.ge.f32.partialorder %v6819, 0.0
      %vm7868 = vcmp.ge.f32.partialorder %v6821, 0.0
      %vm7869 = vcmp.ge.f32.partialorder %v6862, 0.0
      %vm7870 = vcmp.ge.f32.partialorder %v6864, 0.0
      %vm7871 = vcmp.ge.f32.partialorder %v6905, 0.0
      %vm7872 = vcmp.ge.f32.partialorder %v6907, 0.0
      %vm7873 = vcmp.ge.f32.partialorder %v6948, 0.0
      %vm7874 = vcmp.ge.f32.partialorder %v6950, 0.0
      %vm7875 = vcmp.ge.f32.partialorder %v6991, 0.0
      %vm7876 = vcmp.ge.f32.partialorder %v6993, 0.0
      %vm7877 = vcmp.ge.f32.partialorder %v7034, 0.0
      %vm7878 = vcmp.ge.f32.partialorder %v7036, 0.0
      %vm7879 = vcmp.ge.f32.partialorder %v7077, 0.0
      %vm7880 = vcmp.ge.f32.partialorder %v7079, 0.0
      %vm7881 = vcmp.ge.f32.partialorder %v7120, 0.0
      %vm7882 = vcmp.ge.f32.partialorder %v7122, 0.0
      %vm7883 = vcmp.ge.f32.partialorder %v7163, 0.0
      %vm7884 = vcmp.ge.f32.partialorder %v7165, 0.0
      %vm7885 = vcmp.ge.f32.partialorder %v7206, 0.0
      %vm7886 = vcmp.ge.f32.partialorder %v7208, 0.0
      %vm7887 = vcmp.ge.f32.partialorder %v7249, 0.0
      %vm7888 = vcmp.ge.f32.partialorder %v7251, 0.0
      %vm7889 = vcmp.ge.f32.partialorder %v7292, 0.0
      %vm7890 = vcmp.ge.f32.partialorder %v7294, 0.0
      %vm7891 = vcmp.ge.f32.partialorder %v7335, 0.0
      %vm7892 = vcmp.ge.f32.partialorder %v7337, 0.0
      %vm7893 = vcmp.ge.f32.partialorder %v7378, 0.0
      %vm7894 = vcmp.ge.f32.partialorder %v7380, 0.0
      %vm7895 = vcmp.ge.f32.partialorder %v7421, 0.0
      %vm7896 = vcmp.ge.f32.partialorder %v7423, 0.0
      %vm7897 = vcmp.ge.f32.partialorder %v7464, 0.0
      %vm7898 = vcmp.ge.f32.partialorder %v7466, 0.0
      %vm7899 = vcmp.ge.f32.partialorder %v7507, 0.0
      %vm7900 = vcmp.ge.f32.partialorder %v7509, 0.0
      %vm7901 = vcmp.ge.f32.partialorder %v7550, 0.0
      %vm7902 = vcmp.ge.f32.partialorder %v7552, 0.0
      %vm7903 = vcmp.ge.f32.partialorder %v7593, 0.0
      %vm7904 = vcmp.ge.f32.partialorder %v7595, 0.0
      %vm7905 = vcmp.ge.f32.partialorder %v7636, 0.0
      %vm7906 = vcmp.ge.f32.partialorder %v7638, 0.0
      %vm7907 = vcmp.ge.f32.partialorder %v7679, 0.0
      %vm7908 = vcmp.ge.f32.partialorder %v7681, 0.0
      %vm7909 = vcmp.ge.f32.partialorder %v7722, 0.0
      %vm7910 = vcmp.ge.f32.partialorder %v7724, 0.0
      %vm7911 = vcmp.ge.f32.partialorder %v7765, 0.0
      %vm7912 = vcmp.ge.f32.partialorder %v7767, 0.0
      %vm7913 = vcmp.ge.f32.partialorder %v7808, 0.0
      %vm7914 = vcmp.ge.f32.partialorder %v7810, 0.0
      %vm7915 = vcmp.ge.f32.partialorder %v7851, 0.0
      %vm7916 = vcmp.ge.f32.partialorder %v7853, 0.0
      %vm7917 = vcmp.ge.f32.partialorder %v6651, 0.0
      %vm7918 = vcmp.ge.f32.partialorder %v6653, 0.0
      %vm7919 = vcmp.ge.f32.partialorder %v6694, 0.0
      %vm7920 = vcmp.ge.f32.partialorder %v6696, 0.0
      %vm7921 = vcmp.ge.f32.partialorder %v6737, 0.0
      %vm7922 = vcmp.ge.f32.partialorder %v6739, 0.0
      %vm7923 = vcmp.ge.f32.partialorder %v6780, 0.0
      %vm7924 = vcmp.ge.f32.partialorder %v6782, 0.0
      %vm7925 = vcmp.ge.f32.partialorder %v6823, 0.0
      %vm7926 = vcmp.ge.f32.partialorder %v6825, 0.0
      %vm7927 = vcmp.ge.f32.partialorder %v6866, 0.0
      %vm7928 = vcmp.ge.f32.partialorder %v6868, 0.0
      %vm7929 = vcmp.ge.f32.partialorder %v6909, 0.0
      %vm7930 = vcmp.ge.f32.partialorder %v6911, 0.0
      %vm7931 = vcmp.ge.f32.partialorder %v6952, 0.0
      %vm7932 = vcmp.ge.f32.partialorder %v6954, 0.0
      %vm7933 = vcmp.ge.f32.partialorder %v6995, 0.0
      %vm7934 = vcmp.ge.f32.partialorder %v6997, 0.0
      %vm7935 = vcmp.ge.f32.partialorder %v7038, 0.0
      %vm7936 = vcmp.ge.f32.partialorder %v7040, 0.0
      %vm7937 = vcmp.ge.f32.partialorder %v7081, 0.0
      %vm7938 = vcmp.ge.f32.partialorder %v7083, 0.0
      %vm7939 = vcmp.ge.f32.partialorder %v7124, 0.0
      %vm7940 = vcmp.ge.f32.partialorder %v7126, 0.0
      %vm7941 = vcmp.ge.f32.partialorder %v7167, 0.0
      %vm7942 = vcmp.ge.f32.partialorder %v7169, 0.0
      %vm7943 = vcmp.ge.f32.partialorder %v7210, 0.0
      %vm7944 = vcmp.ge.f32.partialorder %v7212, 0.0
      %vm7945 = vcmp.ge.f32.partialorder %v7253, 0.0
      %vm7946 = vcmp.ge.f32.partialorder %v7255, 0.0
      %vm7947 = vcmp.ge.f32.partialorder %v7296, 0.0
      %vm7948 = vcmp.ge.f32.partialorder %v7298, 0.0
      %vm7949 = vcmp.ge.f32.partialorder %v7339, 0.0
      %vm7950 = vcmp.ge.f32.partialorder %v7341, 0.0
      %vm7951 = vcmp.ge.f32.partialorder %v7382, 0.0
      %vm7952 = vcmp.ge.f32.partialorder %v7384, 0.0
      %vm7953 = vcmp.ge.f32.partialorder %v7425, 0.0
      %vm7954 = vcmp.ge.f32.partialorder %v7427, 0.0
      %vm7955 = vcmp.ge.f32.partialorder %v7468, 0.0
      %vm7956 = vcmp.ge.f32.partialorder %v7470, 0.0
      %vm7957 = vcmp.ge.f32.partialorder %v7511, 0.0
      %vm7958 = vcmp.ge.f32.partialorder %v7513, 0.0
      %vm7959 = vcmp.ge.f32.partialorder %v7554, 0.0
      %vm7960 = vcmp.ge.f32.partialorder %v7556, 0.0
      %vm7961 = vcmp.ge.f32.partialorder %v7597, 0.0
      %vm7962 = vcmp.ge.f32.partialorder %v7599, 0.0
      %vm7963 = vcmp.ge.f32.partialorder %v7640, 0.0
      %vm7964 = vcmp.ge.f32.partialorder %v7642, 0.0
      %vm7965 = vcmp.ge.f32.partialorder %v7683, 0.0
      %vm7966 = vcmp.ge.f32.partialorder %v7685, 0.0
      %vm7967 = vcmp.ge.f32.partialorder %v7726, 0.0
      %vm7968 = vcmp.ge.f32.partialorder %v7728, 0.0
      %vm7969 = vcmp.ge.f32.partialorder %v7769, 0.0
      %vm7970 = vcmp.ge.f32.partialorder %v7771, 0.0
      %vm7971 = vcmp.ge.f32.partialorder %v7812, 0.0
      %vm7972 = vcmp.ge.f32.partialorder %v7814, 0.0
      %vm7973 = vcmp.ge.f32.partialorder %v7855, 0.0
      %vm7974 = vcmp.ge.f32.partialorder %v7857, 0.0
      %v7975 = vmul.f32 %v6647, 0.2
      %v7976 = vmul.f32 %v6649, 0.2
      %v7977 = vmul.f32 %v6690, 0.2
      %v7978 = vmul.f32 %v6692, 0.2
      %v7979 = vmul.f32 %v6733, 0.2
      %v7980 = vmul.f32 %v6735, 0.2
      %v7981 = vmul.f32 %v6776, 0.2
      %v7982 = vmul.f32 %v6778, 0.2
      %v7983 = vmul.f32 %v6819, 0.2
      %v7984 = vmul.f32 %v6821, 0.2
      %v7985 = vmul.f32 %v6862, 0.2
      %v7986 = vmul.f32 %v6864, 0.2
      %v7987 = vmul.f32 %v6905, 0.2
      %v7988 = vmul.f32 %v6907, 0.2
      %v7989 = vmul.f32 %v6948, 0.2
      %v7990 = vmul.f32 %v6950, 0.2
      %v7991 = vmul.f32 %v6991, 0.2
      %v7992 = vmul.f32 %v6993, 0.2
      %v7993 = vmul.f32 %v7034, 0.2
      %v7994 = vmul.f32 %v7036, 0.2
      %v7995 = vmul.f32 %v7077, 0.2
      %v7996 = vmul.f32 %v7079, 0.2
      %v7997 = vmul.f32 %v7120, 0.2
      %v7998 = vmul.f32 %v7122, 0.2
      %v7999 = vmul.f32 %v7163, 0.2
      %v8000 = vmul.f32 %v7165, 0.2
      %v8001 = vmul.f32 %v7206, 0.2
      %v8002 = vmul.f32 %v7208, 0.2
      %v8003 = vmul.f32 %v7249, 0.2
      %v8004 = vmul.f32 %v7251, 0.2
      %v8005 = vmul.f32 %v7292, 0.2
      %v8006 = vmul.f32 %v7294, 0.2
      %v8007 = vmul.f32 %v7335, 0.2
      %v8008 = vmul.f32 %v7337, 0.2
      %v8009 = vmul.f32 %v7378, 0.2
      %v8010 = vmul.f32 %v7380, 0.2
      %v8011 = vmul.f32 %v7421, 0.2
      %v8012 = vmul.f32 %v7423, 0.2
      %v8013 = vmul.f32 %v7464, 0.2
      %v8014 = vmul.f32 %v7466, 0.2
      %v8015 = vmul.f32 %v7507, 0.2
      %v8016 = vmul.f32 %v7509, 0.2
      %v8017 = vmul.f32 %v7550, 0.2
      %v8018 = vmul.f32 %v7552, 0.2
      %v8019 = vmul.f32 %v7593, 0.2
      %v8020 = vmul.f32 %v7595, 0.2
      %v8021 = vmul.f32 %v7636, 0.2
      %v8022 = vmul.f32 %v7638, 0.2
      %v8023 = vmul.f32 %v7679, 0.2
      %v8024 = vmul.f32 %v7681, 0.2
      %v8025 = vmul.f32 %v7722, 0.2
      %v8026 = vmul.f32 %v7724, 0.2
      %v8027 = vmul.f32 %v7765, 0.2
      %v8028 = vmul.f32 %v7767, 0.2
      %v8029 = vmul.f32 %v7808, 0.2
      %v8030 = vmul.f32 %v7810, 0.2
      %v8031 = vmul.f32 %v7851, 0.2
      %v8032 = vmul.f32 %v7853, 0.2
      %v8033 = vmul.f32 %v6651, 0.2
      %v8034 = vmul.f32 %v6653, 0.2
      %v8035 = vmul.f32 %v6694, 0.2
      %v8036 = vmul.f32 %v6696, 0.2
      %v8037 = vmul.f32 %v6737, 0.2
      %v8038 = vmul.f32 %v6739, 0.2
      %v8039 = vmul.f32 %v6780, 0.2
      %v8040 = vmul.f32 %v6782, 0.2
      %v8041 = vmul.f32 %v6823, 0.2
      %v8042 = vmul.f32 %v6825, 0.2
      %v8043 = vmul.f32 %v6866, 0.2
      %v8044 = vmul.f32 %v6868, 0.2
      %v8045 = vmul.f32 %v6909, 0.2
      %v8046 = vmul.f32 %v6911, 0.2
      %v8047 = vmul.f32 %v6952, 0.2
      %v8048 = vmul.f32 %v6954, 0.2
      %v8049 = vmul.f32 %v6995, 0.2
      %v8050 = vmul.f32 %v6997, 0.2
      %v8051 = vmul.f32 %v7038, 0.2
      %v8052 = vmul.f32 %v7040, 0.2
      %v8053 = vmul.f32 %v7081, 0.2
      %v8054 = vmul.f32 %v7083, 0.2
      %v8055 = vmul.f32 %v7124, 0.2
      %v8056 = vmul.f32 %v7126, 0.2
      %v8057 = vmul.f32 %v7167, 0.2
      %v8058 = vmul.f32 %v7169, 0.2
      %v8059 = vmul.f32 %v7210, 0.2
      %v8060 = vmul.f32 %v7212, 0.2
      %v8061 = vmul.f32 %v7253, 0.2
      %v8062 = vmul.f32 %v7255, 0.2
      %v8063 = vmul.f32 %v7296, 0.2
      %v8064 = vmul.f32 %v7298, 0.2
      %v8065 = vmul.f32 %v7339, 0.2
      %v8066 = vmul.f32 %v7341, 0.2
      %v8067 = vmul.f32 %v7382, 0.2
      %v8068 = vmul.f32 %v7384, 0.2
      %v8069 = vmul.f32 %v7425, 0.2
      %v8070 = vmul.f32 %v7427, 0.2
      %v8071 = vmul.f32 %v7468, 0.2
      %v8072 = vmul.f32 %v7470, 0.2
      %v8073 = vmul.f32 %v7511, 0.2
      %v8074 = vmul.f32 %v7513, 0.2
      %v8075 = vmul.f32 %v7554, 0.2
      %v8076 = vmul.f32 %v7556, 0.2
      %v8077 = vmul.f32 %v7597, 0.2
      %v8078 = vmul.f32 %v7599, 0.2
      %v8079 = vmul.f32 %v7640, 0.2
      %v8080 = vmul.f32 %v7642, 0.2
      %v8081 = vmul.f32 %v7683, 0.2
      %v8082 = vmul.f32 %v7685, 0.2
      %v8083 = vmul.f32 %v7726, 0.2
      %v8084 = vmul.f32 %v7728, 0.2
      %v8085 = vmul.f32 %v7769, 0.2
      %v8086 = vmul.f32 %v7771, 0.2
      %v8087 = vmul.f32 %v7812, 0.2
      %v8088 = vmul.f32 %v7814, 0.2
      %v8089 = vmul.f32 %v7855, 0.2
      %v8090 = vmul.f32 %v7857, 0.2
      %v8091 = vsel %vm7859, %v6647, %v7975
      %v8092 = vsel %vm7860, %v6649, %v7976
      %v8093 = vsel %vm7861, %v6690, %v7977
      %v8094 = vsel %vm7862, %v6692, %v7978
      %v8095 = vsel %vm7863, %v6733, %v7979
      %v8096 = vsel %vm7864, %v6735, %v7980
      %v8097 = vsel %vm7865, %v6776, %v7981
      %v8098 = vsel %vm7866, %v6778, %v7982
      %v8099 = vsel %vm7867, %v6819, %v7983
      %v8100 = vsel %vm7868, %v6821, %v7984
      %v8101 = vsel %vm7869, %v6862, %v7985
      %v8102 = vsel %vm7870, %v6864, %v7986
      %v8103 = vsel %vm7871, %v6905, %v7987
      %v8104 = vsel %vm7872, %v6907, %v7988
      %v8105 = vsel %vm7873, %v6948, %v7989
      %v8106 = vsel %vm7874, %v6950, %v7990
      %v8107 = vsel %vm7875, %v6991, %v7991
      %v8108 = vsel %vm7876, %v6993, %v7992
      %v8109 = vsel %vm7877, %v7034, %v7993
      %v8110 = vsel %vm7878, %v7036, %v7994
      %v8111 = vsel %vm7879, %v7077, %v7995
      %v8112 = vsel %vm7880, %v7079, %v7996
      %v8113 = vsel %vm7881, %v7120, %v7997
      %v8114 = vsel %vm7882, %v7122, %v7998
      %v8115 = vsel %vm7883, %v7163, %v7999
      %v8116 = vsel %vm7884, %v7165, %v8000
      %v8117 = vsel %vm7885, %v7206, %v8001
      %v8118 = vsel %vm7886, %v7208, %v8002
      %v8119 = vsel %vm7887, %v7249, %v8003
      %v8120 = vsel %vm7888, %v7251, %v8004
      %v8121 = vsel %vm7889, %v7292, %v8005
      %v8122 = vsel %vm7890, %v7294, %v8006
      %v8123 = vsel %vm7891, %v7335, %v8007
      %v8124 = vsel %vm7892, %v7337, %v8008
      %v8125 = vsel %vm7893, %v7378, %v8009
      %v8126 = vsel %vm7894, %v7380, %v8010
      %v8127 = vsel %vm7895, %v7421, %v8011
      %v8128 = vsel %vm7896, %v7423, %v8012
      %v8129 = vsel %vm7897, %v7464, %v8013
      %v8130 = vsel %vm7898, %v7466, %v8014
      %v8131 = vsel %vm7899, %v7507, %v8015
      %v8132 = vsel %vm7900, %v7509, %v8016
      %v8133 = vsel %vm7901, %v7550, %v8017
      %v8134 = vsel %vm7902, %v7552, %v8018
      %v8135 = vsel %vm7903, %v7593, %v8019
      %v8136 = vsel %vm7904, %v7595, %v8020
      %v8137 = vsel %vm7905, %v7636, %v8021
      %v8138 = vsel %vm7906, %v7638, %v8022
      %v8139 = vsel %vm7907, %v7679, %v8023
      %v8140 = vsel %vm7908, %v7681, %v8024
      %v8141 = vsel %vm7909, %v7722, %v8025
      %v8142 = vsel %vm7910, %v7724, %v8026
      %v8143 = vsel %vm7911, %v7765, %v8027
      %v8144 = vsel %vm7912, %v7767, %v8028
      %v8145 = vsel %vm7913, %v7808, %v8029
      %v8146 = vsel %vm7914, %v7810, %v8030
      %v8147 = vsel %vm7915, %v7851, %v8031
      %v8148 = vsel %vm7916, %v7853, %v8032
      %v8149 = vsel %vm7917, %v6651, %v8033
      %v8150 = vsel %vm7918, %v6653, %v8034
      %v8151 = vsel %vm7919, %v6694, %v8035
      %v8152 = vsel %vm7920, %v6696, %v8036
      %v8153 = vsel %vm7921, %v6737, %v8037
      %v8154 = vsel %vm7922, %v6739, %v8038
      %v8155 = vsel %vm7923, %v6780, %v8039
      %v8156 = vsel %vm7924, %v6782, %v8040
      %v8157 = vsel %vm7925, %v6823, %v8041
      %v8158 = vsel %vm7926, %v6825, %v8042
      %v8159 = vsel %vm7927, %v6866, %v8043
      %v8160 = vsel %vm7928, %v6868, %v8044
      %v8161 = vsel %vm7929, %v6909, %v8045
      %v8162 = vsel %vm7930, %v6911, %v8046
      %v8163 = vsel %vm7931, %v6952, %v8047
      %v8164 = vsel %vm7932, %v6954, %v8048
      %v8165 = vsel %vm7933, %v6995, %v8049
      %v8166 = vsel %vm7934, %v6997, %v8050
      %v8167 = vsel %vm7935, %v7038, %v8051
      %v8168 = vsel %vm7936, %v7040, %v8052
      %v8169 = vsel %vm7937, %v7081, %v8053
      %v8170 = vsel %vm7938, %v7083, %v8054
      %v8171 = vsel %vm7939, %v7124, %v8055
      %v8172 = vsel %vm7940, %v7126, %v8056
      %v8173 = vsel %vm7941, %v7167, %v8057
      %v8174 = vsel %vm7942, %v7169, %v8058
      %v8175 = vsel %vm7943, %v7210, %v8059
      %v8176 = vsel %vm7944, %v7212, %v8060
      %v8177 = vsel %vm7945, %v7253, %v8061
      %v8178 = vsel %vm7946, %v7255, %v8062
      %v8179 = vsel %vm7947, %v7296, %v8063
      %v8180 = vsel %vm7948, %v7298, %v8064
      %v8181 = vsel %vm7949, %v7339, %v8065
      %v8182 = vsel %vm7950, %v7341, %v8066
      %v8183 = vsel %vm7951, %v7382, %v8067
      %v8184 = vsel %vm7952, %v7384, %v8068
      %v8185 = vsel %vm7953, %v7425, %v8069
      %v8186 = vsel %vm7954, %v7427, %v8070
      %v8187 = vsel %vm7955, %v7468, %v8071
      %v8188 = vsel %vm7956, %v7470, %v8072
      %v8189 = vsel %vm7957, %v7511, %v8073
      %v8190 = vsel %vm7958, %v7513, %v8074
      %v8191 = vsel %vm7959, %v7554, %v8075
      %v8192 = vsel %vm7960, %v7556, %v8076
      %v8193 = vsel %vm7961, %v7597, %v8077
      %v8194 = vsel %vm7962, %v7599, %v8078
      %v8195 = vsel %vm7963, %v7640, %v8079
      %v8196 = vsel %vm7964, %v7642, %v8080
      %v8197 = vsel %vm7965, %v7683, %v8081
      %v8198 = vsel %vm7966, %v7685, %v8082
      %v8199 = vsel %vm7967, %v7726, %v8083
      %v8200 = vsel %vm7968, %v7728, %v8084
      %v8201 = vsel %vm7969, %v7769, %v8085
      %v8202 = vsel %vm7970, %v7771, %v8086
      %v8203 = vsel %vm7971, %v7812, %v8087
      %v8204 = vsel %vm7972, %v7814, %v8088
      %v8205 = vsel %vm7973, %v7855, %v8089
      %v8206 = vsel %vm7974, %v7857, %v8090
      %v8207 = vpack.c.bf16 %v8149, %v8091
      %v8208 = vpack.c.bf16 %v8150, %v8092
      %v8209 = vpack.c.bf16 %v8151, %v8093
      %v8210 = vpack.c.bf16 %v8152, %v8094
      %v8211 = vpack.c.bf16 %v8153, %v8095
      %v8212 = vpack.c.bf16 %v8154, %v8096
      %v8213 = vpack.c.bf16 %v8155, %v8097
      %v8214 = vpack.c.bf16 %v8156, %v8098
      %v8215 = vpack.c.bf16 %v8157, %v8099
      %v8216 = vpack.c.bf16 %v8158, %v8100
      %v8217 = vpack.c.bf16 %v8159, %v8101
      %v8218 = vpack.c.bf16 %v8160, %v8102
      %v8219 = vpack.c.bf16 %v8161, %v8103
      %v8220 = vpack.c.bf16 %v8162, %v8104
      %v8221 = vpack.c.bf16 %v8163, %v8105
      %v8222 = vpack.c.bf16 %v8164, %v8106
      %v8223 = vpack.c.bf16 %v8165, %v8107
      %v8224 = vpack.c.bf16 %v8166, %v8108
      %v8225 = vpack.c.bf16 %v8167, %v8109
      %v8226 = vpack.c.bf16 %v8168, %v8110
      %v8227 = vpack.c.bf16 %v8169, %v8111
      %v8228 = vpack.c.bf16 %v8170, %v8112
      %v8229 = vpack.c.bf16 %v8171, %v8113
      %v8230 = vpack.c.bf16 %v8172, %v8114
      %v8231 = vpack.c.bf16 %v8173, %v8115
      %v8232 = vpack.c.bf16 %v8174, %v8116
      %v8233 = vpack.c.bf16 %v8175, %v8117
      %v8234 = vpack.c.bf16 %v8176, %v8118
      %v8235 = vpack.c.bf16 %v8177, %v8119
      %v8236 = vpack.c.bf16 %v8178, %v8120
      %v8237 = vpack.c.bf16 %v8179, %v8121
      %v8238 = vpack.c.bf16 %v8180, %v8122
      %v8239 = vpack.c.bf16 %v8181, %v8123
      %v8240 = vpack.c.bf16 %v8182, %v8124
      %v8241 = vpack.c.bf16 %v8183, %v8125
      %v8242 = vpack.c.bf16 %v8184, %v8126
      %v8243 = vpack.c.bf16 %v8185, %v8127
      %v8244 = vpack.c.bf16 %v8186, %v8128
      %v8245 = vpack.c.bf16 %v8187, %v8129
      %v8246 = vpack.c.bf16 %v8188, %v8130
      %v8247 = vpack.c.bf16 %v8189, %v8131
      %v8248 = vpack.c.bf16 %v8190, %v8132
      %v8249 = vpack.c.bf16 %v8191, %v8133
      %v8250 = vpack.c.bf16 %v8192, %v8134
      %v8251 = vpack.c.bf16 %v8193, %v8135
      %v8252 = vpack.c.bf16 %v8194, %v8136
      %v8253 = vpack.c.bf16 %v8195, %v8137
      %v8254 = vpack.c.bf16 %v8196, %v8138
      %v8255 = vpack.c.bf16 %v8197, %v8139
      %v8256 = vpack.c.bf16 %v8198, %v8140
      %v8257 = vpack.c.bf16 %v8199, %v8141
      %v8258 = vpack.c.bf16 %v8200, %v8142
      %v8259 = vpack.c.bf16 %v8201, %v8143
      %v8260 = vpack.c.bf16 %v8202, %v8144
      %v8261 = vpack.c.bf16 %v8203, %v8145
      %v8262 = vpack.c.bf16 %v8204, %v8146
      %v8263 = vpack.c.bf16 %v8205, %v8147
      %v8264 = vpack.c.bf16 %v8206, %v8148
      %v8323 = vunpack.c.l.b16 %v8207
      %v8324 = vunpack.c.l.b16 %v8208
      %v8325 = vunpack.c.l.b16 %v8209
      %v8326 = vunpack.c.l.b16 %v8210
      %v8327 = vunpack.c.l.b16 %v8211
      %v8328 = vunpack.c.l.b16 %v8212
      %v8329 = vunpack.c.l.b16 %v8213
      %v8330 = vunpack.c.l.b16 %v8214
      %v8331 = vunpack.c.l.b16 %v8215
      %v8332 = vunpack.c.l.b16 %v8216
      %v8333 = vunpack.c.l.b16 %v8217
      %v8334 = vunpack.c.l.b16 %v8218
      %v8335 = vunpack.c.l.b16 %v8219
      %v8336 = vunpack.c.l.b16 %v8220
      %v8337 = vunpack.c.l.b16 %v8221
      %v8338 = vunpack.c.l.b16 %v8222
      %v8339 = vunpack.c.l.b16 %v8223
      %v8340 = vunpack.c.l.b16 %v8224
      %v8341 = vunpack.c.l.b16 %v8225
      %v8342 = vunpack.c.l.b16 %v8226
      %v8343 = vunpack.c.l.b16 %v8227
      %v8344 = vunpack.c.l.b16 %v8228
      %v8345 = vunpack.c.l.b16 %v8229
      %v8346 = vunpack.c.l.b16 %v8230
      %v8347 = vunpack.c.l.b16 %v8231
      %v8348 = vunpack.c.l.b16 %v8232
      %v8349 = vunpack.c.l.b16 %v8233
      %v8350 = vunpack.c.l.b16 %v8234
      %v8351 = vunpack.c.l.b16 %v8235
      %v8352 = vunpack.c.l.b16 %v8236
      %v8353 = vunpack.c.l.b16 %v8237
      %v8354 = vunpack.c.l.b16 %v8238
      %v8355 = vunpack.c.l.b16 %v8239
      %v8356 = vunpack.c.l.b16 %v8240
      %v8357 = vunpack.c.l.b16 %v8241
      %v8358 = vunpack.c.l.b16 %v8242
      %v8359 = vunpack.c.l.b16 %v8243
      %v8360 = vunpack.c.l.b16 %v8244
      %v8361 = vunpack.c.l.b16 %v8245
      %v8362 = vunpack.c.l.b16 %v8246
      %v8363 = vunpack.c.l.b16 %v8247
      %v8364 = vunpack.c.l.b16 %v8248
      %v8365 = vunpack.c.l.b16 %v8249
      %v8366 = vunpack.c.l.b16 %v8250
      %v8367 = vunpack.c.l.b16 %v8251
      %v8368 = vunpack.c.l.b16 %v8252
      %v8369 = vunpack.c.l.b16 %v8253
      %v8370 = vunpack.c.l.b16 %v8254
      %v8371 = vunpack.c.l.b16 %v8255
      %v8372 = vunpack.c.l.b16 %v8256
      %v8373 = vunpack.c.l.b16 %v8257
      %v8374 = vunpack.c.l.b16 %v8258
      %v8375 = vunpack.c.l.b16 %v8259
      %v8376 = vunpack.c.l.b16 %v8260
      %v8377 = vunpack.c.l.b16 %v8261
      %v8378 = vunpack.c.l.b16 %v8262
      %v8379 = vunpack.c.l.b16 %v8263
      %v8380 = vunpack.c.l.b16 %v8264
      %v8381 = vunpack.c.h.b16 %v8207
      %v8382 = vunpack.c.h.b16 %v8208
      %v8383 = vunpack.c.h.b16 %v8209
      %v8384 = vunpack.c.h.b16 %v8210
      %v8385 = vunpack.c.h.b16 %v8211
      %v8386 = vunpack.c.h.b16 %v8212
      %v8387 = vunpack.c.h.b16 %v8213
      %v8388 = vunpack.c.h.b16 %v8214
      %v8389 = vunpack.c.h.b16 %v8215
      %v8390 = vunpack.c.h.b16 %v8216
      %v8391 = vunpack.c.h.b16 %v8217
      %v8392 = vunpack.c.h.b16 %v8218
      %v8393 = vunpack.c.h.b16 %v8219
      %v8394 = vunpack.c.h.b16 %v8220
      %v8395 = vunpack.c.h.b16 %v8221
      %v8396 = vunpack.c.h.b16 %v8222
      %v8397 = vunpack.c.h.b16 %v8223
      %v8398 = vunpack.c.h.b16 %v8224
      %v8399 = vunpack.c.h.b16 %v8225
      %v8400 = vunpack.c.h.b16 %v8226
      %v8401 = vunpack.c.h.b16 %v8227
      %v8402 = vunpack.c.h.b16 %v8228
      %v8403 = vunpack.c.h.b16 %v8229
      %v8404 = vunpack.c.h.b16 %v8230
      %v8405 = vunpack.c.h.b16 %v8231
      %v8406 = vunpack.c.h.b16 %v8232
      %v8407 = vunpack.c.h.b16 %v8233
      %v8408 = vunpack.c.h.b16 %v8234
      %v8409 = vunpack.c.h.b16 %v8235
      %v8410 = vunpack.c.h.b16 %v8236
      %v8411 = vunpack.c.h.b16 %v8237
      %v8412 = vunpack.c.h.b16 %v8238
      %v8413 = vunpack.c.h.b16 %v8239
      %v8414 = vunpack.c.h.b16 %v8240
      %v8415 = vunpack.c.h.b16 %v8241
      %v8416 = vunpack.c.h.b16 %v8242
      %v8417 = vunpack.c.h.b16 %v8243
      %v8418 = vunpack.c.h.b16 %v8244
      %v8419 = vunpack.c.h.b16 %v8245
      %v8420 = vunpack.c.h.b16 %v8246
      %v8421 = vunpack.c.h.b16 %v8247
      %v8422 = vunpack.c.h.b16 %v8248
      %v8423 = vunpack.c.h.b16 %v8249
      %v8424 = vunpack.c.h.b16 %v8250
      %v8425 = vunpack.c.h.b16 %v8251
      %v8426 = vunpack.c.h.b16 %v8252
      %v8427 = vunpack.c.h.b16 %v8253
      %v8428 = vunpack.c.h.b16 %v8254
      %v8429 = vunpack.c.h.b16 %v8255
      %v8430 = vunpack.c.h.b16 %v8256
      %v8431 = vunpack.c.h.b16 %v8257
      %v8432 = vunpack.c.h.b16 %v8258
      %v8433 = vunpack.c.h.b16 %v8259
      %v8434 = vunpack.c.h.b16 %v8260
      %v8435 = vunpack.c.h.b16 %v8261
      %v8436 = vunpack.c.h.b16 %v8262
      %v8437 = vunpack.c.h.b16 %v8263
      %v8438 = vunpack.c.h.b16 %v8264
      %v8439 = vpack.c.b16 %v8324, %v8323
      %v8440 = vpack.c.b16 %v8326, %v8325
      %v8441 = vpack.c.b16 %v8328, %v8327
      %v8442 = vpack.c.b16 %v8330, %v8329
      %v8443 = vpack.c.b16 %v8332, %v8331
      %v8444 = vpack.c.b16 %v8334, %v8333
      %v8445 = vpack.c.b16 %v8336, %v8335
      %v8446 = vpack.c.b16 %v8338, %v8337
      %v8447 = vpack.c.b16 %v8340, %v8339
      %v8448 = vpack.c.b16 %v8342, %v8341
      %v8449 = vpack.c.b16 %v8344, %v8343
      %v8450 = vpack.c.b16 %v8346, %v8345
      %v8451 = vpack.c.b16 %v8348, %v8347
      %v8452 = vpack.c.b16 %v8350, %v8349
      %v8453 = vpack.c.b16 %v8352, %v8351
      %v8454 = vpack.c.b16 %v8354, %v8353
      %v8455 = vpack.c.b16 %v8356, %v8355
      %v8456 = vpack.c.b16 %v8358, %v8357
      %v8457 = vpack.c.b16 %v8360, %v8359
      %v8458 = vpack.c.b16 %v8362, %v8361
      %v8459 = vpack.c.b16 %v8364, %v8363
      %v8460 = vpack.c.b16 %v8366, %v8365
      %v8461 = vpack.c.b16 %v8368, %v8367
      %v8462 = vpack.c.b16 %v8370, %v8369
      %v8463 = vpack.c.b16 %v8372, %v8371
      %v8464 = vpack.c.b16 %v8374, %v8373
      %v8465 = vpack.c.b16 %v8376, %v8375
      %v8466 = vpack.c.b16 %v8378, %v8377
      %v8467 = vpack.c.b16 %v8380, %v8379
      %v8468 = vpack.c.b16 %v8382, %v8381
      %v8469 = vpack.c.b16 %v8384, %v8383
      %v8470 = vpack.c.b16 %v8386, %v8385
      %v8471 = vpack.c.b16 %v8388, %v8387
      %v8472 = vpack.c.b16 %v8390, %v8389
      %v8473 = vpack.c.b16 %v8392, %v8391
      %v8474 = vpack.c.b16 %v8394, %v8393
      %v8475 = vpack.c.b16 %v8396, %v8395
      %v8476 = vpack.c.b16 %v8398, %v8397
      %v8477 = vpack.c.b16 %v8400, %v8399
      %v8478 = vpack.c.b16 %v8402, %v8401
      %v8479 = vpack.c.b16 %v8404, %v8403
      %v8480 = vpack.c.b16 %v8406, %v8405
      %v8481 = vpack.c.b16 %v8408, %v8407
      %v8482 = vpack.c.b16 %v8410, %v8409
      %v8483 = vpack.c.b16 %v8412, %v8411
      %v8484 = vpack.c.b16 %v8414, %v8413
      %v8485 = vpack.c.b16 %v8416, %v8415
      %v8486 = vpack.c.b16 %v8418, %v8417
      %v8487 = vpack.c.b16 %v8420, %v8419
      %v8488 = vpack.c.b16 %v8422, %v8421
      %v8489 = vpack.c.b16 %v8424, %v8423
      %v8490 = vpack.c.b16 %v8426, %v8425
      %v8491 = vpack.c.b16 %v8428, %v8427
      %v8492 = vpack.c.b16 %v8430, %v8429
      %v8493 = vpack.c.b16 %v8432, %v8431
      %v8494 = vpack.c.b16 %v8434, %v8433
      %v8495 = vpack.c.b16 %v8436, %v8435
      %v8496 = vpack.c.b16 %v8438, %v8437
      %8555 = vst [vmem:[%s170] sm:$0xff] %v8439
      %8556 = vst [vmem:[%s170 + $0x8] sm:$0xff] %v8440
      %8557 = vst [vmem:[%s170 + $0x10] sm:$0xff] %v8441
      %8558 = vst [vmem:[%s170 + $0x18] sm:$0xff] %v8442
      %8559 = vst [vmem:[%s170 + $0x20] sm:$0xff] %v8443
      %8560 = vst [vmem:[%s170 + $0x28] sm:$0xff] %v8444
      %8561 = vst [vmem:[%s170 + $0x30] sm:$0xff] %v8445
      %8562 = vst [vmem:[%s170 + $0x38] sm:$0xff] %v8446
      %8563 = vst [vmem:[%s170 + $0x40] sm:$0xff] %v8447
      %8564 = vst [vmem:[%s170 + $0x48] sm:$0xff] %v8448
      %8565 = vst [vmem:[%s170 + $0x50] sm:$0xff] %v8449
      %8566 = vst [vmem:[%s170 + $0x58] sm:$0xff] %v8450
      %8567 = vst [vmem:[%s170 + $0x60] sm:$0xff] %v8451
      %8568 = vst [vmem:[%s170 + $0x68] sm:$0xff] %v8452
      %8569 = vst [vmem:[%s170 + $0x70] sm:$0xff] %v8453
      %8570 = vst [vmem:[%s170 + $0x78] sm:$0xff] %v8454
      %8571 = vst [vmem:[%s170 + $0x80] sm:$0xff] %v8455
      %8572 = vst [vmem:[%s170 + $0x88] sm:$0xff] %v8456
      %8573 = vst [vmem:[%s170 + $0x90] sm:$0xff] %v8457
      %8574 = vst [vmem:[%s170 + $0x98] sm:$0xff] %v8458
      %8575 = vst [vmem:[%s170 + $0xa0] sm:$0xff] %v8459
      %8576 = vst [vmem:[%s170 + $0xa8] sm:$0xff] %v8460
      %8577 = vst [vmem:[%s170 + $0xb0] sm:$0xff] %v8461
      %8578 = vst [vmem:[%s170 + $0xb8] sm:$0xff] %v8462
      %8579 = vst [vmem:[%s170 + $0xc0] sm:$0xff] %v8463
      %8580 = vst [vmem:[%s170 + $0xc8] sm:$0xff] %v8464
      %8581 = vst [vmem:[%s170 + $0xd0] sm:$0xff] %v8465
      %8582 = vst [vmem:[%s170 + $0xd8] sm:$0xff] %v8466
      %8583 = vst.msk [vmem:[%s170 + $0xe0] sm:$0xff] %vm260, %v8467
      %8584 = vst [vmem:[%s170 + $0xe8] sm:$0xff] %v8468
      %8585 = vst [vmem:[%s170 + $0xf0] sm:$0xff] %v8469
      %8586 = vst [vmem:[%s170 + $0xf8] sm:$0xff] %v8470
      %8587 = vst [vmem:[%s170 + $0x100] sm:$0xff] %v8471
      %8588 = vst [vmem:[%s170 + $0x108] sm:$0xff] %v8472
      %8589 = vst [vmem:[%s170 + $0x110] sm:$0xff] %v8473
      %8590 = vst [vmem:[%s170 + $0x118] sm:$0xff] %v8474
      %8591 = vst [vmem:[%s170 + $0x120] sm:$0xff] %v8475
      %8592 = vst [vmem:[%s170 + $0x128] sm:$0xff] %v8476
      %8593 = vst [vmem:[%s170 + $0x130] sm:$0xff] %v8477
      %8594 = vst [vmem:[%s170 + $0x138] sm:$0xff] %v8478
      %8595 = vst [vmem:[%s170 + $0x140] sm:$0xff] %v8479
      %8596 = vst [vmem:[%s170 + $0x148] sm:$0xff] %v8480
      %8597 = vst [vmem:[%s170 + $0x150] sm:$0xff] %v8481
      %8598 = vst [vmem:[%s170 + $0x158] sm:$0xff] %v8482
      %8599 = vst [vmem:[%s170 + $0x160] sm:$0xff] %v8483
      %8600 = vst [vmem:[%s170 + $0x168] sm:$0xff] %v8484
      %8601 = vst [vmem:[%s170 + $0x170] sm:$0xff] %v8485
      %8602 = vst [vmem:[%s170 + $0x178] sm:$0xff] %v8486
      %8603 = vst [vmem:[%s170 + $0x180] sm:$0xff] %v8487
      %8604 = vst [vmem:[%s170 + $0x188] sm:$0xff] %v8488
      %8605 = vst [vmem:[%s170 + $0x190] sm:$0xff] %v8489
      %8606 = vst [vmem:[%s170 + $0x198] sm:$0xff] %v8490
      %8607 = vst [vmem:[%s170 + $0x1a0] sm:$0xff] %v8491
      %8608 = vst [vmem:[%s170 + $0x1a8] sm:$0xff] %v8492
      %8609 = vst [vmem:[%s170 + $0x1b0] sm:$0xff] %v8493
      %8610 = vst [vmem:[%s170 + $0x1b8] sm:$0xff] %v8494
      %8611 = vst [vmem:[%s170 + $0x1c0] sm:$0xff] %v8495
      %8612 = vst.msk [vmem:[%s170 + $0x1c8] sm:$0xff] %vm260, %v8496
      %p8613 = scmp.lt.s32.totalorder %s14, 3
      %s8614 = scalar_select %p8613, %s14, 3
      %s8615 = smul.addr %s8614, 116
      %s8616 = smul.addr %s8615, 4
      %s8617 = scalar_lea.vmem %s3, %s8616
      // Predicated region
      $region33: #{sstn_forward.2} parent=31 // pred_check
        %p8618 = pneg %p100
      $region34: #{sstn_forward.2} parent=31 // pred_check_branch
        %8620 = sbr.rel (%p8618) target = $region36
      $region35: #{sstn_forward.2} parent=31 // pred_region
        _
      $region36: #{sstn_forward.2} parent=31 // pred_fallthru
        _
    $region32: #{sstn_forward.2} parent=5 // pred_fallthru
      _
    %p8621 = scmp.le.s32.totalorder 2, %s9
    // Predicated region
    $region37: #{sstn_forward.2} parent=5 // pred_check
      %p8622 = pneg %p8621
    $region38: #{sstn_forward.2} parent=5 // pred_check_branch
      %8624 = sbr.rel (%p8622) target = $region40
    $region39: #{sstn_forward.2} parent=5 // pred_region
      %s8625 = ssub.s32 %s9, 2
      // Predicated region
      $region41: #{sstn_forward.2} parent=39 // pred_check
        %p8626 = pneg %p106
      $region42: #{sstn_forward.2} parent=39 // pred_check_branch
        %8628 = sbr.rel (%p8626) target = $region44
      $region43: #{sstn_forward.2} parent=39 // pred_region
        %p8629 = scmp.lt.s32.totalorder %s15, 3
        %s8630 = scalar_select %p8629, %s15, 3
        %s8631 = smul.addr %s8630, 116
        %s8632 = smul.addr %s8631, 4
        %s8633 = scalar_lea.vmem %s3, %s8632
      $region44: #{sstn_forward.2} parent=39 // pred_fallthru
        _
    $region40: #{sstn_forward.2} parent=5 // pred_fallthru
      _
  $region6: #{sstn_forward.2} parent=0 // loop_footer
    %s13 = sadd.s32 1, %s9
  $region7: #{sstn_forward.2} parent=0 // loop_footer_branch
    %8 = sbr.rel target = $region3
  $region8: #{sstn_forward.2} parent=0 // loop_exit
    _

// kernel: sstn_forward.3
$region0: #{sstn_forward.3}
  #allocation0 [shape = 'u32[]', space=smem, size = 0x4, offset = 0x4, fixed_abs, tag = 'smem constant byte address 0x4 - core index']
  #allocation1 [shape = 'u32[144,128]{1,0:T(1,128)}', space=vmem, size = 0x12000, scoped, tag = 'internal scratch']
  #allocation2 [shape = 'bf16[144,1849]{1,0:T(16,128)(2,1)}', space=vmem, size = 0x87000, scoped, tag = 'scratch operand']
  %s0 = inlined_call_operand.vmem [shape: bf16[4,2,48,1892], index: 0, kind: input, shape index: {}]
  %s1 = inlined_call_operand.vmem [shape: bf16[16,144], index: 1, kind: input, shape index: {}]
  %s2 = inlined_call_operand.vmem [shape: f32[16,1], index: 2, kind: input, shape index: {}]
  %s3 = inlined_call_operand.vmem [shape: bf16[4,16,1849], index: 3, kind: output, shape index: {}]
  %s4 = sld [smem:[#allocation0]]
  $region45: #{sstn_forward.3} parent=0
    _
  %s6 = ssub.s32 1, %s4
  %s7 = scalar_select 0, %s6, %s4
  loop: start=0, step=1, limit=6
  $region2: #{sstn_forward.3} parent=0 // loop_pre_header
    _
  $region3: #{sstn_forward.3} parent=0 // loop_header
    %s9 = sphi 0, %s13
    %p10 = scmp.ge.s32.totalorder %s9, 6
    %s19 = sphi 0, %s21
    %s22 = sphi 0, %s19
    %s23 = sphi 0, %s22
    %s39 = sphi 0, %s23
    %s43 = sphi 0, %s43
    %s45 = sphi 0, %s43
    %s46 = sphi 0, %s45
    %s60 = sphi 0, %s46
    %s64 = sphi 0, %s64
    %s66 = sphi 0, %s64
    %s67 = sphi 0, %s66
    %s81 = sphi 0, %s67
    %s87 = sphi 0, %s89
    %s90 = sphi 0, %s87
    %s91 = sphi 0, %s90
    %s107 = sphi 0, %s91
  $region4: #{sstn_forward.3} parent=0 // loop_header_branch
    %12 = sbr.rel (%p10) target = $region8
  $region5: #{sstn_forward.3} parent=0 // loop_body
    %s14 = ssub.s32 %s9, 1
    %s15 = ssub.s32 %s9, 2
    %s16 = sadd.s32 %s9, 1
    %s17 = ssub.s32 %s9, %s16
    %p18 = scmp.eq.s32.totalorder %s17, 0
    %s20 = sadd.s32 %s19, 1
    %s21 = scalar_select %p18, %s19, %s20
    %p24 = pneg %p18
    %p25 = scmp.eq.s32.totalorder %s9, 3
    %p26 = por %p24, %p25
    %p27 = scmp.ne.s32.totalorder %s19, %s22
    %p28 = scmp.eq.s32.totalorder %s9, 0
    %p29 = por %p27, %p28
    %p30 = scmp.ne.s32.totalorder %s19, %s22
    %p31 = scmp.eq.s32.totalorder %s14, 3
    %p32 = por %p30, %p31
    %p33 = scmp.ne.s32.totalorder %s22, %s23
    %p34 = scmp.eq.s32.totalorder %s14, 0
    %p35 = por %p33, %p34
    %p36 = scmp.ne.s32.totalorder %s22, %s23
    %p37 = scmp.eq.s32.totalorder %s15, 3
    %p38 = por %p36, %p37
    %p40 = scmp.ne.s32.totalorder %s23, %s39
    %p41 = scmp.eq.s32.totalorder %s15, 0
    %p42 = por %p40, %p41
    %s44 = sadd.s32 %s43, 1
    %p47 = scmp.eq.s32.totalorder %s9, 3
    %p48 = scmp.ne.s32.totalorder %s43, %s45
    %p49 = scmp.eq.s32.totalorder %s9, 0
    %p50 = por %p48, %p49
    %p51 = scmp.ne.s32.totalorder %s43, %s45
    %p52 = scmp.eq.s32.totalorder %s14, 3
    %p53 = por %p51, %p52
    %p54 = scmp.ne.s32.totalorder %s45, %s46
    %p55 = scmp.eq.s32.totalorder %s14, 0
    %p56 = por %p54, %p55
    %p57 = scmp.ne.s32.totalorder %s45, %s46
    %p58 = scmp.eq.s32.totalorder %s15, 3
    %p59 = por %p57, %p58
    %p61 = scmp.ne.s32.totalorder %s46, %s60
    %p62 = scmp.eq.s32.totalorder %s15, 0
    %p63 = por %p61, %p62
    %s65 = sadd.s32 %s64, 1
    %p68 = scmp.eq.s32.totalorder %s9, 3
    %p69 = scmp.ne.s32.totalorder %s64, %s66
    %p70 = scmp.eq.s32.totalorder %s9, 0
    %p71 = por %p69, %p70
    %p72 = scmp.ne.s32.totalorder %s64, %s66
    %p73 = scmp.eq.s32.totalorder %s14, 3
    %p74 = por %p72, %p73
    %p75 = scmp.ne.s32.totalorder %s66, %s67
    %p76 = scmp.eq.s32.totalorder %s14, 0
    %p77 = por %p75, %p76
    %p78 = scmp.ne.s32.totalorder %s66, %s67
    %p79 = scmp.eq.s32.totalorder %s15, 3
    %p80 = por %p78, %p79
    %p82 = scmp.ne.s32.totalorder %s67, %s81
    %p83 = scmp.eq.s32.totalorder %s15, 0
    %p84 = por %p82, %p83
    %s85 = ssub.s32 %s9, %s16
    %p86 = scmp.eq.s32.totalorder %s85, 0
    %s88 = sadd.s32 %s87, 1
    %s89 = scalar_select %p86, %s87, %s88
    %p92 = pneg %p86
    %p93 = scmp.eq.s32.totalorder %s9, 3
    %p94 = por %p92, %p93
    %p95 = scmp.ne.s32.totalorder %s87, %s90
    %p96 = scmp.eq.s32.totalorder %s9, 0
    %p97 = por %p95, %p96
    %p98 = scmp.ne.s32.totalorder %s87, %s90
    %p99 = scmp.eq.s32.totalorder %s14, 3
    %p100 = por %p98, %p99
    %p101 = scmp.ne.s32.totalorder %s90, %s91
    %p102 = scmp.eq.s32.totalorder %s14, 0
    %p103 = por %p101, %p102
    %p104 = scmp.ne.s32.totalorder %s90, %s91
    %p105 = scmp.eq.s32.totalorder %s15, 3
    %p106 = por %p104, %p105
    %p108 = scmp.ne.s32.totalorder %s91, %s107
    %p109 = scmp.eq.s32.totalorder %s15, 0
    %p110 = por %p108, %p109
    %p111 = scmp.le.s32.totalorder 1, %s9
    %p112 = scmp.lt.s32.totalorder %s9, 5
    %p113 = pnand %p111, %p112
    %p114 = pneg %p113
    // Predicated region
    $region9: #{sstn_forward.3} parent=5 // pred_check
      _
    $region10: #{sstn_forward.3} parent=5 // pred_check_branch
      %116 = sbr.rel (%p113) target = $region12
    $region11: #{sstn_forward.3} parent=5 // pred_region
      %s117 = ssub.s32 %s9, 1
      // Predicated region
      $region13: #{sstn_forward.3} parent=11 // pred_check
        %p118 = pneg %p56
      $region14: #{sstn_forward.3} parent=11 // pred_check_branch
        %120 = sbr.rel (%p118) target = $region16
      $region15: #{sstn_forward.3} parent=11 // pred_region
        _
      $region16: #{sstn_forward.3} parent=11 // pred_fallthru
        _
      // Predicated region
      $region17: #{sstn_forward.3} parent=11 // pred_check
        %p121 = pneg %p77
      $region18: #{sstn_forward.3} parent=11 // pred_check_branch
        %123 = sbr.rel (%p121) target = $region20
      $region19: #{sstn_forward.3} parent=11 // pred_region
        _
      $region20: #{sstn_forward.3} parent=11 // pred_fallthru
        _
    $region12: #{sstn_forward.3} parent=5 // pred_fallthru
      _
    %p124 = scmp.lt.s32.totalorder %s9, 4
    // Predicated region
    $region21: #{sstn_forward.3} parent=5 // pred_check
      %p125 = pneg %p124
    $region22: #{sstn_forward.3} parent=5 // pred_check_branch
      %127 = sbr.rel (%p125) target = $region24
    $region23: #{sstn_forward.3} parent=5 // pred_region
      // Predicated region
      $region25: #{sstn_forward.3} parent=23 // pred_check
        %p128 = pneg %p29
      $region26: #{sstn_forward.3} parent=23 // pred_check_branch
        %130 = sbr.rel (%p128) target = $region28
      $region27: #{sstn_forward.3} parent=23 // pred_region
        %p131 = scmp.lt.s32.totalorder %s9, 3
        %s132 = scalar_select %p131, %s9, 3
        %s133 = smul.addr %s132, 180
        %s134 = smul.addr %s133, 4
        %s135 = scalar_lea.vmem %s0, %s134
      $region28: #{sstn_forward.3} parent=23 // pred_fallthru
        _
    $region24: #{sstn_forward.3} parent=5 // pred_fallthru
      _
    %p136 = scmp.le.s32.totalorder 1, %s9
    %p137 = scmp.lt.s32.totalorder %s9, 5
    %p138 = pnand %p136, %p137
    %p139 = pneg %p138
    // Predicated region
    $region29: #{sstn_forward.3} parent=5 // pred_check
      _
    $region30: #{sstn_forward.3} parent=5 // pred_check_branch
      %141 = sbr.rel (%p138) target = $region32
    $region31: #{sstn_forward.3} parent=5 // pred_region
      %s142 = ssub.s32 %s9, 1
      %p143 = scmp.lt.s32.totalorder %s14, 3
      %s144 = scalar_select %p143, %s14, 3
      %s145 = smul.addr %s144, 180
      %s146 = smul.addr %s145, 4
      %s147 = scalar_lea.vmem %s0, %s146
      %p148 = pneg %p35
      %p149 = pneg %p32
      %p150 = pneg %p56
      %p151 = pneg %p53
      %p152 = pneg %p77
      %p153 = pneg %p74
      %p154 = pneg %p103
      %p155 = pneg %p100
      %p156 = scmp.lt.s32.totalorder %s14, 3
      %s157 = scalar_select %p156, %s14, 3
      %s158 = smul.addr %s157, 30
      %s159 = smul.addr %s158, 4
      %s160 = scalar_lea.vmem %s3, %s159
      %p161 = scmp.lt.s32.totalorder %s14, 3
      %s162 = scalar_select %p161, %s14, 3
      %s163 = smul.addr %s162, 180
      %s164 = smul.addr %s163, 4
      %s165 = scalar_lea.vmem %s0, %s164
      %p166 = scmp.lt.s32.totalorder %s14, 3
      %s167 = scalar_select %p166, %s14, 3
      %s168 = smul.addr %s167, 30
      %s169 = smul.addr %s168, 4
      %s170 = scalar_lea.vmem %s3, %s169
      %v172 = vld [vmem:[%s165] sm:$0xff]
      %v173 = vld [vmem:[%s165 + $0x8] sm:$0xff]
      %v174 = vld [vmem:[%s165 + $0x10] sm:$0xff]
      %v175 = vld [vmem:[%s165 + $0x18] sm:$0xff]
      %v176 = vld [vmem:[%s165 + $0x20] sm:$0xff]
      %v177 = vld [vmem:[%s165 + $0x28] sm:$0xff]
      %v178 = vld [vmem:[%s165 + $0x30] sm:$0xff]
      %v179 = vld [vmem:[%s165 + $0x38] sm:$0xf]
      %v180 = vld [vmem:[%s165 + $0x3c] sm:$0xff]
      %v181 = vld [vmem:[%s165 + $0x44] sm:$0xff]
      %v182 = vld [vmem:[%s165 + $0x4c] sm:$0xff]
      %v183 = vld [vmem:[%s165 + $0x54] sm:$0xff]
      %v184 = vld [vmem:[%s165 + $0x5c] sm:$0xff]
      %v185 = vld [vmem:[%s165 + $0x64] sm:$0xff]
      %v186 = vld [vmem:[%s165 + $0x6c] sm:$0xff]
      %v187 = vld [vmem:[%s165 + $0x74] sm:$0xf]
      %v188 = vld [vmem:[%s165 + $0x78] sm:$0xff]
      %v189 = vld [vmem:[%s165 + $0x80] sm:$0xff]
      %v190 = vld [vmem:[%s165 + $0x88] sm:$0xff]
      %v191 = vld [vmem:[%s165 + $0x90] sm:$0xff]
      %v192 = vld [vmem:[%s165 + $0x98] sm:$0xff]
      %v193 = vld [vmem:[%s165 + $0xa0] sm:$0xff]
      %v194 = vld [vmem:[%s165 + $0xa8] sm:$0xff]
      %v195 = vld [vmem:[%s165 + $0xb0] sm:$0xf]
      %v196 = vld [vmem:[%s165 + $0xb4] sm:$0xff]
      %v197 = vld [vmem:[%s165 + $0xbc] sm:$0xff]
      %v198 = vld [vmem:[%s165 + $0xc4] sm:$0xff]
      %v199 = vld [vmem:[%s165 + $0xcc] sm:$0xff]
      %v200 = vld [vmem:[%s165 + $0xd4] sm:$0xff]
      %v201 = vld [vmem:[%s165 + $0xdc] sm:$0xff]
      %v202 = vld [vmem:[%s165 + $0xe4] sm:$0xff]
      %v203 = vld [vmem:[%s165 + $0xec] sm:$0xf]
      %v204 = vld [vmem:[%s165 + $0xf0] sm:$0xff]
      %v205 = vld [vmem:[%s165 + $0xf8] sm:$0xff]
      %v206 = vld [vmem:[%s165 + $0x100] sm:$0xff]
      %v207 = vld [vmem:[%s165 + $0x108] sm:$0xff]
      %v208 = vld [vmem:[%s165 + $0x110] sm:$0xff]
      %v209 = vld [vmem:[%s165 + $0x118] sm:$0xff]
      %v210 = vld [vmem:[%s165 + $0x120] sm:$0xff]
      %v211 = vld [vmem:[%s165 + $0x128] sm:$0xf]
      %v212 = vld [vmem:[%s165 + $0x12c] sm:$0xff]
      %v213 = vld [vmem:[%s165 + $0x134] sm:$0xff]
      %v214 = vld [vmem:[%s165 + $0x13c] sm:$0xff]
      %v215 = vld [vmem:[%s165 + $0x144] sm:$0xff]
      %v216 = vld [vmem:[%s165 + $0x14c] sm:$0xff]
      %v217 = vld [vmem:[%s165 + $0x154] sm:$0xff]
      %v218 = vld [vmem:[%s165 + $0x15c] sm:$0xff]
      %v219 = vld [vmem:[%s165 + $0x164] sm:$0xf]
      %v268 = vunpack.c.l.b16 %v172
      %v269 = vunpack.c.h.b16 %v172
      %v270 = vunpack.c.l.b16 %v173
      %v271 = vunpack.c.h.b16 %v173
      %v272 = vunpack.c.l.b16 %v174
      %v273 = vunpack.c.h.b16 %v174
      %v274 = vunpack.c.l.b16 %v175
      %v275 = vunpack.c.h.b16 %v175
      %v276 = vunpack.c.l.b16 %v176
      %v277 = vunpack.c.h.b16 %v176
      %v278 = vunpack.c.l.b16 %v177
      %v279 = vunpack.c.h.b16 %v177
      %v280 = vunpack.c.l.b16 %v178
      %v281 = vunpack.c.h.b16 %v178
      %v282 = vunpack.c.l.b16 %v179
      %v283 = vunpack.c.l.b16 %v180
      %v284 = vunpack.c.h.b16 %v180
      %v285 = vunpack.c.l.b16 %v181
      %v286 = vunpack.c.h.b16 %v181
      %v287 = vunpack.c.l.b16 %v182
      %v288 = vunpack.c.h.b16 %v182
      %v289 = vunpack.c.l.b16 %v183
      %v290 = vunpack.c.h.b16 %v183
      %v291 = vunpack.c.l.b16 %v184
      %v292 = vunpack.c.h.b16 %v184
      %v293 = vunpack.c.l.b16 %v185
      %v294 = vunpack.c.h.b16 %v185
      %v295 = vunpack.c.l.b16 %v186
      %v296 = vunpack.c.h.b16 %v186
      %v297 = vunpack.c.l.b16 %v187
      %v298 = vunpack.c.l.b16 %v188
      %v299 = vunpack.c.h.b16 %v188
      %v300 = vunpack.c.l.b16 %v189
      %v301 = vunpack.c.h.b16 %v189
      %v302 = vunpack.c.l.b16 %v190
      %v303 = vunpack.c.h.b16 %v190
      %v304 = vunpack.c.l.b16 %v191
      %v305 = vunpack.c.h.b16 %v191
      %v306 = vunpack.c.l.b16 %v192
      %v307 = vunpack.c.h.b16 %v192
      %v308 = vunpack.c.l.b16 %v193
      %v309 = vunpack.c.h.b16 %v193
      %v310 = vunpack.c.l.b16 %v194
      %v311 = vunpack.c.h.b16 %v194
      %v312 = vunpack.c.l.b16 %v195
      %v313 = vunpack.c.l.b16 %v196
      %v314 = vunpack.c.h.b16 %v196
      %v315 = vunpack.c.l.b16 %v197
      %v316 = vunpack.c.h.b16 %v197
      %v317 = vunpack.c.l.b16 %v198
      %v318 = vunpack.c.h.b16 %v198
      %v319 = vunpack.c.l.b16 %v199
      %v320 = vunpack.c.h.b16 %v199
      %v321 = vunpack.c.l.b16 %v200
      %v322 = vunpack.c.h.b16 %v200
      %v323 = vunpack.c.l.b16 %v201
      %v324 = vunpack.c.h.b16 %v201
      %v325 = vunpack.c.l.b16 %v202
      %v326 = vunpack.c.h.b16 %v202
      %v327 = vunpack.c.l.b16 %v203
      %v328 = vunpack.c.l.b16 %v204
      %v329 = vunpack.c.h.b16 %v204
      %v330 = vunpack.c.l.b16 %v205
      %v331 = vunpack.c.h.b16 %v205
      %v332 = vunpack.c.l.b16 %v206
      %v333 = vunpack.c.h.b16 %v206
      %v334 = vunpack.c.l.b16 %v207
      %v335 = vunpack.c.h.b16 %v207
      %v336 = vunpack.c.l.b16 %v208
      %v337 = vunpack.c.h.b16 %v208
      %v338 = vunpack.c.l.b16 %v209
      %v339 = vunpack.c.h.b16 %v209
      %v340 = vunpack.c.l.b16 %v210
      %v341 = vunpack.c.h.b16 %v210
      %v342 = vunpack.c.l.b16 %v211
      %v343 = vunpack.c.l.b16 %v212
      %v344 = vunpack.c.h.b16 %v212
      %v345 = vunpack.c.l.b16 %v213
      %v346 = vunpack.c.h.b16 %v213
      %v347 = vunpack.c.l.b16 %v214
      %v348 = vunpack.c.h.b16 %v214
      %v349 = vunpack.c.l.b16 %v215
      %v350 = vunpack.c.h.b16 %v215
      %v351 = vunpack.c.l.b16 %v216
      %v352 = vunpack.c.h.b16 %v216
      %v353 = vunpack.c.l.b16 %v217
      %v354 = vunpack.c.h.b16 %v217
      %v355 = vunpack.c.l.b16 %v218
      %v356 = vunpack.c.h.b16 %v218
      %v357 = vunpack.c.l.b16 %v219
      %v358 = vpack.c.b16 %v283, %v268
      %v359 = vpack.c.b16 %v284, %v269
      %v360 = vpack.c.b16 %v285, %v270
      %v361 = vpack.c.b16 %v286, %v271
      %v362 = vpack.c.b16 %v287, %v272
      %v363 = vpack.c.b16 %v288, %v273
      %v364 = vpack.c.b16 %v289, %v274
      %v365 = vpack.c.b16 %v290, %v275
      %v366 = vpack.c.b16 %v291, %v276
      %v367 = vpack.c.b16 %v292, %v277
      %v368 = vpack.c.b16 %v293, %v278
      %v369 = vpack.c.b16 %v294, %v279
      %v370 = vpack.c.b16 %v295, %v280
      %v371 = vpack.c.b16 %v296, %v281
      %v372 = vpack.c.b16 %v297, %v282
      %v373 = vpack.c.b16 %v313, %v298
      %v374 = vpack.c.b16 %v314, %v299
      %v375 = vpack.c.b16 %v315, %v300
      %v376 = vpack.c.b16 %v316, %v301
      %v377 = vpack.c.b16 %v317, %v302
      %v378 = vpack.c.b16 %v318, %v303
      %v379 = vpack.c.b16 %v319, %v304
      %v380 = vpack.c.b16 %v320, %v305
      %v381 = vpack.c.b16 %v321, %v306
      %v382 = vpack.c.b16 %v322, %v307
      %v383 = vpack.c.b16 %v323, %v308
      %v384 = vpack.c.b16 %v324, %v309
      %v385 = vpack.c.b16 %v325, %v310
      %v386 = vpack.c.b16 %v326, %v311
      %v387 = vpack.c.b16 %v327, %v312
      %v388 = vpack.c.b16 %v343, %v328
      %v389 = vpack.c.b16 %v344, %v329
      %v390 = vpack.c.b16 %v345, %v330
      %v391 = vpack.c.b16 %v346, %v331
      %v392 = vpack.c.b16 %v347, %v332
      %v393 = vpack.c.b16 %v348, %v333
      %v394 = vpack.c.b16 %v349, %v334
      %v395 = vpack.c.b16 %v350, %v335
      %v396 = vpack.c.b16 %v351, %v336
      %v397 = vpack.c.b16 %v352, %v337
      %v398 = vpack.c.b16 %v353, %v338
      %v399 = vpack.c.b16 %v354, %v339
      %v400 = vpack.c.b16 %v355, %v340
      %v401 = vpack.c.b16 %v356, %v341
      %v402 = vpack.c.b16 %v357, %v342
      %448 = vst [vmem:[#allocation2] sm:$0xff] %v358
      %449 = vst [vmem:[#allocation2 + $0x8] sm:$0xff] %v359
      %450 = vst [vmem:[#allocation2 + $0x10] sm:$0xff] %v360
      %451 = vst [vmem:[#allocation2 + $0x18] sm:$0xff] %v361
      %452 = vst [vmem:[#allocation2 + $0x20] sm:$0xff] %v362
      %453 = vst [vmem:[#allocation2 + $0x28] sm:$0xff] %v363
      %454 = vst [vmem:[#allocation2 + $0x30] sm:$0xff] %v364
      %455 = vst [vmem:[#allocation2 + $0x38] sm:$0xff] %v365
      %456 = vst [vmem:[#allocation2 + $0x40] sm:$0xff] %v366
      %457 = vst [vmem:[#allocation2 + $0x48] sm:$0xff] %v367
      %458 = vst [vmem:[#allocation2 + $0x50] sm:$0xff] %v368
      %459 = vst [vmem:[#allocation2 + $0x58] sm:$0xff] %v369
      %460 = vst [vmem:[#allocation2 + $0x60] sm:$0xff] %v370
      %461 = vst [vmem:[#allocation2 + $0x68] sm:$0xff] %v371
      %vm462 = vcmask 465920
      %463 = vst.msk [vmem:[#allocation2 + $0x70] sm:$0xff] %vm462, %v372
      %464 = vst [vmem:[#allocation2 + $0x78] sm:$0xff] %v373
      %465 = vst [vmem:[#allocation2 + $0x80] sm:$0xff] %v374
      %466 = vst [vmem:[#allocation2 + $0x88] sm:$0xff] %v375
      %467 = vst [vmem:[#allocation2 + $0x90] sm:$0xff] %v376
      %468 = vst [vmem:[#allocation2 + $0x98] sm:$0xff] %v377
      %469 = vst [vmem:[#allocation2 + $0xa0] sm:$0xff] %v378
      %470 = vst [vmem:[#allocation2 + $0xa8] sm:$0xff] %v379
      %471 = vst [vmem:[#allocation2 + $0xb0] sm:$0xff] %v380
      %472 = vst [vmem:[#allocation2 + $0xb8] sm:$0xff] %v381
      %473 = vst [vmem:[#allocation2 + $0xc0] sm:$0xff] %v382
      %474 = vst [vmem:[#allocation2 + $0xc8] sm:$0xff] %v383
      %475 = vst [vmem:[#allocation2 + $0xd0] sm:$0xff] %v384
      %476 = vst [vmem:[#allocation2 + $0xd8] sm:$0xff] %v385
      %477 = vst [vmem:[#allocation2 + $0xe0] sm:$0xff] %v386
      %478 = vst.msk [vmem:[#allocation2 + $0xe8] sm:$0xff] %vm462, %v387
      %479 = vst [vmem:[#allocation2 + $0xf0] sm:$0xff] %v388
      %480 = vst [vmem:[#allocation2 + $0xf8] sm:$0xff] %v389
      %481 = vst [vmem:[#allocation2 + $0x100] sm:$0xff] %v390
      %482 = vst [vmem:[#allocation2 + $0x108] sm:$0xff] %v391
      %483 = vst [vmem:[#allocation2 + $0x110] sm:$0xff] %v392
      %484 = vst [vmem:[#allocation2 + $0x118] sm:$0xff] %v393
      %485 = vst [vmem:[#allocation2 + $0x120] sm:$0xff] %v394
      %486 = vst [vmem:[#allocation2 + $0x128] sm:$0xff] %v395
      %487 = vst [vmem:[#allocation2 + $0x130] sm:$0xff] %v396
      %488 = vst [vmem:[#allocation2 + $0x138] sm:$0xff] %v397
      %489 = vst [vmem:[#allocation2 + $0x140] sm:$0xff] %v398
      %490 = vst [vmem:[#allocation2 + $0x148] sm:$0xff] %v399
      %491 = vst [vmem:[#allocation2 + $0x150] sm:$0xff] %v400
      %492 = vst [vmem:[#allocation2 + $0x158] sm:$0xff] %v401
      %493 = vst.msk [vmem:[#allocation2 + $0x160] sm:$0xff] %vm462, %v402
      %s494 = scalar_lea.vmem %s165, 360
      %v495 = vld [vmem:[%s494] sm:$0xff]
      %v496 = vld [vmem:[%s494 + $0x8] sm:$0xff]
      %v497 = vld [vmem:[%s494 + $0x10] sm:$0xff]
      %v498 = vld [vmem:[%s494 + $0x18] sm:$0xff]
      %v499 = vld [vmem:[%s494 + $0x20] sm:$0xff]
      %v500 = vld [vmem:[%s494 + $0x28] sm:$0xff]
      %v501 = vld [vmem:[%s494 + $0x30] sm:$0xff]
      %v502 = vld [vmem:[%s494 + $0x38] sm:$0xf]
      %v503 = vld [vmem:[%s494 + $0x3c] sm:$0xff]
      %v504 = vld [vmem:[%s494 + $0x44] sm:$0xff]
      %v505 = vld [vmem:[%s494 + $0x4c] sm:$0xff]
      %v506 = vld [vmem:[%s494 + $0x54] sm:$0xff]
      %v507 = vld [vmem:[%s494 + $0x5c] sm:$0xff]
      %v508 = vld [vmem:[%s494 + $0x64] sm:$0xff]
      %v509 = vld [vmem:[%s494 + $0x6c] sm:$0xff]
      %v510 = vld [vmem:[%s494 + $0x74] sm:$0xf]
      %v511 = vld [vmem:[%s494 + $0x78] sm:$0xff]
      %v512 = vld [vmem:[%s494 + $0x80] sm:$0xff]
      %v513 = vld [vmem:[%s494 + $0x88] sm:$0xff]
      %v514 = vld [vmem:[%s494 + $0x90] sm:$0xff]
      %v515 = vld [vmem:[%s494 + $0x98] sm:$0xff]
      %v516 = vld [vmem:[%s494 + $0xa0] sm:$0xff]
      %v517 = vld [vmem:[%s494 + $0xa8] sm:$0xff]
      %v518 = vld [vmem:[%s494 + $0xb0] sm:$0xf]
      %v519 = vld [vmem:[%s494 + $0xb4] sm:$0xff]
      %v520 = vld [vmem:[%s494 + $0xbc] sm:$0xff]
      %v521 = vld [vmem:[%s494 + $0xc4] sm:$0xff]
      %v522 = vld [vmem:[%s494 + $0xcc] sm:$0xff]
      %v523 = vld [vmem:[%s494 + $0xd4] sm:$0xff]
      %v524 = vld [vmem:[%s494 + $0xdc] sm:$0xff]
      %v525 = vld [vmem:[%s494 + $0xe4] sm:$0xff]
      %v526 = vld [vmem:[%s494 + $0xec] sm:$0xf]
      %v527 = vld [vmem:[%s494 + $0xf0] sm:$0xff]
      %v528 = vld [vmem:[%s494 + $0xf8] sm:$0xff]
      %v529 = vld [vmem:[%s494 + $0x100] sm:$0xff]
      %v530 = vld [vmem:[%s494 + $0x108] sm:$0xff]
      %v531 = vld [vmem:[%s494 + $0x110] sm:$0xff]
      %v532 = vld [vmem:[%s494 + $0x118] sm:$0xff]
      %v533 = vld [vmem:[%s494 + $0x120] sm:$0xff]
      %v534 = vld [vmem:[%s494 + $0x128] sm:$0xf]
      %v535 = vld [vmem:[%s494 + $0x12c] sm:$0xff]
      %v536 = vld [vmem:[%s494 + $0x134] sm:$0xff]
      %v537 = vld [vmem:[%s494 + $0x13c] sm:$0xff]
      %v538 = vld [vmem:[%s494 + $0x144] sm:$0xff]
      %v539 = vld [vmem:[%s494 + $0x14c] sm:$0xff]
      %v540 = vld [vmem:[%s494 + $0x154] sm:$0xff]
      %v541 = vld [vmem:[%s494 + $0x15c] sm:$0xff]
      %v542 = vld [vmem:[%s494 + $0x164] sm:$0xf]
      %v591 = vunpack.c.l.b16 %v495
      %v592 = vunpack.c.h.b16 %v495
      %v593 = vunpack.c.l.b16 %v496
      %v594 = vunpack.c.h.b16 %v496
      %v595 = vunpack.c.l.b16 %v497
      %v596 = vunpack.c.h.b16 %v497
      %v597 = vunpack.c.l.b16 %v498
      %v598 = vunpack.c.h.b16 %v498
      %v599 = vunpack.c.l.b16 %v499
      %v600 = vunpack.c.h.b16 %v499
      %v601 = vunpack.c.l.b16 %v500
      %v602 = vunpack.c.h.b16 %v500
      %v603 = vunpack.c.l.b16 %v501
      %v604 = vunpack.c.h.b16 %v501
      %v605 = vunpack.c.l.b16 %v502
      %v606 = vunpack.c.l.b16 %v503
      %v607 = vunpack.c.h.b16 %v503
      %v608 = vunpack.c.l.b16 %v504
      %v609 = vunpack.c.h.b16 %v504
      %v610 = vunpack.c.l.b16 %v505
      %v611 = vunpack.c.h.b16 %v505
      %v612 = vunpack.c.l.b16 %v506
      %v613 = vunpack.c.h.b16 %v506
      %v614 = vunpack.c.l.b16 %v507
      %v615 = vunpack.c.h.b16 %v507
      %v616 = vunpack.c.l.b16 %v508
      %v617 = vunpack.c.h.b16 %v508
      %v618 = vunpack.c.l.b16 %v509
      %v619 = vunpack.c.h.b16 %v509
      %v620 = vunpack.c.l.b16 %v510
      %v621 = vunpack.c.l.b16 %v511
      %v622 = vunpack.c.h.b16 %v511
      %v623 = vunpack.c.l.b16 %v512
      %v624 = vunpack.c.h.b16 %v512
      %v625 = vunpack.c.l.b16 %v513
      %v626 = vunpack.c.h.b16 %v513
      %v627 = vunpack.c.l.b16 %v514
      %v628 = vunpack.c.h.b16 %v514
      %v629 = vunpack.c.l.b16 %v515
      %v630 = vunpack.c.h.b16 %v515
      %v631 = vunpack.c.l.b16 %v516
      %v632 = vunpack.c.h.b16 %v516
      %v633 = vunpack.c.l.b16 %v517
      %v634 = vunpack.c.h.b16 %v517
      %v635 = vunpack.c.l.b16 %v518
      %v636 = vunpack.c.l.b16 %v519
      %v637 = vunpack.c.h.b16 %v519
      %v638 = vunpack.c.l.b16 %v520
      %v639 = vunpack.c.h.b16 %v520
      %v640 = vunpack.c.l.b16 %v521
      %v641 = vunpack.c.h.b16 %v521
      %v642 = vunpack.c.l.b16 %v522
      %v643 = vunpack.c.h.b16 %v522
      %v644 = vunpack.c.l.b16 %v523
      %v645 = vunpack.c.h.b16 %v523
      %v646 = vunpack.c.l.b16 %v524
      %v647 = vunpack.c.h.b16 %v524
      %v648 = vunpack.c.l.b16 %v525
      %v649 = vunpack.c.h.b16 %v525
      %v650 = vunpack.c.l.b16 %v526
      %v651 = vunpack.c.l.b16 %v527
      %v652 = vunpack.c.h.b16 %v527
      %v653 = vunpack.c.l.b16 %v528
      %v654 = vunpack.c.h.b16 %v528
      %v655 = vunpack.c.l.b16 %v529
      %v656 = vunpack.c.h.b16 %v529
      %v657 = vunpack.c.l.b16 %v530
      %v658 = vunpack.c.h.b16 %v530
      %v659 = vunpack.c.l.b16 %v531
      %v660 = vunpack.c.h.b16 %v531
      %v661 = vunpack.c.l.b16 %v532
      %v662 = vunpack.c.h.b16 %v532
      %v663 = vunpack.c.l.b16 %v533
      %v664 = vunpack.c.h.b16 %v533
      %v665 = vunpack.c.l.b16 %v534
      %v666 = vunpack.c.l.b16 %v535
      %v667 = vunpack.c.h.b16 %v535
      %v668 = vunpack.c.l.b16 %v536
      %v669 = vunpack.c.h.b16 %v536
      %v670 = vunpack.c.l.b16 %v537
      %v671 = vunpack.c.h.b16 %v537
      %v672 = vunpack.c.l.b16 %v538
      %v673 = vunpack.c.h.b16 %v538
      %v674 = vunpack.c.l.b16 %v539
      %v675 = vunpack.c.h.b16 %v539
      %v676 = vunpack.c.l.b16 %v540
      %v677 = vunpack.c.h.b16 %v540
      %v678 = vunpack.c.l.b16 %v541
      %v679 = vunpack.c.h.b16 %v541
      %v680 = vunpack.c.l.b16 %v542
      %v681 = vpack.c.b16 %v606, %v591
      %v682 = vpack.c.b16 %v607, %v592
      %v683 = vpack.c.b16 %v608, %v593
      %v684 = vpack.c.b16 %v609, %v594
      %v685 = vpack.c.b16 %v610, %v595
      %v686 = vpack.c.b16 %v611, %v596
      %v687 = vpack.c.b16 %v612, %v597
      %v688 = vpack.c.b16 %v613, %v598
      %v689 = vpack.c.b16 %v614, %v599
      %v690 = vpack.c.b16 %v615, %v600
      %v691 = vpack.c.b16 %v616, %v601
      %v692 = vpack.c.b16 %v617, %v602
      %v693 = vpack.c.b16 %v618, %v603
      %v694 = vpack.c.b16 %v619, %v604
      %v695 = vpack.c.b16 %v620, %v605
      %v696 = vpack.c.b16 %v636, %v621
      %v697 = vpack.c.b16 %v637, %v622
      %v698 = vpack.c.b16 %v638, %v623
      %v699 = vpack.c.b16 %v639, %v624
      %v700 = vpack.c.b16 %v640, %v625
      %v701 = vpack.c.b16 %v641, %v626
      %v702 = vpack.c.b16 %v642, %v627
      %v703 = vpack.c.b16 %v643, %v628
      %v704 = vpack.c.b16 %v644, %v629
      %v705 = vpack.c.b16 %v645, %v630
      %v706 = vpack.c.b16 %v646, %v631
      %v707 = vpack.c.b16 %v647, %v632
      %v708 = vpack.c.b16 %v648, %v633
      %v709 = vpack.c.b16 %v649, %v634
      %v710 = vpack.c.b16 %v650, %v635
      %v711 = vpack.c.b16 %v666, %v651
      %v712 = vpack.c.b16 %v667, %v652
      %v713 = vpack.c.b16 %v668, %v653
      %v714 = vpack.c.b16 %v669, %v654
      %v715 = vpack.c.b16 %v670, %v655
      %v716 = vpack.c.b16 %v671, %v656
      %v717 = vpack.c.b16 %v672, %v657
      %v718 = vpack.c.b16 %v673, %v658
      %v719 = vpack.c.b16 %v674, %v659
      %v720 = vpack.c.b16 %v675, %v660
      %v721 = vpack.c.b16 %v676, %v661
      %v722 = vpack.c.b16 %v677, %v662
      %v723 = vpack.c.b16 %v678, %v663
      %v724 = vpack.c.b16 %v679, %v664
      %v725 = vpack.c.b16 %v680, %v665
      %771 = vst [vmem:[#allocation2 + $0x168] sm:$0xff] %v681
      %772 = vst [vmem:[#allocation2 + $0x170] sm:$0xff] %v682
      %773 = vst [vmem:[#allocation2 + $0x178] sm:$0xff] %v683
      %774 = vst [vmem:[#allocation2 + $0x180] sm:$0xff] %v684
      %775 = vst [vmem:[#allocation2 + $0x188] sm:$0xff] %v685
      %776 = vst [vmem:[#allocation2 + $0x190] sm:$0xff] %v686
      %777 = vst [vmem:[#allocation2 + $0x198] sm:$0xff] %v687
      %778 = vst [vmem:[#allocation2 + $0x1a0] sm:$0xff] %v688
      %779 = vst [vmem:[#allocation2 + $0x1a8] sm:$0xff] %v689
      %780 = vst [vmem:[#allocation2 + $0x1b0] sm:$0xff] %v690
      %781 = vst [vmem:[#allocation2 + $0x1b8] sm:$0xff] %v691
      %782 = vst [vmem:[#allocation2 + $0x1c0] sm:$0xff] %v692
      %783 = vst [vmem:[#allocation2 + $0x1c8] sm:$0xff] %v693
      %784 = vst [vmem:[#allocation2 + $0x1d0] sm:$0xff] %v694
      %785 = vst.msk [vmem:[#allocation2 + $0x1d8] sm:$0xff] %vm462, %v695
      %786 = vst [vmem:[#allocation2 + $0x1e0] sm:$0xff] %v696
      %787 = vst [vmem:[#allocation2 + $0x1e8] sm:$0xff] %v697
      %788 = vst [vmem:[#allocation2 + $0x1f0] sm:$0xff] %v698
      %789 = vst [vmem:[#allocation2 + $0x1f8] sm:$0xff] %v699
      %790 = vst [vmem:[#allocation2 + $0x200] sm:$0xff] %v700
      %791 = vst [vmem:[#allocation2 + $0x208] sm:$0xff] %v701
      %792 = vst [vmem:[#allocation2 + $0x210] sm:$0xff] %v702
      %793 = vst [vmem:[#allocation2 + $0x218] sm:$0xff] %v703
      %794 = vst [vmem:[#allocation2 + $0x220] sm:$0xff] %v704
      %795 = vst [vmem:[#allocation2 + $0x228] sm:$0xff] %v705
      %796 = vst [vmem:[#allocation2 + $0x230] sm:$0xff] %v706
      %797 = vst [vmem:[#allocation2 + $0x238] sm:$0xff] %v707
      %798 = vst [vmem:[#allocation2 + $0x240] sm:$0xff] %v708
      %799 = vst [vmem:[#allocation2 + $0x248] sm:$0xff] %v709
      %800 = vst.msk [vmem:[#allocation2 + $0x250] sm:$0xff] %vm462, %v710
      %801 = vst [vmem:[#allocation2 + $0x258] sm:$0xff] %v711
      %802 = vst [vmem:[#allocation2 + $0x260] sm:$0xff] %v712
      %803 = vst [vmem:[#allocation2 + $0x268] sm:$0xff] %v713
      %804 = vst [vmem:[#allocation2 + $0x270] sm:$0xff] %v714
      %805 = vst [vmem:[#allocation2 + $0x278] sm:$0xff] %v715
      %806 = vst [vmem:[#allocation2 + $0x280] sm:$0xff] %v716
      %807 = vst [vmem:[#allocation2 + $0x288] sm:$0xff] %v717
      %808 = vst [vmem:[#allocation2 + $0x290] sm:$0xff] %v718
      %809 = vst [vmem:[#allocation2 + $0x298] sm:$0xff] %v719
      %810 = vst [vmem:[#allocation2 + $0x2a0] sm:$0xff] %v720
      %811 = vst [vmem:[#allocation2 + $0x2a8] sm:$0xff] %v721
      %812 = vst [vmem:[#allocation2 + $0x2b0] sm:$0xff] %v722
      %813 = vst [vmem:[#allocation2 + $0x2b8] sm:$0xff] %v723
      %814 = vst [vmem:[#allocation2 + $0x2c0] sm:$0xff] %v724
      %815 = vst.msk [vmem:[#allocation2 + $0x2c8] sm:$0xff] %vm462, %v725
      %v816 = vld [vmem:[%s165] sm:$0xff]
      %v817 = vld [vmem:[%s165 + $0x8] sm:$0xff]
      %v818 = vld [vmem:[%s165 + $0x10] sm:$0xff]
      %v819 = vld [vmem:[%s165 + $0x18] sm:$0xff]
      %v820 = vld [vmem:[%s165 + $0x20] sm:$0xff]
      %v821 = vld [vmem:[%s165 + $0x28] sm:$0xff]
      %v822 = vld [vmem:[%s165 + $0x30] sm:$0xff]
      %v823 = vld [vmem:[%s165 + $0x38] sm:$0xf]
      %v824 = vld [vmem:[%s165 + $0x3c] sm:$0xff]
      %v825 = vld [vmem:[%s165 + $0x44] sm:$0xff]
      %v826 = vld [vmem:[%s165 + $0x4c] sm:$0xff]
      %v827 = vld [vmem:[%s165 + $0x54] sm:$0xff]
      %v828 = vld [vmem:[%s165 + $0x5c] sm:$0xff]
      %v829 = vld [vmem:[%s165 + $0x64] sm:$0xff]
      %v830 = vld [vmem:[%s165 + $0x6c] sm:$0xff]
      %v831 = vld [vmem:[%s165 + $0x74] sm:$0xf]
      %v832 = vld [vmem:[%s165 + $0x78] sm:$0xff]
      %v833 = vld [vmem:[%s165 + $0x80] sm:$0xff]
      %v834 = vld [vmem:[%s165 + $0x88] sm:$0xff]
      %v835 = vld [vmem:[%s165 + $0x90] sm:$0xff]
      %v836 = vld [vmem:[%s165 + $0x98] sm:$0xff]
      %v837 = vld [vmem:[%s165 + $0xa0] sm:$0xff]
      %v838 = vld [vmem:[%s165 + $0xa8] sm:$0xff]
      %v839 = vld [vmem:[%s165 + $0xb0] sm:$0xf]
      %v840 = vld [vmem:[%s165 + $0xb4] sm:$0xff]
      %v841 = vld [vmem:[%s165 + $0xbc] sm:$0xff]
      %v842 = vld [vmem:[%s165 + $0xc4] sm:$0xff]
      %v843 = vld [vmem:[%s165 + $0xcc] sm:$0xff]
      %v844 = vld [vmem:[%s165 + $0xd4] sm:$0xff]
      %v845 = vld [vmem:[%s165 + $0xdc] sm:$0xff]
      %v846 = vld [vmem:[%s165 + $0xe4] sm:$0xff]
      %v847 = vld [vmem:[%s165 + $0xec] sm:$0xf]
      %v848 = vld [vmem:[%s165 + $0xf0] sm:$0xff]
      %v849 = vld [vmem:[%s165 + $0xf8] sm:$0xff]
      %v850 = vld [vmem:[%s165 + $0x100] sm:$0xff]
      %v851 = vld [vmem:[%s165 + $0x108] sm:$0xff]
      %v852 = vld [vmem:[%s165 + $0x110] sm:$0xff]
      %v853 = vld [vmem:[%s165 + $0x118] sm:$0xff]
      %v854 = vld [vmem:[%s165 + $0x120] sm:$0xff]
      %v855 = vld [vmem:[%s165 + $0x128] sm:$0xf]
      %v856 = vld [vmem:[%s165 + $0x12c] sm:$0xff]
      %v857 = vld [vmem:[%s165 + $0x134] sm:$0xff]
      %v858 = vld [vmem:[%s165 + $0x13c] sm:$0xff]
      %v859 = vld [vmem:[%s165 + $0x144] sm:$0xff]
      %v860 = vld [vmem:[%s165 + $0x14c] sm:$0xff]
      %v861 = vld [vmem:[%s165 + $0x154] sm:$0xff]
      %v862 = vld [vmem:[%s165 + $0x15c] sm:$0xff]
      %v863 = vld [vmem:[%s165 + $0x164] sm:$0xf]
      %v912 = vunpack.c.l.b16 %v816
      %v913 = vunpack.c.h.b16 %v816
      %v914 = vunpack.c.l.b16 %v817
      %v915 = vunpack.c.h.b16 %v817
      %v916 = vunpack.c.l.b16 %v818
      %v917 = vunpack.c.h.b16 %v818
      %v918 = vunpack.c.l.b16 %v819
      %v919 = vunpack.c.h.b16 %v819
      %v920 = vunpack.c.l.b16 %v820
      %v921 = vunpack.c.h.b16 %v820
      %v922 = vunpack.c.l.b16 %v821
      %v923 = vunpack.c.h.b16 %v821
      %v924 = vunpack.c.l.b16 %v822
      %v925 = vunpack.c.h.b16 %v822
      %v926 = vunpack.c.l.b16 %v823
      %v927 = vunpack.c.l.b16 %v824
      %v928 = vunpack.c.h.b16 %v824
      %v929 = vunpack.c.l.b16 %v825
      %v930 = vunpack.c.h.b16 %v825
      %v931 = vunpack.c.l.b16 %v826
      %v932 = vunpack.c.h.b16 %v826
      %v933 = vunpack.c.l.b16 %v827
      %v934 = vunpack.c.h.b16 %v827
      %v935 = vunpack.c.l.b16 %v828
      %v936 = vunpack.c.h.b16 %v828
      %v937 = vunpack.c.l.b16 %v829
      %v938 = vunpack.c.h.b16 %v829
      %v939 = vunpack.c.l.b16 %v830
      %v940 = vunpack.c.h.b16 %v830
      %v941 = vunpack.c.l.b16 %v831
      %v942 = vunpack.c.l.b16 %v832
      %v943 = vunpack.c.h.b16 %v832
      %v944 = vunpack.c.l.b16 %v833
      %v945 = vunpack.c.h.b16 %v833
      %v946 = vunpack.c.l.b16 %v834
      %v947 = vunpack.c.h.b16 %v834
      %v948 = vunpack.c.l.b16 %v835
      %v949 = vunpack.c.h.b16 %v835
      %v950 = vunpack.c.l.b16 %v836
      %v951 = vunpack.c.h.b16 %v836
      %v952 = vunpack.c.l.b16 %v837
      %v953 = vunpack.c.h.b16 %v837
      %v954 = vunpack.c.l.b16 %v838
      %v955 = vunpack.c.h.b16 %v838
      %v956 = vunpack.c.l.b16 %v839
      %v957 = vunpack.c.l.b16 %v840
      %v958 = vunpack.c.h.b16 %v840
      %v959 = vunpack.c.l.b16 %v841
      %v960 = vunpack.c.h.b16 %v841
      %v961 = vunpack.c.l.b16 %v842
      %v962 = vunpack.c.h.b16 %v842
      %v963 = vunpack.c.l.b16 %v843
      %v964 = vunpack.c.h.b16 %v843
      %v965 = vunpack.c.l.b16 %v844
      %v966 = vunpack.c.h.b16 %v844
      %v967 = vunpack.c.l.b16 %v845
      %v968 = vunpack.c.h.b16 %v845
      %v969 = vunpack.c.l.b16 %v846
      %v970 = vunpack.c.h.b16 %v846
      %v971 = vunpack.c.l.b16 %v847
      %v972 = vunpack.c.l.b16 %v848
      %v973 = vunpack.c.h.b16 %v848
      %v974 = vunpack.c.l.b16 %v849
      %v975 = vunpack.c.h.b16 %v849
      %v976 = vunpack.c.l.b16 %v850
      %v977 = vunpack.c.h.b16 %v850
      %v978 = vunpack.c.l.b16 %v851
      %v979 = vunpack.c.h.b16 %v851
      %v980 = vunpack.c.l.b16 %v852
      %v981 = vunpack.c.h.b16 %v852
      %v982 = vunpack.c.l.b16 %v853
      %v983 = vunpack.c.h.b16 %v853
      %v984 = vunpack.c.l.b16 %v854
      %v985 = vunpack.c.h.b16 %v854
      %v986 = vunpack.c.l.b16 %v855
      %v987 = vunpack.c.l.b16 %v856
      %v988 = vunpack.c.h.b16 %v856
      %v989 = vunpack.c.l.b16 %v857
      %v990 = vunpack.c.h.b16 %v857
      %v991 = vunpack.c.l.b16 %v858
      %v992 = vunpack.c.h.b16 %v858
      %v993 = vunpack.c.l.b16 %v859
      %v994 = vunpack.c.h.b16 %v859
      %v995 = vunpack.c.l.b16 %v860
      %v996 = vunpack.c.h.b16 %v860
      %v997 = vunpack.c.l.b16 %v861
      %v998 = vunpack.c.h.b16 %v861
      %v999 = vunpack.c.l.b16 %v862
      %v1000 = vunpack.c.h.b16 %v862
      %v1001 = vunpack.c.l.b16 %v863
      %v1002 = vpack.c.b16 %v927, %v912
      %v1003 = vpack.c.b16 %v928, %v913
      %v1004 = vpack.c.b16 %v929, %v914
      %v1005 = vpack.c.b16 %v930, %v915
      %v1006 = vpack.c.b16 %v931, %v916
      %v1007 = vpack.c.b16 %v932, %v917
      %v1008 = vpack.c.b16 %v933, %v918
      %v1009 = vpack.c.b16 %v934, %v919
      %v1010 = vpack.c.b16 %v935, %v920
      %v1011 = vpack.c.b16 %v936, %v921
      %v1012 = vpack.c.b16 %v937, %v922
      %v1013 = vpack.c.b16 %v938, %v923
      %v1014 = vpack.c.b16 %v939, %v924
      %v1015 = vpack.c.b16 %v940, %v925
      %v1016 = vpack.c.b16 %v941, %v926
      %v1017 = vpack.c.b16 %v957, %v942
      %v1018 = vpack.c.b16 %v958, %v943
      %v1019 = vpack.c.b16 %v959, %v944
      %v1020 = vpack.c.b16 %v960, %v945
      %v1021 = vpack.c.b16 %v961, %v946
      %v1022 = vpack.c.b16 %v962, %v947
      %v1023 = vpack.c.b16 %v963, %v948
      %v1024 = vpack.c.b16 %v964, %v949
      %v1025 = vpack.c.b16 %v965, %v950
      %v1026 = vpack.c.b16 %v966, %v951
      %v1027 = vpack.c.b16 %v967, %v952
      %v1028 = vpack.c.b16 %v968, %v953
      %v1029 = vpack.c.b16 %v969, %v954
      %v1030 = vpack.c.b16 %v970, %v955
      %v1031 = vpack.c.b16 %v971, %v956
      %v1032 = vpack.c.b16 %v987, %v972
      %v1033 = vpack.c.b16 %v988, %v973
      %v1034 = vpack.c.b16 %v989, %v974
      %v1035 = vpack.c.b16 %v990, %v975
      %v1036 = vpack.c.b16 %v991, %v976
      %v1037 = vpack.c.b16 %v992, %v977
      %v1038 = vpack.c.b16 %v993, %v978
      %v1039 = vpack.c.b16 %v994, %v979
      %v1040 = vpack.c.b16 %v995, %v980
      %v1041 = vpack.c.b16 %v996, %v981
      %v1042 = vpack.c.b16 %v997, %v982
      %v1043 = vpack.c.b16 %v998, %v983
      %v1044 = vpack.c.b16 %v999, %v984
      %v1045 = vpack.c.b16 %v1000, %v985
      %v1046 = vpack.c.b16 %v1001, %v986
      %1047 = vrot.lane.b32.xlu0 %v1002, 85
      %v1048 = vpop.permute.xlu0 %1047
      %1049 = vrot.lane.b32.xlu0 %v1003, 85
      %v1050 = vpop.permute.xlu0 %1049
      %1051 = vrot.lane.b32.xlu0 %v1004, 85
      %v1052 = vpop.permute.xlu0 %1051
      %1053 = vrot.lane.b32.xlu0 %v1005, 85
      %v1054 = vpop.permute.xlu0 %1053
      %1055 = vrot.lane.b32.xlu0 %v1006, 85
      %v1056 = vpop.permute.xlu0 %1055
      %1057 = vrot.lane.b32.xlu0 %v1007, 85
      %v1058 = vpop.permute.xlu0 %1057
      %1059 = vrot.lane.b32.xlu0 %v1008, 85
      %v1060 = vpop.permute.xlu0 %1059
      %1061 = vrot.lane.b32.xlu0 %v1009, 85
      %v1062 = vpop.permute.xlu0 %1061
      %1063 = vrot.lane.b32.xlu0 %v1010, 85
      %v1064 = vpop.permute.xlu0 %1063
      %1065 = vrot.lane.b32.xlu0 %v1011, 85
      %v1066 = vpop.permute.xlu0 %1065
      %1067 = vrot.lane.b32.xlu0 %v1012, 85
      %v1068 = vpop.permute.xlu0 %1067
      %1069 = vrot.lane.b32.xlu0 %v1013, 85
      %v1070 = vpop.permute.xlu0 %1069
      %1071 = vrot.lane.b32.xlu0 %v1014, 85
      %v1072 = vpop.permute.xlu0 %1071
      %1073 = vrot.lane.b32.xlu0 %v1015, 85
      %v1074 = vpop.permute.xlu0 %1073
      %1075 = vrot.lane.b32.xlu0 %v1016, 85
      %v1076 = vpop.permute.xlu0 %1075
      %1077 = vrot.lane.b32.xlu0 %v1017, 85
      %v1078 = vpop.permute.xlu0 %1077
      %1079 = vrot.lane.b32.xlu0 %v1018, 85
      %v1080 = vpop.permute.xlu0 %1079
      %1081 = vrot.lane.b32.xlu0 %v1019, 85
      %v1082 = vpop.permute.xlu0 %1081
      %1083 = vrot.lane.b32.xlu0 %v1020, 85
      %v1084 = vpop.permute.xlu0 %1083
      %1085 = vrot.lane.b32.xlu0 %v1021, 85
      %v1086 = vpop.permute.xlu0 %1085
      %1087 = vrot.lane.b32.xlu0 %v1022, 85
      %v1088 = vpop.permute.xlu0 %1087
      %1089 = vrot.lane.b32.xlu0 %v1023, 85
      %v1090 = vpop.permute.xlu0 %1089
      %1091 = vrot.lane.b32.xlu0 %v1024, 85
      %v1092 = vpop.permute.xlu0 %1091
      %1093 = vrot.lane.b32.xlu0 %v1025, 85
      %v1094 = vpop.permute.xlu0 %1093
      %1095 = vrot.lane.b32.xlu0 %v1026, 85
      %v1096 = vpop.permute.xlu0 %1095
      %1097 = vrot.lane.b32.xlu0 %v1027, 85
      %v1098 = vpop.permute.xlu0 %1097
      %1099 = vrot.lane.b32.xlu0 %v1028, 85
      %v1100 = vpop.permute.xlu0 %1099
      %1101 = vrot.lane.b32.xlu0 %v1029, 85
      %v1102 = vpop.permute.xlu0 %1101
      %1103 = vrot.lane.b32.xlu0 %v1030, 85
      %v1104 = vpop.permute.xlu0 %1103
      %1105 = vrot.lane.b32.xlu0 %v1031, 85
      %v1106 = vpop.permute.xlu0 %1105
      %1107 = vrot.lane.b32.xlu0 %v1032, 85
      %v1108 = vpop.permute.xlu0 %1107
      %1109 = vrot.lane.b32.xlu0 %v1033, 85
      %v1110 = vpop.permute.xlu0 %1109
      %1111 = vrot.lane.b32.xlu0 %v1034, 85
      %v1112 = vpop.permute.xlu0 %1111
      %1113 = vrot.lane.b32.xlu0 %v1035, 85
      %v1114 = vpop.permute.xlu0 %1113
      %1115 = vrot.lane.b32.xlu0 %v1036, 85
      %v1116 = vpop.permute.xlu0 %1115
      %1117 = vrot.lane.b32.xlu0 %v1037, 85
      %v1118 = vpop.permute.xlu0 %1117
      %1119 = vrot.lane.b32.xlu0 %v1038, 85
      %v1120 = vpop.permute.xlu0 %1119
      %1121 = vrot.lane.b32.xlu0 %v1039, 85
      %v1122 = vpop.permute.xlu0 %1121
      %1123 = vrot.lane.b32.xlu0 %v1040, 85
      %v1124 = vpop.permute.xlu0 %1123
      %1125 = vrot.lane.b32.xlu0 %v1041, 85
      %v1126 = vpop.permute.xlu0 %1125
      %1127 = vrot.lane.b32.xlu0 %v1042, 85
      %v1128 = vpop.permute.xlu0 %1127
      %1129 = vrot.lane.b32.xlu0 %v1043, 85
      %v1130 = vpop.permute.xlu0 %1129
      %1131 = vrot.lane.b32.xlu0 %v1044, 85
      %v1132 = vpop.permute.xlu0 %1131
      %1133 = vrot.lane.b32.xlu0 %v1045, 85
      %v1134 = vpop.permute.xlu0 %1133
      %1135 = vrot.lane.b32.xlu0 %v1046, 85
      %v1136 = vpop.permute.xlu0 %1135
      %vm1137 = vcmask 695296
      %v1138 = vsel %vm1137, %v1048, %v1050
      %v1139 = vsel %vm1137, %v1050, %v1052
      %v1140 = vsel %vm1137, %v1052, %v1054
      %v1141 = vsel %vm1137, %v1054, %v1056
      %v1142 = vsel %vm1137, %v1056, %v1058
      %v1143 = vsel %vm1137, %v1058, %v1060
      %v1144 = vsel %vm1137, %v1060, %v1062
      %v1145 = vsel %vm1137, %v1062, %v1064
      %v1146 = vsel %vm1137, %v1064, %v1066
      %v1147 = vsel %vm1137, %v1066, %v1068
      %v1148 = vsel %vm1137, %v1068, %v1070
      %v1149 = vsel %vm1137, %v1070, %v1072
      %v1150 = vsel %vm1137, %v1072, %v1074
      %v1151 = vsel %vm1137, %v1074, %v1076
      %v1152 = vsel %vm1137, %v1078, %v1080
      %v1153 = vsel %vm1137, %v1080, %v1082
      %v1154 = vsel %vm1137, %v1082, %v1084
      %v1155 = vsel %vm1137, %v1084, %v1086
      %v1156 = vsel %vm1137, %v1086, %v1088
      %v1157 = vsel %vm1137, %v1088, %v1090
      %v1158 = vsel %vm1137, %v1090, %v1092
      %v1159 = vsel %vm1137, %v1092, %v1094
      %v1160 = vsel %vm1137, %v1094, %v1096
      %v1161 = vsel %vm1137, %v1096, %v1098
      %v1162 = vsel %vm1137, %v1098, %v1100
      %v1163 = vsel %vm1137, %v1100, %v1102
      %v1164 = vsel %vm1137, %v1102, %v1104
      %v1165 = vsel %vm1137, %v1104, %v1106
      %v1166 = vsel %vm1137, %v1108, %v1110
      %v1167 = vsel %vm1137, %v1110, %v1112
      %v1168 = vsel %vm1137, %v1112, %v1114
      %v1169 = vsel %vm1137, %v1114, %v1116
      %v1170 = vsel %vm1137, %v1116, %v1118
      %v1171 = vsel %vm1137, %v1118, %v1120
      %v1172 = vsel %vm1137, %v1120, %v1122
      %v1173 = vsel %vm1137, %v1122, %v1124
      %v1174 = vsel %vm1137, %v1124, %v1126
      %v1175 = vsel %vm1137, %v1126, %v1128
      %v1176 = vsel %vm1137, %v1128, %v1130
      %v1177 = vsel %vm1137, %v1130, %v1132
      %v1178 = vsel %vm1137, %v1132, %v1134
      %v1179 = vsel %vm1137, %v1134, %v1136
      %1225 = vst [vmem:[#allocation2 + $0x2d0] sm:$0xff] %v1138
      %1226 = vst [vmem:[#allocation2 + $0x2d8] sm:$0xff] %v1139
      %1227 = vst [vmem:[#allocation2 + $0x2e0] sm:$0xff] %v1140
      %1228 = vst [vmem:[#allocation2 + $0x2e8] sm:$0xff] %v1141
      %1229 = vst [vmem:[#allocation2 + $0x2f0] sm:$0xff] %v1142
      %1230 = vst [vmem:[#allocation2 + $0x2f8] sm:$0xff] %v1143
      %1231 = vst [vmem:[#allocation2 + $0x300] sm:$0xff] %v1144
      %1232 = vst [vmem:[#allocation2 + $0x308] sm:$0xff] %v1145
      %1233 = vst [vmem:[#allocation2 + $0x310] sm:$0xff] %v1146
      %1234 = vst [vmem:[#allocation2 + $0x318] sm:$0xff] %v1147
      %1235 = vst [vmem:[#allocation2 + $0x320] sm:$0xff] %v1148
      %1236 = vst [vmem:[#allocation2 + $0x328] sm:$0xff] %v1149
      %1237 = vst [vmem:[#allocation2 + $0x330] sm:$0xff] %v1150
      %1238 = vst [vmem:[#allocation2 + $0x338] sm:$0xff] %v1151
      %1239 = vst.msk [vmem:[#allocation2 + $0x340] sm:$0xff] %vm462, %v1076
      %1240 = vst [vmem:[#allocation2 + $0x348] sm:$0xff] %v1152
      %1241 = vst [vmem:[#allocation2 + $0x350] sm:$0xff] %v1153
      %1242 = vst [vmem:[#allocation2 + $0x358] sm:$0xff] %v1154
      %1243 = vst [vmem:[#allocation2 + $0x360] sm:$0xff] %v1155
      %1244 = vst [vmem:[#allocation2 + $0x368] sm:$0xff] %v1156
      %1245 = vst [vmem:[#allocation2 + $0x370] sm:$0xff] %v1157
      %1246 = vst [vmem:[#allocation2 + $0x378] sm:$0xff] %v1158
      %1247 = vst [vmem:[#allocation2 + $0x380] sm:$0xff] %v1159
      %1248 = vst [vmem:[#allocation2 + $0x388] sm:$0xff] %v1160
      %1249 = vst [vmem:[#allocation2 + $0x390] sm:$0xff] %v1161
      %1250 = vst [vmem:[#allocation2 + $0x398] sm:$0xff] %v1162
      %1251 = vst [vmem:[#allocation2 + $0x3a0] sm:$0xff] %v1163
      %1252 = vst [vmem:[#allocation2 + $0x3a8] sm:$0xff] %v1164
      %1253 = vst [vmem:[#allocation2 + $0x3b0] sm:$0xff] %v1165
      %1254 = vst.msk [vmem:[#allocation2 + $0x3b8] sm:$0xff] %vm462, %v1106
      %1255 = vst [vmem:[#allocation2 + $0x3c0] sm:$0xff] %v1166
      %1256 = vst [vmem:[#allocation2 + $0x3c8] sm:$0xff] %v1167
      %1257 = vst [vmem:[#allocation2 + $0x3d0] sm:$0xff] %v1168
      %1258 = vst [vmem:[#allocation2 + $0x3d8] sm:$0xff] %v1169
      %1259 = vst [vmem:[#allocation2 + $0x3e0] sm:$0xff] %v1170
      %1260 = vst [vmem:[#allocation2 + $0x3e8] sm:$0xff] %v1171
      %1261 = vst [vmem:[#allocation2 + $0x3f0] sm:$0xff] %v1172
      %1262 = vst [vmem:[#allocation2 + $0x3f8] sm:$0xff] %v1173
      %1263 = vst [vmem:[#allocation2 + $0x400] sm:$0xff] %v1174
      %1264 = vst [vmem:[#allocation2 + $0x408] sm:$0xff] %v1175
      %1265 = vst [vmem:[#allocation2 + $0x410] sm:$0xff] %v1176
      %1266 = vst [vmem:[#allocation2 + $0x418] sm:$0xff] %v1177
      %1267 = vst [vmem:[#allocation2 + $0x420] sm:$0xff] %v1178
      %1268 = vst [vmem:[#allocation2 + $0x428] sm:$0xff] %v1179
      %1269 = vst.msk [vmem:[#allocation2 + $0x430] sm:$0xff] %vm462, %v1136
      %v1270 = vld [vmem:[%s1] sm:$0xff]
      %v1271 = vld [vmem:[%s1 + $0x8] sm:$0xff]
      %v1272 = vld [vmem:[#allocation2] sm:$0xff]
      %v1273 = vld [vmem:[#allocation2 + $0x8] sm:$0xff]
      %v1274 = vld [vmem:[#allocation2 + $0x10] sm:$0xff]
      %v1275 = vld [vmem:[#allocation2 + $0x18] sm:$0xff]
      %v1276 = vld [vmem:[#allocation2 + $0x20] sm:$0xff]
      %v1277 = vld [vmem:[#allocation2 + $0x28] sm:$0xff]
      %v1278 = vld [vmem:[#allocation2 + $0x30] sm:$0xff]
      %v1279 = vld [vmem:[#allocation2 + $0x38] sm:$0xff]
      %v1280 = vld [vmem:[#allocation2 + $0x40] sm:$0xff]
      %v1281 = vld [vmem:[#allocation2 + $0x48] sm:$0xff]
      %v1282 = vld [vmem:[#allocation2 + $0x50] sm:$0xff]
      %v1283 = vld [vmem:[#allocation2 + $0x58] sm:$0xff]
      %v1284 = vld [vmem:[#allocation2 + $0x60] sm:$0xff]
      %v1285 = vld [vmem:[#allocation2 + $0x68] sm:$0xff]
      %v1286 = vld [vmem:[#allocation2 + $0x70] sm:$0xff]
      %v1287 = vld [vmem:[#allocation2 + $0x78] sm:$0xff]
      %v1288 = vld [vmem:[#allocation2 + $0x80] sm:$0xff]
      %v1289 = vld [vmem:[#allocation2 + $0x88] sm:$0xff]
      %v1290 = vld [vmem:[#allocation2 + $0x90] sm:$0xff]
      %v1291 = vld [vmem:[#allocation2 + $0x98] sm:$0xff]
      %v1292 = vld [vmem:[#allocation2 + $0xa0] sm:$0xff]
      %v1293 = vld [vmem:[#allocation2 + $0xa8] sm:$0xff]
      %v1294 = vld [vmem:[#allocation2 + $0xb0] sm:$0xff]
      %v1295 = vld [vmem:[#allocation2 + $0xb8] sm:$0xff]
      %v1296 = vld [vmem:[#allocation2 + $0xc0] sm:$0xff]
      %v1297 = vld [vmem:[#allocation2 + $0xc8] sm:$0xff]
      %v1298 = vld [vmem:[#allocation2 + $0xd0] sm:$0xff]
      %v1299 = vld [vmem:[#allocation2 + $0xd8] sm:$0xff]
      %v1300 = vld [vmem:[#allocation2 + $0xe0] sm:$0xff]
      %v1301 = vld [vmem:[#allocation2 + $0xe8] sm:$0xff]
      %v1302 = vld [vmem:[#allocation2 + $0xf0] sm:$0xff]
      %v1303 = vld [vmem:[#allocation2 + $0xf8] sm:$0xff]
      %v1304 = vld [vmem:[#allocation2 + $0x100] sm:$0xff]
      %v1305 = vld [vmem:[#allocation2 + $0x108] sm:$0xff]
      %v1306 = vld [vmem:[#allocation2 + $0x110] sm:$0xff]
      %v1307 = vld [vmem:[#allocation2 + $0x118] sm:$0xff]
      %v1308 = vld [vmem:[#allocation2 + $0x120] sm:$0xff]
      %v1309 = vld [vmem:[#allocation2 + $0x128] sm:$0xff]
      %v1310 = vld [vmem:[#allocation2 + $0x130] sm:$0xff]
      %v1311 = vld [vmem:[#allocation2 + $0x138] sm:$0xff]
      %v1312 = vld [vmem:[#allocation2 + $0x140] sm:$0xff]
      %v1313 = vld [vmem:[#allocation2 + $0x148] sm:$0xff]
      %v1314 = vld [vmem:[#allocation2 + $0x150] sm:$0xff]
      %v1315 = vld [vmem:[#allocation2 + $0x158] sm:$0xff]
      %v1316 = vld [vmem:[#allocation2 + $0x160] sm:$0xff]
      %v1317 = vld [vmem:[#allocation2 + $0x168] sm:$0xff]
      %v1318 = vld [vmem:[#allocation2 + $0x170] sm:$0xff]
      %v1319 = vld [vmem:[#allocation2 + $0x178] sm:$0xff]
      %v1320 = vld [vmem:[#allocation2 + $0x180] sm:$0xff]
      %v1321 = vld [vmem:[#allocation2 + $0x188] sm:$0xff]
      %v1322 = vld [vmem:[#allocation2 + $0x190] sm:$0xff]
      %v1323 = vld [vmem:[#allocation2 + $0x198] sm:$0xff]
      %v1324 = vld [vmem:[#allocation2 + $0x1a0] sm:$0xff]
      %v1325 = vld [vmem:[#allocation2 + $0x1a8] sm:$0xff]
      %v1326 = vld [vmem:[#allocation2 + $0x1b0] sm:$0xff]
      %v1327 = vld [vmem:[#allocation2 + $0x1b8] sm:$0xff]
      %v1328 = vld [vmem:[#allocation2 + $0x1c0] sm:$0xff]
      %v1329 = vld [vmem:[#allocation2 + $0x1c8] sm:$0xff]
      %v1330 = vld [vmem:[#allocation2 + $0x1d0] sm:$0xff]
      %v1331 = vld [vmem:[#allocation2 + $0x1d8] sm:$0xff]
      %v1332 = vld [vmem:[#allocation2 + $0x1e0] sm:$0xff]
      %v1333 = vld [vmem:[#allocation2 + $0x1e8] sm:$0xff]
      %v1334 = vld [vmem:[#allocation2 + $0x1f0] sm:$0xff]
      %v1335 = vld [vmem:[#allocation2 + $0x1f8] sm:$0xff]
      %v1336 = vld [vmem:[#allocation2 + $0x200] sm:$0xff]
      %v1337 = vld [vmem:[#allocation2 + $0x208] sm:$0xff]
      %v1338 = vld [vmem:[#allocation2 + $0x210] sm:$0xff]
      %v1339 = vld [vmem:[#allocation2 + $0x218] sm:$0xff]
      %v1340 = vld [vmem:[#allocation2 + $0x220] sm:$0xff]
      %v1341 = vld [vmem:[#allocation2 + $0x228] sm:$0xff]
      %v1342 = vld [vmem:[#allocation2 + $0x230] sm:$0xff]
      %v1343 = vld [vmem:[#allocation2 + $0x238] sm:$0xff]
      %v1344 = vld [vmem:[#allocation2 + $0x240] sm:$0xff]
      %v1345 = vld [vmem:[#allocation2 + $0x248] sm:$0xff]
      %v1346 = vld [vmem:[#allocation2 + $0x250] sm:$0xff]
      %v1347 = vld [vmem:[#allocation2 + $0x258] sm:$0xff]
      %v1348 = vld [vmem:[#allocation2 + $0x260] sm:$0xff]
      %v1349 = vld [vmem:[#allocation2 + $0x268] sm:$0xff]
      %v1350 = vld [vmem:[#allocation2 + $0x270] sm:$0xff]
      %v1351 = vld [vmem:[#allocation2 + $0x278] sm:$0xff]
      %v1352 = vld [vmem:[#allocation2 + $0x280] sm:$0xff]
      %v1353 = vld [vmem:[#allocation2 + $0x288] sm:$0xff]
      %v1354 = vld [vmem:[#allocation2 + $0x290] sm:$0xff]
      %v1355 = vld [vmem:[#allocation2 + $0x298] sm:$0xff]
      %v1356 = vld [vmem:[#allocation2 + $0x2a0] sm:$0xff]
      %v1357 = vld [vmem:[#allocation2 + $0x2a8] sm:$0xff]
      %v1358 = vld [vmem:[#allocation2 + $0x2b0] sm:$0xff]
      %v1359 = vld [vmem:[#allocation2 + $0x2b8] sm:$0xff]
      %v1360 = vld [vmem:[#allocation2 + $0x2c0] sm:$0xff]
      %v1361 = vld [vmem:[#allocation2 + $0x2c8] sm:$0xff]
      %v1362 = vld [vmem:[#allocation2 + $0x2d0] sm:$0xff]
      %v1363 = vld [vmem:[#allocation2 + $0x2d8] sm:$0xff]
      %v1364 = vld [vmem:[#allocation2 + $0x2e0] sm:$0xff]
      %v1365 = vld [vmem:[#allocation2 + $0x2e8] sm:$0xff]
      %v1366 = vld [vmem:[#allocation2 + $0x2f0] sm:$0xff]
      %v1367 = vld [vmem:[#allocation2 + $0x2f8] sm:$0xff]
      %v1368 = vld [vmem:[#allocation2 + $0x300] sm:$0xff]
      %v1369 = vld [vmem:[#allocation2 + $0x308] sm:$0xff]
      %v1370 = vld [vmem:[#allocation2 + $0x310] sm:$0xff]
      %v1371 = vld [vmem:[#allocation2 + $0x318] sm:$0xff]
      %v1372 = vld [vmem:[#allocation2 + $0x320] sm:$0xff]
      %v1373 = vld [vmem:[#allocation2 + $0x328] sm:$0xff]
      %v1374 = vld [vmem:[#allocation2 + $0x330] sm:$0xff]
      %v1375 = vld [vmem:[#allocation2 + $0x338] sm:$0xff]
      %v1376 = vld [vmem:[#allocation2 + $0x340] sm:$0xff]
      %v1377 = vld [vmem:[#allocation2 + $0x348] sm:$0xff]
      %v1378 = vld [vmem:[#allocation2 + $0x350] sm:$0xff]
      %v1379 = vld [vmem:[#allocation2 + $0x358] sm:$0xff]
      %v1380 = vld [vmem:[#allocation2 + $0x360] sm:$0xff]
      %v1381 = vld [vmem:[#allocation2 + $0x368] sm:$0xff]
      %v1382 = vld [vmem:[#allocation2 + $0x370] sm:$0xff]
      %v1383 = vld [vmem:[#allocation2 + $0x378] sm:$0xff]
      %v1384 = vld [vmem:[#allocation2 + $0x380] sm:$0xff]
      %v1385 = vld [vmem:[#allocation2 + $0x388] sm:$0xff]
      %v1386 = vld [vmem:[#allocation2 + $0x390] sm:$0xff]
      %v1387 = vld [vmem:[#allocation2 + $0x398] sm:$0xff]
      %v1388 = vld [vmem:[#allocation2 + $0x3a0] sm:$0xff]
      %v1389 = vld [vmem:[#allocation2 + $0x3a8] sm:$0xff]
      %v1390 = vld [vmem:[#allocation2 + $0x3b0] sm:$0xff]
      %v1391 = vld [vmem:[#allocation2 + $0x3b8] sm:$0xff]
      %v1392 = vld [vmem:[#allocation2 + $0x3c0] sm:$0xff]
      %v1393 = vld [vmem:[#allocation2 + $0x3c8] sm:$0xff]
      %v1394 = vld [vmem:[#allocation2 + $0x3d0] sm:$0xff]
      %v1395 = vld [vmem:[#allocation2 + $0x3d8] sm:$0xff]
      %v1396 = vld [vmem:[#allocation2 + $0x3e0] sm:$0xff]
      %v1397 = vld [vmem:[#allocation2 + $0x3e8] sm:$0xff]
      %v1398 = vld [vmem:[#allocation2 + $0x3f0] sm:$0xff]
      %v1399 = vld [vmem:[#allocation2 + $0x3f8] sm:$0xff]
      %v1400 = vld [vmem:[#allocation2 + $0x400] sm:$0xff]
      %v1401 = vld [vmem:[#allocation2 + $0x408] sm:$0xff]
      %v1402 = vld [vmem:[#allocation2 + $0x410] sm:$0xff]
      %v1403 = vld [vmem:[#allocation2 + $0x418] sm:$0xff]
      %v1404 = vld [vmem:[#allocation2 + $0x420] sm:$0xff]
      %v1405 = vld [vmem:[#allocation2 + $0x428] sm:$0xff]
      %v1406 = vld [vmem:[#allocation2 + $0x430] sm:$0xff]
      %v1407 = vld [vmem:[%s2] sm:$0xff]
      %v1408 = vld [vmem:[%s2 + $0x8] sm:$0xff]
      %1410 = vset.pattern.permute.xlu0 0
      %1411 = vperm.xlu0 %1410, %v1407
      %v1412 = vpop.permute.xlu0 %1411
      %1415 = vset.pattern.permute.xlu0 0
      %1416 = vperm.xlu0 %1415, %v1408
      %v1417 = vpop.permute.xlu0 %1416
      %v1421 = vunpack.c.l.b16 %v1270
      %v1422 = vunpack.c.h.b16 %v1270
      %v1423 = vunpack.c.l.b16 %v1271
      %v1424 = vunpack.c.h.b16 %v1271
      %v1425 = vpack.c.b16 %v1423, %v1421
      %v1426 = vpack.c.b16 %v1424, %v1422
      %vm1428 = vcmask 130048
      %v1430 = vsel %vm1428, %v1426, 0
      %1432 = vmatprep.subr.bf16.mxu0 %v1273
      %1433 = vmatpush1.bf16.msra.mxu0 %v1272
      %1434 = vmatprep.subr.bf16.mxu0 %v1288
      %1435 = vmatpush1.bf16.msra.mxu0 %v1287
      %1436 = vmatprep.subr.bf16.mxu0 %v1303
      %1437 = vmatpush1.bf16.msra.mxu0 %v1302
      %1438 = vmatprep.subr.bf16.mxu0 %v1318
      %1439 = vmatpush1.bf16.msra.mxu0 %v1317
      %1440 = vmatprep.subr.bf16.mxu0 %v1333
      %1441 = vmatpush1.bf16.msra.mxu0 %v1332
      %1442 = vmatprep.subr.bf16.mxu0 %v1348
      %1443 = vmatpush1.bf16.msra.mxu0 %v1347
      %1444 = vmatprep.subr.bf16.mxu0 %v1363
      %1445 = vmatpush1.bf16.msra.mxu0 %v1362
      %1446 = vmatprep.subr.bf16.mxu0 %v1378
      %1447 = vmatpush1.bf16.msra.mxu0 %v1377
      %1448 = vmatprep.subr.bf16.mxu0 %v1393
      %1449 = vmatpush1.bf16.msra.mxu0 %v1392
      %1450 = vmatprep.subr.bf16.mxu0 0
      %1451 = vmatpush1.bf16.msra.mxu0 0
      %1452 = vmatprep.subr.bf16.mxu0 0
      %1453 = vmatpush1.bf16.msra.mxu0 0
      %1454 = vmatprep.subr.bf16.mxu0 0
      %1455 = vmatpush1.bf16.msra.mxu0 0
      %1456 = vmatprep.subr.bf16.mxu0 0
      %1457 = vmatpush1.bf16.msra.mxu0 0
      %1458 = vmatprep.subr.bf16.mxu0 0
      %1459 = vmatpush1.bf16.msra.mxu0 0
      %1460 = vmatprep.subr.bf16.mxu0 0
      %1461 = vmatpush1.bf16.msra.mxu0 0
      %1462 = vmatprep.subr.bf16.mxu0 0
      %1463 = vmatpush1.bf16.msra.mxu0 0
      %1464 = vmatprep.mubr.bf16.mxu0 %v1430
      %1465 = vmatmul.mubr.bf16.gmra.mrb[0].mxu0 %v1425
      %v1466 = vpop.f32.mrb[0].mxu0
      %v1467 = vadd.f32 %v1412, %v1466
      %v1468 = vpop.f32.mrb[0].mxu0
      %v1469 = vadd.f32 %v1412, %v1468
      %v1470 = vpop.f32.mrb[0].mxu0
      %v1471 = vadd.f32 %v1417, %v1470
      %v1472 = vpop.f32.mrb[0].mxu0
      %v1473 = vadd.f32 %v1417, %v1472
      %1474 = vdwg.mxu0
      %1475 = vmatprep.subr.bf16.mxu0 %v1275
      %1476 = vmatpush1.bf16.msra.mxu0 %v1274
      %1477 = vmatprep.subr.bf16.mxu0 %v1290
      %1478 = vmatpush1.bf16.msra.mxu0 %v1289
      %1479 = vmatprep.subr.bf16.mxu0 %v1305
      %1480 = vmatpush1.bf16.msra.mxu0 %v1304
      %1481 = vmatprep.subr.bf16.mxu0 %v1320
      %1482 = vmatpush1.bf16.msra.mxu0 %v1319
      %1483 = vmatprep.subr.bf16.mxu0 %v1335
      %1484 = vmatpush1.bf16.msra.mxu0 %v1334
      %1485 = vmatprep.subr.bf16.mxu0 %v1350
      %1486 = vmatpush1.bf16.msra.mxu0 %v1349
      %1487 = vmatprep.subr.bf16.mxu0 %v1365
      %1488 = vmatpush1.bf16.msra.mxu0 %v1364
      %1489 = vmatprep.subr.bf16.mxu0 %v1380
      %1490 = vmatpush1.bf16.msra.mxu0 %v1379
      %1491 = vmatprep.subr.bf16.mxu0 %v1395
      %1492 = vmatpush1.bf16.msra.mxu0 %v1394
      %1493 = vmatprep.subr.bf16.mxu0 0
      %1494 = vmatpush1.bf16.msra.mxu0 0
      %1495 = vmatprep.subr.bf16.mxu0 0
      %1496 = vmatpush1.bf16.msra.mxu0 0
      %1497 = vmatprep.subr.bf16.mxu0 0
      %1498 = vmatpush1.bf16.msra.mxu0 0
      %1499 = vmatprep.subr.bf16.mxu0 0
      %1500 = vmatpush1.bf16.msra.mxu0 0
      %1501 = vmatprep.subr.bf16.mxu0 0
      %1502 = vmatpush1.bf16.msra.mxu0 0
      %1503 = vmatprep.subr.bf16.mxu0 0
      %1504 = vmatpush1.bf16.msra.mxu0 0
      %1505 = vmatprep.subr.bf16.mxu0 0
      %1506 = vmatpush1.bf16.msra.mxu0 0
      %1507 = vmatprep.mubr.bf16.mxu0 %v1430
      %1508 = vmatmul.mubr.bf16.gmra.mrb[0].mxu0 %v1425
      %v1509 = vpop.f32.mrb[0].mxu0
      %v1510 = vadd.f32 %v1412, %v1509
      %v1511 = vpop.f32.mrb[0].mxu0
      %v1512 = vadd.f32 %v1412, %v1511
      %v1513 = vpop.f32.mrb[0].mxu0
      %v1514 = vadd.f32 %v1417, %v1513
      %v1515 = vpop.f32.mrb[0].mxu0
      %v1516 = vadd.f32 %v1417, %v1515
      %1517 = vdwg.mxu0
      %1518 = vmatprep.subr.bf16.mxu0 %v1277
      %1519 = vmatpush1.bf16.msra.mxu0 %v1276
      %1520 = vmatprep.subr.bf16.mxu0 %v1292
      %1521 = vmatpush1.bf16.msra.mxu0 %v1291
      %1522 = vmatprep.subr.bf16.mxu0 %v1307
      %1523 = vmatpush1.bf16.msra.mxu0 %v1306
      %1524 = vmatprep.subr.bf16.mxu0 %v1322
      %1525 = vmatpush1.bf16.msra.mxu0 %v1321
      %1526 = vmatprep.subr.bf16.mxu0 %v1337
      %1527 = vmatpush1.bf16.msra.mxu0 %v1336
      %1528 = vmatprep.subr.bf16.mxu0 %v1352
      %1529 = vmatpush1.bf16.msra.mxu0 %v1351
      %1530 = vmatprep.subr.bf16.mxu0 %v1367
      %1531 = vmatpush1.bf16.msra.mxu0 %v1366
      %1532 = vmatprep.subr.bf16.mxu0 %v1382
      %1533 = vmatpush1.bf16.msra.mxu0 %v1381
      %1534 = vmatprep.subr.bf16.mxu0 %v1397
      %1535 = vmatpush1.bf16.msra.mxu0 %v1396
      %1536 = vmatprep.subr.bf16.mxu0 0
      %1537 = vmatpush1.bf16.msra.mxu0 0
      %1538 = vmatprep.subr.bf16.mxu0 0
      %1539 = vmatpush1.bf16.msra.mxu0 0
      %1540 = vmatprep.subr.bf16.mxu0 0
      %1541 = vmatpush1.bf16.msra.mxu0 0
      %1542 = vmatprep.subr.bf16.mxu0 0
      %1543 = vmatpush1.bf16.msra.mxu0 0
      %1544 = vmatprep.subr.bf16.mxu0 0
      %1545 = vmatpush1.bf16.msra.mxu0 0
      %1546 = vmatprep.subr.bf16.mxu0 0
      %1547 = vmatpush1.bf16.msra.mxu0 0
      %1548 = vmatprep.subr.bf16.mxu0 0
      %1549 = vmatpush1.bf16.msra.mxu0 0
      %1550 = vmatprep.mubr.bf16.mxu0 %v1430
      %1551 = vmatmul.mubr.bf16.gmra.mrb[0].mxu0 %v1425
      %v1552 = vpop.f32.mrb[0].mxu0
      %v1553 = vadd.f32 %v1412, %v1552
      %v1554 = vpop.f32.mrb[0].mxu0
      %v1555 = vadd.f32 %v1412, %v1554
      %v1556 = vpop.f32.mrb[0].mxu0
      %v1557 = vadd.f32 %v1417, %v1556
      %v1558 = vpop.f32.mrb[0].mxu0
      %v1559 = vadd.f32 %v1417, %v1558
      %1560 = vdwg.mxu0
      %1561 = vmatprep.subr.bf16.mxu0 %v1279
      %1562 = vmatpush1.bf16.msra.mxu0 %v1278
      %1563 = vmatprep.subr.bf16.mxu0 %v1294
      %1564 = vmatpush1.bf16.msra.mxu0 %v1293
      %1565 = vmatprep.subr.bf16.mxu0 %v1309
      %1566 = vmatpush1.bf16.msra.mxu0 %v1308
      %1567 = vmatprep.subr.bf16.mxu0 %v1324
      %1568 = vmatpush1.bf16.msra.mxu0 %v1323
      %1569 = vmatprep.subr.bf16.mxu0 %v1339
      %1570 = vmatpush1.bf16.msra.mxu0 %v1338
      %1571 = vmatprep.subr.bf16.mxu0 %v1354
      %1572 = vmatpush1.bf16.msra.mxu0 %v1353
      %1573 = vmatprep.subr.bf16.mxu0 %v1369
      %1574 = vmatpush1.bf16.msra.mxu0 %v1368
      %1575 = vmatprep.subr.bf16.mxu0 %v1384
      %1576 = vmatpush1.bf16.msra.mxu0 %v1383
      %1577 = vmatprep.subr.bf16.mxu0 %v1399
      %1578 = vmatpush1.bf16.msra.mxu0 %v1398
      %1579 = vmatprep.subr.bf16.mxu0 0
      %1580 = vmatpush1.bf16.msra.mxu0 0
      %1581 = vmatprep.subr.bf16.mxu0 0
      %1582 = vmatpush1.bf16.msra.mxu0 0
      %1583 = vmatprep.subr.bf16.mxu0 0
      %1584 = vmatpush1.bf16.msra.mxu0 0
      %1585 = vmatprep.subr.bf16.mxu0 0
      %1586 = vmatpush1.bf16.msra.mxu0 0
      %1587 = vmatprep.subr.bf16.mxu0 0
      %1588 = vmatpush1.bf16.msra.mxu0 0
      %1589 = vmatprep.subr.bf16.mxu0 0
      %1590 = vmatpush1.bf16.msra.mxu0 0
      %1591 = vmatprep.subr.bf16.mxu0 0
      %1592 = vmatpush1.bf16.msra.mxu0 0
      %1593 = vmatprep.mubr.bf16.mxu0 %v1430
      %1594 = vmatmul.mubr.bf16.gmra.mrb[0].mxu0 %v1425
      %v1595 = vpop.f32.mrb[0].mxu0
      %v1596 = vadd.f32 %v1412, %v1595
      %v1597 = vpop.f32.mrb[0].mxu0
      %v1598 = vadd.f32 %v1412, %v1597
      %v1599 = vpop.f32.mrb[0].mxu0
      %v1600 = vadd.f32 %v1417, %v1599
      %v1601 = vpop.f32.mrb[0].mxu0
      %v1602 = vadd.f32 %v1417, %v1601
      %1603 = vdwg.mxu0
      %1604 = vmatprep.subr.bf16.mxu0 %v1281
      %1605 = vmatpush1.bf16.msra.mxu0 %v1280
      %1606 = vmatprep.subr.bf16.mxu0 %v1296
      %1607 = vmatpush1.bf16.msra.mxu0 %v1295
      %1608 = vmatprep.subr.bf16.mxu0 %v1311
      %1609 = vmatpush1.bf16.msra.mxu0 %v1310
      %1610 = vmatprep.subr.bf16.mxu0 %v1326
      %1611 = vmatpush1.bf16.msra.mxu0 %v1325
      %1612 = vmatprep.subr.bf16.mxu0 %v1341
      %1613 = vmatpush1.bf16.msra.mxu0 %v1340
      %1614 = vmatprep.subr.bf16.mxu0 %v1356
      %1615 = vmatpush1.bf16.msra.mxu0 %v1355
      %1616 = vmatprep.subr.bf16.mxu0 %v1371
      %1617 = vmatpush1.bf16.msra.mxu0 %v1370
      %1618 = vmatprep.subr.bf16.mxu0 %v1386
      %1619 = vmatpush1.bf16.msra.mxu0 %v1385
      %1620 = vmatprep.subr.bf16.mxu0 %v1401
      %1621 = vmatpush1.bf16.msra.mxu0 %v1400
      %1622 = vmatprep.subr.bf16.mxu0 0
      %1623 = vmatpush1.bf16.msra.mxu0 0
      %1624 = vmatprep.subr.bf16.mxu0 0
      %1625 = vmatpush1.bf16.msra.mxu0 0
      %1626 = vmatprep.subr.bf16.mxu0 0
      %1627 = vmatpush1.bf16.msra.mxu0 0
      %1628 = vmatprep.subr.bf16.mxu0 0
      %1629 = vmatpush1.bf16.msra.mxu0 0
      %1630 = vmatprep.subr.bf16.mxu0 0
      %1631 = vmatpush1.bf16.msra.mxu0 0
      %1632 = vmatprep.subr.bf16.mxu0 0
      %1633 = vmatpush1.bf16.msra.mxu0 0
      %1634 = vmatprep.subr.bf16.mxu0 0
      %1635 = vmatpush1.bf16.msra.mxu0 0
      %1636 = vmatprep.mubr.bf16.mxu0 %v1430
      %1637 = vmatmul.mubr.bf16.gmra.mrb[0].mxu0 %v1425
      %v1638 = vpop.f32.mrb[0].mxu0
      %v1639 = vadd.f32 %v1412, %v1638
      %v1640 = vpop.f32.mrb[0].mxu0
      %v1641 = vadd.f32 %v1412, %v1640
      %v1642 = vpop.f32.mrb[0].mxu0
      %v1643 = vadd.f32 %v1417, %v1642
      %v1644 = vpop.f32.mrb[0].mxu0
      %v1645 = vadd.f32 %v1417, %v1644
      %1646 = vdwg.mxu0
      %1647 = vmatprep.subr.bf16.mxu0 %v1283
      %1648 = vmatpush1.bf16.msra.mxu0 %v1282
      %1649 = vmatprep.subr.bf16.mxu0 %v1298
      %1650 = vmatpush1.bf16.msra.mxu0 %v1297
      %1651 = vmatprep.subr.bf16.mxu0 %v1313
      %1652 = vmatpush1.bf16.msra.mxu0 %v1312
      %1653 = vmatprep.subr.bf16.mxu0 %v1328
      %1654 = vmatpush1.bf16.msra.mxu0 %v1327
      %1655 = vmatprep.subr.bf16.mxu0 %v1343
      %1656 = vmatpush1.bf16.msra.mxu0 %v1342
      %1657 = vmatprep.subr.bf16.mxu0 %v1358
      %1658 = vmatpush1.bf16.msra.mxu0 %v1357
      %1659 = vmatprep.subr.bf16.mxu0 %v1373
      %1660 = vmatpush1.bf16.msra.mxu0 %v1372
      %1661 = vmatprep.subr.bf16.mxu0 %v1388
      %1662 = vmatpush1.bf16.msra.mxu0 %v1387
      %1663 = vmatprep.subr.bf16.mxu0 %v1403
      %1664 = vmatpush1.bf16.msra.mxu0 %v1402
      %1665 = vmatprep.subr.bf16.mxu0 0
      %1666 = vmatpush1.bf16.msra.mxu0 0
      %1667 = vmatprep.subr.bf16.mxu0 0
      %1668 = vmatpush1.bf16.msra.mxu0 0
      %1669 = vmatprep.subr.bf16.mxu0 0
      %1670 = vmatpush1.bf16.msra.mxu0 0
      %1671 = vmatprep.subr.bf16.mxu0 0
      %1672 = vmatpush1.bf16.msra.mxu0 0
      %1673 = vmatprep.subr.bf16.mxu0 0
      %1674 = vmatpush1.bf16.msra.mxu0 0
      %1675 = vmatprep.subr.bf16.mxu0 0
      %1676 = vmatpush1.bf16.msra.mxu0 0
      %1677 = vmatprep.subr.bf16.mxu0 0
      %1678 = vmatpush1.bf16.msra.mxu0 0
      %1679 = vmatprep.mubr.bf16.mxu0 %v1430
      %1680 = vmatmul.mubr.bf16.gmra.mrb[0].mxu0 %v1425
      %v1681 = vpop.f32.mrb[0].mxu0
      %v1682 = vadd.f32 %v1412, %v1681
      %v1683 = vpop.f32.mrb[0].mxu0
      %v1684 = vadd.f32 %v1412, %v1683
      %v1685 = vpop.f32.mrb[0].mxu0
      %v1686 = vadd.f32 %v1417, %v1685
      %v1687 = vpop.f32.mrb[0].mxu0
      %v1688 = vadd.f32 %v1417, %v1687
      %1689 = vdwg.mxu0
      %1690 = vmatprep.subr.bf16.mxu0 %v1285
      %1691 = vmatpush1.bf16.msra.mxu0 %v1284
      %1692 = vmatprep.subr.bf16.mxu0 %v1300
      %1693 = vmatpush1.bf16.msra.mxu0 %v1299
      %1694 = vmatprep.subr.bf16.mxu0 %v1315
      %1695 = vmatpush1.bf16.msra.mxu0 %v1314
      %1696 = vmatprep.subr.bf16.mxu0 %v1330
      %1697 = vmatpush1.bf16.msra.mxu0 %v1329
      %1698 = vmatprep.subr.bf16.mxu0 %v1345
      %1699 = vmatpush1.bf16.msra.mxu0 %v1344
      %1700 = vmatprep.subr.bf16.mxu0 %v1360
      %1701 = vmatpush1.bf16.msra.mxu0 %v1359
      %1702 = vmatprep.subr.bf16.mxu0 %v1375
      %1703 = vmatpush1.bf16.msra.mxu0 %v1374
      %1704 = vmatprep.subr.bf16.mxu0 %v1390
      %1705 = vmatpush1.bf16.msra.mxu0 %v1389
      %1706 = vmatprep.subr.bf16.mxu0 %v1405
      %1707 = vmatpush1.bf16.msra.mxu0 %v1404
      %1708 = vmatprep.subr.bf16.mxu0 0
      %1709 = vmatpush1.bf16.msra.mxu0 0
      %1710 = vmatprep.subr.bf16.mxu0 0
      %1711 = vmatpush1.bf16.msra.mxu0 0
      %1712 = vmatprep.subr.bf16.mxu0 0
      %1713 = vmatpush1.bf16.msra.mxu0 0
      %1714 = vmatprep.subr.bf16.mxu0 0
      %1715 = vmatpush1.bf16.msra.mxu0 0
      %1716 = vmatprep.subr.bf16.mxu0 0
      %1717 = vmatpush1.bf16.msra.mxu0 0
      %1718 = vmatprep.subr.bf16.mxu0 0
      %1719 = vmatpush1.bf16.msra.mxu0 0
      %1720 = vmatprep.subr.bf16.mxu0 0
      %1721 = vmatpush1.bf16.msra.mxu0 0
      %1722 = vmatprep.mubr.bf16.mxu0 %v1430
      %1723 = vmatmul.mubr.bf16.gmra.mrb[0].mxu0 %v1425
      %v1724 = vpop.f32.mrb[0].mxu0
      %v1725 = vadd.f32 %v1412, %v1724
      %v1726 = vpop.f32.mrb[0].mxu0
      %v1727 = vadd.f32 %v1412, %v1726
      %v1728 = vpop.f32.mrb[0].mxu0
      %v1729 = vadd.f32 %v1417, %v1728
      %v1730 = vpop.f32.mrb[0].mxu0
      %v1731 = vadd.f32 %v1417, %v1730
      %1732 = vdwg.mxu0
      %1733 = vmatprep.subr.bf16.mxu0 0
      %1734 = vmatpush1.bf16.msra.mxu0 %v1286
      %1735 = vmatprep.subr.bf16.mxu0 0
      %1736 = vmatpush1.bf16.msra.mxu0 %v1301
      %1737 = vmatprep.subr.bf16.mxu0 0
      %1738 = vmatpush1.bf16.msra.mxu0 %v1316
      %1739 = vmatprep.subr.bf16.mxu0 0
      %1740 = vmatpush1.bf16.msra.mxu0 %v1331
      %1741 = vmatprep.subr.bf16.mxu0 0
      %1742 = vmatpush1.bf16.msra.mxu0 %v1346
      %1743 = vmatprep.subr.bf16.mxu0 0
      %1744 = vmatpush1.bf16.msra.mxu0 %v1361
      %1745 = vmatprep.subr.bf16.mxu0 0
      %1746 = vmatpush1.bf16.msra.mxu0 %v1376
      %1747 = vmatprep.subr.bf16.mxu0 0
      %1748 = vmatpush1.bf16.msra.mxu0 %v1391
      %1749 = vmatprep.subr.bf16.mxu0 0
      %1750 = vmatpush1.bf16.msra.mxu0 %v1406
      %1751 = vmatprep.subr.bf16.mxu0 0
      %1752 = vmatpush1.bf16.msra.mxu0 0
      %1753 = vmatprep.subr.bf16.mxu0 0
      %1754 = vmatpush1.bf16.msra.mxu0 0
      %1755 = vmatprep.subr.bf16.mxu0 0
      %1756 = vmatpush1.bf16.msra.mxu0 0
      %1757 = vmatprep.subr.bf16.mxu0 0
      %1758 = vmatpush1.bf16.msra.mxu0 0
      %1759 = vmatprep.subr.bf16.mxu0 0
      %1760 = vmatpush1.bf16.msra.mxu0 0
      %1761 = vmatprep.subr.bf16.mxu0 0
      %1762 = vmatpush1.bf16.msra.mxu0 0
      %1763 = vmatprep.subr.bf16.mxu0 0
      %1764 = vmatpush1.bf16.msra.mxu0 0
      %1765 = vmatprep.mubr.bf16.mxu0 %v1430
      %1766 = vmatmul.mubr.bf16.gmra.mrb[0].mxu0 %v1425
      %v1767 = vpop.f32.mrb[0].mxu0
      %v1768 = vadd.f32 %v1412, %v1767
      %v1769 = vpop.f32.mrb[0].mxu0
      %v1770 = vpop.f32.mrb[0].mxu0
      %v1771 = vadd.f32 %v1417, %v1770
      %v1772 = vpop.f32.mrb[0].mxu0
      %1773 = vdwg.mxu0
      %vm1774 = vcmp.ge.f32.partialorder %v1467, 0.0
      %vm1775 = vcmp.ge.f32.partialorder %v1469, 0.0
      %vm1776 = vcmp.ge.f32.partialorder %v1510, 0.0
      %vm1777 = vcmp.ge.f32.partialorder %v1512, 0.0
      %vm1778 = vcmp.ge.f32.partialorder %v1553, 0.0
      %vm1779 = vcmp.ge.f32.partialorder %v1555, 0.0
      %vm1780 = vcmp.ge.f32.partialorder %v1596, 0.0
      %vm1781 = vcmp.ge.f32.partialorder %v1598, 0.0
      %vm1782 = vcmp.ge.f32.partialorder %v1639, 0.0
      %vm1783 = vcmp.ge.f32.partialorder %v1641, 0.0
      %vm1784 = vcmp.ge.f32.partialorder %v1682, 0.0
      %vm1785 = vcmp.ge.f32.partialorder %v1684, 0.0
      %vm1786 = vcmp.ge.f32.partialorder %v1725, 0.0
      %vm1787 = vcmp.ge.f32.partialorder %v1727, 0.0
      %vm1788 = vcmp.ge.f32.partialorder %v1768, 0.0
      %vm1789 = vcmp.ge.f32.partialorder %v1471, 0.0
      %vm1790 = vcmp.ge.f32.partialorder %v1473, 0.0
      %vm1791 = vcmp.ge.f32.partialorder %v1514, 0.0
      %vm1792 = vcmp.ge.f32.partialorder %v1516, 0.0
      %vm1793 = vcmp.ge.f32.partialorder %v1557, 0.0
      %vm1794 = vcmp.ge.f32.partialorder %v1559, 0.0
      %vm1795 = vcmp.ge.f32.partialorder %v1600, 0.0
      %vm1796 = vcmp.ge.f32.partialorder %v1602, 0.0
      %vm1797 = vcmp.ge.f32.partialorder %v1643, 0.0
      %vm1798 = vcmp.ge.f32.partialorder %v1645, 0.0
      %vm1799 = vcmp.ge.f32.partialorder %v1686, 0.0
      %vm1800 = vcmp.ge.f32.partialorder %v1688, 0.0
      %vm1801 = vcmp.ge.f32.partialorder %v1729, 0.0
      %vm1802 = vcmp.ge.f32.partialorder %v1731, 0.0
      %vm1803 = vcmp.ge.f32.partialorder %v1771, 0.0
      %v1804 = vmul.f32 %v1467, 0.2
      %v1805 = vmul.f32 %v1469, 0.2
      %v1806 = vmul.f32 %v1510, 0.2
      %v1807 = vmul.f32 %v1512, 0.2
      %v1808 = vmul.f32 %v1553, 0.2
      %v1809 = vmul.f32 %v1555, 0.2
      %v1810 = vmul.f32 %v1596, 0.2
      %v1811 = vmul.f32 %v1598, 0.2
      %v1812 = vmul.f32 %v1639, 0.2
      %v1813 = vmul.f32 %v1641, 0.2
      %v1814 = vmul.f32 %v1682, 0.2
      %v1815 = vmul.f32 %v1684, 0.2
      %v1816 = vmul.f32 %v1725, 0.2
      %v1817 = vmul.f32 %v1727, 0.2
      %v1818 = vmul.f32 %v1768, 0.2
      %v1819 = vmul.f32 %v1471, 0.2
      %v1820 = vmul.f32 %v1473, 0.2
      %v1821 = vmul.f32 %v1514, 0.2
      %v1822 = vmul.f32 %v1516, 0.2
      %v1823 = vmul.f32 %v1557, 0.2
      %v1824 = vmul.f32 %v1559, 0.2
      %v1825 = vmul.f32 %v1600, 0.2
      %v1826 = vmul.f32 %v1602, 0.2
      %v1827 = vmul.f32 %v1643, 0.2
      %v1828 = vmul.f32 %v1645, 0.2
      %v1829 = vmul.f32 %v1686, 0.2
      %v1830 = vmul.f32 %v1688, 0.2
      %v1831 = vmul.f32 %v1729, 0.2
      %v1832 = vmul.f32 %v1731, 0.2
      %v1833 = vmul.f32 %v1771, 0.2
      %v1834 = vsel %vm1774, %v1467, %v1804
      %v1835 = vsel %vm1775, %v1469, %v1805
      %v1836 = vsel %vm1776, %v1510, %v1806
      %v1837 = vsel %vm1777, %v1512, %v1807
      %v1838 = vsel %vm1778, %v1553, %v1808
      %v1839 = vsel %vm1779, %v1555, %v1809
      %v1840 = vsel %vm1780, %v1596, %v1810
      %v1841 = vsel %vm1781, %v1598, %v1811
      %v1842 = vsel %vm1782, %v1639, %v1812
      %v1843 = vsel %vm1783, %v1641, %v1813
      %v1844 = vsel %vm1784, %v1682, %v1814
      %v1845 = vsel %vm1785, %v1684, %v1815
      %v1846 = vsel %vm1786, %v1725, %v1816
      %v1847 = vsel %vm1787, %v1727, %v1817
      %v1848 = vsel %vm1788, %v1768, %v1818
      %v1849 = vsel %vm1789, %v1471, %v1819
      %v1850 = vsel %vm1790, %v1473, %v1820
      %v1851 = vsel %vm1791, %v1514, %v1821
      %v1852 = vsel %vm1792, %v1516, %v1822
      %v1853 = vsel %vm1793, %v1557, %v1823
      %v1854 = vsel %vm1794, %v1559, %v1824
      %v1855 = vsel %vm1795, %v1600, %v1825
      %v1856 = vsel %vm1796, %v1602, %v1826
      %v1857 = vsel %vm1797, %v1643, %v1827
      %v1858 = vsel %vm1798, %v1645, %v1828
      %v1859 = vsel %vm1799, %v1686, %v1829
      %v1860 = vsel %vm1800, %v1688, %v1830
      %v1861 = vsel %vm1801, %v1729, %v1831
      %v1862 = vsel %vm1802, %v1731, %v1832
      %v1863 = vsel %vm1803, %v1771, %v1833
      %v1864 = vpack.c.bf16 %v1849, %v1834
      %v1865 = vpack.c.bf16 %v1850, %v1835
      %v1866 = vpack.c.bf16 %v1851, %v1836
      %v1867 = vpack.c.bf16 %v1852, %v1837
      %v1868 = vpack.c.bf16 %v1853, %v1838
      %v1869 = vpack.c.bf16 %v1854, %v1839
      %v1870 = vpack.c.bf16 %v1855, %v1840
      %v1871 = vpack.c.bf16 %v1856, %v1841
      %v1872 = vpack.c.bf16 %v1857, %v1842
      %v1873 = vpack.c.bf16 %v1858, %v1843
      %v1874 = vpack.c.bf16 %v1859, %v1844
      %v1875 = vpack.c.bf16 %v1860, %v1845
      %v1876 = vpack.c.bf16 %v1861, %v1846
      %v1877 = vpack.c.bf16 %v1862, %v1847
      %v1878 = vpack.c.bf16 %v1863, %v1848
      %v1894 = vunpack.c.l.b16 %v1864
      %v1895 = vunpack.c.l.b16 %v1865
      %v1896 = vunpack.c.l.b16 %v1866
      %v1897 = vunpack.c.l.b16 %v1867
      %v1898 = vunpack.c.l.b16 %v1868
      %v1899 = vunpack.c.l.b16 %v1869
      %v1900 = vunpack.c.l.b16 %v1870
      %v1901 = vunpack.c.l.b16 %v1871
      %v1902 = vunpack.c.l.b16 %v1872
      %v1903 = vunpack.c.l.b16 %v1873
      %v1904 = vunpack.c.l.b16 %v1874
      %v1905 = vunpack.c.l.b16 %v1875
      %v1906 = vunpack.c.l.b16 %v1876
      %v1907 = vunpack.c.l.b16 %v1877
      %v1908 = vunpack.c.l.b16 %v1878
      %v1909 = vunpack.c.h.b16 %v1864
      %v1910 = vunpack.c.h.b16 %v1865
      %v1911 = vunpack.c.h.b16 %v1866
      %v1912 = vunpack.c.h.b16 %v1867
      %v1913 = vunpack.c.h.b16 %v1868
      %v1914 = vunpack.c.h.b16 %v1869
      %v1915 = vunpack.c.h.b16 %v1870
      %v1916 = vunpack.c.h.b16 %v1871
      %v1917 = vunpack.c.h.b16 %v1872
      %v1918 = vunpack.c.h.b16 %v1873
      %v1919 = vunpack.c.h.b16 %v1874
      %v1920 = vunpack.c.h.b16 %v1875
      %v1921 = vunpack.c.h.b16 %v1876
      %v1922 = vunpack.c.h.b16 %v1877
      %v1923 = vunpack.c.h.b16 %v1878
      %v1924 = vpack.c.b16 %v1895, %v1894
      %v1925 = vpack.c.b16 %v1897, %v1896
      %v1926 = vpack.c.b16 %v1899, %v1898
      %v1927 = vpack.c.b16 %v1901, %v1900
      %v1928 = vpack.c.b16 %v1903, %v1902
      %v1929 = vpack.c.b16 %v1905, %v1904
      %v1930 = vpack.c.b16 %v1907, %v1906
      %v1931 = vpack.c.b16 %v1908, %v1908
      %v1932 = vpack.c.b16 %v1910, %v1909
      %v1933 = vpack.c.b16 %v1912, %v1911
      %v1934 = vpack.c.b16 %v1914, %v1913
      %v1935 = vpack.c.b16 %v1916, %v1915
      %v1936 = vpack.c.b16 %v1918, %v1917
      %v1937 = vpack.c.b16 %v1920, %v1919
      %v1938 = vpack.c.b16 %v1922, %v1921
      %v1939 = vpack.c.b16 %v1923, %v1923
      %1956 = vst [vmem:[%s170] sm:$0xff] %v1924
      %1957 = vst [vmem:[%s170 + $0x8] sm:$0xff] %v1925
      %1958 = vst [vmem:[%s170 + $0x10] sm:$0xff] %v1926
      %1959 = vst [vmem:[%s170 + $0x18] sm:$0xff] %v1927
      %1960 = vst [vmem:[%s170 + $0x20] sm:$0xff] %v1928
      %1961 = vst [vmem:[%s170 + $0x28] sm:$0xff] %v1929
      %1962 = vst [vmem:[%s170 + $0x30] sm:$0xff] %v1930
      %vm1963 = vcmask 461824
      %1964 = vst.msk [vmem:[%s170 + $0x38] sm:$0xf] %vm1963, %v1931
      %1965 = vst [vmem:[%s170 + $0x3c] sm:$0xff] %v1932
      %1966 = vst [vmem:[%s170 + $0x44] sm:$0xff] %v1933
      %1967 = vst [vmem:[%s170 + $0x4c] sm:$0xff] %v1934
      %1968 = vst [vmem:[%s170 + $0x54] sm:$0xff] %v1935
      %1969 = vst [vmem:[%s170 + $0x5c] sm:$0xff] %v1936
      %1970 = vst [vmem:[%s170 + $0x64] sm:$0xff] %v1937
      %1971 = vst [vmem:[%s170 + $0x6c] sm:$0xff] %v1938
      %1972 = vst.msk [vmem:[%s170 + $0x74] sm:$0xf] %vm1963, %v1939
      %p1973 = scmp.lt.s32.totalorder %s14, 3
      %s1974 = scalar_select %p1973, %s14, 3
      %s1975 = smul.addr %s1974, 30
      %s1976 = smul.addr %s1975, 4
      %s1977 = scalar_lea.vmem %s3, %s1976
      // Predicated region
      $region33: #{sstn_forward.3} parent=31 // pred_check
        %p1978 = pneg %p100
      $region34: #{sstn_forward.3} parent=31 // pred_check_branch
        %1980 = sbr.rel (%p1978) target = $region36
      $region35: #{sstn_forward.3} parent=31 // pred_region
        _
      $region36: #{sstn_forward.3} parent=31 // pred_fallthru
        _
    $region32: #{sstn_forward.3} parent=5 // pred_fallthru
      _
    %p1981 = scmp.le.s32.totalorder 2, %s9
    // Predicated region
    $region37: #{sstn_forward.3} parent=5 // pred_check
      %p1982 = pneg %p1981
    $region38: #{sstn_forward.3} parent=5 // pred_check_branch
      %1984 = sbr.rel (%p1982) target = $region40
    $region39: #{sstn_forward.3} parent=5 // pred_region
      %s1985 = ssub.s32 %s9, 2
      // Predicated region
      $region41: #{sstn_forward.3} parent=39 // pred_check
        %p1986 = pneg %p106
      $region42: #{sstn_forward.3} parent=39 // pred_check_branch
        %1988 = sbr.rel (%p1986) target = $region44
      $region43: #{sstn_forward.3} parent=39 // pred_region
        %p1989 = scmp.lt.s32.totalorder %s15, 3
        %s1990 = scalar_select %p1989, %s15, 3
        %s1991 = smul.addr %s1990, 30
        %s1992 = smul.addr %s1991, 4
        %s1993 = scalar_lea.vmem %s3, %s1992
      $region44: #{sstn_forward.3} parent=39 // pred_fallthru
        _
    $region40: #{sstn_forward.3} parent=5 // pred_fallthru
      _
  $region6: #{sstn_forward.3} parent=0 // loop_footer
    %s13 = sadd.s32 1, %s9
  $region7: #{sstn_forward.3} parent=0 // loop_footer_branch
    %8 = sbr.rel target = $region3
  $region8: #{sstn_forward.3} parent=0 // loop_exit
    _

</llo_original>
